<compile_context>
chip_gen: v7x
topology: tpu7x:2x2x1
jax: 0.10.0
libtpu: 0.0.40
codegen_flags: <defaults>
</compile_context>

<pallas_src>
import functools
import numpy as np
import jax
import jax.numpy as jnp
from jax.experimental import pallas as pl
from jax.experimental.pallas import tpu as pltpu


# Fixed geometry implied by l1's 2592 = 32*9*9 input features (84x84 Atari frames).
H_IN = W_IN = 84
K1, S1, C1 = 8, 4, 16                      # conv1
K2, S2, C2 = 4, 2, 32                      # conv2
HO1 = WO1 = (H_IN - K1) // S1 + 1          # 20
HO2 = WO2 = (HO1 - K2) // S2 + 1           # 9
F1 = WO1 * C1                              # 320 = conv1 row features, (w, c) order
F2 = WO2 * C2                              # 288 = conv2 row features, (w, c) order
HID = 256


# ---------------------------------------------------------------------------
# One-time weight lowering (host side, done once at init)
# ---------------------------------------------------------------------------
def _lowered_conv_row_matrix(w, w_in, stride):
    """Lower a PyTorch conv weight (Cout, Cin, KH, KW) into per-kh dense matrices.

    M[kh, wi*Cin + ci, wo*Cout + co] = w[co, ci, kh, wi - stride*wo]   (band, else 0)

    so that    out_row[ho] = sum_kh  in_row[ho*stride + kh] @ M[kh]
    where in_row[r] is the NHWC input row r flattened (w, c) and out_row[ho] is the
    conv output row flattened (w, c).  This turns the conv into plain MXU matmuls.
    """
    w = np.asarray(w, np.float32)
    cout, cin, kh, kw = w.shape
    wo_n = (w_in - kw) // stride + 1
    m = np.zeros((kh, w_in, cin, wo_n, cout), np.float32)
    wt = w.transpose(2, 3, 1, 0)                       # (KH, KW, Cin, Cout)
    for wo in range(wo_n):
        for q in range(kw):
            m[:, wo * stride + q, :, wo, :] = wt[:, q, :, :]
    return m.reshape(kh, w_in * cin, wo_n * cout)


def init_params(key, c_in, action_space):
    """Deterministic uniform(-1/sqrt(fan_in), +1/sqrt(fan_in)) init, PyTorch layouts."""
    def u(key, shape, fan_in):
        bound = 1.0 / jnp.sqrt(float(fan_in))
        return jax.random.uniform(key, shape, jnp.float32, -bound, bound)

    ks = jax.random.split(key, 8)
    p = {}
    p["conv1_w"] = u(ks[0], (C1, c_in, K1, K1), c_in * K1 * K1)
    p["conv1_b"] = u(ks[1], (C1,), c_in * K1 * K1)
    p["conv2_w"] = u(ks[2], (C2, C1, K2, K2), C1 * K2 * K2)
    p["conv2_b"] = u(ks[3], (C2,), C1 * K2 * K2)
    # l1 weight stored as (2592, 256) with rows in PyTorch flatten order (c2, h2, w2)
    p["l1_w"] = u(ks[4], (C2 * HO2 * WO2, HID), C2 * HO2 * WO2)
    p["l1_b"] = u(ks[5], (HID,), C2 * HO2 * WO2)
    p["l2_w"] = u(ks[6], (HID, action_space), HID)
    p["l2_b"] = u(ks[7], (action_space,), HID)
    return p


def prepare_params(params, compute_dtype=jnp.bfloat16):
    """One-time conversion of PyTorch-layout params into the fused-kernel layout."""
    c_in = params["conv1_w"].shape[1]
    m1 = _lowered_conv_row_matrix(params["conv1_w"], w_in=W_IN, stride=S1)  # (8, 84*C, 320)
    m2 = _lowered_conv_row_matrix(params["conv2_w"], w_in=WO1, stride=S2)   # (4, 320, 288)
    m1_full = m1.reshape(K1 * W_IN * c_in, F1)                              # (2688, 320)

    # l1 rows: PyTorch flatten order (c2, h2, w2) -> kernel flatten order (h2, w2, c2)
    w1 = np.asarray(params["l1_w"], np.float32)
    w1 = w1.reshape(C2, HO2, WO2, HID).transpose(1, 2, 0, 3).reshape(C2 * HO2 * WO2, HID)

    return {
        "m1": jnp.asarray(m1_full, compute_dtype),                              # (2688, 320)
        "b1": jnp.tile(jnp.asarray(params["conv1_b"], jnp.float32), WO1)[None, :],  # (1, 320)
        "m2": jnp.asarray(m2, compute_dtype),                                   # (4, 320, 288)
        "b2": jnp.tile(jnp.asarray(params["conv2_b"], jnp.float32), WO2)[None, :],  # (1, 288)
        "w1": jnp.asarray(w1, compute_dtype),                                   # (2592, 256)
        "c1": jnp.asarray(params["l1_b"], jnp.float32)[None, :],                # (1, 256)
        "w2": jnp.asarray(params["l2_w"], compute_dtype),                       # (256, A)
        "c2": jnp.asarray(params["l2_b"], jnp.float32)[None, :],                # (1, A)
    }


# ---------------------------------------------------------------------------
# Fused Pallas kernel: TB batch elements per grid step, batch packed into M
# ---------------------------------------------------------------------------
def _make_fused_kernel(tb):
    n_even = (HO1 // 2) * tb            # 10*tb rows in the even-parity half
    n_c2 = HO2 * tb                     # 9*tb conv2 output rows per step

    def kernel(slab_ref, m1_ref, b1_ref, m2_ref, b2_ref,
               w1_ref, c1_ref, w2_ref, c2_ref, o_ref):
        f32 = jnp.float32
        cdt = m1_ref.dtype               # bf16 compute dtype for the MXU inputs

        # ---- conv1 + ReLU: ONE (20*tb, 2688) @ (2688, 320) MXU matmul.
        # slab rows within the step are ordered [even: (j, b)] then [odd: (j, b)],
        # i.e. row j*tb + b holds conv1 output row 2j (resp. 2j+1) of local element b.
        y = jnp.dot(slab_ref[...], m1_ref[...], preferred_element_type=f32) + b1_ref[...]
        yb = jnp.maximum(y, 0.0).astype(cdt)            # (20*tb, 320), single bf16 cast

        # ---- conv2 + ReLU: out[h2, b] = sum_kh conv1_row[2*h2 + kh, b] @ M2[kh].
        # With the even/odd (j, b) layout every LHS window is a contiguous,
        # sublane-aligned slice (tb is a multiple of 8) -> 4 M=9*tb matmuls.
        z = (jnp.dot(yb[0:n_c2], m2_ref[0], preferred_element_type=f32)
             + jnp.dot(yb[n_even:n_even + n_c2], m2_ref[1], preferred_element_type=f32)
             + jnp.dot(yb[tb:tb + n_c2], m2_ref[2], preferred_element_type=f32)
             + jnp.dot(yb[n_even + tb:n_even + tb + n_c2], m2_ref[3],
                       preferred_element_type=f32))
        a2 = jnp.maximum(z + b2_ref[...], 0.0).astype(cdt)   # (9*tb, 288), rows = (h2, b)

        # ---- l1 + ReLU: nine INDEPENDENT (tb, 288) @ (288, 256) partials (one per
        # conv2 output row h2), summed.  No M=1 dots, no serial dot dependency chain,
        # no in-kernel reshape of the (h2, b)-ordered activation.
        parts = [jnp.dot(a2[r * tb:(r + 1) * tb], w1_ref[r * F2:(r + 1) * F2, :],
                         preferred_element_type=f32)
                 for r in range(HO2)]
        acc = parts[0]
        for p in parts[1:]:
            acc = acc + p                                    # cheap VPU adds, (tb, 256)
        h = jnp.maximum(acc + c1_ref[...], 0.0)

        # ---- l2 + softmax (f32, EXACT normalization so rows sum to 1).
        logits = jnp.dot(h.astype(cdt), w2_ref[...], preferred_element_type=f32) + c2_ref[...]
        logits = logits - jnp.max(logits, axis=-1, keepdims=True)
        e = jnp.exp(logits)
        o_ref[...] = (e / jnp.sum(e, axis=-1, keepdims=True)).astype(o_ref.dtype)

    return kernel


@functools.partial(jax.jit, static_argnames=("tb",))
def agent_forward(kparams, state, tb=8):
    """state: (B, C, 84, 84) float32 NCHW (PyTorch layout) -> action probabilities (B, A).

    tb = batch elements per grid step (multiple of 8).  tb=8 gives conv1 M=160; raise
    to 16 on v6e/v7x for M=320 if B is large (keep >=2 grid steps for v7x's 2 TCs).
    """
    B, C, H, W = state.shape
    assert H == H_IN and W == W_IN, "l1 expects 2592 features -> 84x84 input"
    assert tb % 8 == 0, "tb must be a multiple of 8 (sublane alignment of all slices)"
    A = kparams["w2"].shape[1]
    cdt = kparams["m1"].dtype
    row = W * C                               # 336 input-row features, (w, c) order
    slab_k = K1 * row                         # 2688 features per conv1 output row
    half = HO1 // 2                           # 10 even / 10 odd conv1 output rows

    bp = ((B + tb - 1) // tb) * tb            # pad batch to a multiple of tb
    g = bp // tb
    xs = state if bp == B else jnp.pad(state, ((0, bp - B), (0, 0), (0, 0), (0, 0)))

    # Input-boundary glue (single fused XLA pass): NCHW -> NHWC rows, the two
    # overlapping 8-row window slabs (even / odd conv1 rows), batch-packed so each
    # grid step sees rows ordered [even (j, b)] then [odd (j, b)], cast to bf16.
    x = jnp.transpose(xs, (0, 2, 3, 1)).reshape(bp, H, row).astype(cdt)
    xa = x[:, 0:half * K1, :].reshape(g, tb, half, slab_k)        # rows 8j .. 8j+7
    xb = x[:, S1:S1 + half * K1, :].reshape(g, tb, half, slab_k)  # rows 8j+4 .. 8j+11
    slab = jnp.concatenate(
        [jnp.transpose(xa, (0, 2, 1, 3)), jnp.transpose(xb, (0, 2, 1, 3))], axis=1
    ).reshape(g * 2 * half * tb, slab_k)                          # (bp*20, 2688)

    def full_spec(a):
        nd = a.ndim
        return pl.BlockSpec(a.shape, lambda gi, _nd=nd: (0,) * _nd)   # resident weights

    out = pl.pallas_call(
        _make_fused_kernel(tb),
        out_shape=jax.ShapeDtypeStruct((bp, A), jnp.float32),
        grid=(g,),
        in_specs=[
            pl.BlockSpec((2 * half * tb, slab_k), lambda gi: (gi, 0)),   # input slab
            full_spec(kparams["m1"]), full_spec(kparams["b1"]),
            full_spec(kparams["m2"]), full_spec(kparams["b2"]),
            full_spec(kparams["w1"]), full_spec(kparams["c1"]),
            full_spec(kparams["w2"]), full_spec(kparams["c2"]),
        ],
        out_specs=pl.BlockSpec((tb, A), lambda gi: (gi, 0)),
        compiler_params=pltpu.CompilerParams(
            dimension_semantics=("parallel",),        # shards steps over v7x's 2 TCs
            vmem_limit_bytes=32 * 1024 * 1024,        # ~10 MiB used; safe on v5e/v6e/v7x
        ),
    )(slab, kparams["m1"], kparams["b1"], kparams["m2"], kparams["b2"],
      kparams["w1"], kparams["c1"], kparams["w2"], kparams["c2"])
    return out[:B]


# ---------------------------------------------------------------------------
# Pure-JAX reference (XLA) for a correctness check
# ---------------------------------------------------------------------------
def agent_forward_reference(params, state):
    dn = ("NCHW", "OIHW", "NCHW")
    a = jax.lax.conv_general_dilated(state, params["conv1_w"], (S1, S1), "VALID",
                                     dimension_numbers=dn)
    a = jax.nn.relu(a + params["conv1_b"][None, :, None, None])
    a = jax.lax.conv_general_dilated(a, params["conv2_w"], (S2, S2), "VALID",
                                     dimension_numbers=dn)
    a = jax.nn.relu(a + params["conv2_b"][None, :, None, None])
    a = a.reshape(a.shape[0], -1)                       # NCHW flatten: (c, h, w) order
    a = jax.nn.relu(a @ params["l1_w"] + params["l1_b"])
    return jax.nn.softmax(a @ params["l2_w"] + params["l2_b"], axis=-1)


if __name__ == "__main__":
    # The l1 layer requires 2592 = 32*9*9 features, which pins the spatial size to 84x84.
    # B=16 with tb=8 -> 2 grid steps (exercises the batched-M path and batch packing).
    B, C, H, W = 16, 4, 84, 84
    action_space = 6

    key = jax.random.PRNGKey(0)
    k_param, k_state = jax.random.split(key)
    params = init_params(k_param, C, action_space)
    kparams = prepare_params(params)
    state = jax.random.uniform(k_state, (B, C, H, W), jnp.float32)

    probs = jax.block_until_ready(agent_forward(kparams, state))
    ref = jax.block_until_ready(agent_forward_reference(params, state))

    assert probs.shape == (B, action_space)
    assert bool(jnp.all(jnp.isfinite(probs)))
    # rows sum to 1 (exact divide in the kernel's softmax)
    assert bool(jnp.allclose(jnp.sum(probs, axis=-1), 1.0, atol=1e-3))
    # matches the f32 XLA reference within bf16-MXU tolerance
    assert float(jnp.max(jnp.abs(probs - ref))) < 5e-2

    print("KERNEL_OK")
</pallas_src>

<mosaic_0001>
module attributes {stable_mosaic.version = 11 : i64} {
  func.func @kernel(%arg0: i32, %arg1: memref<160x2688xbf16, #tpu.memory_space<vmem>>, %arg2: memref<2688x320xbf16, #tpu.memory_space<vmem>>, %arg3: memref<1x320xf32, #tpu.memory_space<vmem>>, %arg4: memref<4x320x288xbf16, #tpu.memory_space<vmem>>, %arg5: memref<1x288xf32, #tpu.memory_space<vmem>>, %arg6: memref<2592x256xbf16, #tpu.memory_space<vmem>>, %arg7: memref<1x256xf32, #tpu.memory_space<vmem>>, %arg8: memref<256x6xbf16, #tpu.memory_space<vmem>>, %arg9: memref<1x6xf32, #tpu.memory_space<vmem>>, %arg10: memref<8x6xf32, #tpu.memory_space<vmem>>) attributes {dimension_semantics = [#tpu.dimension_semantics<parallel>], iteration_bounds = array<i64: 2>, scalar_prefetch = 0 : i64, scratch_operands = 0 : i64, tpu.core_type = #tpu.core_type<tc>, window_params = [{transform_indices = @transform_0, window_bounds = array<i64: 160, 2688>}, {pipeline_mode = #tpu.pipeline_mode<synchronous>, transform_indices = @transform_1, window_bounds = array<i64: 2688, 320>}, {pipeline_mode = #tpu.pipeline_mode<synchronous>, transform_indices = @transform_2, window_bounds = array<i64: 1, 320>}, {pipeline_mode = #tpu.pipeline_mode<synchronous>, transform_indices = @transform_3, window_bounds = array<i64: 4, 320, 288>}, {pipeline_mode = #tpu.pipeline_mode<synchronous>, transform_indices = @transform_4, window_bounds = array<i64: 1, 288>}, {pipeline_mode = #tpu.pipeline_mode<synchronous>, transform_indices = @transform_5, window_bounds = array<i64: 2592, 256>}, {pipeline_mode = #tpu.pipeline_mode<synchronous>, transform_indices = @transform_6, window_bounds = array<i64: 1, 256>}, {pipeline_mode = #tpu.pipeline_mode<synchronous>, transform_indices = @transform_7, window_bounds = array<i64: 256, 6>}, {pipeline_mode = #tpu.pipeline_mode<synchronous>, transform_indices = @transform_8, window_bounds = array<i64: 1, 6>}, {transform_indices = @transform_9, window_bounds = array<i64: 8, 6>}]} {
    %c0 = arith.constant 0 : index
    %c0_0 = arith.constant 0 : index
    %0 = vector.load %arg1[%c0, %c0_0] : memref<160x2688xbf16, #tpu.memory_space<vmem>>, vector<160x2688xbf16>
    %c0_1 = arith.constant 0 : index
    %c0_2 = arith.constant 0 : index
    %1 = vector.load %arg2[%c0_1, %c0_2] : memref<2688x320xbf16, #tpu.memory_space<vmem>>, vector<2688x320xbf16>
    %cst = arith.constant dense<0.000000e+00> : vector<160x320xf32>
    %2 = tpu.matmul %0, %1, %cst {dimension_numbers = #tpu.dot_dimension_numbers<[1], [0], [0], [1], [0, 0, 1, 1], [], []>} : vector<160x2688xbf16>, vector<2688x320xbf16>, vector<160x320xf32> -> vector<160x320xf32>
    %c0_3 = arith.constant 0 : index
    %c0_4 = arith.constant 0 : index
    %3 = vector.load %arg3[%c0_3, %c0_4] : memref<1x320xf32, #tpu.memory_space<vmem>>, vector<1x320xf32>
    %4 = vector.broadcast %3 : vector<1x320xf32> to vector<160x320xf32>
    %5 = arith.addf %2, %4 : vector<160x320xf32>
    %cst_5 = arith.constant 0.000000e+00 : f32
    %6 = vector.broadcast %cst_5 : f32 to vector<160x320xf32>
    %7 = arith.maximumf %5, %6 : vector<160x320xf32>
    %8 = arith.truncf %7 : vector<160x320xf32> to vector<160x320xbf16>
    %9 = vector.extract_strided_slice %8 {offsets = [0, 0], sizes = [72, 320], strides = [1, 1]} : vector<160x320xbf16> to vector<72x320xbf16>
    %c0_6 = arith.constant 0 : index
    %c0_7 = arith.constant 0 : index
    %c0_8 = arith.constant 0 : index
    %10 = vector.load %arg4[%c0_6, %c0_7, %c0_8] : memref<4x320x288xbf16, #tpu.memory_space<vmem>>, vector<1x320x288xbf16>
    %11 = vector.shape_cast %10 : vector<1x320x288xbf16> to vector<320x288xbf16>
    %cst_9 = arith.constant dense<0.000000e+00> : vector<72x288xf32>
    %12 = tpu.matmul %9, %11, %cst_9 {dimension_numbers = #tpu.dot_dimension_numbers<[1], [0], [0], [1], [0, 0, 1, 1], [], []>} : vector<72x320xbf16>, vector<320x288xbf16>, vector<72x288xf32> -> vector<72x288xf32>
    %13 = vector.extract_strided_slice %8 {offsets = [80, 0], sizes = [72, 320], strides = [1, 1]} : vector<160x320xbf16> to vector<72x320xbf16>
    %c1 = arith.constant 1 : index
    %c0_10 = arith.constant 0 : index
    %c0_11 = arith.constant 0 : index
    %14 = vector.load %arg4[%c1, %c0_10, %c0_11] : memref<4x320x288xbf16, #tpu.memory_space<vmem>>, vector<1x320x288xbf16>
    %15 = vector.shape_cast %14 : vector<1x320x288xbf16> to vector<320x288xbf16>
    %cst_12 = arith.constant dense<0.000000e+00> : vector<72x288xf32>
    %16 = tpu.matmul %13, %15, %cst_12 {dimension_numbers = #tpu.dot_dimension_numbers<[1], [0], [0], [1], [0, 0, 1, 1], [], []>} : vector<72x320xbf16>, vector<320x288xbf16>, vector<72x288xf32> -> vector<72x288xf32>
    %17 = arith.addf %12, %16 : vector<72x288xf32>
    %18 = vector.extract_strided_slice %8 {offsets = [8, 0], sizes = [72, 320], strides = [1, 1]} : vector<160x320xbf16> to vector<72x320xbf16>
    %c2 = arith.constant 2 : index
    %c0_13 = arith.constant 0 : index
    %c0_14 = arith.constant 0 : index
    %19 = vector.load %arg4[%c2, %c0_13, %c0_14] : memref<4x320x288xbf16, #tpu.memory_space<vmem>>, vector<1x320x288xbf16>
    %20 = vector.shape_cast %19 : vector<1x320x288xbf16> to vector<320x288xbf16>
    %cst_15 = arith.constant dense<0.000000e+00> : vector<72x288xf32>
    %21 = tpu.matmul %18, %20, %cst_15 {dimension_numbers = #tpu.dot_dimension_numbers<[1], [0], [0], [1], [0, 0, 1, 1], [], []>} : vector<72x320xbf16>, vector<320x288xbf16>, vector<72x288xf32> -> vector<72x288xf32>
    %22 = arith.addf %17, %21 : vector<72x288xf32>
    %23 = vector.extract_strided_slice %8 {offsets = [88, 0], sizes = [72, 320], strides = [1, 1]} : vector<160x320xbf16> to vector<72x320xbf16>
    %c3 = arith.constant 3 : index
    %c0_16 = arith.constant 0 : index
    %c0_17 = arith.constant 0 : index
    %24 = vector.load %arg4[%c3, %c0_16, %c0_17] : memref<4x320x288xbf16, #tpu.memory_space<vmem>>, vector<1x320x288xbf16>
    %25 = vector.shape_cast %24 : vector<1x320x288xbf16> to vector<320x288xbf16>
    %cst_18 = arith.constant dense<0.000000e+00> : vector<72x288xf32>
    %26 = tpu.matmul %23, %25, %cst_18 {dimension_numbers = #tpu.dot_dimension_numbers<[1], [0], [0], [1], [0, 0, 1, 1], [], []>} : vector<72x320xbf16>, vector<320x288xbf16>, vector<72x288xf32> -> vector<72x288xf32>
    %27 = arith.addf %22, %26 : vector<72x288xf32>
    %c0_19 = arith.constant 0 : index
    %c0_20 = arith.constant 0 : index
    %28 = vector.load %arg5[%c0_19, %c0_20] : memref<1x288xf32, #tpu.memory_space<vmem>>, vector<1x288xf32>
    %29 = vector.broadcast %28 : vector<1x288xf32> to vector<72x288xf32>
    %30 = arith.addf %27, %29 : vector<72x288xf32>
    %cst_21 = arith.constant 0.000000e+00 : f32
    %31 = vector.broadcast %cst_21 : f32 to vector<72x288xf32>
    %32 = arith.maximumf %30, %31 : vector<72x288xf32>
    %33 = arith.truncf %32 : vector<72x288xf32> to vector<72x288xbf16>
    %34 = vector.extract_strided_slice %33 {offsets = [0, 0], sizes = [8, 288], strides = [1, 1]} : vector<72x288xbf16> to vector<8x288xbf16>
    %c0_22 = arith.constant 0 : index
    %c0_23 = arith.constant 0 : index
    %35 = vector.load %arg6[%c0_22, %c0_23] : memref<2592x256xbf16, #tpu.memory_space<vmem>>, vector<288x256xbf16>
    %cst_24 = arith.constant dense<0.000000e+00> : vector<8x256xf32>
    %36 = tpu.matmul %34, %35, %cst_24 {dimension_numbers = #tpu.dot_dimension_numbers<[1], [0], [0], [1], [0, 0, 1, 1], [], []>} : vector<8x288xbf16>, vector<288x256xbf16>, vector<8x256xf32> -> vector<8x256xf32>
    %37 = vector.extract_strided_slice %33 {offsets = [8, 0], sizes = [8, 288], strides = [1, 1]} : vector<72x288xbf16> to vector<8x288xbf16>
    %c288 = arith.constant 288 : index
    %c0_25 = arith.constant 0 : index
    %38 = vector.load %arg6[%c288, %c0_25] : memref<2592x256xbf16, #tpu.memory_space<vmem>>, vector<288x256xbf16>
    %cst_26 = arith.constant dense<0.000000e+00> : vector<8x256xf32>
    %39 = tpu.matmul %37, %38, %cst_26 {dimension_numbers = #tpu.dot_dimension_numbers<[1], [0], [0], [1], [0, 0, 1, 1], [], []>} : vector<8x288xbf16>, vector<288x256xbf16>, vector<8x256xf32> -> vector<8x256xf32>
    %40 = vector.extract_strided_slice %33 {offsets = [16, 0], sizes = [8, 288], strides = [1, 1]} : vector<72x288xbf16> to vector<8x288xbf16>
    %c576 = arith.constant 576 : index
    %c0_27 = arith.constant 0 : index
    %41 = vector.load %arg6[%c576, %c0_27] : memref<2592x256xbf16, #tpu.memory_space<vmem>>, vector<288x256xbf16>
    %cst_28 = arith.constant dense<0.000000e+00> : vector<8x256xf32>
    %42 = tpu.matmul %40, %41, %cst_28 {dimension_numbers = #tpu.dot_dimension_numbers<[1], [0], [0], [1], [0, 0, 1, 1], [], []>} : vector<8x288xbf16>, vector<288x256xbf16>, vector<8x256xf32> -> vector<8x256xf32>
    %43 = vector.extract_strided_slice %33 {offsets = [24, 0], sizes = [8, 288], strides = [1, 1]} : vector<72x288xbf16> to vector<8x288xbf16>
    %c864 = arith.constant 864 : index
    %c0_29 = arith.constant 0 : index
    %44 = vector.load %arg6[%c864, %c0_29] : memref<2592x256xbf16, #tpu.memory_space<vmem>>, vector<288x256xbf16>
    %cst_30 = arith.constant dense<0.000000e+00> : vector<8x256xf32>
    %45 = tpu.matmul %43, %44, %cst_30 {dimension_numbers = #tpu.dot_dimension_numbers<[1], [0], [0], [1], [0, 0, 1, 1], [], []>} : vector<8x288xbf16>, vector<288x256xbf16>, vector<8x256xf32> -> vector<8x256xf32>
    %46 = vector.extract_strided_slice %33 {offsets = [32, 0], sizes = [8, 288], strides = [1, 1]} : vector<72x288xbf16> to vector<8x288xbf16>
    %c1152 = arith.constant 1152 : index
    %c0_31 = arith.constant 0 : index
    %47 = vector.load %arg6[%c1152, %c0_31] : memref<2592x256xbf16, #tpu.memory_space<vmem>>, vector<288x256xbf16>
    %cst_32 = arith.constant dense<0.000000e+00> : vector<8x256xf32>
    %48 = tpu.matmul %46, %47, %cst_32 {dimension_numbers = #tpu.dot_dimension_numbers<[1], [0], [0], [1], [0, 0, 1, 1], [], []>} : vector<8x288xbf16>, vector<288x256xbf16>, vector<8x256xf32> -> vector<8x256xf32>
    %49 = vector.extract_strided_slice %33 {offsets = [40, 0], sizes = [8, 288], strides = [1, 1]} : vector<72x288xbf16> to vector<8x288xbf16>
    %c1440 = arith.constant 1440 : index
    %c0_33 = arith.constant 0 : index
    %50 = vector.load %arg6[%c1440, %c0_33] : memref<2592x256xbf16, #tpu.memory_space<vmem>>, vector<288x256xbf16>
    %cst_34 = arith.constant dense<0.000000e+00> : vector<8x256xf32>
    %51 = tpu.matmul %49, %50, %cst_34 {dimension_numbers = #tpu.dot_dimension_numbers<[1], [0], [0], [1], [0, 0, 1, 1], [], []>} : vector<8x288xbf16>, vector<288x256xbf16>, vector<8x256xf32> -> vector<8x256xf32>
    %52 = vector.extract_strided_slice %33 {offsets = [48, 0], sizes = [8, 288], strides = [1, 1]} : vector<72x288xbf16> to vector<8x288xbf16>
    %c1728 = arith.constant 1728 : index
    %c0_35 = arith.constant 0 : index
    %53 = vector.load %arg6[%c1728, %c0_35] : memref<2592x256xbf16, #tpu.memory_space<vmem>>, vector<288x256xbf16>
    %cst_36 = arith.constant dense<0.000000e+00> : vector<8x256xf32>
    %54 = tpu.matmul %52, %53, %cst_36 {dimension_numbers = #tpu.dot_dimension_numbers<[1], [0], [0], [1], [0, 0, 1, 1], [], []>} : vector<8x288xbf16>, vector<288x256xbf16>, vector<8x256xf32> -> vector<8x256xf32>
    %55 = vector.extract_strided_slice %33 {offsets = [56, 0], sizes = [8, 288], strides = [1, 1]} : vector<72x288xbf16> to vector<8x288xbf16>
    %c2016 = arith.constant 2016 : index
    %c0_37 = arith.constant 0 : index
    %56 = vector.load %arg6[%c2016, %c0_37] : memref<2592x256xbf16, #tpu.memory_space<vmem>>, vector<288x256xbf16>
    %cst_38 = arith.constant dense<0.000000e+00> : vector<8x256xf32>
    %57 = tpu.matmul %55, %56, %cst_38 {dimension_numbers = #tpu.dot_dimension_numbers<[1], [0], [0], [1], [0, 0, 1, 1], [], []>} : vector<8x288xbf16>, vector<288x256xbf16>, vector<8x256xf32> -> vector<8x256xf32>
    %58 = vector.extract_strided_slice %33 {offsets = [64, 0], sizes = [8, 288], strides = [1, 1]} : vector<72x288xbf16> to vector<8x288xbf16>
    %c2304 = arith.constant 2304 : index
    %c0_39 = arith.constant 0 : index
    %59 = vector.load %arg6[%c2304, %c0_39] : memref<2592x256xbf16, #tpu.memory_space<vmem>>, vector<288x256xbf16>
    %cst_40 = arith.constant dense<0.000000e+00> : vector<8x256xf32>
    %60 = tpu.matmul %58, %59, %cst_40 {dimension_numbers = #tpu.dot_dimension_numbers<[1], [0], [0], [1], [0, 0, 1, 1], [], []>} : vector<8x288xbf16>, vector<288x256xbf16>, vector<8x256xf32> -> vector<8x256xf32>
    %61 = arith.addf %36, %39 : vector<8x256xf32>
    %62 = arith.addf %61, %42 : vector<8x256xf32>
    %63 = arith.addf %62, %45 : vector<8x256xf32>
    %64 = arith.addf %63, %48 : vector<8x256xf32>
    %65 = arith.addf %64, %51 : vector<8x256xf32>
    %66 = arith.addf %65, %54 : vector<8x256xf32>
    %67 = arith.addf %66, %57 : vector<8x256xf32>
    %68 = arith.addf %67, %60 : vector<8x256xf32>
    %c0_41 = arith.constant 0 : index
    %c0_42 = arith.constant 0 : index
    %69 = vector.load %arg7[%c0_41, %c0_42] : memref<1x256xf32, #tpu.memory_space<vmem>>, vector<1x256xf32>
    %70 = vector.broadcast %69 : vector<1x256xf32> to vector<8x256xf32>
    %71 = arith.addf %68, %70 : vector<8x256xf32>
    %cst_43 = arith.constant 0.000000e+00 : f32
    %72 = vector.broadcast %cst_43 : f32 to vector<8x256xf32>
    %73 = arith.maximumf %71, %72 : vector<8x256xf32>
    %74 = arith.truncf %73 : vector<8x256xf32> to vector<8x256xbf16>
    %c0_44 = arith.constant 0 : index
    %c0_45 = arith.constant 0 : index
    %75 = vector.load %arg8[%c0_44, %c0_45] : memref<256x6xbf16, #tpu.memory_space<vmem>>, vector<256x6xbf16>
    %cst_46 = arith.constant dense<0.000000e+00> : vector<8x6xf32>
    %76 = tpu.matmul %74, %75, %cst_46 {dimension_numbers = #tpu.dot_dimension_numbers<[1], [0], [0], [1], [0, 0, 1, 1], [], []>} : vector<8x256xbf16>, vector<256x6xbf16>, vector<8x6xf32> -> vector<8x6xf32>
    %c0_47 = arith.constant 0 : index
    %c0_48 = arith.constant 0 : index
    %77 = vector.load %arg9[%c0_47, %c0_48] : memref<1x6xf32, #tpu.memory_space<vmem>>, vector<1x6xf32>
    %78 = vector.broadcast %77 : vector<1x6xf32> to vector<8x6xf32>
    %79 = arith.addf %76, %78 : vector<8x6xf32>
    %cst_49 = arith.constant dense<0xFF800000> : vector<8xf32>
    %80 = vector.multi_reduction <maximumf>, %79, %cst_49 [1] : vector<8x6xf32> to vector<8xf32>
    %81 = vector.shape_cast %80 : vector<8xf32> to vector<8x1xf32>
    %82 = vector.broadcast %81 : vector<8x1xf32> to vector<8x6xf32>
    %83 = arith.subf %79, %82 : vector<8x6xf32>
    %84 = math.exp %83 : vector<8x6xf32>
    %cst_50 = arith.constant dense<0.000000e+00> : vector<8xf32>
    %85 = vector.multi_reduction <add>, %84, %cst_50 [1] : vector<8x6xf32> to vector<8xf32>
    %86 = vector.shape_cast %85 : vector<8xf32> to vector<8x1xf32>
    %87 = vector.broadcast %86 : vector<8x1xf32> to vector<8x6xf32>
    %88 = arith.divf %84, %87 : vector<8x6xf32>
    %c0_51 = arith.constant 0 : index
    %c0_52 = arith.constant 0 : index
    %89 = vector.load %arg10[%c0_51, %c0_52] : memref<8x6xf32, #tpu.memory_space<vmem>>, vector<8x6xf32>
    tpu.vector_store %arg10[%c0_51, %c0_52], %88 {strides = array<i32>} : memref<8x6xf32, #tpu.memory_space<vmem>>, vector<8x6xf32>,
    return
  }
  func.func @transform_0(%arg0: i32) -> (i32, i32) {
    %c0_i32 = arith.constant 0 : i32
    %c0_i32_0 = arith.constant 0 : i32
    return %arg0, %c0_i32 : i32, i32
  }
  func.func @transform_1(%arg0: i32) -> (i32, i32) {
    %c0_i32 = arith.constant 0 : i32
    %c0_i32_0 = arith.constant 0 : i32
    %c0_i32_1 = arith.constant 0 : i32
    return %c0_i32, %c0_i32_0 : i32, i32
  }
  func.func @transform_2(%arg0: i32) -> (i32, i32) {
    %c0_i32 = arith.constant 0 : i32
    %c0_i32_0 = arith.constant 0 : i32
    %c0_i32_1 = arith.constant 0 : i32
    return %c0_i32, %c0_i32_0 : i32, i32
  }
  func.func @transform_3(%arg0: i32) -> (i32, i32, i32) {
    %c0_i32 = arith.constant 0 : i32
    %c0_i32_0 = arith.constant 0 : i32
    %c0_i32_1 = arith.constant 0 : i32
    %c0_i32_2 = arith.constant 0 : i32
    return %c0_i32, %c0_i32_0, %c0_i32_1 : i32, i32, i32
  }
  func.func @transform_4(%arg0: i32) -> (i32, i32) {
    %c0_i32 = arith.constant 0 : i32
    %c0_i32_0 = arith.constant 0 : i32
    %c0_i32_1 = arith.constant 0 : i32
    return %c0_i32, %c0_i32_0 : i32, i32
  }
  func.func @transform_5(%arg0: i32) -> (i32, i32) {
    %c0_i32 = arith.constant 0 : i32
    %c0_i32_0 = arith.constant 0 : i32
    %c0_i32_1 = arith.constant 0 : i32
    return %c0_i32, %c0_i32_0 : i32, i32
  }
  func.func @transform_6(%arg0: i32) -> (i32, i32) {
    %c0_i32 = arith.constant 0 : i32
    %c0_i32_0 = arith.constant 0 : i32
    %c0_i32_1 = arith.constant 0 : i32
    return %c0_i32, %c0_i32_0 : i32, i32
  }
  func.func @transform_7(%arg0: i32) -> (i32, i32) {
    %c0_i32 = arith.constant 0 : i32
    %c0_i32_0 = arith.constant 0 : i32
    %c0_i32_1 = arith.constant 0 : i32
    return %c0_i32, %c0_i32_0 : i32, i32
  }
  func.func @transform_8(%arg0: i32) -> (i32, i32) {
    %c0_i32 = arith.constant 0 : i32
    %c0_i32_0 = arith.constant 0 : i32
    %c0_i32_1 = arith.constant 0 : i32
    return %c0_i32, %c0_i32_0 : i32, i32
  }
  func.func @transform_9(%arg0: i32) -> (i32, i32) {
    %c0_i32 = arith.constant 0 : i32
    %c0_i32_0 = arith.constant 0 : i32
    return %arg0, %c0_i32 : i32, i32
  }
}

</mosaic_0001>

<llo_original>
// kernel: agent_forward.1
$region0: #{agent_forward.1}
  #allocation0 [shape = 'u32[]', space=smem, size = 0x4, offset = 0x4, fixed_abs, tag = 'smem constant byte address 0x4 - core index']
  #allocation1 [shape = 'u32[144,128]{1,0:T(1,128)}', space=vmem, size = 0x12000, scoped, tag = 'internal scratch']
  %s0 = inlined_call_operand.vmem [shape: bf16[320,2688], index: 0, kind: input, shape index: {}]
  %s1 = inlined_call_operand.vmem [shape: bf16[2688,320], index: 1, kind: input, shape index: {}]
  %s2 = inlined_call_operand.vmem [shape: f32[1,320], index: 2, kind: input, shape index: {}]
  %s3 = inlined_call_operand.vmem [shape: bf16[4,320,288], index: 3, kind: input, shape index: {}]
  %s4 = inlined_call_operand.vmem [shape: f32[1,288], index: 4, kind: input, shape index: {}]
  %s5 = inlined_call_operand.vmem [shape: bf16[2592,256], index: 5, kind: input, shape index: {}]
  %s6 = inlined_call_operand.vmem [shape: f32[1,256], index: 6, kind: input, shape index: {}]
  %s7 = inlined_call_operand.vmem [shape: bf16[256,6], index: 7, kind: input, shape index: {}]
  %s8 = inlined_call_operand.vmem [shape: f32[1,6], index: 8, kind: input, shape index: {}]
  %s9 = inlined_call_operand.vmem [shape: f32[16,6], index: 9, kind: output, shape index: {}]
  %s10 = sld [smem:[#allocation0]]
  $region69: #{agent_forward.1} parent=0
    _
  %s12 = ssub.s32 1, %s10
  %s13 = scalar_select 0, %s12, %s10
  loop: start=0, step=1, limit=4
  $region2: #{agent_forward.1} parent=0 // loop_pre_header
    _
  $region3: #{agent_forward.1} parent=0 // loop_header
    %s15 = sphi 0, %s19
    %p16 = scmp.ge.s32.totalorder %s15, 4
    %s25 = sphi 0, %s27
    %s28 = sphi 0, %s25
    %s29 = sphi 0, %s28
    %s45 = sphi 0, %s29
    %s49 = sphi 0, %s49
    %s51 = sphi 0, %s49
    %s52 = sphi 0, %s51
    %s66 = sphi 0, %s52
    %s70 = sphi 0, %s70
    %s72 = sphi 0, %s70
    %s73 = sphi 0, %s72
    %s87 = sphi 0, %s73
    %s91 = sphi 0, %s91
    %s93 = sphi 0, %s91
    %s94 = sphi 0, %s93
    %s108 = sphi 0, %s94
    %s112 = sphi 0, %s112
    %s114 = sphi 0, %s112
    %s115 = sphi 0, %s114
    %s129 = sphi 0, %s115
    %s133 = sphi 0, %s133
    %s135 = sphi 0, %s133
    %s136 = sphi 0, %s135
    %s150 = sphi 0, %s136
    %s154 = sphi 0, %s154
    %s156 = sphi 0, %s154
    %s157 = sphi 0, %s156
    %s171 = sphi 0, %s157
    %s175 = sphi 0, %s175
    %s177 = sphi 0, %s175
    %s178 = sphi 0, %s177
    %s192 = sphi 0, %s178
    %s196 = sphi 0, %s196
    %s198 = sphi 0, %s196
    %s199 = sphi 0, %s198
    %s213 = sphi 0, %s199
    %s219 = sphi 0, %s221
    %s222 = sphi 0, %s219
    %s223 = sphi 0, %s222
    %s239 = sphi 0, %s223
  $region4: #{agent_forward.1} parent=0 // loop_header_branch
    %18 = sbr.rel (%p16) target = $region8
  $region5: #{agent_forward.1} parent=0 // loop_body
    %s20 = ssub.s32 %s15, 1
    %s21 = ssub.s32 %s15, 2
    %s22 = sadd.s32 %s15, 1
    %s23 = ssub.s32 %s15, %s22
    %p24 = scmp.eq.s32.totalorder %s23, 0
    %s26 = sadd.s32 %s25, 1
    %s27 = scalar_select %p24, %s25, %s26
    %p30 = pneg %p24
    %p31 = scmp.eq.s32.totalorder %s15, 1
    %p32 = por %p30, %p31
    %p33 = scmp.ne.s32.totalorder %s25, %s28
    %p34 = scmp.eq.s32.totalorder %s15, 0
    %p35 = por %p33, %p34
    %p36 = scmp.ne.s32.totalorder %s25, %s28
    %p37 = scmp.eq.s32.totalorder %s20, 1
    %p38 = por %p36, %p37
    %p39 = scmp.ne.s32.totalorder %s28, %s29
    %p40 = scmp.eq.s32.totalorder %s20, 0
    %p41 = por %p39, %p40
    %p42 = scmp.ne.s32.totalorder %s28, %s29
    %p43 = scmp.eq.s32.totalorder %s21, 1
    %p44 = por %p42, %p43
    %p46 = scmp.ne.s32.totalorder %s29, %s45
    %p47 = scmp.eq.s32.totalorder %s21, 0
    %p48 = por %p46, %p47
    %s50 = sadd.s32 %s49, 1
    %p53 = scmp.eq.s32.totalorder %s15, 1
    %p54 = scmp.ne.s32.totalorder %s49, %s51
    %p55 = scmp.eq.s32.totalorder %s15, 0
    %p56 = por %p54, %p55
    %p57 = scmp.ne.s32.totalorder %s49, %s51
    %p58 = scmp.eq.s32.totalorder %s20, 1
    %p59 = por %p57, %p58
    %p60 = scmp.ne.s32.totalorder %s51, %s52
    %p61 = scmp.eq.s32.totalorder %s20, 0
    %p62 = por %p60, %p61
    %p63 = scmp.ne.s32.totalorder %s51, %s52
    %p64 = scmp.eq.s32.totalorder %s21, 1
    %p65 = por %p63, %p64
    %p67 = scmp.ne.s32.totalorder %s52, %s66
    %p68 = scmp.eq.s32.totalorder %s21, 0
    %p69 = por %p67, %p68
    %s71 = sadd.s32 %s70, 1
    %p74 = scmp.eq.s32.totalorder %s15, 1
    %p75 = scmp.ne.s32.totalorder %s70, %s72
    %p76 = scmp.eq.s32.totalorder %s15, 0
    %p77 = por %p75, %p76
    %p78 = scmp.ne.s32.totalorder %s70, %s72
    %p79 = scmp.eq.s32.totalorder %s20, 1
    %p80 = por %p78, %p79
    %p81 = scmp.ne.s32.totalorder %s72, %s73
    %p82 = scmp.eq.s32.totalorder %s20, 0
    %p83 = por %p81, %p82
    %p84 = scmp.ne.s32.totalorder %s72, %s73
    %p85 = scmp.eq.s32.totalorder %s21, 1
    %p86 = por %p84, %p85
    %p88 = scmp.ne.s32.totalorder %s73, %s87
    %p89 = scmp.eq.s32.totalorder %s21, 0
    %p90 = por %p88, %p89
    %s92 = sadd.s32 %s91, 1
    %p95 = scmp.eq.s32.totalorder %s15, 1
    %p96 = scmp.ne.s32.totalorder %s91, %s93
    %p97 = scmp.eq.s32.totalorder %s15, 0
    %p98 = por %p96, %p97
    %p99 = scmp.ne.s32.totalorder %s91, %s93
    %p100 = scmp.eq.s32.totalorder %s20, 1
    %p101 = por %p99, %p100
    %p102 = scmp.ne.s32.totalorder %s93, %s94
    %p103 = scmp.eq.s32.totalorder %s20, 0
    %p104 = por %p102, %p103
    %p105 = scmp.ne.s32.totalorder %s93, %s94
    %p106 = scmp.eq.s32.totalorder %s21, 1
    %p107 = por %p105, %p106
    %p109 = scmp.ne.s32.totalorder %s94, %s108
    %p110 = scmp.eq.s32.totalorder %s21, 0
    %p111 = por %p109, %p110
    %s113 = sadd.s32 %s112, 1
    %p116 = scmp.eq.s32.totalorder %s15, 1
    %p117 = scmp.ne.s32.totalorder %s112, %s114
    %p118 = scmp.eq.s32.totalorder %s15, 0
    %p119 = por %p117, %p118
    %p120 = scmp.ne.s32.totalorder %s112, %s114
    %p121 = scmp.eq.s32.totalorder %s20, 1
    %p122 = por %p120, %p121
    %p123 = scmp.ne.s32.totalorder %s114, %s115
    %p124 = scmp.eq.s32.totalorder %s20, 0
    %p125 = por %p123, %p124
    %p126 = scmp.ne.s32.totalorder %s114, %s115
    %p127 = scmp.eq.s32.totalorder %s21, 1
    %p128 = por %p126, %p127
    %p130 = scmp.ne.s32.totalorder %s115, %s129
    %p131 = scmp.eq.s32.totalorder %s21, 0
    %p132 = por %p130, %p131
    %s134 = sadd.s32 %s133, 1
    %p137 = scmp.eq.s32.totalorder %s15, 1
    %p138 = scmp.ne.s32.totalorder %s133, %s135
    %p139 = scmp.eq.s32.totalorder %s15, 0
    %p140 = por %p138, %p139
    %p141 = scmp.ne.s32.totalorder %s133, %s135
    %p142 = scmp.eq.s32.totalorder %s20, 1
    %p143 = por %p141, %p142
    %p144 = scmp.ne.s32.totalorder %s135, %s136
    %p145 = scmp.eq.s32.totalorder %s20, 0
    %p146 = por %p144, %p145
    %p147 = scmp.ne.s32.totalorder %s135, %s136
    %p148 = scmp.eq.s32.totalorder %s21, 1
    %p149 = por %p147, %p148
    %p151 = scmp.ne.s32.totalorder %s136, %s150
    %p152 = scmp.eq.s32.totalorder %s21, 0
    %p153 = por %p151, %p152
    %s155 = sadd.s32 %s154, 1
    %p158 = scmp.eq.s32.totalorder %s15, 1
    %p159 = scmp.ne.s32.totalorder %s154, %s156
    %p160 = scmp.eq.s32.totalorder %s15, 0
    %p161 = por %p159, %p160
    %p162 = scmp.ne.s32.totalorder %s154, %s156
    %p163 = scmp.eq.s32.totalorder %s20, 1
    %p164 = por %p162, %p163
    %p165 = scmp.ne.s32.totalorder %s156, %s157
    %p166 = scmp.eq.s32.totalorder %s20, 0
    %p167 = por %p165, %p166
    %p168 = scmp.ne.s32.totalorder %s156, %s157
    %p169 = scmp.eq.s32.totalorder %s21, 1
    %p170 = por %p168, %p169
    %p172 = scmp.ne.s32.totalorder %s157, %s171
    %p173 = scmp.eq.s32.totalorder %s21, 0
    %p174 = por %p172, %p173
    %s176 = sadd.s32 %s175, 1
    %p179 = scmp.eq.s32.totalorder %s15, 1
    %p180 = scmp.ne.s32.totalorder %s175, %s177
    %p181 = scmp.eq.s32.totalorder %s15, 0
    %p182 = por %p180, %p181
    %p183 = scmp.ne.s32.totalorder %s175, %s177
    %p184 = scmp.eq.s32.totalorder %s20, 1
    %p185 = por %p183, %p184
    %p186 = scmp.ne.s32.totalorder %s177, %s178
    %p187 = scmp.eq.s32.totalorder %s20, 0
    %p188 = por %p186, %p187
    %p189 = scmp.ne.s32.totalorder %s177, %s178
    %p190 = scmp.eq.s32.totalorder %s21, 1
    %p191 = por %p189, %p190
    %p193 = scmp.ne.s32.totalorder %s178, %s192
    %p194 = scmp.eq.s32.totalorder %s21, 0
    %p195 = por %p193, %p194
    %s197 = sadd.s32 %s196, 1
    %p200 = scmp.eq.s32.totalorder %s15, 1
    %p201 = scmp.ne.s32.totalorder %s196, %s198
    %p202 = scmp.eq.s32.totalorder %s15, 0
    %p203 = por %p201, %p202
    %p204 = scmp.ne.s32.totalorder %s196, %s198
    %p205 = scmp.eq.s32.totalorder %s20, 1
    %p206 = por %p204, %p205
    %p207 = scmp.ne.s32.totalorder %s198, %s199
    %p208 = scmp.eq.s32.totalorder %s20, 0
    %p209 = por %p207, %p208
    %p210 = scmp.ne.s32.totalorder %s198, %s199
    %p211 = scmp.eq.s32.totalorder %s21, 1
    %p212 = por %p210, %p211
    %p214 = scmp.ne.s32.totalorder %s199, %s213
    %p215 = scmp.eq.s32.totalorder %s21, 0
    %p216 = por %p214, %p215
    %s217 = ssub.s32 %s15, %s22
    %p218 = scmp.eq.s32.totalorder %s217, 0
    %s220 = sadd.s32 %s219, 1
    %s221 = scalar_select %p218, %s219, %s220
    %p224 = pneg %p218
    %p225 = scmp.eq.s32.totalorder %s15, 1
    %p226 = por %p224, %p225
    %p227 = scmp.ne.s32.totalorder %s219, %s222
    %p228 = scmp.eq.s32.totalorder %s15, 0
    %p229 = por %p227, %p228
    %p230 = scmp.ne.s32.totalorder %s219, %s222
    %p231 = scmp.eq.s32.totalorder %s20, 1
    %p232 = por %p230, %p231
    %p233 = scmp.ne.s32.totalorder %s222, %s223
    %p234 = scmp.eq.s32.totalorder %s20, 0
    %p235 = por %p233, %p234
    %p236 = scmp.ne.s32.totalorder %s222, %s223
    %p237 = scmp.eq.s32.totalorder %s21, 1
    %p238 = por %p236, %p237
    %p240 = scmp.ne.s32.totalorder %s223, %s239
    %p241 = scmp.eq.s32.totalorder %s21, 0
    %p242 = por %p240, %p241
    %p243 = scmp.le.s32.totalorder 1, %s15
    %p244 = scmp.lt.s32.totalorder %s15, 3
    %p245 = pnand %p243, %p244
    %p246 = pneg %p245
    // Predicated region
    $region9: #{agent_forward.1} parent=5 // pred_check
      _
    $region10: #{agent_forward.1} parent=5 // pred_check_branch
      %248 = sbr.rel (%p245) target = $region12
    $region11: #{agent_forward.1} parent=5 // pred_region
      %s249 = ssub.s32 %s15, 1
      // Predicated region
      $region13: #{agent_forward.1} parent=11 // pred_check
        %p250 = pneg %p62
      $region14: #{agent_forward.1} parent=11 // pred_check_branch
        %252 = sbr.rel (%p250) target = $region16
      $region15: #{agent_forward.1} parent=11 // pred_region
        _
      $region16: #{agent_forward.1} parent=11 // pred_fallthru
        _
      // Predicated region
      $region17: #{agent_forward.1} parent=11 // pred_check
        %p253 = pneg %p83
      $region18: #{agent_forward.1} parent=11 // pred_check_branch
        %255 = sbr.rel (%p253) target = $region20
      $region19: #{agent_forward.1} parent=11 // pred_region
        _
      $region20: #{agent_forward.1} parent=11 // pred_fallthru
        _
      // Predicated region
      $region21: #{agent_forward.1} parent=11 // pred_check
        %p256 = pneg %p104
      $region22: #{agent_forward.1} parent=11 // pred_check_branch
        %258 = sbr.rel (%p256) target = $region24
      $region23: #{agent_forward.1} parent=11 // pred_region
        _
      $region24: #{agent_forward.1} parent=11 // pred_fallthru
        _
      // Predicated region
      $region25: #{agent_forward.1} parent=11 // pred_check
        %p259 = pneg %p125
      $region26: #{agent_forward.1} parent=11 // pred_check_branch
        %261 = sbr.rel (%p259) target = $region28
      $region27: #{agent_forward.1} parent=11 // pred_region
        _
      $region28: #{agent_forward.1} parent=11 // pred_fallthru
        _
      // Predicated region
      $region29: #{agent_forward.1} parent=11 // pred_check
        %p262 = pneg %p146
      $region30: #{agent_forward.1} parent=11 // pred_check_branch
        %264 = sbr.rel (%p262) target = $region32
      $region31: #{agent_forward.1} parent=11 // pred_region
        _
      $region32: #{agent_forward.1} parent=11 // pred_fallthru
        _
      // Predicated region
      $region33: #{agent_forward.1} parent=11 // pred_check
        %p265 = pneg %p167
      $region34: #{agent_forward.1} parent=11 // pred_check_branch
        %267 = sbr.rel (%p265) target = $region36
      $region35: #{agent_forward.1} parent=11 // pred_region
        _
      $region36: #{agent_forward.1} parent=11 // pred_fallthru
        _
      // Predicated region
      $region37: #{agent_forward.1} parent=11 // pred_check
        %p268 = pneg %p188
      $region38: #{agent_forward.1} parent=11 // pred_check_branch
        %270 = sbr.rel (%p268) target = $region40
      $region39: #{agent_forward.1} parent=11 // pred_region
        _
      $region40: #{agent_forward.1} parent=11 // pred_fallthru
        _
      // Predicated region
      $region41: #{agent_forward.1} parent=11 // pred_check
        %p271 = pneg %p209
      $region42: #{agent_forward.1} parent=11 // pred_check_branch
        %273 = sbr.rel (%p271) target = $region44
      $region43: #{agent_forward.1} parent=11 // pred_region
        _
      $region44: #{agent_forward.1} parent=11 // pred_fallthru
        _
    $region12: #{agent_forward.1} parent=5 // pred_fallthru
      _
    %p274 = scmp.lt.s32.totalorder %s15, 2
    // Predicated region
    $region45: #{agent_forward.1} parent=5 // pred_check
      %p275 = pneg %p274
    $region46: #{agent_forward.1} parent=5 // pred_check_branch
      %277 = sbr.rel (%p275) target = $region48
    $region47: #{agent_forward.1} parent=5 // pred_region
      // Predicated region
      $region49: #{agent_forward.1} parent=47 // pred_check
        %p278 = pneg %p35
      $region50: #{agent_forward.1} parent=47 // pred_check_branch
        %280 = sbr.rel (%p278) target = $region52
      $region51: #{agent_forward.1} parent=47 // pred_region
        %s281 = smul.u32 20, %s15
        %p282 = scmp.lt.s32.totalorder %s281, 39
        %s283 = scalar_select %p282, %s281, 39
        %s284 = smul.addr %s283, 21
        %s285 = smul.addr %s284, 4
        %s286 = scalar_lea.vmem %s0, %s285
        %s287 = smul.u32 20, %s15
      $region52: #{agent_forward.1} parent=47 // pred_fallthru
        _
    $region48: #{agent_forward.1} parent=5 // pred_fallthru
      _
    %p288 = scmp.le.s32.totalorder 1, %s15
    %p289 = scmp.lt.s32.totalorder %s15, 3
    %p290 = pnand %p288, %p289
    %p291 = pneg %p290
    // Predicated region
    $region53: #{agent_forward.1} parent=5 // pred_check
      _
    $region54: #{agent_forward.1} parent=5 // pred_check_branch
      %293 = sbr.rel (%p290) target = $region56
    $region55: #{agent_forward.1} parent=5 // pred_region
      %s294 = ssub.s32 %s15, 1
      %s295 = smul.u32 20, %s20
      %p296 = scmp.lt.s32.totalorder %s295, 39
      %s297 = scalar_select %p296, %s295, 39
      %s298 = smul.addr %s297, 21
      %s299 = smul.addr %s298, 4
      %s300 = scalar_lea.vmem %s0, %s299
      %p301 = pneg %p41
      %p302 = pneg %p38
      %p303 = pneg %p62
      %p304 = pneg %p59
      %p305 = pneg %p83
      %p306 = pneg %p80
      %p307 = pneg %p104
      %p308 = pneg %p101
      %p309 = pneg %p125
      %p310 = pneg %p122
      %p311 = pneg %p146
      %p312 = pneg %p143
      %p313 = pneg %p167
      %p314 = pneg %p164
      %p315 = pneg %p188
      %p316 = pneg %p185
      %p317 = pneg %p209
      %p318 = pneg %p206
      %p319 = pneg %p235
      %p320 = pneg %p232
      %p321 = scmp.lt.s32.totalorder %s20, 1
      %s322 = scalar_select %p321, %s20, 1
      %s323 = smul.addr %s322, 8
      %s324 = scalar_lea.vmem %s9, %s323
      %s325 = smul.u32 20, %s20
      %p326 = scmp.lt.s32.totalorder %s325, 39
      %s327 = scalar_select %p326, %s325, 39
      %s328 = smul.addr %s327, 21
      %s329 = smul.addr %s328, 4
      %s330 = scalar_lea.vmem %s0, %s329
      %s331 = smul.u32 20, %s20
      %p332 = scmp.lt.s32.totalorder %s20, 1
      %s333 = scalar_select %p332, %s20, 1
      %s334 = smul.addr %s333, 8
      %s335 = scalar_lea.vmem %s9, %s334
      %v337 = vld [vmem:[%s330] sm:$0xff]
      %v338 = vld [vmem:[%s330 + $0x8] sm:$0xff]
      %v339 = vld [vmem:[%s330 + $0x10] sm:$0xff]
      %v340 = vld [vmem:[%s330 + $0x18] sm:$0xff]
      %v341 = vld [vmem:[%s330 + $0x20] sm:$0xff]
      %v342 = vld [vmem:[%s330 + $0x28] sm:$0xff]
      %v343 = vld [vmem:[%s330 + $0x30] sm:$0xff]
      %v344 = vld [vmem:[%s330 + $0x38] sm:$0xff]
      %v345 = vld [vmem:[%s330 + $0x40] sm:$0xff]
      %v346 = vld [vmem:[%s330 + $0x48] sm:$0xff]
      %v347 = vld [vmem:[%s330 + $0x50] sm:$0xf]
      %v348 = vld [vmem:[%s330 + $0x54] sm:$0xff]
      %v349 = vld [vmem:[%s330 + $0x5c] sm:$0xff]
      %v350 = vld [vmem:[%s330 + $0x64] sm:$0xff]
      %v351 = vld [vmem:[%s330 + $0x6c] sm:$0xff]
      %v352 = vld [vmem:[%s330 + $0x74] sm:$0xff]
      %v353 = vld [vmem:[%s330 + $0x7c] sm:$0xff]
      %v354 = vld [vmem:[%s330 + $0x84] sm:$0xff]
      %v355 = vld [vmem:[%s330 + $0x8c] sm:$0xff]
      %v356 = vld [vmem:[%s330 + $0x94] sm:$0xff]
      %v357 = vld [vmem:[%s330 + $0x9c] sm:$0xff]
      %v358 = vld [vmem:[%s330 + $0xa4] sm:$0xf]
      %v359 = vld [vmem:[%s330 + $0xa8] sm:$0xff]
      %v360 = vld [vmem:[%s330 + $0xb0] sm:$0xff]
      %v361 = vld [vmem:[%s330 + $0xb8] sm:$0xff]
      %v362 = vld [vmem:[%s330 + $0xc0] sm:$0xff]
      %v363 = vld [vmem:[%s330 + $0xc8] sm:$0xff]
      %v364 = vld [vmem:[%s330 + $0xd0] sm:$0xff]
      %v365 = vld [vmem:[%s330 + $0xd8] sm:$0xff]
      %v366 = vld [vmem:[%s330 + $0xe0] sm:$0xff]
      %v367 = vld [vmem:[%s330 + $0xe8] sm:$0xff]
      %v368 = vld [vmem:[%s330 + $0xf0] sm:$0xff]
      %v369 = vld [vmem:[%s330 + $0xf8] sm:$0xf]
      %v370 = vld [vmem:[%s330 + $0xfc] sm:$0xff]
      %v371 = vld [vmem:[%s330 + $0x104] sm:$0xff]
      %v372 = vld [vmem:[%s330 + $0x10c] sm:$0xff]
      %v373 = vld [vmem:[%s330 + $0x114] sm:$0xff]
      %v374 = vld [vmem:[%s330 + $0x11c] sm:$0xff]
      %v375 = vld [vmem:[%s330 + $0x124] sm:$0xff]
      %v376 = vld [vmem:[%s330 + $0x12c] sm:$0xff]
      %v377 = vld [vmem:[%s330 + $0x134] sm:$0xff]
      %v378 = vld [vmem:[%s330 + $0x13c] sm:$0xff]
      %v379 = vld [vmem:[%s330 + $0x144] sm:$0xff]
      %v380 = vld [vmem:[%s330 + $0x14c] sm:$0xf]
      %v381 = vld [vmem:[%s330 + $0x150] sm:$0xff]
      %v382 = vld [vmem:[%s330 + $0x158] sm:$0xff]
      %v383 = vld [vmem:[%s330 + $0x160] sm:$0xff]
      %v384 = vld [vmem:[%s330 + $0x168] sm:$0xff]
      %v385 = vld [vmem:[%s330 + $0x170] sm:$0xff]
      %v386 = vld [vmem:[%s330 + $0x178] sm:$0xff]
      %v387 = vld [vmem:[%s330 + $0x180] sm:$0xff]
      %v388 = vld [vmem:[%s330 + $0x188] sm:$0xff]
      %v389 = vld [vmem:[%s330 + $0x190] sm:$0xff]
      %v390 = vld [vmem:[%s330 + $0x198] sm:$0xff]
      %v391 = vld [vmem:[%s330 + $0x1a0] sm:$0xf]
      %v392 = vld [vmem:[%s330 + $0x1a4] sm:$0xff]
      %v393 = vld [vmem:[%s330 + $0x1ac] sm:$0xff]
      %v394 = vld [vmem:[%s330 + $0x1b4] sm:$0xff]
      %v395 = vld [vmem:[%s330 + $0x1bc] sm:$0xff]
      %v396 = vld [vmem:[%s330 + $0x1c4] sm:$0xff]
      %v397 = vld [vmem:[%s330 + $0x1cc] sm:$0xff]
      %v398 = vld [vmem:[%s330 + $0x1d4] sm:$0xff]
      %v399 = vld [vmem:[%s330 + $0x1dc] sm:$0xff]
      %v400 = vld [vmem:[%s330 + $0x1e4] sm:$0xff]
      %v401 = vld [vmem:[%s330 + $0x1ec] sm:$0xff]
      %v402 = vld [vmem:[%s330 + $0x1f4] sm:$0xf]
      %v403 = vld [vmem:[%s330 + $0x1f8] sm:$0xff]
      %v404 = vld [vmem:[%s330 + $0x200] sm:$0xff]
      %v405 = vld [vmem:[%s330 + $0x208] sm:$0xff]
      %v406 = vld [vmem:[%s330 + $0x210] sm:$0xff]
      %v407 = vld [vmem:[%s330 + $0x218] sm:$0xff]
      %v408 = vld [vmem:[%s330 + $0x220] sm:$0xff]
      %v409 = vld [vmem:[%s330 + $0x228] sm:$0xff]
      %v410 = vld [vmem:[%s330 + $0x230] sm:$0xff]
      %v411 = vld [vmem:[%s330 + $0x238] sm:$0xff]
      %v412 = vld [vmem:[%s330 + $0x240] sm:$0xff]
      %v413 = vld [vmem:[%s330 + $0x248] sm:$0xf]
      %v414 = vld [vmem:[%s330 + $0x24c] sm:$0xff]
      %v415 = vld [vmem:[%s330 + $0x254] sm:$0xff]
      %v416 = vld [vmem:[%s330 + $0x25c] sm:$0xff]
      %v417 = vld [vmem:[%s330 + $0x264] sm:$0xff]
      %v418 = vld [vmem:[%s330 + $0x26c] sm:$0xff]
      %v419 = vld [vmem:[%s330 + $0x274] sm:$0xff]
      %v420 = vld [vmem:[%s330 + $0x27c] sm:$0xff]
      %v421 = vld [vmem:[%s330 + $0x284] sm:$0xff]
      %v422 = vld [vmem:[%s330 + $0x28c] sm:$0xff]
      %v423 = vld [vmem:[%s330 + $0x294] sm:$0xff]
      %v424 = vld [vmem:[%s330 + $0x29c] sm:$0xf]
      %v425 = vld [vmem:[%s330 + $0x2a0] sm:$0xff]
      %v426 = vld [vmem:[%s330 + $0x2a8] sm:$0xff]
      %v427 = vld [vmem:[%s330 + $0x2b0] sm:$0xff]
      %v428 = vld [vmem:[%s330 + $0x2b8] sm:$0xff]
      %v429 = vld [vmem:[%s330 + $0x2c0] sm:$0xff]
      %v430 = vld [vmem:[%s330 + $0x2c8] sm:$0xff]
      %v431 = vld [vmem:[%s330 + $0x2d0] sm:$0xff]
      %v432 = vld [vmem:[%s330 + $0x2d8] sm:$0xff]
      %v433 = vld [vmem:[%s330 + $0x2e0] sm:$0xff]
      %v434 = vld [vmem:[%s330 + $0x2e8] sm:$0xff]
      %v435 = vld [vmem:[%s330 + $0x2f0] sm:$0xf]
      %v436 = vld [vmem:[%s330 + $0x2f4] sm:$0xff]
      %v437 = vld [vmem:[%s330 + $0x2fc] sm:$0xff]
      %v438 = vld [vmem:[%s330 + $0x304] sm:$0xff]
      %v439 = vld [vmem:[%s330 + $0x30c] sm:$0xff]
      %v440 = vld [vmem:[%s330 + $0x314] sm:$0xff]
      %v441 = vld [vmem:[%s330 + $0x31c] sm:$0xff]
      %v442 = vld [vmem:[%s330 + $0x324] sm:$0xff]
      %v443 = vld [vmem:[%s330 + $0x32c] sm:$0xff]
      %v444 = vld [vmem:[%s330 + $0x334] sm:$0xff]
      %v445 = vld [vmem:[%s330 + $0x33c] sm:$0xff]
      %v446 = vld [vmem:[%s330 + $0x344] sm:$0xf]
      %v447 = vld [vmem:[%s330 + $0x348] sm:$0xff]
      %v448 = vld [vmem:[%s330 + $0x350] sm:$0xff]
      %v449 = vld [vmem:[%s330 + $0x358] sm:$0xff]
      %v450 = vld [vmem:[%s330 + $0x360] sm:$0xff]
      %v451 = vld [vmem:[%s330 + $0x368] sm:$0xff]
      %v452 = vld [vmem:[%s330 + $0x370] sm:$0xff]
      %v453 = vld [vmem:[%s330 + $0x378] sm:$0xff]
      %v454 = vld [vmem:[%s330 + $0x380] sm:$0xff]
      %v455 = vld [vmem:[%s330 + $0x388] sm:$0xff]
      %v456 = vld [vmem:[%s330 + $0x390] sm:$0xff]
      %v457 = vld [vmem:[%s330 + $0x398] sm:$0xf]
      %v458 = vld [vmem:[%s330 + $0x39c] sm:$0xff]
      %v459 = vld [vmem:[%s330 + $0x3a4] sm:$0xff]
      %v460 = vld [vmem:[%s330 + $0x3ac] sm:$0xff]
      %v461 = vld [vmem:[%s330 + $0x3b4] sm:$0xff]
      %v462 = vld [vmem:[%s330 + $0x3bc] sm:$0xff]
      %v463 = vld [vmem:[%s330 + $0x3c4] sm:$0xff]
      %v464 = vld [vmem:[%s330 + $0x3cc] sm:$0xff]
      %v465 = vld [vmem:[%s330 + $0x3d4] sm:$0xff]
      %v466 = vld [vmem:[%s330 + $0x3dc] sm:$0xff]
      %v467 = vld [vmem:[%s330 + $0x3e4] sm:$0xff]
      %v468 = vld [vmem:[%s330 + $0x3ec] sm:$0xf]
      %v469 = vld [vmem:[%s330 + $0x3f0] sm:$0xff]
      %v470 = vld [vmem:[%s330 + $0x3f8] sm:$0xff]
      %v471 = vld [vmem:[%s330 + $0x400] sm:$0xff]
      %v472 = vld [vmem:[%s330 + $0x408] sm:$0xff]
      %v473 = vld [vmem:[%s330 + $0x410] sm:$0xff]
      %v474 = vld [vmem:[%s330 + $0x418] sm:$0xff]
      %v475 = vld [vmem:[%s330 + $0x420] sm:$0xff]
      %v476 = vld [vmem:[%s330 + $0x428] sm:$0xff]
      %v477 = vld [vmem:[%s330 + $0x430] sm:$0xff]
      %v478 = vld [vmem:[%s330 + $0x438] sm:$0xff]
      %v479 = vld [vmem:[%s330 + $0x440] sm:$0xf]
      %v480 = vld [vmem:[%s330 + $0x444] sm:$0xff]
      %v481 = vld [vmem:[%s330 + $0x44c] sm:$0xff]
      %v482 = vld [vmem:[%s330 + $0x454] sm:$0xff]
      %v483 = vld [vmem:[%s330 + $0x45c] sm:$0xff]
      %v484 = vld [vmem:[%s330 + $0x464] sm:$0xff]
      %v485 = vld [vmem:[%s330 + $0x46c] sm:$0xff]
      %v486 = vld [vmem:[%s330 + $0x474] sm:$0xff]
      %v487 = vld [vmem:[%s330 + $0x47c] sm:$0xff]
      %v488 = vld [vmem:[%s330 + $0x484] sm:$0xff]
      %v489 = vld [vmem:[%s330 + $0x48c] sm:$0xff]
      %v490 = vld [vmem:[%s330 + $0x494] sm:$0xf]
      %v491 = vld [vmem:[%s330 + $0x498] sm:$0xff]
      %v492 = vld [vmem:[%s330 + $0x4a0] sm:$0xff]
      %v493 = vld [vmem:[%s330 + $0x4a8] sm:$0xff]
      %v494 = vld [vmem:[%s330 + $0x4b0] sm:$0xff]
      %v495 = vld [vmem:[%s330 + $0x4b8] sm:$0xff]
      %v496 = vld [vmem:[%s330 + $0x4c0] sm:$0xff]
      %v497 = vld [vmem:[%s330 + $0x4c8] sm:$0xff]
      %v498 = vld [vmem:[%s330 + $0x4d0] sm:$0xff]
      %v499 = vld [vmem:[%s330 + $0x4d8] sm:$0xff]
      %v500 = vld [vmem:[%s330 + $0x4e0] sm:$0xff]
      %v501 = vld [vmem:[%s330 + $0x4e8] sm:$0xf]
      %v502 = vld [vmem:[%s330 + $0x4ec] sm:$0xff]
      %v503 = vld [vmem:[%s330 + $0x4f4] sm:$0xff]
      %v504 = vld [vmem:[%s330 + $0x4fc] sm:$0xff]
      %v505 = vld [vmem:[%s330 + $0x504] sm:$0xff]
      %v506 = vld [vmem:[%s330 + $0x50c] sm:$0xff]
      %v507 = vld [vmem:[%s330 + $0x514] sm:$0xff]
      %v508 = vld [vmem:[%s330 + $0x51c] sm:$0xff]
      %v509 = vld [vmem:[%s330 + $0x524] sm:$0xff]
      %v510 = vld [vmem:[%s330 + $0x52c] sm:$0xff]
      %v511 = vld [vmem:[%s330 + $0x534] sm:$0xff]
      %v512 = vld [vmem:[%s330 + $0x53c] sm:$0xf]
      %v513 = vld [vmem:[%s330 + $0x540] sm:$0xff]
      %v514 = vld [vmem:[%s330 + $0x548] sm:$0xff]
      %v515 = vld [vmem:[%s330 + $0x550] sm:$0xff]
      %v516 = vld [vmem:[%s330 + $0x558] sm:$0xff]
      %v517 = vld [vmem:[%s330 + $0x560] sm:$0xff]
      %v518 = vld [vmem:[%s330 + $0x568] sm:$0xff]
      %v519 = vld [vmem:[%s330 + $0x570] sm:$0xff]
      %v520 = vld [vmem:[%s330 + $0x578] sm:$0xff]
      %v521 = vld [vmem:[%s330 + $0x580] sm:$0xff]
      %v522 = vld [vmem:[%s330 + $0x588] sm:$0xff]
      %v523 = vld [vmem:[%s330 + $0x590] sm:$0xf]
      %v524 = vld [vmem:[%s330 + $0x594] sm:$0xff]
      %v525 = vld [vmem:[%s330 + $0x59c] sm:$0xff]
      %v526 = vld [vmem:[%s330 + $0x5a4] sm:$0xff]
      %v527 = vld [vmem:[%s330 + $0x5ac] sm:$0xff]
      %v528 = vld [vmem:[%s330 + $0x5b4] sm:$0xff]
      %v529 = vld [vmem:[%s330 + $0x5bc] sm:$0xff]
      %v530 = vld [vmem:[%s330 + $0x5c4] sm:$0xff]
      %v531 = vld [vmem:[%s330 + $0x5cc] sm:$0xff]
      %v532 = vld [vmem:[%s330 + $0x5d4] sm:$0xff]
      %v533 = vld [vmem:[%s330 + $0x5dc] sm:$0xff]
      %v534 = vld [vmem:[%s330 + $0x5e4] sm:$0xf]
      %v535 = vld [vmem:[%s330 + $0x5e8] sm:$0xff]
      %v536 = vld [vmem:[%s330 + $0x5f0] sm:$0xff]
      %v537 = vld [vmem:[%s330 + $0x5f8] sm:$0xff]
      %v538 = vld [vmem:[%s330 + $0x600] sm:$0xff]
      %v539 = vld [vmem:[%s330 + $0x608] sm:$0xff]
      %v540 = vld [vmem:[%s330 + $0x610] sm:$0xff]
      %v541 = vld [vmem:[%s330 + $0x618] sm:$0xff]
      %v542 = vld [vmem:[%s330 + $0x620] sm:$0xff]
      %v543 = vld [vmem:[%s330 + $0x628] sm:$0xff]
      %v544 = vld [vmem:[%s330 + $0x630] sm:$0xff]
      %v545 = vld [vmem:[%s330 + $0x638] sm:$0xf]
      %v546 = vld [vmem:[%s330 + $0x63c] sm:$0xff]
      %v547 = vld [vmem:[%s330 + $0x644] sm:$0xff]
      %v548 = vld [vmem:[%s330 + $0x64c] sm:$0xff]
      %v549 = vld [vmem:[%s330 + $0x654] sm:$0xff]
      %v550 = vld [vmem:[%s330 + $0x65c] sm:$0xff]
      %v551 = vld [vmem:[%s330 + $0x664] sm:$0xff]
      %v552 = vld [vmem:[%s330 + $0x66c] sm:$0xff]
      %v553 = vld [vmem:[%s330 + $0x674] sm:$0xff]
      %v554 = vld [vmem:[%s330 + $0x67c] sm:$0xff]
      %v555 = vld [vmem:[%s330 + $0x684] sm:$0xff]
      %v556 = vld [vmem:[%s330 + $0x68c] sm:$0xf]
      %v557 = vld [vmem:[%s1] sm:$0xff]
      %v558 = vld [vmem:[%s1 + $0x8] sm:$0xf]
      %v559 = vld [vmem:[%s1 + $0xc] sm:$0xff]
      %v560 = vld [vmem:[%s1 + $0x14] sm:$0xf]
      %v561 = vld [vmem:[%s1 + $0x18] sm:$0xff]
      %v562 = vld [vmem:[%s1 + $0x20] sm:$0xf]
      %v563 = vld [vmem:[%s1 + $0x24] sm:$0xff]
      %v564 = vld [vmem:[%s1 + $0x2c] sm:$0xf]
      %v565 = vld [vmem:[%s1 + $0x30] sm:$0xff]
      %v566 = vld [vmem:[%s1 + $0x38] sm:$0xf]
      %v567 = vld [vmem:[%s1 + $0x3c] sm:$0xff]
      %v568 = vld [vmem:[%s1 + $0x44] sm:$0xf]
      %v569 = vld [vmem:[%s1 + $0x48] sm:$0xff]
      %v570 = vld [vmem:[%s1 + $0x50] sm:$0xf]
      %v571 = vld [vmem:[%s1 + $0x54] sm:$0xff]
      %v572 = vld [vmem:[%s1 + $0x5c] sm:$0xf]
      %v573 = vld [vmem:[%s1 + $0x60] sm:$0xff]
      %v574 = vld [vmem:[%s1 + $0x68] sm:$0xf]
      %v575 = vld [vmem:[%s1 + $0x6c] sm:$0xff]
      %v576 = vld [vmem:[%s1 + $0x74] sm:$0xf]
      %v577 = vld [vmem:[%s1 + $0x78] sm:$0xff]
      %v578 = vld [vmem:[%s1 + $0x80] sm:$0xf]
      %v579 = vld [vmem:[%s1 + $0x84] sm:$0xff]
      %v580 = vld [vmem:[%s1 + $0x8c] sm:$0xf]
      %v581 = vld [vmem:[%s1 + $0x90] sm:$0xff]
      %v582 = vld [vmem:[%s1 + $0x98] sm:$0xf]
      %v583 = vld [vmem:[%s1 + $0x9c] sm:$0xff]
      %v584 = vld [vmem:[%s1 + $0xa4] sm:$0xf]
      %v585 = vld [vmem:[%s1 + $0xa8] sm:$0xff]
      %v586 = vld [vmem:[%s1 + $0xb0] sm:$0xf]
      %v587 = vld [vmem:[%s1 + $0xb4] sm:$0xff]
      %v588 = vld [vmem:[%s1 + $0xbc] sm:$0xf]
      %v589 = vld [vmem:[%s1 + $0xc0] sm:$0xff]
      %v590 = vld [vmem:[%s1 + $0xc8] sm:$0xf]
      %v591 = vld [vmem:[%s1 + $0xcc] sm:$0xff]
      %v592 = vld [vmem:[%s1 + $0xd4] sm:$0xf]
      %v593 = vld [vmem:[%s1 + $0xd8] sm:$0xff]
      %v594 = vld [vmem:[%s1 + $0xe0] sm:$0xf]
      %v595 = vld [vmem:[%s1 + $0xe4] sm:$0xff]
      %v596 = vld [vmem:[%s1 + $0xec] sm:$0xf]
      %v597 = vld [vmem:[%s1 + $0xf0] sm:$0xff]
      %v598 = vld [vmem:[%s1 + $0xf8] sm:$0xf]
      %v599 = vld [vmem:[%s1 + $0xfc] sm:$0xff]
      %v600 = vld [vmem:[%s1 + $0x104] sm:$0xf]
      %v601 = vld [vmem:[%s1 + $0x108] sm:$0xff]
      %v602 = vld [vmem:[%s1 + $0x110] sm:$0xf]
      %v603 = vld [vmem:[%s1 + $0x114] sm:$0xff]
      %v604 = vld [vmem:[%s1 + $0x11c] sm:$0xf]
      %v605 = vld [vmem:[%s1 + $0x120] sm:$0xff]
      %v606 = vld [vmem:[%s1 + $0x128] sm:$0xf]
      %v607 = vld [vmem:[%s1 + $0x12c] sm:$0xff]
      %v608 = vld [vmem:[%s1 + $0x134] sm:$0xf]
      %v609 = vld [vmem:[%s1 + $0x138] sm:$0xff]
      %v610 = vld [vmem:[%s1 + $0x140] sm:$0xf]
      %v611 = vld [vmem:[%s1 + $0x144] sm:$0xff]
      %v612 = vld [vmem:[%s1 + $0x14c] sm:$0xf]
      %v613 = vld [vmem:[%s1 + $0x150] sm:$0xff]
      %v614 = vld [vmem:[%s1 + $0x158] sm:$0xf]
      %v615 = vld [vmem:[%s1 + $0x15c] sm:$0xff]
      %v616 = vld [vmem:[%s1 + $0x164] sm:$0xf]
      %v617 = vld [vmem:[%s1 + $0x168] sm:$0xff]
      %v618 = vld [vmem:[%s1 + $0x170] sm:$0xf]
      %v619 = vld [vmem:[%s1 + $0x174] sm:$0xff]
      %v620 = vld [vmem:[%s1 + $0x17c] sm:$0xf]
      %v621 = vld [vmem:[%s1 + $0x180] sm:$0xff]
      %v622 = vld [vmem:[%s1 + $0x188] sm:$0xf]
      %v623 = vld [vmem:[%s1 + $0x18c] sm:$0xff]
      %v624 = vld [vmem:[%s1 + $0x194] sm:$0xf]
      %v625 = vld [vmem:[%s1 + $0x198] sm:$0xff]
      %v626 = vld [vmem:[%s1 + $0x1a0] sm:$0xf]
      %v627 = vld [vmem:[%s1 + $0x1a4] sm:$0xff]
      %v628 = vld [vmem:[%s1 + $0x1ac] sm:$0xf]
      %v629 = vld [vmem:[%s1 + $0x1b0] sm:$0xff]
      %v630 = vld [vmem:[%s1 + $0x1b8] sm:$0xf]
      %v631 = vld [vmem:[%s1 + $0x1bc] sm:$0xff]
      %v632 = vld [vmem:[%s1 + $0x1c4] sm:$0xf]
      %v633 = vld [vmem:[%s1 + $0x1c8] sm:$0xff]
      %v634 = vld [vmem:[%s1 + $0x1d0] sm:$0xf]
      %v635 = vld [vmem:[%s1 + $0x1d4] sm:$0xff]
      %v636 = vld [vmem:[%s1 + $0x1dc] sm:$0xf]
      %v637 = vld [vmem:[%s1 + $0x1e0] sm:$0xff]
      %v638 = vld [vmem:[%s1 + $0x1e8] sm:$0xf]
      %v639 = vld [vmem:[%s1 + $0x1ec] sm:$0xff]
      %v640 = vld [vmem:[%s1 + $0x1f4] sm:$0xf]
      %v641 = vld [vmem:[%s1 + $0x1f8] sm:$0xff]
      %v642 = vld [vmem:[%s1 + $0x200] sm:$0xf]
      %v643 = vld [vmem:[%s1 + $0x204] sm:$0xff]
      %v644 = vld [vmem:[%s1 + $0x20c] sm:$0xf]
      %v645 = vld [vmem:[%s1 + $0x210] sm:$0xff]
      %v646 = vld [vmem:[%s1 + $0x218] sm:$0xf]
      %v647 = vld [vmem:[%s1 + $0x21c] sm:$0xff]
      %v648 = vld [vmem:[%s1 + $0x224] sm:$0xf]
      %v649 = vld [vmem:[%s1 + $0x228] sm:$0xff]
      %v650 = vld [vmem:[%s1 + $0x230] sm:$0xf]
      %v651 = vld [vmem:[%s1 + $0x234] sm:$0xff]
      %v652 = vld [vmem:[%s1 + $0x23c] sm:$0xf]
      %v653 = vld [vmem:[%s1 + $0x240] sm:$0xff]
      %v654 = vld [vmem:[%s1 + $0x248] sm:$0xf]
      %v655 = vld [vmem:[%s1 + $0x24c] sm:$0xff]
      %v656 = vld [vmem:[%s1 + $0x254] sm:$0xf]
      %v657 = vld [vmem:[%s1 + $0x258] sm:$0xff]
      %v658 = vld [vmem:[%s1 + $0x260] sm:$0xf]
      %v659 = vld [vmem:[%s1 + $0x264] sm:$0xff]
      %v660 = vld [vmem:[%s1 + $0x26c] sm:$0xf]
      %v661 = vld [vmem:[%s1 + $0x270] sm:$0xff]
      %v662 = vld [vmem:[%s1 + $0x278] sm:$0xf]
      %v663 = vld [vmem:[%s1 + $0x27c] sm:$0xff]
      %v664 = vld [vmem:[%s1 + $0x284] sm:$0xf]
      %v665 = vld [vmem:[%s1 + $0x288] sm:$0xff]
      %v666 = vld [vmem:[%s1 + $0x290] sm:$0xf]
      %v667 = vld [vmem:[%s1 + $0x294] sm:$0xff]
      %v668 = vld [vmem:[%s1 + $0x29c] sm:$0xf]
      %v669 = vld [vmem:[%s1 + $0x2a0] sm:$0xff]
      %v670 = vld [vmem:[%s1 + $0x2a8] sm:$0xf]
      %v671 = vld [vmem:[%s1 + $0x2ac] sm:$0xff]
      %v672 = vld [vmem:[%s1 + $0x2b4] sm:$0xf]
      %v673 = vld [vmem:[%s1 + $0x2b8] sm:$0xff]
      %v674 = vld [vmem:[%s1 + $0x2c0] sm:$0xf]
      %v675 = vld [vmem:[%s1 + $0x2c4] sm:$0xff]
      %v676 = vld [vmem:[%s1 + $0x2cc] sm:$0xf]
      %v677 = vld [vmem:[%s1 + $0x2d0] sm:$0xff]
      %v678 = vld [vmem:[%s1 + $0x2d8] sm:$0xf]
      %v679 = vld [vmem:[%s1 + $0x2dc] sm:$0xff]
      %v680 = vld [vmem:[%s1 + $0x2e4] sm:$0xf]
      %v681 = vld [vmem:[%s1 + $0x2e8] sm:$0xff]
      %v682 = vld [vmem:[%s1 + $0x2f0] sm:$0xf]
      %v683 = vld [vmem:[%s1 + $0x2f4] sm:$0xff]
      %v684 = vld [vmem:[%s1 + $0x2fc] sm:$0xf]
      %v685 = vld [vmem:[%s1 + $0x300] sm:$0xff]
      %v686 = vld [vmem:[%s1 + $0x308] sm:$0xf]
      %v687 = vld [vmem:[%s1 + $0x30c] sm:$0xff]
      %v688 = vld [vmem:[%s1 + $0x314] sm:$0xf]
      %v689 = vld [vmem:[%s1 + $0x318] sm:$0xff]
      %v690 = vld [vmem:[%s1 + $0x320] sm:$0xf]
      %v691 = vld [vmem:[%s1 + $0x324] sm:$0xff]
      %v692 = vld [vmem:[%s1 + $0x32c] sm:$0xf]
      %v693 = vld [vmem:[%s1 + $0x330] sm:$0xff]
      %v694 = vld [vmem:[%s1 + $0x338] sm:$0xf]
      %v695 = vld [vmem:[%s1 + $0x33c] sm:$0xff]
      %v696 = vld [vmem:[%s1 + $0x344] sm:$0xf]
      %v697 = vld [vmem:[%s1 + $0x348] sm:$0xff]
      %v698 = vld [vmem:[%s1 + $0x350] sm:$0xf]
      %v699 = vld [vmem:[%s1 + $0x354] sm:$0xff]
      %v700 = vld [vmem:[%s1 + $0x35c] sm:$0xf]
      %v701 = vld [vmem:[%s1 + $0x360] sm:$0xff]
      %v702 = vld [vmem:[%s1 + $0x368] sm:$0xf]
      %v703 = vld [vmem:[%s1 + $0x36c] sm:$0xff]
      %v704 = vld [vmem:[%s1 + $0x374] sm:$0xf]
      %v705 = vld [vmem:[%s1 + $0x378] sm:$0xff]
      %v706 = vld [vmem:[%s1 + $0x380] sm:$0xf]
      %v707 = vld [vmem:[%s1 + $0x384] sm:$0xff]
      %v708 = vld [vmem:[%s1 + $0x38c] sm:$0xf]
      %v709 = vld [vmem:[%s1 + $0x390] sm:$0xff]
      %v710 = vld [vmem:[%s1 + $0x398] sm:$0xf]
      %v711 = vld [vmem:[%s1 + $0x39c] sm:$0xff]
      %v712 = vld [vmem:[%s1 + $0x3a4] sm:$0xf]
      %v713 = vld [vmem:[%s1 + $0x3a8] sm:$0xff]
      %v714 = vld [vmem:[%s1 + $0x3b0] sm:$0xf]
      %v715 = vld [vmem:[%s1 + $0x3b4] sm:$0xff]
      %v716 = vld [vmem:[%s1 + $0x3bc] sm:$0xf]
      %v717 = vld [vmem:[%s1 + $0x3c0] sm:$0xff]
      %v718 = vld [vmem:[%s1 + $0x3c8] sm:$0xf]
      %v719 = vld [vmem:[%s1 + $0x3cc] sm:$0xff]
      %v720 = vld [vmem:[%s1 + $0x3d4] sm:$0xf]
      %v721 = vld [vmem:[%s1 + $0x3d8] sm:$0xff]
      %v722 = vld [vmem:[%s1 + $0x3e0] sm:$0xf]
      %v723 = vld [vmem:[%s1 + $0x3e4] sm:$0xff]
      %v724 = vld [vmem:[%s1 + $0x3ec] sm:$0xf]
      %v725 = vld [vmem:[%s1 + $0x3f0] sm:$0xff]
      %v726 = vld [vmem:[%s1 + $0x3f8] sm:$0xf]
      %v727 = vld [vmem:[%s1 + $0x3fc] sm:$0xff]
      %v728 = vld [vmem:[%s1 + $0x404] sm:$0xf]
      %v729 = vld [vmem:[%s1 + $0x408] sm:$0xff]
      %v730 = vld [vmem:[%s1 + $0x410] sm:$0xf]
      %v731 = vld [vmem:[%s1 + $0x414] sm:$0xff]
      %v732 = vld [vmem:[%s1 + $0x41c] sm:$0xf]
      %v733 = vld [vmem:[%s1 + $0x420] sm:$0xff]
      %v734 = vld [vmem:[%s1 + $0x428] sm:$0xf]
      %v735 = vld [vmem:[%s1 + $0x42c] sm:$0xff]
      %v736 = vld [vmem:[%s1 + $0x434] sm:$0xf]
      %v737 = vld [vmem:[%s1 + $0x438] sm:$0xff]
      %v738 = vld [vmem:[%s1 + $0x440] sm:$0xf]
      %v739 = vld [vmem:[%s1 + $0x444] sm:$0xff]
      %v740 = vld [vmem:[%s1 + $0x44c] sm:$0xf]
      %v741 = vld [vmem:[%s1 + $0x450] sm:$0xff]
      %v742 = vld [vmem:[%s1 + $0x458] sm:$0xf]
      %v743 = vld [vmem:[%s1 + $0x45c] sm:$0xff]
      %v744 = vld [vmem:[%s1 + $0x464] sm:$0xf]
      %v745 = vld [vmem:[%s1 + $0x468] sm:$0xff]
      %v746 = vld [vmem:[%s1 + $0x470] sm:$0xf]
      %v747 = vld [vmem:[%s1 + $0x474] sm:$0xff]
      %v748 = vld [vmem:[%s1 + $0x47c] sm:$0xf]
      %v749 = vld [vmem:[%s1 + $0x480] sm:$0xff]
      %v750 = vld [vmem:[%s1 + $0x488] sm:$0xf]
      %v751 = vld [vmem:[%s1 + $0x48c] sm:$0xff]
      %v752 = vld [vmem:[%s1 + $0x494] sm:$0xf]
      %v753 = vld [vmem:[%s1 + $0x498] sm:$0xff]
      %v754 = vld [vmem:[%s1 + $0x4a0] sm:$0xf]
      %v755 = vld [vmem:[%s1 + $0x4a4] sm:$0xff]
      %v756 = vld [vmem:[%s1 + $0x4ac] sm:$0xf]
      %v757 = vld [vmem:[%s1 + $0x4b0] sm:$0xff]
      %v758 = vld [vmem:[%s1 + $0x4b8] sm:$0xf]
      %v759 = vld [vmem:[%s1 + $0x4bc] sm:$0xff]
      %v760 = vld [vmem:[%s1 + $0x4c4] sm:$0xf]
      %v761 = vld [vmem:[%s1 + $0x4c8] sm:$0xff]
      %v762 = vld [vmem:[%s1 + $0x4d0] sm:$0xf]
      %v763 = vld [vmem:[%s1 + $0x4d4] sm:$0xff]
      %v764 = vld [vmem:[%s1 + $0x4dc] sm:$0xf]
      %v765 = vld [vmem:[%s1 + $0x4e0] sm:$0xff]
      %v766 = vld [vmem:[%s1 + $0x4e8] sm:$0xf]
      %v767 = vld [vmem:[%s1 + $0x4ec] sm:$0xff]
      %v768 = vld [vmem:[%s1 + $0x4f4] sm:$0xf]
      %v769 = vld [vmem:[%s1 + $0x4f8] sm:$0xff]
      %v770 = vld [vmem:[%s1 + $0x500] sm:$0xf]
      %v771 = vld [vmem:[%s1 + $0x504] sm:$0xff]
      %v772 = vld [vmem:[%s1 + $0x50c] sm:$0xf]
      %v773 = vld [vmem:[%s1 + $0x510] sm:$0xff]
      %v774 = vld [vmem:[%s1 + $0x518] sm:$0xf]
      %v775 = vld [vmem:[%s1 + $0x51c] sm:$0xff]
      %v776 = vld [vmem:[%s1 + $0x524] sm:$0xf]
      %v777 = vld [vmem:[%s1 + $0x528] sm:$0xff]
      %v778 = vld [vmem:[%s1 + $0x530] sm:$0xf]
      %v779 = vld [vmem:[%s1 + $0x534] sm:$0xff]
      %v780 = vld [vmem:[%s1 + $0x53c] sm:$0xf]
      %v781 = vld [vmem:[%s1 + $0x540] sm:$0xff]
      %v782 = vld [vmem:[%s1 + $0x548] sm:$0xf]
      %v783 = vld [vmem:[%s1 + $0x54c] sm:$0xff]
      %v784 = vld [vmem:[%s1 + $0x554] sm:$0xf]
      %v785 = vld [vmem:[%s1 + $0x558] sm:$0xff]
      %v786 = vld [vmem:[%s1 + $0x560] sm:$0xf]
      %v787 = vld [vmem:[%s1 + $0x564] sm:$0xff]
      %v788 = vld [vmem:[%s1 + $0x56c] sm:$0xf]
      %v789 = vld [vmem:[%s1 + $0x570] sm:$0xff]
      %v790 = vld [vmem:[%s1 + $0x578] sm:$0xf]
      %v791 = vld [vmem:[%s1 + $0x57c] sm:$0xff]
      %v792 = vld [vmem:[%s1 + $0x584] sm:$0xf]
      %v793 = vld [vmem:[%s1 + $0x588] sm:$0xff]
      %v794 = vld [vmem:[%s1 + $0x590] sm:$0xf]
      %v795 = vld [vmem:[%s1 + $0x594] sm:$0xff]
      %v796 = vld [vmem:[%s1 + $0x59c] sm:$0xf]
      %v797 = vld [vmem:[%s1 + $0x5a0] sm:$0xff]
      %v798 = vld [vmem:[%s1 + $0x5a8] sm:$0xf]
      %v799 = vld [vmem:[%s1 + $0x5ac] sm:$0xff]
      %v800 = vld [vmem:[%s1 + $0x5b4] sm:$0xf]
      %v801 = vld [vmem:[%s1 + $0x5b8] sm:$0xff]
      %v802 = vld [vmem:[%s1 + $0x5c0] sm:$0xf]
      %v803 = vld [vmem:[%s1 + $0x5c4] sm:$0xff]
      %v804 = vld [vmem:[%s1 + $0x5cc] sm:$0xf]
      %v805 = vld [vmem:[%s1 + $0x5d0] sm:$0xff]
      %v806 = vld [vmem:[%s1 + $0x5d8] sm:$0xf]
      %v807 = vld [vmem:[%s1 + $0x5dc] sm:$0xff]
      %v808 = vld [vmem:[%s1 + $0x5e4] sm:$0xf]
      %v809 = vld [vmem:[%s1 + $0x5e8] sm:$0xff]
      %v810 = vld [vmem:[%s1 + $0x5f0] sm:$0xf]
      %v811 = vld [vmem:[%s1 + $0x5f4] sm:$0xff]
      %v812 = vld [vmem:[%s1 + $0x5fc] sm:$0xf]
      %v813 = vld [vmem:[%s1 + $0x600] sm:$0xff]
      %v814 = vld [vmem:[%s1 + $0x608] sm:$0xf]
      %v815 = vld [vmem:[%s1 + $0x60c] sm:$0xff]
      %v816 = vld [vmem:[%s1 + $0x614] sm:$0xf]
      %v817 = vld [vmem:[%s1 + $0x618] sm:$0xff]
      %v818 = vld [vmem:[%s1 + $0x620] sm:$0xf]
      %v819 = vld [vmem:[%s1 + $0x624] sm:$0xff]
      %v820 = vld [vmem:[%s1 + $0x62c] sm:$0xf]
      %v821 = vld [vmem:[%s1 + $0x630] sm:$0xff]
      %v822 = vld [vmem:[%s1 + $0x638] sm:$0xf]
      %v823 = vld [vmem:[%s1 + $0x63c] sm:$0xff]
      %v824 = vld [vmem:[%s1 + $0x644] sm:$0xf]
      %v825 = vld [vmem:[%s1 + $0x648] sm:$0xff]
      %v826 = vld [vmem:[%s1 + $0x650] sm:$0xf]
      %v827 = vld [vmem:[%s1 + $0x654] sm:$0xff]
      %v828 = vld [vmem:[%s1 + $0x65c] sm:$0xf]
      %v829 = vld [vmem:[%s1 + $0x660] sm:$0xff]
      %v830 = vld [vmem:[%s1 + $0x668] sm:$0xf]
      %v831 = vld [vmem:[%s1 + $0x66c] sm:$0xff]
      %v832 = vld [vmem:[%s1 + $0x674] sm:$0xf]
      %v833 = vld [vmem:[%s1 + $0x678] sm:$0xff]
      %v834 = vld [vmem:[%s1 + $0x680] sm:$0xf]
      %v835 = vld [vmem:[%s1 + $0x684] sm:$0xff]
      %v836 = vld [vmem:[%s1 + $0x68c] sm:$0xf]
      %v837 = vld [vmem:[%s1 + $0x690] sm:$0xff]
      %v838 = vld [vmem:[%s1 + $0x698] sm:$0xf]
      %v839 = vld [vmem:[%s1 + $0x69c] sm:$0xff]
      %v840 = vld [vmem:[%s1 + $0x6a4] sm:$0xf]
      %v841 = vld [vmem:[%s1 + $0x6a8] sm:$0xff]
      %v842 = vld [vmem:[%s1 + $0x6b0] sm:$0xf]
      %v843 = vld [vmem:[%s1 + $0x6b4] sm:$0xff]
      %v844 = vld [vmem:[%s1 + $0x6bc] sm:$0xf]
      %v845 = vld [vmem:[%s1 + $0x6c0] sm:$0xff]
      %v846 = vld [vmem:[%s1 + $0x6c8] sm:$0xf]
      %v847 = vld [vmem:[%s1 + $0x6cc] sm:$0xff]
      %v848 = vld [vmem:[%s1 + $0x6d4] sm:$0xf]
      %v849 = vld [vmem:[%s1 + $0x6d8] sm:$0xff]
      %v850 = vld [vmem:[%s1 + $0x6e0] sm:$0xf]
      %v851 = vld [vmem:[%s1 + $0x6e4] sm:$0xff]
      %v852 = vld [vmem:[%s1 + $0x6ec] sm:$0xf]
      %v853 = vld [vmem:[%s1 + $0x6f0] sm:$0xff]
      %v854 = vld [vmem:[%s1 + $0x6f8] sm:$0xf]
      %v855 = vld [vmem:[%s1 + $0x6fc] sm:$0xff]
      %v856 = vld [vmem:[%s1 + $0x704] sm:$0xf]
      %v857 = vld [vmem:[%s1 + $0x708] sm:$0xff]
      %v858 = vld [vmem:[%s1 + $0x710] sm:$0xf]
      %v859 = vld [vmem:[%s1 + $0x714] sm:$0xff]
      %v860 = vld [vmem:[%s1 + $0x71c] sm:$0xf]
      %v861 = vld [vmem:[%s1 + $0x720] sm:$0xff]
      %v862 = vld [vmem:[%s1 + $0x728] sm:$0xf]
      %v863 = vld [vmem:[%s1 + $0x72c] sm:$0xff]
      %v864 = vld [vmem:[%s1 + $0x734] sm:$0xf]
      %v865 = vld [vmem:[%s1 + $0x738] sm:$0xff]
      %v866 = vld [vmem:[%s1 + $0x740] sm:$0xf]
      %v867 = vld [vmem:[%s1 + $0x744] sm:$0xff]
      %v868 = vld [vmem:[%s1 + $0x74c] sm:$0xf]
      %v869 = vld [vmem:[%s1 + $0x750] sm:$0xff]
      %v870 = vld [vmem:[%s1 + $0x758] sm:$0xf]
      %v871 = vld [vmem:[%s1 + $0x75c] sm:$0xff]
      %v872 = vld [vmem:[%s1 + $0x764] sm:$0xf]
      %v873 = vld [vmem:[%s1 + $0x768] sm:$0xff]
      %v874 = vld [vmem:[%s1 + $0x770] sm:$0xf]
      %v875 = vld [vmem:[%s1 + $0x774] sm:$0xff]
      %v876 = vld [vmem:[%s1 + $0x77c] sm:$0xf]
      %v877 = vld [vmem:[%s1 + $0x780] sm:$0xff]
      %v878 = vld [vmem:[%s1 + $0x788] sm:$0xf]
      %v879 = vld [vmem:[%s1 + $0x78c] sm:$0xff]
      %v880 = vld [vmem:[%s1 + $0x794] sm:$0xf]
      %v881 = vld [vmem:[%s1 + $0x798] sm:$0xff]
      %v882 = vld [vmem:[%s1 + $0x7a0] sm:$0xf]
      %v883 = vld [vmem:[%s1 + $0x7a4] sm:$0xff]
      %v884 = vld [vmem:[%s1 + $0x7ac] sm:$0xf]
      %v885 = vld [vmem:[%s1 + $0x7b0] sm:$0xff]
      %v886 = vld [vmem:[%s1 + $0x7b8] sm:$0xf]
      %v887 = vld [vmem:[%s1 + $0x7bc] sm:$0xff]
      %v888 = vld [vmem:[%s1 + $0x7c4] sm:$0xf]
      %v889 = vld [vmem:[%s1 + $0x7c8] sm:$0xff]
      %v890 = vld [vmem:[%s1 + $0x7d0] sm:$0xf]
      %v891 = vld [vmem:[%s1 + $0x7d4] sm:$0xff]
      %v892 = vld [vmem:[%s1 + $0x7dc] sm:$0xf]
      %v893 = vld [vmem:[%s1 + $0x7e0] sm:$0xff]
      %v894 = vld [vmem:[%s1 + $0x7e8] sm:$0xf]
      %v895 = vld [vmem:[%s1 + $0x7ec] sm:$0xff]
      %v896 = vld [vmem:[%s1 + $0x7f4] sm:$0xf]
      %v897 = vld [vmem:[%s1 + $0x7f8] sm:$0xff]
      %v898 = vld [vmem:[%s1 + $0x800] sm:$0xf]
      %v899 = vld [vmem:[%s1 + $0x804] sm:$0xff]
      %v900 = vld [vmem:[%s1 + $0x80c] sm:$0xf]
      %v901 = vld [vmem:[%s1 + $0x810] sm:$0xff]
      %v902 = vld [vmem:[%s1 + $0x818] sm:$0xf]
      %v903 = vld [vmem:[%s1 + $0x81c] sm:$0xff]
      %v904 = vld [vmem:[%s1 + $0x824] sm:$0xf]
      %v905 = vld [vmem:[%s1 + $0x828] sm:$0xff]
      %v906 = vld [vmem:[%s1 + $0x830] sm:$0xf]
      %v907 = vld [vmem:[%s1 + $0x834] sm:$0xff]
      %v908 = vld [vmem:[%s1 + $0x83c] sm:$0xf]
      %v909 = vld [vmem:[%s1 + $0x840] sm:$0xff]
      %v910 = vld [vmem:[%s1 + $0x848] sm:$0xf]
      %v911 = vld [vmem:[%s1 + $0x84c] sm:$0xff]
      %v912 = vld [vmem:[%s1 + $0x854] sm:$0xf]
      %v913 = vld [vmem:[%s1 + $0x858] sm:$0xff]
      %v914 = vld [vmem:[%s1 + $0x860] sm:$0xf]
      %v915 = vld [vmem:[%s1 + $0x864] sm:$0xff]
      %v916 = vld [vmem:[%s1 + $0x86c] sm:$0xf]
      %v917 = vld [vmem:[%s1 + $0x870] sm:$0xff]
      %v918 = vld [vmem:[%s1 + $0x878] sm:$0xf]
      %v919 = vld [vmem:[%s1 + $0x87c] sm:$0xff]
      %v920 = vld [vmem:[%s1 + $0x884] sm:$0xf]
      %v921 = vld [vmem:[%s1 + $0x888] sm:$0xff]
      %v922 = vld [vmem:[%s1 + $0x890] sm:$0xf]
      %v923 = vld [vmem:[%s1 + $0x894] sm:$0xff]
      %v924 = vld [vmem:[%s1 + $0x89c] sm:$0xf]
      %v925 = vld [vmem:[%s1 + $0x8a0] sm:$0xff]
      %v926 = vld [vmem:[%s1 + $0x8a8] sm:$0xf]
      %v927 = vld [vmem:[%s1 + $0x8ac] sm:$0xff]
      %v928 = vld [vmem:[%s1 + $0x8b4] sm:$0xf]
      %v929 = vld [vmem:[%s1 + $0x8b8] sm:$0xff]
      %v930 = vld [vmem:[%s1 + $0x8c0] sm:$0xf]
      %v931 = vld [vmem:[%s1 + $0x8c4] sm:$0xff]
      %v932 = vld [vmem:[%s1 + $0x8cc] sm:$0xf]
      %v933 = vld [vmem:[%s1 + $0x8d0] sm:$0xff]
      %v934 = vld [vmem:[%s1 + $0x8d8] sm:$0xf]
      %v935 = vld [vmem:[%s1 + $0x8dc] sm:$0xff]
      %v936 = vld [vmem:[%s1 + $0x8e4] sm:$0xf]
      %v937 = vld [vmem:[%s1 + $0x8e8] sm:$0xff]
      %v938 = vld [vmem:[%s1 + $0x8f0] sm:$0xf]
      %v939 = vld [vmem:[%s1 + $0x8f4] sm:$0xff]
      %v940 = vld [vmem:[%s1 + $0x8fc] sm:$0xf]
      %v941 = vld [vmem:[%s1 + $0x900] sm:$0xff]
      %v942 = vld [vmem:[%s1 + $0x908] sm:$0xf]
      %v943 = vld [vmem:[%s1 + $0x90c] sm:$0xff]
      %v944 = vld [vmem:[%s1 + $0x914] sm:$0xf]
      %v945 = vld [vmem:[%s1 + $0x918] sm:$0xff]
      %v946 = vld [vmem:[%s1 + $0x920] sm:$0xf]
      %v947 = vld [vmem:[%s1 + $0x924] sm:$0xff]
      %v948 = vld [vmem:[%s1 + $0x92c] sm:$0xf]
      %v949 = vld [vmem:[%s1 + $0x930] sm:$0xff]
      %v950 = vld [vmem:[%s1 + $0x938] sm:$0xf]
      %v951 = vld [vmem:[%s1 + $0x93c] sm:$0xff]
      %v952 = vld [vmem:[%s1 + $0x944] sm:$0xf]
      %v953 = vld [vmem:[%s1 + $0x948] sm:$0xff]
      %v954 = vld [vmem:[%s1 + $0x950] sm:$0xf]
      %v955 = vld [vmem:[%s1 + $0x954] sm:$0xff]
      %v956 = vld [vmem:[%s1 + $0x95c] sm:$0xf]
      %v957 = vld [vmem:[%s1 + $0x960] sm:$0xff]
      %v958 = vld [vmem:[%s1 + $0x968] sm:$0xf]
      %v959 = vld [vmem:[%s1 + $0x96c] sm:$0xff]
      %v960 = vld [vmem:[%s1 + $0x974] sm:$0xf]
      %v961 = vld [vmem:[%s1 + $0x978] sm:$0xff]
      %v962 = vld [vmem:[%s1 + $0x980] sm:$0xf]
      %v963 = vld [vmem:[%s1 + $0x984] sm:$0xff]
      %v964 = vld [vmem:[%s1 + $0x98c] sm:$0xf]
      %v965 = vld [vmem:[%s1 + $0x990] sm:$0xff]
      %v966 = vld [vmem:[%s1 + $0x998] sm:$0xf]
      %v967 = vld [vmem:[%s1 + $0x99c] sm:$0xff]
      %v968 = vld [vmem:[%s1 + $0x9a4] sm:$0xf]
      %v969 = vld [vmem:[%s1 + $0x9a8] sm:$0xff]
      %v970 = vld [vmem:[%s1 + $0x9b0] sm:$0xf]
      %v971 = vld [vmem:[%s1 + $0x9b4] sm:$0xff]
      %v972 = vld [vmem:[%s1 + $0x9bc] sm:$0xf]
      %v973 = vld [vmem:[%s1 + $0x9c0] sm:$0xff]
      %v974 = vld [vmem:[%s1 + $0x9c8] sm:$0xf]
      %v975 = vld [vmem:[%s1 + $0x9cc] sm:$0xff]
      %v976 = vld [vmem:[%s1 + $0x9d4] sm:$0xf]
      %v977 = vld [vmem:[%s1 + $0x9d8] sm:$0xff]
      %v978 = vld [vmem:[%s1 + $0x9e0] sm:$0xf]
      %v979 = vld [vmem:[%s1 + $0x9e4] sm:$0xff]
      %v980 = vld [vmem:[%s1 + $0x9ec] sm:$0xf]
      %v981 = vld [vmem:[%s1 + $0x9f0] sm:$0xff]
      %v982 = vld [vmem:[%s1 + $0x9f8] sm:$0xf]
      %v983 = vld [vmem:[%s1 + $0x9fc] sm:$0xff]
      %v984 = vld [vmem:[%s1 + $0xa04] sm:$0xf]
      %v985 = vld [vmem:[%s1 + $0xa08] sm:$0xff]
      %v986 = vld [vmem:[%s1 + $0xa10] sm:$0xf]
      %v987 = vld [vmem:[%s1 + $0xa14] sm:$0xff]
      %v988 = vld [vmem:[%s1 + $0xa1c] sm:$0xf]
      %v989 = vld [vmem:[%s1 + $0xa20] sm:$0xff]
      %v990 = vld [vmem:[%s1 + $0xa28] sm:$0xf]
      %v991 = vld [vmem:[%s1 + $0xa2c] sm:$0xff]
      %v992 = vld [vmem:[%s1 + $0xa34] sm:$0xf]
      %v993 = vld [vmem:[%s1 + $0xa38] sm:$0xff]
      %v994 = vld [vmem:[%s1 + $0xa40] sm:$0xf]
      %v995 = vld [vmem:[%s1 + $0xa44] sm:$0xff]
      %v996 = vld [vmem:[%s1 + $0xa4c] sm:$0xf]
      %v997 = vld [vmem:[%s1 + $0xa50] sm:$0xff]
      %v998 = vld [vmem:[%s1 + $0xa58] sm:$0xf]
      %v999 = vld [vmem:[%s1 + $0xa5c] sm:$0xff]
      %v1000 = vld [vmem:[%s1 + $0xa64] sm:$0xf]
      %v1001 = vld [vmem:[%s1 + $0xa68] sm:$0xff]
      %v1002 = vld [vmem:[%s1 + $0xa70] sm:$0xf]
      %v1003 = vld [vmem:[%s1 + $0xa74] sm:$0xff]
      %v1004 = vld [vmem:[%s1 + $0xa7c] sm:$0xf]
      %v1005 = vld [vmem:[%s1 + $0xa80] sm:$0xff]
      %v1006 = vld [vmem:[%s1 + $0xa88] sm:$0xf]
      %v1007 = vld [vmem:[%s1 + $0xa8c] sm:$0xff]
      %v1008 = vld [vmem:[%s1 + $0xa94] sm:$0xf]
      %v1009 = vld [vmem:[%s1 + $0xa98] sm:$0xff]
      %v1010 = vld [vmem:[%s1 + $0xaa0] sm:$0xf]
      %v1011 = vld [vmem:[%s1 + $0xaa4] sm:$0xff]
      %v1012 = vld [vmem:[%s1 + $0xaac] sm:$0xf]
      %v1013 = vld [vmem:[%s1 + $0xab0] sm:$0xff]
      %v1014 = vld [vmem:[%s1 + $0xab8] sm:$0xf]
      %v1015 = vld [vmem:[%s1 + $0xabc] sm:$0xff]
      %v1016 = vld [vmem:[%s1 + $0xac4] sm:$0xf]
      %v1017 = vld [vmem:[%s1 + $0xac8] sm:$0xff]
      %v1018 = vld [vmem:[%s1 + $0xad0] sm:$0xf]
      %v1019 = vld [vmem:[%s1 + $0xad4] sm:$0xff]
      %v1020 = vld [vmem:[%s1 + $0xadc] sm:$0xf]
      %v1021 = vld [vmem:[%s1 + $0xae0] sm:$0xff]
      %v1022 = vld [vmem:[%s1 + $0xae8] sm:$0xf]
      %v1023 = vld [vmem:[%s1 + $0xaec] sm:$0xff]
      %v1024 = vld [vmem:[%s1 + $0xaf4] sm:$0xf]
      %v1025 = vld [vmem:[%s1 + $0xaf8] sm:$0xff]
      %v1026 = vld [vmem:[%s1 + $0xb00] sm:$0xf]
      %v1027 = vld [vmem:[%s1 + $0xb04] sm:$0xff]
      %v1028 = vld [vmem:[%s1 + $0xb0c] sm:$0xf]
      %v1029 = vld [vmem:[%s1 + $0xb10] sm:$0xff]
      %v1030 = vld [vmem:[%s1 + $0xb18] sm:$0xf]
      %v1031 = vld [vmem:[%s1 + $0xb1c] sm:$0xff]
      %v1032 = vld [vmem:[%s1 + $0xb24] sm:$0xf]
      %v1033 = vld [vmem:[%s1 + $0xb28] sm:$0xff]
      %v1034 = vld [vmem:[%s1 + $0xb30] sm:$0xf]
      %v1035 = vld [vmem:[%s1 + $0xb34] sm:$0xff]
      %v1036 = vld [vmem:[%s1 + $0xb3c] sm:$0xf]
      %v1037 = vld [vmem:[%s1 + $0xb40] sm:$0xff]
      %v1038 = vld [vmem:[%s1 + $0xb48] sm:$0xf]
      %v1039 = vld [vmem:[%s1 + $0xb4c] sm:$0xff]
      %v1040 = vld [vmem:[%s1 + $0xb54] sm:$0xf]
      %v1041 = vld [vmem:[%s1 + $0xb58] sm:$0xff]
      %v1042 = vld [vmem:[%s1 + $0xb60] sm:$0xf]
      %v1043 = vld [vmem:[%s1 + $0xb64] sm:$0xff]
      %v1044 = vld [vmem:[%s1 + $0xb6c] sm:$0xf]
      %v1045 = vld [vmem:[%s1 + $0xb70] sm:$0xff]
      %v1046 = vld [vmem:[%s1 + $0xb78] sm:$0xf]
      %v1047 = vld [vmem:[%s1 + $0xb7c] sm:$0xff]
      %v1048 = vld [vmem:[%s1 + $0xb84] sm:$0xf]
      %v1049 = vld [vmem:[%s1 + $0xb88] sm:$0xff]
      %v1050 = vld [vmem:[%s1 + $0xb90] sm:$0xf]
      %v1051 = vld [vmem:[%s1 + $0xb94] sm:$0xff]
      %v1052 = vld [vmem:[%s1 + $0xb9c] sm:$0xf]
      %v1053 = vld [vmem:[%s1 + $0xba0] sm:$0xff]
      %v1054 = vld [vmem:[%s1 + $0xba8] sm:$0xf]
      %v1055 = vld [vmem:[%s1 + $0xbac] sm:$0xff]
      %v1056 = vld [vmem:[%s1 + $0xbb4] sm:$0xf]
      %v1057 = vld [vmem:[%s1 + $0xbb8] sm:$0xff]
      %v1058 = vld [vmem:[%s1 + $0xbc0] sm:$0xf]
      %v1059 = vld [vmem:[%s1 + $0xbc4] sm:$0xff]
      %v1060 = vld [vmem:[%s1 + $0xbcc] sm:$0xf]
      %v1061 = vld [vmem:[%s1 + $0xbd0] sm:$0xff]
      %v1062 = vld [vmem:[%s1 + $0xbd8] sm:$0xf]
      %v1063 = vld [vmem:[%s1 + $0xbdc] sm:$0xff]
      %v1064 = vld [vmem:[%s1 + $0xbe4] sm:$0xf]
      %v1065 = vld [vmem:[%s1 + $0xbe8] sm:$0xff]
      %v1066 = vld [vmem:[%s1 + $0xbf0] sm:$0xf]
      %v1067 = vld [vmem:[%s1 + $0xbf4] sm:$0xff]
      %v1068 = vld [vmem:[%s1 + $0xbfc] sm:$0xf]
      %v1069 = vld [vmem:[%s1 + $0xc00] sm:$0xff]
      %v1070 = vld [vmem:[%s1 + $0xc08] sm:$0xf]
      %v1071 = vld [vmem:[%s1 + $0xc0c] sm:$0xff]
      %v1072 = vld [vmem:[%s1 + $0xc14] sm:$0xf]
      %v1073 = vld [vmem:[%s1 + $0xc18] sm:$0xff]
      %v1074 = vld [vmem:[%s1 + $0xc20] sm:$0xf]
      %v1075 = vld [vmem:[%s1 + $0xc24] sm:$0xff]
      %v1076 = vld [vmem:[%s1 + $0xc2c] sm:$0xf]
      %v1077 = vld [vmem:[%s1 + $0xc30] sm:$0xff]
      %v1078 = vld [vmem:[%s1 + $0xc38] sm:$0xf]
      %v1079 = vld [vmem:[%s1 + $0xc3c] sm:$0xff]
      %v1080 = vld [vmem:[%s1 + $0xc44] sm:$0xf]
      %v1081 = vld [vmem:[%s1 + $0xc48] sm:$0xff]
      %v1082 = vld [vmem:[%s1 + $0xc50] sm:$0xf]
      %v1083 = vld [vmem:[%s1 + $0xc54] sm:$0xff]
      %v1084 = vld [vmem:[%s1 + $0xc5c] sm:$0xf]
      %v1085 = vld [vmem:[%s1 + $0xc60] sm:$0xff]
      %v1086 = vld [vmem:[%s1 + $0xc68] sm:$0xf]
      %v1087 = vld [vmem:[%s1 + $0xc6c] sm:$0xff]
      %v1088 = vld [vmem:[%s1 + $0xc74] sm:$0xf]
      %v1089 = vld [vmem:[%s1 + $0xc78] sm:$0xff]
      %v1090 = vld [vmem:[%s1 + $0xc80] sm:$0xf]
      %v1091 = vld [vmem:[%s1 + $0xc84] sm:$0xff]
      %v1092 = vld [vmem:[%s1 + $0xc8c] sm:$0xf]
      %v1093 = vld [vmem:[%s1 + $0xc90] sm:$0xff]
      %v1094 = vld [vmem:[%s1 + $0xc98] sm:$0xf]
      %v1095 = vld [vmem:[%s1 + $0xc9c] sm:$0xff]
      %v1096 = vld [vmem:[%s1 + $0xca4] sm:$0xf]
      %v1097 = vld [vmem:[%s1 + $0xca8] sm:$0xff]
      %v1098 = vld [vmem:[%s1 + $0xcb0] sm:$0xf]
      %v1099 = vld [vmem:[%s1 + $0xcb4] sm:$0xff]
      %v1100 = vld [vmem:[%s1 + $0xcbc] sm:$0xf]
      %v1101 = vld [vmem:[%s1 + $0xcc0] sm:$0xff]
      %v1102 = vld [vmem:[%s1 + $0xcc8] sm:$0xf]
      %v1103 = vld [vmem:[%s1 + $0xccc] sm:$0xff]
      %v1104 = vld [vmem:[%s1 + $0xcd4] sm:$0xf]
      %v1105 = vld [vmem:[%s1 + $0xcd8] sm:$0xff]
      %v1106 = vld [vmem:[%s1 + $0xce0] sm:$0xf]
      %v1107 = vld [vmem:[%s1 + $0xce4] sm:$0xff]
      %v1108 = vld [vmem:[%s1 + $0xcec] sm:$0xf]
      %v1109 = vld [vmem:[%s1 + $0xcf0] sm:$0xff]
      %v1110 = vld [vmem:[%s1 + $0xcf8] sm:$0xf]
      %v1111 = vld [vmem:[%s1 + $0xcfc] sm:$0xff]
      %v1112 = vld [vmem:[%s1 + $0xd04] sm:$0xf]
      %v1113 = vld [vmem:[%s1 + $0xd08] sm:$0xff]
      %v1114 = vld [vmem:[%s1 + $0xd10] sm:$0xf]
      %v1115 = vld [vmem:[%s1 + $0xd14] sm:$0xff]
      %v1116 = vld [vmem:[%s1 + $0xd1c] sm:$0xf]
      %v1117 = vld [vmem:[%s1 + $0xd20] sm:$0xff]
      %v1118 = vld [vmem:[%s1 + $0xd28] sm:$0xf]
      %v1119 = vld [vmem:[%s1 + $0xd2c] sm:$0xff]
      %v1120 = vld [vmem:[%s1 + $0xd34] sm:$0xf]
      %v1121 = vld [vmem:[%s1 + $0xd38] sm:$0xff]
      %v1122 = vld [vmem:[%s1 + $0xd40] sm:$0xf]
      %v1123 = vld [vmem:[%s1 + $0xd44] sm:$0xff]
      %v1124 = vld [vmem:[%s1 + $0xd4c] sm:$0xf]
      %v1125 = vld [vmem:[%s1 + $0xd50] sm:$0xff]
      %v1126 = vld [vmem:[%s1 + $0xd58] sm:$0xf]
      %v1127 = vld [vmem:[%s1 + $0xd5c] sm:$0xff]
      %v1128 = vld [vmem:[%s1 + $0xd64] sm:$0xf]
      %v1129 = vld [vmem:[%s1 + $0xd68] sm:$0xff]
      %v1130 = vld [vmem:[%s1 + $0xd70] sm:$0xf]
      %v1131 = vld [vmem:[%s1 + $0xd74] sm:$0xff]
      %v1132 = vld [vmem:[%s1 + $0xd7c] sm:$0xf]
      %v1133 = vld [vmem:[%s1 + $0xd80] sm:$0xff]
      %v1134 = vld [vmem:[%s1 + $0xd88] sm:$0xf]
      %v1135 = vld [vmem:[%s1 + $0xd8c] sm:$0xff]
      %v1136 = vld [vmem:[%s1 + $0xd94] sm:$0xf]
      %v1137 = vld [vmem:[%s1 + $0xd98] sm:$0xff]
      %v1138 = vld [vmem:[%s1 + $0xda0] sm:$0xf]
      %v1139 = vld [vmem:[%s1 + $0xda4] sm:$0xff]
      %v1140 = vld [vmem:[%s1 + $0xdac] sm:$0xf]
      %v1141 = vld [vmem:[%s1 + $0xdb0] sm:$0xff]
      %v1142 = vld [vmem:[%s1 + $0xdb8] sm:$0xf]
      %v1143 = vld [vmem:[%s1 + $0xdbc] sm:$0xff]
      %v1144 = vld [vmem:[%s1 + $0xdc4] sm:$0xf]
      %v1145 = vld [vmem:[%s1 + $0xdc8] sm:$0xff]
      %v1146 = vld [vmem:[%s1 + $0xdd0] sm:$0xf]
      %v1147 = vld [vmem:[%s1 + $0xdd4] sm:$0xff]
      %v1148 = vld [vmem:[%s1 + $0xddc] sm:$0xf]
      %v1149 = vld [vmem:[%s1 + $0xde0] sm:$0xff]
      %v1150 = vld [vmem:[%s1 + $0xde8] sm:$0xf]
      %v1151 = vld [vmem:[%s1 + $0xdec] sm:$0xff]
      %v1152 = vld [vmem:[%s1 + $0xdf4] sm:$0xf]
      %v1153 = vld [vmem:[%s1 + $0xdf8] sm:$0xff]
      %v1154 = vld [vmem:[%s1 + $0xe00] sm:$0xf]
      %v1155 = vld [vmem:[%s1 + $0xe04] sm:$0xff]
      %v1156 = vld [vmem:[%s1 + $0xe0c] sm:$0xf]
      %v1157 = vld [vmem:[%s1 + $0xe10] sm:$0xff]
      %v1158 = vld [vmem:[%s1 + $0xe18] sm:$0xf]
      %v1159 = vld [vmem:[%s1 + $0xe1c] sm:$0xff]
      %v1160 = vld [vmem:[%s1 + $0xe24] sm:$0xf]
      %v1161 = vld [vmem:[%s1 + $0xe28] sm:$0xff]
      %v1162 = vld [vmem:[%s1 + $0xe30] sm:$0xf]
      %v1163 = vld [vmem:[%s1 + $0xe34] sm:$0xff]
      %v1164 = vld [vmem:[%s1 + $0xe3c] sm:$0xf]
      %v1165 = vld [vmem:[%s1 + $0xe40] sm:$0xff]
      %v1166 = vld [vmem:[%s1 + $0xe48] sm:$0xf]
      %v1167 = vld [vmem:[%s1 + $0xe4c] sm:$0xff]
      %v1168 = vld [vmem:[%s1 + $0xe54] sm:$0xf]
      %v1169 = vld [vmem:[%s1 + $0xe58] sm:$0xff]
      %v1170 = vld [vmem:[%s1 + $0xe60] sm:$0xf]
      %v1171 = vld [vmem:[%s1 + $0xe64] sm:$0xff]
      %v1172 = vld [vmem:[%s1 + $0xe6c] sm:$0xf]
      %v1173 = vld [vmem:[%s1 + $0xe70] sm:$0xff]
      %v1174 = vld [vmem:[%s1 + $0xe78] sm:$0xf]
      %v1175 = vld [vmem:[%s1 + $0xe7c] sm:$0xff]
      %v1176 = vld [vmem:[%s1 + $0xe84] sm:$0xf]
      %v1177 = vld [vmem:[%s1 + $0xe88] sm:$0xff]
      %v1178 = vld [vmem:[%s1 + $0xe90] sm:$0xf]
      %v1179 = vld [vmem:[%s1 + $0xe94] sm:$0xff]
      %v1180 = vld [vmem:[%s1 + $0xe9c] sm:$0xf]
      %v1181 = vld [vmem:[%s1 + $0xea0] sm:$0xff]
      %v1182 = vld [vmem:[%s1 + $0xea8] sm:$0xf]
      %v1183 = vld [vmem:[%s1 + $0xeac] sm:$0xff]
      %v1184 = vld [vmem:[%s1 + $0xeb4] sm:$0xf]
      %v1185 = vld [vmem:[%s1 + $0xeb8] sm:$0xff]
      %v1186 = vld [vmem:[%s1 + $0xec0] sm:$0xf]
      %v1187 = vld [vmem:[%s1 + $0xec4] sm:$0xff]
      %v1188 = vld [vmem:[%s1 + $0xecc] sm:$0xf]
      %v1189 = vld [vmem:[%s1 + $0xed0] sm:$0xff]
      %v1190 = vld [vmem:[%s1 + $0xed8] sm:$0xf]
      %v1191 = vld [vmem:[%s1 + $0xedc] sm:$0xff]
      %v1192 = vld [vmem:[%s1 + $0xee4] sm:$0xf]
      %v1193 = vld [vmem:[%s1 + $0xee8] sm:$0xff]
      %v1194 = vld [vmem:[%s1 + $0xef0] sm:$0xf]
      %v1195 = vld [vmem:[%s1 + $0xef4] sm:$0xff]
      %v1196 = vld [vmem:[%s1 + $0xefc] sm:$0xf]
      %v1197 = vld [vmem:[%s1 + $0xf00] sm:$0xff]
      %v1198 = vld [vmem:[%s1 + $0xf08] sm:$0xf]
      %v1199 = vld [vmem:[%s1 + $0xf0c] sm:$0xff]
      %v1200 = vld [vmem:[%s1 + $0xf14] sm:$0xf]
      %v1201 = vld [vmem:[%s1 + $0xf18] sm:$0xff]
      %v1202 = vld [vmem:[%s1 + $0xf20] sm:$0xf]
      %v1203 = vld [vmem:[%s1 + $0xf24] sm:$0xff]
      %v1204 = vld [vmem:[%s1 + $0xf2c] sm:$0xf]
      %v1205 = vld [vmem:[%s1 + $0xf30] sm:$0xff]
      %v1206 = vld [vmem:[%s1 + $0xf38] sm:$0xf]
      %v1207 = vld [vmem:[%s1 + $0xf3c] sm:$0xff]
      %v1208 = vld [vmem:[%s1 + $0xf44] sm:$0xf]
      %v1209 = vld [vmem:[%s1 + $0xf48] sm:$0xff]
      %v1210 = vld [vmem:[%s1 + $0xf50] sm:$0xf]
      %v1211 = vld [vmem:[%s1 + $0xf54] sm:$0xff]
      %v1212 = vld [vmem:[%s1 + $0xf5c] sm:$0xf]
      %v1213 = vld [vmem:[%s1 + $0xf60] sm:$0xff]
      %v1214 = vld [vmem:[%s1 + $0xf68] sm:$0xf]
      %v1215 = vld [vmem:[%s1 + $0xf6c] sm:$0xff]
      %v1216 = vld [vmem:[%s1 + $0xf74] sm:$0xf]
      %v1217 = vld [vmem:[%s1 + $0xf78] sm:$0xff]
      %v1218 = vld [vmem:[%s1 + $0xf80] sm:$0xf]
      %v1219 = vld [vmem:[%s1 + $0xf84] sm:$0xff]
      %v1220 = vld [vmem:[%s1 + $0xf8c] sm:$0xf]
      %v1221 = vld [vmem:[%s1 + $0xf90] sm:$0xff]
      %v1222 = vld [vmem:[%s1 + $0xf98] sm:$0xf]
      %v1223 = vld [vmem:[%s1 + $0xf9c] sm:$0xff]
      %v1224 = vld [vmem:[%s1 + $0xfa4] sm:$0xf]
      %v1225 = vld [vmem:[%s1 + $0xfa8] sm:$0xff]
      %v1226 = vld [vmem:[%s1 + $0xfb0] sm:$0xf]
      %v1227 = vld [vmem:[%s1 + $0xfb4] sm:$0xff]
      %v1228 = vld [vmem:[%s1 + $0xfbc] sm:$0xf]
      %v1229 = vld [vmem:[%s2] sm:$0x7]
      %v1231 = vlaneseq
      %v1232 = vshrl.u32 %v1231, 7
      %v1233 = vsub.s32 0, %v1232
      %v1234 = vrot.slane %v1229, %v1233
      %v1235 = vlaneseq
      %v1236 = vshrl.u32 %v1235, 7
      %v1237 = vsub.s32 1, %v1236
      %v1238 = vrot.slane %v1229, %v1237
      %v1239 = vlaneseq
      %v1240 = vshrl.u32 %v1239, 7
      %v1241 = vsub.s32 2, %v1240
      %v1242 = vrot.slane %v1229, %v1241
      %v1466 = vunpack.c.l.b16 %v337
      %v1467 = vunpack.c.h.b16 %v337
      %v1468 = vunpack.c.l.b16 %v338
      %v1469 = vunpack.c.h.b16 %v338
      %v1470 = vunpack.c.l.b16 %v339
      %v1471 = vunpack.c.h.b16 %v339
      %v1472 = vunpack.c.l.b16 %v340
      %v1473 = vunpack.c.h.b16 %v340
      %v1474 = vunpack.c.l.b16 %v341
      %v1475 = vunpack.c.h.b16 %v341
      %v1476 = vunpack.c.l.b16 %v342
      %v1477 = vunpack.c.h.b16 %v342
      %v1478 = vunpack.c.l.b16 %v343
      %v1479 = vunpack.c.h.b16 %v343
      %v1480 = vunpack.c.l.b16 %v344
      %v1481 = vunpack.c.h.b16 %v344
      %v1482 = vunpack.c.l.b16 %v345
      %v1483 = vunpack.c.h.b16 %v345
      %v1484 = vunpack.c.l.b16 %v346
      %v1485 = vunpack.c.h.b16 %v346
      %v1486 = vunpack.c.l.b16 %v347
      %v1487 = vunpack.c.l.b16 %v348
      %v1488 = vunpack.c.h.b16 %v348
      %v1489 = vunpack.c.l.b16 %v349
      %v1490 = vunpack.c.h.b16 %v349
      %v1491 = vunpack.c.l.b16 %v350
      %v1492 = vunpack.c.h.b16 %v350
      %v1493 = vunpack.c.l.b16 %v351
      %v1494 = vunpack.c.h.b16 %v351
      %v1495 = vunpack.c.l.b16 %v352
      %v1496 = vunpack.c.h.b16 %v352
      %v1497 = vunpack.c.l.b16 %v353
      %v1498 = vunpack.c.h.b16 %v353
      %v1499 = vunpack.c.l.b16 %v354
      %v1500 = vunpack.c.h.b16 %v354
      %v1501 = vunpack.c.l.b16 %v355
      %v1502 = vunpack.c.h.b16 %v355
      %v1503 = vunpack.c.l.b16 %v356
      %v1504 = vunpack.c.h.b16 %v356
      %v1505 = vunpack.c.l.b16 %v357
      %v1506 = vunpack.c.h.b16 %v357
      %v1507 = vunpack.c.l.b16 %v358
      %v1508 = vunpack.c.l.b16 %v359
      %v1509 = vunpack.c.h.b16 %v359
      %v1510 = vunpack.c.l.b16 %v360
      %v1511 = vunpack.c.h.b16 %v360
      %v1512 = vunpack.c.l.b16 %v361
      %v1513 = vunpack.c.h.b16 %v361
      %v1514 = vunpack.c.l.b16 %v362
      %v1515 = vunpack.c.h.b16 %v362
      %v1516 = vunpack.c.l.b16 %v363
      %v1517 = vunpack.c.h.b16 %v363
      %v1518 = vunpack.c.l.b16 %v364
      %v1519 = vunpack.c.h.b16 %v364
      %v1520 = vunpack.c.l.b16 %v365
      %v1521 = vunpack.c.h.b16 %v365
      %v1522 = vunpack.c.l.b16 %v366
      %v1523 = vunpack.c.h.b16 %v366
      %v1524 = vunpack.c.l.b16 %v367
      %v1525 = vunpack.c.h.b16 %v367
      %v1526 = vunpack.c.l.b16 %v368
      %v1527 = vunpack.c.h.b16 %v368
      %v1528 = vunpack.c.l.b16 %v369
      %v1529 = vunpack.c.l.b16 %v370
      %v1530 = vunpack.c.h.b16 %v370
      %v1531 = vunpack.c.l.b16 %v371
      %v1532 = vunpack.c.h.b16 %v371
      %v1533 = vunpack.c.l.b16 %v372
      %v1534 = vunpack.c.h.b16 %v372
      %v1535 = vunpack.c.l.b16 %v373
      %v1536 = vunpack.c.h.b16 %v373
      %v1537 = vunpack.c.l.b16 %v374
      %v1538 = vunpack.c.h.b16 %v374
      %v1539 = vunpack.c.l.b16 %v375
      %v1540 = vunpack.c.h.b16 %v375
      %v1541 = vunpack.c.l.b16 %v376
      %v1542 = vunpack.c.h.b16 %v376
      %v1543 = vunpack.c.l.b16 %v377
      %v1544 = vunpack.c.h.b16 %v377
      %v1545 = vunpack.c.l.b16 %v378
      %v1546 = vunpack.c.h.b16 %v378
      %v1547 = vunpack.c.l.b16 %v379
      %v1548 = vunpack.c.h.b16 %v379
      %v1549 = vunpack.c.l.b16 %v380
      %v1550 = vunpack.c.l.b16 %v381
      %v1551 = vunpack.c.h.b16 %v381
      %v1552 = vunpack.c.l.b16 %v382
      %v1553 = vunpack.c.h.b16 %v382
      %v1554 = vunpack.c.l.b16 %v383
      %v1555 = vunpack.c.h.b16 %v383
      %v1556 = vunpack.c.l.b16 %v384
      %v1557 = vunpack.c.h.b16 %v384
      %v1558 = vunpack.c.l.b16 %v385
      %v1559 = vunpack.c.h.b16 %v385
      %v1560 = vunpack.c.l.b16 %v386
      %v1561 = vunpack.c.h.b16 %v386
      %v1562 = vunpack.c.l.b16 %v387
      %v1563 = vunpack.c.h.b16 %v387
      %v1564 = vunpack.c.l.b16 %v388
      %v1565 = vunpack.c.h.b16 %v388
      %v1566 = vunpack.c.l.b16 %v389
      %v1567 = vunpack.c.h.b16 %v389
      %v1568 = vunpack.c.l.b16 %v390
      %v1569 = vunpack.c.h.b16 %v390
      %v1570 = vunpack.c.l.b16 %v391
      %v1571 = vunpack.c.l.b16 %v392
      %v1572 = vunpack.c.h.b16 %v392
      %v1573 = vunpack.c.l.b16 %v393
      %v1574 = vunpack.c.h.b16 %v393
      %v1575 = vunpack.c.l.b16 %v394
      %v1576 = vunpack.c.h.b16 %v394
      %v1577 = vunpack.c.l.b16 %v395
      %v1578 = vunpack.c.h.b16 %v395
      %v1579 = vunpack.c.l.b16 %v396
      %v1580 = vunpack.c.h.b16 %v396
      %v1581 = vunpack.c.l.b16 %v397
      %v1582 = vunpack.c.h.b16 %v397
      %v1583 = vunpack.c.l.b16 %v398
      %v1584 = vunpack.c.h.b16 %v398
      %v1585 = vunpack.c.l.b16 %v399
      %v1586 = vunpack.c.h.b16 %v399
      %v1587 = vunpack.c.l.b16 %v400
      %v1588 = vunpack.c.h.b16 %v400
      %v1589 = vunpack.c.l.b16 %v401
      %v1590 = vunpack.c.h.b16 %v401
      %v1591 = vunpack.c.l.b16 %v402
      %v1592 = vunpack.c.l.b16 %v403
      %v1593 = vunpack.c.h.b16 %v403
      %v1594 = vunpack.c.l.b16 %v404
      %v1595 = vunpack.c.h.b16 %v404
      %v1596 = vunpack.c.l.b16 %v405
      %v1597 = vunpack.c.h.b16 %v405
      %v1598 = vunpack.c.l.b16 %v406
      %v1599 = vunpack.c.h.b16 %v406
      %v1600 = vunpack.c.l.b16 %v407
      %v1601 = vunpack.c.h.b16 %v407
      %v1602 = vunpack.c.l.b16 %v408
      %v1603 = vunpack.c.h.b16 %v408
      %v1604 = vunpack.c.l.b16 %v409
      %v1605 = vunpack.c.h.b16 %v409
      %v1606 = vunpack.c.l.b16 %v410
      %v1607 = vunpack.c.h.b16 %v410
      %v1608 = vunpack.c.l.b16 %v411
      %v1609 = vunpack.c.h.b16 %v411
      %v1610 = vunpack.c.l.b16 %v412
      %v1611 = vunpack.c.h.b16 %v412
      %v1612 = vunpack.c.l.b16 %v413
      %v1613 = vunpack.c.l.b16 %v414
      %v1614 = vunpack.c.h.b16 %v414
      %v1615 = vunpack.c.l.b16 %v415
      %v1616 = vunpack.c.h.b16 %v415
      %v1617 = vunpack.c.l.b16 %v416
      %v1618 = vunpack.c.h.b16 %v416
      %v1619 = vunpack.c.l.b16 %v417
      %v1620 = vunpack.c.h.b16 %v417
      %v1621 = vunpack.c.l.b16 %v418
      %v1622 = vunpack.c.h.b16 %v418
      %v1623 = vunpack.c.l.b16 %v419
      %v1624 = vunpack.c.h.b16 %v419
      %v1625 = vunpack.c.l.b16 %v420
      %v1626 = vunpack.c.h.b16 %v420
      %v1627 = vunpack.c.l.b16 %v421
      %v1628 = vunpack.c.h.b16 %v421
      %v1629 = vunpack.c.l.b16 %v422
      %v1630 = vunpack.c.h.b16 %v422
      %v1631 = vunpack.c.l.b16 %v423
      %v1632 = vunpack.c.h.b16 %v423
      %v1633 = vunpack.c.l.b16 %v424
      %v1634 = vunpack.c.l.b16 %v425
      %v1635 = vunpack.c.h.b16 %v425
      %v1636 = vunpack.c.l.b16 %v426
      %v1637 = vunpack.c.h.b16 %v426
      %v1638 = vunpack.c.l.b16 %v427
      %v1639 = vunpack.c.h.b16 %v427
      %v1640 = vunpack.c.l.b16 %v428
      %v1641 = vunpack.c.h.b16 %v428
      %v1642 = vunpack.c.l.b16 %v429
      %v1643 = vunpack.c.h.b16 %v429
      %v1644 = vunpack.c.l.b16 %v430
      %v1645 = vunpack.c.h.b16 %v430
      %v1646 = vunpack.c.l.b16 %v431
      %v1647 = vunpack.c.h.b16 %v431
      %v1648 = vunpack.c.l.b16 %v432
      %v1649 = vunpack.c.h.b16 %v432
      %v1650 = vunpack.c.l.b16 %v433
      %v1651 = vunpack.c.h.b16 %v433
      %v1652 = vunpack.c.l.b16 %v434
      %v1653 = vunpack.c.h.b16 %v434
      %v1654 = vunpack.c.l.b16 %v435
      %v1655 = vunpack.c.l.b16 %v436
      %v1656 = vunpack.c.h.b16 %v436
      %v1657 = vunpack.c.l.b16 %v437
      %v1658 = vunpack.c.h.b16 %v437
      %v1659 = vunpack.c.l.b16 %v438
      %v1660 = vunpack.c.h.b16 %v438
      %v1661 = vunpack.c.l.b16 %v439
      %v1662 = vunpack.c.h.b16 %v439
      %v1663 = vunpack.c.l.b16 %v440
      %v1664 = vunpack.c.h.b16 %v440
      %v1665 = vunpack.c.l.b16 %v441
      %v1666 = vunpack.c.h.b16 %v441
      %v1667 = vunpack.c.l.b16 %v442
      %v1668 = vunpack.c.h.b16 %v442
      %v1669 = vunpack.c.l.b16 %v443
      %v1670 = vunpack.c.h.b16 %v443
      %v1671 = vunpack.c.l.b16 %v444
      %v1672 = vunpack.c.h.b16 %v444
      %v1673 = vunpack.c.l.b16 %v445
      %v1674 = vunpack.c.h.b16 %v445
      %v1675 = vunpack.c.l.b16 %v446
      %v1676 = vunpack.c.l.b16 %v447
      %v1677 = vunpack.c.h.b16 %v447
      %v1678 = vunpack.c.l.b16 %v448
      %v1679 = vunpack.c.h.b16 %v448
      %v1680 = vunpack.c.l.b16 %v449
      %v1681 = vunpack.c.h.b16 %v449
      %v1682 = vunpack.c.l.b16 %v450
      %v1683 = vunpack.c.h.b16 %v450
      %v1684 = vunpack.c.l.b16 %v451
      %v1685 = vunpack.c.h.b16 %v451
      %v1686 = vunpack.c.l.b16 %v452
      %v1687 = vunpack.c.h.b16 %v452
      %v1688 = vunpack.c.l.b16 %v453
      %v1689 = vunpack.c.h.b16 %v453
      %v1690 = vunpack.c.l.b16 %v454
      %v1691 = vunpack.c.h.b16 %v454
      %v1692 = vunpack.c.l.b16 %v455
      %v1693 = vunpack.c.h.b16 %v455
      %v1694 = vunpack.c.l.b16 %v456
      %v1695 = vunpack.c.h.b16 %v456
      %v1696 = vunpack.c.l.b16 %v457
      %v1697 = vunpack.c.l.b16 %v458
      %v1698 = vunpack.c.h.b16 %v458
      %v1699 = vunpack.c.l.b16 %v459
      %v1700 = vunpack.c.h.b16 %v459
      %v1701 = vunpack.c.l.b16 %v460
      %v1702 = vunpack.c.h.b16 %v460
      %v1703 = vunpack.c.l.b16 %v461
      %v1704 = vunpack.c.h.b16 %v461
      %v1705 = vunpack.c.l.b16 %v462
      %v1706 = vunpack.c.h.b16 %v462
      %v1707 = vunpack.c.l.b16 %v463
      %v1708 = vunpack.c.h.b16 %v463
      %v1709 = vunpack.c.l.b16 %v464
      %v1710 = vunpack.c.h.b16 %v464
      %v1711 = vunpack.c.l.b16 %v465
      %v1712 = vunpack.c.h.b16 %v465
      %v1713 = vunpack.c.l.b16 %v466
      %v1714 = vunpack.c.h.b16 %v466
      %v1715 = vunpack.c.l.b16 %v467
      %v1716 = vunpack.c.h.b16 %v467
      %v1717 = vunpack.c.l.b16 %v468
      %v1718 = vunpack.c.l.b16 %v469
      %v1719 = vunpack.c.h.b16 %v469
      %v1720 = vunpack.c.l.b16 %v470
      %v1721 = vunpack.c.h.b16 %v470
      %v1722 = vunpack.c.l.b16 %v471
      %v1723 = vunpack.c.h.b16 %v471
      %v1724 = vunpack.c.l.b16 %v472
      %v1725 = vunpack.c.h.b16 %v472
      %v1726 = vunpack.c.l.b16 %v473
      %v1727 = vunpack.c.h.b16 %v473
      %v1728 = vunpack.c.l.b16 %v474
      %v1729 = vunpack.c.h.b16 %v474
      %v1730 = vunpack.c.l.b16 %v475
      %v1731 = vunpack.c.h.b16 %v475
      %v1732 = vunpack.c.l.b16 %v476
      %v1733 = vunpack.c.h.b16 %v476
      %v1734 = vunpack.c.l.b16 %v477
      %v1735 = vunpack.c.h.b16 %v477
      %v1736 = vunpack.c.l.b16 %v478
      %v1737 = vunpack.c.h.b16 %v478
      %v1738 = vunpack.c.l.b16 %v479
      %v1739 = vunpack.c.l.b16 %v480
      %v1740 = vunpack.c.h.b16 %v480
      %v1741 = vunpack.c.l.b16 %v481
      %v1742 = vunpack.c.h.b16 %v481
      %v1743 = vunpack.c.l.b16 %v482
      %v1744 = vunpack.c.h.b16 %v482
      %v1745 = vunpack.c.l.b16 %v483
      %v1746 = vunpack.c.h.b16 %v483
      %v1747 = vunpack.c.l.b16 %v484
      %v1748 = vunpack.c.h.b16 %v484
      %v1749 = vunpack.c.l.b16 %v485
      %v1750 = vunpack.c.h.b16 %v485
      %v1751 = vunpack.c.l.b16 %v486
      %v1752 = vunpack.c.h.b16 %v486
      %v1753 = vunpack.c.l.b16 %v487
      %v1754 = vunpack.c.h.b16 %v487
      %v1755 = vunpack.c.l.b16 %v488
      %v1756 = vunpack.c.h.b16 %v488
      %v1757 = vunpack.c.l.b16 %v489
      %v1758 = vunpack.c.h.b16 %v489
      %v1759 = vunpack.c.l.b16 %v490
      %v1760 = vunpack.c.l.b16 %v491
      %v1761 = vunpack.c.h.b16 %v491
      %v1762 = vunpack.c.l.b16 %v492
      %v1763 = vunpack.c.h.b16 %v492
      %v1764 = vunpack.c.l.b16 %v493
      %v1765 = vunpack.c.h.b16 %v493
      %v1766 = vunpack.c.l.b16 %v494
      %v1767 = vunpack.c.h.b16 %v494
      %v1768 = vunpack.c.l.b16 %v495
      %v1769 = vunpack.c.h.b16 %v495
      %v1770 = vunpack.c.l.b16 %v496
      %v1771 = vunpack.c.h.b16 %v496
      %v1772 = vunpack.c.l.b16 %v497
      %v1773 = vunpack.c.h.b16 %v497
      %v1774 = vunpack.c.l.b16 %v498
      %v1775 = vunpack.c.h.b16 %v498
      %v1776 = vunpack.c.l.b16 %v499
      %v1777 = vunpack.c.h.b16 %v499
      %v1778 = vunpack.c.l.b16 %v500
      %v1779 = vunpack.c.h.b16 %v500
      %v1780 = vunpack.c.l.b16 %v501
      %v1781 = vunpack.c.l.b16 %v502
      %v1782 = vunpack.c.h.b16 %v502
      %v1783 = vunpack.c.l.b16 %v503
      %v1784 = vunpack.c.h.b16 %v503
      %v1785 = vunpack.c.l.b16 %v504
      %v1786 = vunpack.c.h.b16 %v504
      %v1787 = vunpack.c.l.b16 %v505
      %v1788 = vunpack.c.h.b16 %v505
      %v1789 = vunpack.c.l.b16 %v506
      %v1790 = vunpack.c.h.b16 %v506
      %v1791 = vunpack.c.l.b16 %v507
      %v1792 = vunpack.c.h.b16 %v507
      %v1793 = vunpack.c.l.b16 %v508
      %v1794 = vunpack.c.h.b16 %v508
      %v1795 = vunpack.c.l.b16 %v509
      %v1796 = vunpack.c.h.b16 %v509
      %v1797 = vunpack.c.l.b16 %v510
      %v1798 = vunpack.c.h.b16 %v510
      %v1799 = vunpack.c.l.b16 %v511
      %v1800 = vunpack.c.h.b16 %v511
      %v1801 = vunpack.c.l.b16 %v512
      %v1802 = vunpack.c.l.b16 %v513
      %v1803 = vunpack.c.h.b16 %v513
      %v1804 = vunpack.c.l.b16 %v514
      %v1805 = vunpack.c.h.b16 %v514
      %v1806 = vunpack.c.l.b16 %v515
      %v1807 = vunpack.c.h.b16 %v515
      %v1808 = vunpack.c.l.b16 %v516
      %v1809 = vunpack.c.h.b16 %v516
      %v1810 = vunpack.c.l.b16 %v517
      %v1811 = vunpack.c.h.b16 %v517
      %v1812 = vunpack.c.l.b16 %v518
      %v1813 = vunpack.c.h.b16 %v518
      %v1814 = vunpack.c.l.b16 %v519
      %v1815 = vunpack.c.h.b16 %v519
      %v1816 = vunpack.c.l.b16 %v520
      %v1817 = vunpack.c.h.b16 %v520
      %v1818 = vunpack.c.l.b16 %v521
      %v1819 = vunpack.c.h.b16 %v521
      %v1820 = vunpack.c.l.b16 %v522
      %v1821 = vunpack.c.h.b16 %v522
      %v1822 = vunpack.c.l.b16 %v523
      %v1823 = vunpack.c.l.b16 %v524
      %v1824 = vunpack.c.h.b16 %v524
      %v1825 = vunpack.c.l.b16 %v525
      %v1826 = vunpack.c.h.b16 %v525
      %v1827 = vunpack.c.l.b16 %v526
      %v1828 = vunpack.c.h.b16 %v526
      %v1829 = vunpack.c.l.b16 %v527
      %v1830 = vunpack.c.h.b16 %v527
      %v1831 = vunpack.c.l.b16 %v528
      %v1832 = vunpack.c.h.b16 %v528
      %v1833 = vunpack.c.l.b16 %v529
      %v1834 = vunpack.c.h.b16 %v529
      %v1835 = vunpack.c.l.b16 %v530
      %v1836 = vunpack.c.h.b16 %v530
      %v1837 = vunpack.c.l.b16 %v531
      %v1838 = vunpack.c.h.b16 %v531
      %v1839 = vunpack.c.l.b16 %v532
      %v1840 = vunpack.c.h.b16 %v532
      %v1841 = vunpack.c.l.b16 %v533
      %v1842 = vunpack.c.h.b16 %v533
      %v1843 = vunpack.c.l.b16 %v534
      %v1844 = vunpack.c.l.b16 %v535
      %v1845 = vunpack.c.h.b16 %v535
      %v1846 = vunpack.c.l.b16 %v536
      %v1847 = vunpack.c.h.b16 %v536
      %v1848 = vunpack.c.l.b16 %v537
      %v1849 = vunpack.c.h.b16 %v537
      %v1850 = vunpack.c.l.b16 %v538
      %v1851 = vunpack.c.h.b16 %v538
      %v1852 = vunpack.c.l.b16 %v539
      %v1853 = vunpack.c.h.b16 %v539
      %v1854 = vunpack.c.l.b16 %v540
      %v1855 = vunpack.c.h.b16 %v540
      %v1856 = vunpack.c.l.b16 %v541
      %v1857 = vunpack.c.h.b16 %v541
      %v1858 = vunpack.c.l.b16 %v542
      %v1859 = vunpack.c.h.b16 %v542
      %v1860 = vunpack.c.l.b16 %v543
      %v1861 = vunpack.c.h.b16 %v543
      %v1862 = vunpack.c.l.b16 %v544
      %v1863 = vunpack.c.h.b16 %v544
      %v1864 = vunpack.c.l.b16 %v545
      %v1865 = vunpack.c.l.b16 %v546
      %v1866 = vunpack.c.h.b16 %v546
      %v1867 = vunpack.c.l.b16 %v547
      %v1868 = vunpack.c.h.b16 %v547
      %v1869 = vunpack.c.l.b16 %v548
      %v1870 = vunpack.c.h.b16 %v548
      %v1871 = vunpack.c.l.b16 %v549
      %v1872 = vunpack.c.h.b16 %v549
      %v1873 = vunpack.c.l.b16 %v550
      %v1874 = vunpack.c.h.b16 %v550
      %v1875 = vunpack.c.l.b16 %v551
      %v1876 = vunpack.c.h.b16 %v551
      %v1877 = vunpack.c.l.b16 %v552
      %v1878 = vunpack.c.h.b16 %v552
      %v1879 = vunpack.c.l.b16 %v553
      %v1880 = vunpack.c.h.b16 %v553
      %v1881 = vunpack.c.l.b16 %v554
      %v1882 = vunpack.c.h.b16 %v554
      %v1883 = vunpack.c.l.b16 %v555
      %v1884 = vunpack.c.h.b16 %v555
      %v1885 = vunpack.c.l.b16 %v556
      %v1886 = vpack.c.b16 %v1487, %v1466
      %v1887 = vpack.c.b16 %v1488, %v1467
      %v1888 = vpack.c.b16 %v1489, %v1468
      %v1889 = vpack.c.b16 %v1490, %v1469
      %v1890 = vpack.c.b16 %v1491, %v1470
      %v1891 = vpack.c.b16 %v1492, %v1471
      %v1892 = vpack.c.b16 %v1493, %v1472
      %v1893 = vpack.c.b16 %v1494, %v1473
      %v1894 = vpack.c.b16 %v1495, %v1474
      %v1895 = vpack.c.b16 %v1496, %v1475
      %v1896 = vpack.c.b16 %v1497, %v1476
      %v1897 = vpack.c.b16 %v1498, %v1477
      %v1898 = vpack.c.b16 %v1499, %v1478
      %v1899 = vpack.c.b16 %v1500, %v1479
      %v1900 = vpack.c.b16 %v1501, %v1480
      %v1901 = vpack.c.b16 %v1502, %v1481
      %v1902 = vpack.c.b16 %v1503, %v1482
      %v1903 = vpack.c.b16 %v1504, %v1483
      %v1904 = vpack.c.b16 %v1505, %v1484
      %v1905 = vpack.c.b16 %v1506, %v1485
      %v1906 = vpack.c.b16 %v1507, %v1486
      %v1907 = vpack.c.b16 %v1529, %v1508
      %v1908 = vpack.c.b16 %v1530, %v1509
      %v1909 = vpack.c.b16 %v1531, %v1510
      %v1910 = vpack.c.b16 %v1532, %v1511
      %v1911 = vpack.c.b16 %v1533, %v1512
      %v1912 = vpack.c.b16 %v1534, %v1513
      %v1913 = vpack.c.b16 %v1535, %v1514
      %v1914 = vpack.c.b16 %v1536, %v1515
      %v1915 = vpack.c.b16 %v1537, %v1516
      %v1916 = vpack.c.b16 %v1538, %v1517
      %v1917 = vpack.c.b16 %v1539, %v1518
      %v1918 = vpack.c.b16 %v1540, %v1519
      %v1919 = vpack.c.b16 %v1541, %v1520
      %v1920 = vpack.c.b16 %v1542, %v1521
      %v1921 = vpack.c.b16 %v1543, %v1522
      %v1922 = vpack.c.b16 %v1544, %v1523
      %v1923 = vpack.c.b16 %v1545, %v1524
      %v1924 = vpack.c.b16 %v1546, %v1525
      %v1925 = vpack.c.b16 %v1547, %v1526
      %v1926 = vpack.c.b16 %v1548, %v1527
      %v1927 = vpack.c.b16 %v1549, %v1528
      %v1928 = vpack.c.b16 %v1571, %v1550
      %v1929 = vpack.c.b16 %v1572, %v1551
      %v1930 = vpack.c.b16 %v1573, %v1552
      %v1931 = vpack.c.b16 %v1574, %v1553
      %v1932 = vpack.c.b16 %v1575, %v1554
      %v1933 = vpack.c.b16 %v1576, %v1555
      %v1934 = vpack.c.b16 %v1577, %v1556
      %v1935 = vpack.c.b16 %v1578, %v1557
      %v1936 = vpack.c.b16 %v1579, %v1558
      %v1937 = vpack.c.b16 %v1580, %v1559
      %v1938 = vpack.c.b16 %v1581, %v1560
      %v1939 = vpack.c.b16 %v1582, %v1561
      %v1940 = vpack.c.b16 %v1583, %v1562
      %v1941 = vpack.c.b16 %v1584, %v1563
      %v1942 = vpack.c.b16 %v1585, %v1564
      %v1943 = vpack.c.b16 %v1586, %v1565
      %v1944 = vpack.c.b16 %v1587, %v1566
      %v1945 = vpack.c.b16 %v1588, %v1567
      %v1946 = vpack.c.b16 %v1589, %v1568
      %v1947 = vpack.c.b16 %v1590, %v1569
      %v1948 = vpack.c.b16 %v1591, %v1570
      %v1949 = vpack.c.b16 %v1613, %v1592
      %v1950 = vpack.c.b16 %v1614, %v1593
      %v1951 = vpack.c.b16 %v1615, %v1594
      %v1952 = vpack.c.b16 %v1616, %v1595
      %v1953 = vpack.c.b16 %v1617, %v1596
      %v1954 = vpack.c.b16 %v1618, %v1597
      %v1955 = vpack.c.b16 %v1619, %v1598
      %v1956 = vpack.c.b16 %v1620, %v1599
      %v1957 = vpack.c.b16 %v1621, %v1600
      %v1958 = vpack.c.b16 %v1622, %v1601
      %v1959 = vpack.c.b16 %v1623, %v1602
      %v1960 = vpack.c.b16 %v1624, %v1603
      %v1961 = vpack.c.b16 %v1625, %v1604
      %v1962 = vpack.c.b16 %v1626, %v1605
      %v1963 = vpack.c.b16 %v1627, %v1606
      %v1964 = vpack.c.b16 %v1628, %v1607
      %v1965 = vpack.c.b16 %v1629, %v1608
      %v1966 = vpack.c.b16 %v1630, %v1609
      %v1967 = vpack.c.b16 %v1631, %v1610
      %v1968 = vpack.c.b16 %v1632, %v1611
      %v1969 = vpack.c.b16 %v1633, %v1612
      %v1970 = vpack.c.b16 %v1655, %v1634
      %v1971 = vpack.c.b16 %v1656, %v1635
      %v1972 = vpack.c.b16 %v1657, %v1636
      %v1973 = vpack.c.b16 %v1658, %v1637
      %v1974 = vpack.c.b16 %v1659, %v1638
      %v1975 = vpack.c.b16 %v1660, %v1639
      %v1976 = vpack.c.b16 %v1661, %v1640
      %v1977 = vpack.c.b16 %v1662, %v1641
      %v1978 = vpack.c.b16 %v1663, %v1642
      %v1979 = vpack.c.b16 %v1664, %v1643
      %v1980 = vpack.c.b16 %v1665, %v1644
      %v1981 = vpack.c.b16 %v1666, %v1645
      %v1982 = vpack.c.b16 %v1667, %v1646
      %v1983 = vpack.c.b16 %v1668, %v1647
      %v1984 = vpack.c.b16 %v1669, %v1648
      %v1985 = vpack.c.b16 %v1670, %v1649
      %v1986 = vpack.c.b16 %v1671, %v1650
      %v1987 = vpack.c.b16 %v1672, %v1651
      %v1988 = vpack.c.b16 %v1673, %v1652
      %v1989 = vpack.c.b16 %v1674, %v1653
      %v1990 = vpack.c.b16 %v1675, %v1654
      %v1991 = vpack.c.b16 %v1697, %v1676
      %v1992 = vpack.c.b16 %v1698, %v1677
      %v1993 = vpack.c.b16 %v1699, %v1678
      %v1994 = vpack.c.b16 %v1700, %v1679
      %v1995 = vpack.c.b16 %v1701, %v1680
      %v1996 = vpack.c.b16 %v1702, %v1681
      %v1997 = vpack.c.b16 %v1703, %v1682
      %v1998 = vpack.c.b16 %v1704, %v1683
      %v1999 = vpack.c.b16 %v1705, %v1684
      %v2000 = vpack.c.b16 %v1706, %v1685
      %v2001 = vpack.c.b16 %v1707, %v1686
      %v2002 = vpack.c.b16 %v1708, %v1687
      %v2003 = vpack.c.b16 %v1709, %v1688
      %v2004 = vpack.c.b16 %v1710, %v1689
      %v2005 = vpack.c.b16 %v1711, %v1690
      %v2006 = vpack.c.b16 %v1712, %v1691
      %v2007 = vpack.c.b16 %v1713, %v1692
      %v2008 = vpack.c.b16 %v1714, %v1693
      %v2009 = vpack.c.b16 %v1715, %v1694
      %v2010 = vpack.c.b16 %v1716, %v1695
      %v2011 = vpack.c.b16 %v1717, %v1696
      %v2012 = vpack.c.b16 %v1739, %v1718
      %v2013 = vpack.c.b16 %v1740, %v1719
      %v2014 = vpack.c.b16 %v1741, %v1720
      %v2015 = vpack.c.b16 %v1742, %v1721
      %v2016 = vpack.c.b16 %v1743, %v1722
      %v2017 = vpack.c.b16 %v1744, %v1723
      %v2018 = vpack.c.b16 %v1745, %v1724
      %v2019 = vpack.c.b16 %v1746, %v1725
      %v2020 = vpack.c.b16 %v1747, %v1726
      %v2021 = vpack.c.b16 %v1748, %v1727
      %v2022 = vpack.c.b16 %v1749, %v1728
      %v2023 = vpack.c.b16 %v1750, %v1729
      %v2024 = vpack.c.b16 %v1751, %v1730
      %v2025 = vpack.c.b16 %v1752, %v1731
      %v2026 = vpack.c.b16 %v1753, %v1732
      %v2027 = vpack.c.b16 %v1754, %v1733
      %v2028 = vpack.c.b16 %v1755, %v1734
      %v2029 = vpack.c.b16 %v1756, %v1735
      %v2030 = vpack.c.b16 %v1757, %v1736
      %v2031 = vpack.c.b16 %v1758, %v1737
      %v2032 = vpack.c.b16 %v1759, %v1738
      %v2033 = vpack.c.b16 %v1781, %v1760
      %v2034 = vpack.c.b16 %v1782, %v1761
      %v2035 = vpack.c.b16 %v1783, %v1762
      %v2036 = vpack.c.b16 %v1784, %v1763
      %v2037 = vpack.c.b16 %v1785, %v1764
      %v2038 = vpack.c.b16 %v1786, %v1765
      %v2039 = vpack.c.b16 %v1787, %v1766
      %v2040 = vpack.c.b16 %v1788, %v1767
      %v2041 = vpack.c.b16 %v1789, %v1768
      %v2042 = vpack.c.b16 %v1790, %v1769
      %v2043 = vpack.c.b16 %v1791, %v1770
      %v2044 = vpack.c.b16 %v1792, %v1771
      %v2045 = vpack.c.b16 %v1793, %v1772
      %v2046 = vpack.c.b16 %v1794, %v1773
      %v2047 = vpack.c.b16 %v1795, %v1774
      %v2048 = vpack.c.b16 %v1796, %v1775
      %v2049 = vpack.c.b16 %v1797, %v1776
      %v2050 = vpack.c.b16 %v1798, %v1777
      %v2051 = vpack.c.b16 %v1799, %v1778
      %v2052 = vpack.c.b16 %v1800, %v1779
      %v2053 = vpack.c.b16 %v1801, %v1780
      %v2054 = vpack.c.b16 %v1823, %v1802
      %v2055 = vpack.c.b16 %v1824, %v1803
      %v2056 = vpack.c.b16 %v1825, %v1804
      %v2057 = vpack.c.b16 %v1826, %v1805
      %v2058 = vpack.c.b16 %v1827, %v1806
      %v2059 = vpack.c.b16 %v1828, %v1807
      %v2060 = vpack.c.b16 %v1829, %v1808
      %v2061 = vpack.c.b16 %v1830, %v1809
      %v2062 = vpack.c.b16 %v1831, %v1810
      %v2063 = vpack.c.b16 %v1832, %v1811
      %v2064 = vpack.c.b16 %v1833, %v1812
      %v2065 = vpack.c.b16 %v1834, %v1813
      %v2066 = vpack.c.b16 %v1835, %v1814
      %v2067 = vpack.c.b16 %v1836, %v1815
      %v2068 = vpack.c.b16 %v1837, %v1816
      %v2069 = vpack.c.b16 %v1838, %v1817
      %v2070 = vpack.c.b16 %v1839, %v1818
      %v2071 = vpack.c.b16 %v1840, %v1819
      %v2072 = vpack.c.b16 %v1841, %v1820
      %v2073 = vpack.c.b16 %v1842, %v1821
      %v2074 = vpack.c.b16 %v1843, %v1822
      %v2075 = vpack.c.b16 %v1865, %v1844
      %v2076 = vpack.c.b16 %v1866, %v1845
      %v2077 = vpack.c.b16 %v1867, %v1846
      %v2078 = vpack.c.b16 %v1868, %v1847
      %v2079 = vpack.c.b16 %v1869, %v1848
      %v2080 = vpack.c.b16 %v1870, %v1849
      %v2081 = vpack.c.b16 %v1871, %v1850
      %v2082 = vpack.c.b16 %v1872, %v1851
      %v2083 = vpack.c.b16 %v1873, %v1852
      %v2084 = vpack.c.b16 %v1874, %v1853
      %v2085 = vpack.c.b16 %v1875, %v1854
      %v2086 = vpack.c.b16 %v1876, %v1855
      %v2087 = vpack.c.b16 %v1877, %v1856
      %v2088 = vpack.c.b16 %v1878, %v1857
      %v2089 = vpack.c.b16 %v1879, %v1858
      %v2090 = vpack.c.b16 %v1880, %v1859
      %v2091 = vpack.c.b16 %v1881, %v1860
      %v2092 = vpack.c.b16 %v1882, %v1861
      %v2093 = vpack.c.b16 %v1883, %v1862
      %v2094 = vpack.c.b16 %v1884, %v1863
      %v2095 = vpack.c.b16 %v1885, %v1864
      %v2978 = vunpack.c.l.b16 %v557
      %v2979 = vunpack.c.h.b16 %v557
      %v2980 = vunpack.c.l.b16 %v558
      %v2981 = vunpack.c.l.b16 %v559
      %v2982 = vunpack.c.h.b16 %v559
      %v2983 = vunpack.c.l.b16 %v560
      %v2984 = vunpack.c.l.b16 %v561
      %v2985 = vunpack.c.h.b16 %v561
      %v2986 = vunpack.c.l.b16 %v562
      %v2987 = vunpack.c.l.b16 %v563
      %v2988 = vunpack.c.h.b16 %v563
      %v2989 = vunpack.c.l.b16 %v564
      %v2990 = vunpack.c.l.b16 %v565
      %v2991 = vunpack.c.h.b16 %v565
      %v2992 = vunpack.c.l.b16 %v566
      %v2993 = vunpack.c.l.b16 %v567
      %v2994 = vunpack.c.h.b16 %v567
      %v2995 = vunpack.c.l.b16 %v568
      %v2996 = vunpack.c.l.b16 %v569
      %v2997 = vunpack.c.h.b16 %v569
      %v2998 = vunpack.c.l.b16 %v570
      %v2999 = vunpack.c.l.b16 %v571
      %v3000 = vunpack.c.h.b16 %v571
      %v3001 = vunpack.c.l.b16 %v572
      %v3002 = vunpack.c.l.b16 %v573
      %v3003 = vunpack.c.h.b16 %v573
      %v3004 = vunpack.c.l.b16 %v574
      %v3005 = vunpack.c.l.b16 %v575
      %v3006 = vunpack.c.h.b16 %v575
      %v3007 = vunpack.c.l.b16 %v576
      %v3008 = vunpack.c.l.b16 %v577
      %v3009 = vunpack.c.h.b16 %v577
      %v3010 = vunpack.c.l.b16 %v578
      %v3011 = vunpack.c.l.b16 %v579
      %v3012 = vunpack.c.h.b16 %v579
      %v3013 = vunpack.c.l.b16 %v580
      %v3014 = vunpack.c.l.b16 %v581
      %v3015 = vunpack.c.h.b16 %v581
      %v3016 = vunpack.c.l.b16 %v582
      %v3017 = vunpack.c.l.b16 %v583
      %v3018 = vunpack.c.h.b16 %v583
      %v3019 = vunpack.c.l.b16 %v584
      %v3020 = vunpack.c.l.b16 %v585
      %v3021 = vunpack.c.h.b16 %v585
      %v3022 = vunpack.c.l.b16 %v586
      %v3023 = vunpack.c.l.b16 %v587
      %v3024 = vunpack.c.h.b16 %v587
      %v3025 = vunpack.c.l.b16 %v588
      %v3026 = vunpack.c.l.b16 %v589
      %v3027 = vunpack.c.h.b16 %v589
      %v3028 = vunpack.c.l.b16 %v590
      %v3029 = vunpack.c.l.b16 %v591
      %v3030 = vunpack.c.h.b16 %v591
      %v3031 = vunpack.c.l.b16 %v592
      %v3032 = vunpack.c.l.b16 %v593
      %v3033 = vunpack.c.h.b16 %v593
      %v3034 = vunpack.c.l.b16 %v594
      %v3035 = vunpack.c.l.b16 %v595
      %v3036 = vunpack.c.h.b16 %v595
      %v3037 = vunpack.c.l.b16 %v596
      %v3038 = vunpack.c.l.b16 %v597
      %v3039 = vunpack.c.h.b16 %v597
      %v3040 = vunpack.c.l.b16 %v598
      %v3041 = vunpack.c.l.b16 %v599
      %v3042 = vunpack.c.h.b16 %v599
      %v3043 = vunpack.c.l.b16 %v600
      %v3044 = vunpack.c.l.b16 %v601
      %v3045 = vunpack.c.h.b16 %v601
      %v3046 = vunpack.c.l.b16 %v602
      %v3047 = vunpack.c.l.b16 %v603
      %v3048 = vunpack.c.h.b16 %v603
      %v3049 = vunpack.c.l.b16 %v604
      %v3050 = vunpack.c.l.b16 %v605
      %v3051 = vunpack.c.h.b16 %v605
      %v3052 = vunpack.c.l.b16 %v606
      %v3053 = vunpack.c.l.b16 %v607
      %v3054 = vunpack.c.h.b16 %v607
      %v3055 = vunpack.c.l.b16 %v608
      %v3056 = vunpack.c.l.b16 %v609
      %v3057 = vunpack.c.h.b16 %v609
      %v3058 = vunpack.c.l.b16 %v610
      %v3059 = vunpack.c.l.b16 %v611
      %v3060 = vunpack.c.h.b16 %v611
      %v3061 = vunpack.c.l.b16 %v612
      %v3062 = vunpack.c.l.b16 %v613
      %v3063 = vunpack.c.h.b16 %v613
      %v3064 = vunpack.c.l.b16 %v614
      %v3065 = vunpack.c.l.b16 %v615
      %v3066 = vunpack.c.h.b16 %v615
      %v3067 = vunpack.c.l.b16 %v616
      %v3068 = vunpack.c.l.b16 %v617
      %v3069 = vunpack.c.h.b16 %v617
      %v3070 = vunpack.c.l.b16 %v618
      %v3071 = vunpack.c.l.b16 %v619
      %v3072 = vunpack.c.h.b16 %v619
      %v3073 = vunpack.c.l.b16 %v620
      %v3074 = vunpack.c.l.b16 %v621
      %v3075 = vunpack.c.h.b16 %v621
      %v3076 = vunpack.c.l.b16 %v622
      %v3077 = vunpack.c.l.b16 %v623
      %v3078 = vunpack.c.h.b16 %v623
      %v3079 = vunpack.c.l.b16 %v624
      %v3080 = vunpack.c.l.b16 %v625
      %v3081 = vunpack.c.h.b16 %v625
      %v3082 = vunpack.c.l.b16 %v626
      %v3083 = vunpack.c.l.b16 %v627
      %v3084 = vunpack.c.h.b16 %v627
      %v3085 = vunpack.c.l.b16 %v628
      %v3086 = vunpack.c.l.b16 %v629
      %v3087 = vunpack.c.h.b16 %v629
      %v3088 = vunpack.c.l.b16 %v630
      %v3089 = vunpack.c.l.b16 %v631
      %v3090 = vunpack.c.h.b16 %v631
      %v3091 = vunpack.c.l.b16 %v632
      %v3092 = vunpack.c.l.b16 %v633
      %v3093 = vunpack.c.h.b16 %v633
      %v3094 = vunpack.c.l.b16 %v634
      %v3095 = vunpack.c.l.b16 %v635
      %v3096 = vunpack.c.h.b16 %v635
      %v3097 = vunpack.c.l.b16 %v636
      %v3098 = vunpack.c.l.b16 %v637
      %v3099 = vunpack.c.h.b16 %v637
      %v3100 = vunpack.c.l.b16 %v638
      %v3101 = vunpack.c.l.b16 %v639
      %v3102 = vunpack.c.h.b16 %v639
      %v3103 = vunpack.c.l.b16 %v640
      %v3104 = vunpack.c.l.b16 %v641
      %v3105 = vunpack.c.h.b16 %v641
      %v3106 = vunpack.c.l.b16 %v642
      %v3107 = vunpack.c.l.b16 %v643
      %v3108 = vunpack.c.h.b16 %v643
      %v3109 = vunpack.c.l.b16 %v644
      %v3110 = vunpack.c.l.b16 %v645
      %v3111 = vunpack.c.h.b16 %v645
      %v3112 = vunpack.c.l.b16 %v646
      %v3113 = vunpack.c.l.b16 %v647
      %v3114 = vunpack.c.h.b16 %v647
      %v3115 = vunpack.c.l.b16 %v648
      %v3116 = vunpack.c.l.b16 %v649
      %v3117 = vunpack.c.h.b16 %v649
      %v3118 = vunpack.c.l.b16 %v650
      %v3119 = vunpack.c.l.b16 %v651
      %v3120 = vunpack.c.h.b16 %v651
      %v3121 = vunpack.c.l.b16 %v652
      %v3122 = vunpack.c.l.b16 %v653
      %v3123 = vunpack.c.h.b16 %v653
      %v3124 = vunpack.c.l.b16 %v654
      %v3125 = vunpack.c.l.b16 %v655
      %v3126 = vunpack.c.h.b16 %v655
      %v3127 = vunpack.c.l.b16 %v656
      %v3128 = vunpack.c.l.b16 %v657
      %v3129 = vunpack.c.h.b16 %v657
      %v3130 = vunpack.c.l.b16 %v658
      %v3131 = vunpack.c.l.b16 %v659
      %v3132 = vunpack.c.h.b16 %v659
      %v3133 = vunpack.c.l.b16 %v660
      %v3134 = vunpack.c.l.b16 %v661
      %v3135 = vunpack.c.h.b16 %v661
      %v3136 = vunpack.c.l.b16 %v662
      %v3137 = vunpack.c.l.b16 %v663
      %v3138 = vunpack.c.h.b16 %v663
      %v3139 = vunpack.c.l.b16 %v664
      %v3140 = vunpack.c.l.b16 %v665
      %v3141 = vunpack.c.h.b16 %v665
      %v3142 = vunpack.c.l.b16 %v666
      %v3143 = vunpack.c.l.b16 %v667
      %v3144 = vunpack.c.h.b16 %v667
      %v3145 = vunpack.c.l.b16 %v668
      %v3146 = vunpack.c.l.b16 %v669
      %v3147 = vunpack.c.h.b16 %v669
      %v3148 = vunpack.c.l.b16 %v670
      %v3149 = vunpack.c.l.b16 %v671
      %v3150 = vunpack.c.h.b16 %v671
      %v3151 = vunpack.c.l.b16 %v672
      %v3152 = vunpack.c.l.b16 %v673
      %v3153 = vunpack.c.h.b16 %v673
      %v3154 = vunpack.c.l.b16 %v674
      %v3155 = vunpack.c.l.b16 %v675
      %v3156 = vunpack.c.h.b16 %v675
      %v3157 = vunpack.c.l.b16 %v676
      %v3158 = vunpack.c.l.b16 %v677
      %v3159 = vunpack.c.h.b16 %v677
      %v3160 = vunpack.c.l.b16 %v678
      %v3161 = vunpack.c.l.b16 %v679
      %v3162 = vunpack.c.h.b16 %v679
      %v3163 = vunpack.c.l.b16 %v680
      %v3164 = vunpack.c.l.b16 %v681
      %v3165 = vunpack.c.h.b16 %v681
      %v3166 = vunpack.c.l.b16 %v682
      %v3167 = vunpack.c.l.b16 %v683
      %v3168 = vunpack.c.h.b16 %v683
      %v3169 = vunpack.c.l.b16 %v684
      %v3170 = vunpack.c.l.b16 %v685
      %v3171 = vunpack.c.h.b16 %v685
      %v3172 = vunpack.c.l.b16 %v686
      %v3173 = vunpack.c.l.b16 %v687
      %v3174 = vunpack.c.h.b16 %v687
      %v3175 = vunpack.c.l.b16 %v688
      %v3176 = vunpack.c.l.b16 %v689
      %v3177 = vunpack.c.h.b16 %v689
      %v3178 = vunpack.c.l.b16 %v690
      %v3179 = vunpack.c.l.b16 %v691
      %v3180 = vunpack.c.h.b16 %v691
      %v3181 = vunpack.c.l.b16 %v692
      %v3182 = vunpack.c.l.b16 %v693
      %v3183 = vunpack.c.h.b16 %v693
      %v3184 = vunpack.c.l.b16 %v694
      %v3185 = vunpack.c.l.b16 %v695
      %v3186 = vunpack.c.h.b16 %v695
      %v3187 = vunpack.c.l.b16 %v696
      %v3188 = vunpack.c.l.b16 %v697
      %v3189 = vunpack.c.h.b16 %v697
      %v3190 = vunpack.c.l.b16 %v698
      %v3191 = vunpack.c.l.b16 %v699
      %v3192 = vunpack.c.h.b16 %v699
      %v3193 = vunpack.c.l.b16 %v700
      %v3194 = vunpack.c.l.b16 %v701
      %v3195 = vunpack.c.h.b16 %v701
      %v3196 = vunpack.c.l.b16 %v702
      %v3197 = vunpack.c.l.b16 %v703
      %v3198 = vunpack.c.h.b16 %v703
      %v3199 = vunpack.c.l.b16 %v704
      %v3200 = vunpack.c.l.b16 %v705
      %v3201 = vunpack.c.h.b16 %v705
      %v3202 = vunpack.c.l.b16 %v706
      %v3203 = vunpack.c.l.b16 %v707
      %v3204 = vunpack.c.h.b16 %v707
      %v3205 = vunpack.c.l.b16 %v708
      %v3206 = vunpack.c.l.b16 %v709
      %v3207 = vunpack.c.h.b16 %v709
      %v3208 = vunpack.c.l.b16 %v710
      %v3209 = vunpack.c.l.b16 %v711
      %v3210 = vunpack.c.h.b16 %v711
      %v3211 = vunpack.c.l.b16 %v712
      %v3212 = vunpack.c.l.b16 %v713
      %v3213 = vunpack.c.h.b16 %v713
      %v3214 = vunpack.c.l.b16 %v714
      %v3215 = vunpack.c.l.b16 %v715
      %v3216 = vunpack.c.h.b16 %v715
      %v3217 = vunpack.c.l.b16 %v716
      %v3218 = vunpack.c.l.b16 %v717
      %v3219 = vunpack.c.h.b16 %v717
      %v3220 = vunpack.c.l.b16 %v718
      %v3221 = vunpack.c.l.b16 %v719
      %v3222 = vunpack.c.h.b16 %v719
      %v3223 = vunpack.c.l.b16 %v720
      %v3224 = vunpack.c.l.b16 %v721
      %v3225 = vunpack.c.h.b16 %v721
      %v3226 = vunpack.c.l.b16 %v722
      %v3227 = vunpack.c.l.b16 %v723
      %v3228 = vunpack.c.h.b16 %v723
      %v3229 = vunpack.c.l.b16 %v724
      %v3230 = vunpack.c.l.b16 %v725
      %v3231 = vunpack.c.h.b16 %v725
      %v3232 = vunpack.c.l.b16 %v726
      %v3233 = vunpack.c.l.b16 %v727
      %v3234 = vunpack.c.h.b16 %v727
      %v3235 = vunpack.c.l.b16 %v728
      %v3236 = vunpack.c.l.b16 %v729
      %v3237 = vunpack.c.h.b16 %v729
      %v3238 = vunpack.c.l.b16 %v730
      %v3239 = vunpack.c.l.b16 %v731
      %v3240 = vunpack.c.h.b16 %v731
      %v3241 = vunpack.c.l.b16 %v732
      %v3242 = vunpack.c.l.b16 %v733
      %v3243 = vunpack.c.h.b16 %v733
      %v3244 = vunpack.c.l.b16 %v734
      %v3245 = vunpack.c.l.b16 %v735
      %v3246 = vunpack.c.h.b16 %v735
      %v3247 = vunpack.c.l.b16 %v736
      %v3248 = vunpack.c.l.b16 %v737
      %v3249 = vunpack.c.h.b16 %v737
      %v3250 = vunpack.c.l.b16 %v738
      %v3251 = vunpack.c.l.b16 %v739
      %v3252 = vunpack.c.h.b16 %v739
      %v3253 = vunpack.c.l.b16 %v740
      %v3254 = vunpack.c.l.b16 %v741
      %v3255 = vunpack.c.h.b16 %v741
      %v3256 = vunpack.c.l.b16 %v742
      %v3257 = vunpack.c.l.b16 %v743
      %v3258 = vunpack.c.h.b16 %v743
      %v3259 = vunpack.c.l.b16 %v744
      %v3260 = vunpack.c.l.b16 %v745
      %v3261 = vunpack.c.h.b16 %v745
      %v3262 = vunpack.c.l.b16 %v746
      %v3263 = vunpack.c.l.b16 %v747
      %v3264 = vunpack.c.h.b16 %v747
      %v3265 = vunpack.c.l.b16 %v748
      %v3266 = vunpack.c.l.b16 %v749
      %v3267 = vunpack.c.h.b16 %v749
      %v3268 = vunpack.c.l.b16 %v750
      %v3269 = vunpack.c.l.b16 %v751
      %v3270 = vunpack.c.h.b16 %v751
      %v3271 = vunpack.c.l.b16 %v752
      %v3272 = vunpack.c.l.b16 %v753
      %v3273 = vunpack.c.h.b16 %v753
      %v3274 = vunpack.c.l.b16 %v754
      %v3275 = vunpack.c.l.b16 %v755
      %v3276 = vunpack.c.h.b16 %v755
      %v3277 = vunpack.c.l.b16 %v756
      %v3278 = vunpack.c.l.b16 %v757
      %v3279 = vunpack.c.h.b16 %v757
      %v3280 = vunpack.c.l.b16 %v758
      %v3281 = vunpack.c.l.b16 %v759
      %v3282 = vunpack.c.h.b16 %v759
      %v3283 = vunpack.c.l.b16 %v760
      %v3284 = vunpack.c.l.b16 %v761
      %v3285 = vunpack.c.h.b16 %v761
      %v3286 = vunpack.c.l.b16 %v762
      %v3287 = vunpack.c.l.b16 %v763
      %v3288 = vunpack.c.h.b16 %v763
      %v3289 = vunpack.c.l.b16 %v764
      %v3290 = vunpack.c.l.b16 %v765
      %v3291 = vunpack.c.h.b16 %v765
      %v3292 = vunpack.c.l.b16 %v766
      %v3293 = vunpack.c.l.b16 %v767
      %v3294 = vunpack.c.h.b16 %v767
      %v3295 = vunpack.c.l.b16 %v768
      %v3296 = vunpack.c.l.b16 %v769
      %v3297 = vunpack.c.h.b16 %v769
      %v3298 = vunpack.c.l.b16 %v770
      %v3299 = vunpack.c.l.b16 %v771
      %v3300 = vunpack.c.h.b16 %v771
      %v3301 = vunpack.c.l.b16 %v772
      %v3302 = vunpack.c.l.b16 %v773
      %v3303 = vunpack.c.h.b16 %v773
      %v3304 = vunpack.c.l.b16 %v774
      %v3305 = vunpack.c.l.b16 %v775
      %v3306 = vunpack.c.h.b16 %v775
      %v3307 = vunpack.c.l.b16 %v776
      %v3308 = vunpack.c.l.b16 %v777
      %v3309 = vunpack.c.h.b16 %v777
      %v3310 = vunpack.c.l.b16 %v778
      %v3311 = vunpack.c.l.b16 %v779
      %v3312 = vunpack.c.h.b16 %v779
      %v3313 = vunpack.c.l.b16 %v780
      %v3314 = vunpack.c.l.b16 %v781
      %v3315 = vunpack.c.h.b16 %v781
      %v3316 = vunpack.c.l.b16 %v782
      %v3317 = vunpack.c.l.b16 %v783
      %v3318 = vunpack.c.h.b16 %v783
      %v3319 = vunpack.c.l.b16 %v784
      %v3320 = vunpack.c.l.b16 %v785
      %v3321 = vunpack.c.h.b16 %v785
      %v3322 = vunpack.c.l.b16 %v786
      %v3323 = vunpack.c.l.b16 %v787
      %v3324 = vunpack.c.h.b16 %v787
      %v3325 = vunpack.c.l.b16 %v788
      %v3326 = vunpack.c.l.b16 %v789
      %v3327 = vunpack.c.h.b16 %v789
      %v3328 = vunpack.c.l.b16 %v790
      %v3329 = vunpack.c.l.b16 %v791
      %v3330 = vunpack.c.h.b16 %v791
      %v3331 = vunpack.c.l.b16 %v792
      %v3332 = vunpack.c.l.b16 %v793
      %v3333 = vunpack.c.h.b16 %v793
      %v3334 = vunpack.c.l.b16 %v794
      %v3335 = vunpack.c.l.b16 %v795
      %v3336 = vunpack.c.h.b16 %v795
      %v3337 = vunpack.c.l.b16 %v796
      %v3338 = vunpack.c.l.b16 %v797
      %v3339 = vunpack.c.h.b16 %v797
      %v3340 = vunpack.c.l.b16 %v798
      %v3341 = vunpack.c.l.b16 %v799
      %v3342 = vunpack.c.h.b16 %v799
      %v3343 = vunpack.c.l.b16 %v800
      %v3344 = vunpack.c.l.b16 %v801
      %v3345 = vunpack.c.h.b16 %v801
      %v3346 = vunpack.c.l.b16 %v802
      %v3347 = vunpack.c.l.b16 %v803
      %v3348 = vunpack.c.h.b16 %v803
      %v3349 = vunpack.c.l.b16 %v804
      %v3350 = vunpack.c.l.b16 %v805
      %v3351 = vunpack.c.h.b16 %v805
      %v3352 = vunpack.c.l.b16 %v806
      %v3353 = vunpack.c.l.b16 %v807
      %v3354 = vunpack.c.h.b16 %v807
      %v3355 = vunpack.c.l.b16 %v808
      %v3356 = vunpack.c.l.b16 %v809
      %v3357 = vunpack.c.h.b16 %v809
      %v3358 = vunpack.c.l.b16 %v810
      %v3359 = vunpack.c.l.b16 %v811
      %v3360 = vunpack.c.h.b16 %v811
      %v3361 = vunpack.c.l.b16 %v812
      %v3362 = vunpack.c.l.b16 %v813
      %v3363 = vunpack.c.h.b16 %v813
      %v3364 = vunpack.c.l.b16 %v814
      %v3365 = vunpack.c.l.b16 %v815
      %v3366 = vunpack.c.h.b16 %v815
      %v3367 = vunpack.c.l.b16 %v816
      %v3368 = vunpack.c.l.b16 %v817
      %v3369 = vunpack.c.h.b16 %v817
      %v3370 = vunpack.c.l.b16 %v818
      %v3371 = vunpack.c.l.b16 %v819
      %v3372 = vunpack.c.h.b16 %v819
      %v3373 = vunpack.c.l.b16 %v820
      %v3374 = vunpack.c.l.b16 %v821
      %v3375 = vunpack.c.h.b16 %v821
      %v3376 = vunpack.c.l.b16 %v822
      %v3377 = vunpack.c.l.b16 %v823
      %v3378 = vunpack.c.h.b16 %v823
      %v3379 = vunpack.c.l.b16 %v824
      %v3380 = vunpack.c.l.b16 %v825
      %v3381 = vunpack.c.h.b16 %v825
      %v3382 = vunpack.c.l.b16 %v826
      %v3383 = vunpack.c.l.b16 %v827
      %v3384 = vunpack.c.h.b16 %v827
      %v3385 = vunpack.c.l.b16 %v828
      %v3386 = vunpack.c.l.b16 %v829
      %v3387 = vunpack.c.h.b16 %v829
      %v3388 = vunpack.c.l.b16 %v830
      %v3389 = vunpack.c.l.b16 %v831
      %v3390 = vunpack.c.h.b16 %v831
      %v3391 = vunpack.c.l.b16 %v832
      %v3392 = vunpack.c.l.b16 %v833
      %v3393 = vunpack.c.h.b16 %v833
      %v3394 = vunpack.c.l.b16 %v834
      %v3395 = vunpack.c.l.b16 %v835
      %v3396 = vunpack.c.h.b16 %v835
      %v3397 = vunpack.c.l.b16 %v836
      %v3398 = vunpack.c.l.b16 %v837
      %v3399 = vunpack.c.h.b16 %v837
      %v3400 = vunpack.c.l.b16 %v838
      %v3401 = vunpack.c.l.b16 %v839
      %v3402 = vunpack.c.h.b16 %v839
      %v3403 = vunpack.c.l.b16 %v840
      %v3404 = vunpack.c.l.b16 %v841
      %v3405 = vunpack.c.h.b16 %v841
      %v3406 = vunpack.c.l.b16 %v842
      %v3407 = vunpack.c.l.b16 %v843
      %v3408 = vunpack.c.h.b16 %v843
      %v3409 = vunpack.c.l.b16 %v844
      %v3410 = vunpack.c.l.b16 %v845
      %v3411 = vunpack.c.h.b16 %v845
      %v3412 = vunpack.c.l.b16 %v846
      %v3413 = vunpack.c.l.b16 %v847
      %v3414 = vunpack.c.h.b16 %v847
      %v3415 = vunpack.c.l.b16 %v848
      %v3416 = vunpack.c.l.b16 %v849
      %v3417 = vunpack.c.h.b16 %v849
      %v3418 = vunpack.c.l.b16 %v850
      %v3419 = vunpack.c.l.b16 %v851
      %v3420 = vunpack.c.h.b16 %v851
      %v3421 = vunpack.c.l.b16 %v852
      %v3422 = vunpack.c.l.b16 %v853
      %v3423 = vunpack.c.h.b16 %v853
      %v3424 = vunpack.c.l.b16 %v854
      %v3425 = vunpack.c.l.b16 %v855
      %v3426 = vunpack.c.h.b16 %v855
      %v3427 = vunpack.c.l.b16 %v856
      %v3428 = vunpack.c.l.b16 %v857
      %v3429 = vunpack.c.h.b16 %v857
      %v3430 = vunpack.c.l.b16 %v858
      %v3431 = vunpack.c.l.b16 %v859
      %v3432 = vunpack.c.h.b16 %v859
      %v3433 = vunpack.c.l.b16 %v860
      %v3434 = vunpack.c.l.b16 %v861
      %v3435 = vunpack.c.h.b16 %v861
      %v3436 = vunpack.c.l.b16 %v862
      %v3437 = vunpack.c.l.b16 %v863
      %v3438 = vunpack.c.h.b16 %v863
      %v3439 = vunpack.c.l.b16 %v864
      %v3440 = vunpack.c.l.b16 %v865
      %v3441 = vunpack.c.h.b16 %v865
      %v3442 = vunpack.c.l.b16 %v866
      %v3443 = vunpack.c.l.b16 %v867
      %v3444 = vunpack.c.h.b16 %v867
      %v3445 = vunpack.c.l.b16 %v868
      %v3446 = vunpack.c.l.b16 %v869
      %v3447 = vunpack.c.h.b16 %v869
      %v3448 = vunpack.c.l.b16 %v870
      %v3449 = vunpack.c.l.b16 %v871
      %v3450 = vunpack.c.h.b16 %v871
      %v3451 = vunpack.c.l.b16 %v872
      %v3452 = vunpack.c.l.b16 %v873
      %v3453 = vunpack.c.h.b16 %v873
      %v3454 = vunpack.c.l.b16 %v874
      %v3455 = vunpack.c.l.b16 %v875
      %v3456 = vunpack.c.h.b16 %v875
      %v3457 = vunpack.c.l.b16 %v876
      %v3458 = vunpack.c.l.b16 %v877
      %v3459 = vunpack.c.h.b16 %v877
      %v3460 = vunpack.c.l.b16 %v878
      %v3461 = vunpack.c.l.b16 %v879
      %v3462 = vunpack.c.h.b16 %v879
      %v3463 = vunpack.c.l.b16 %v880
      %v3464 = vunpack.c.l.b16 %v881
      %v3465 = vunpack.c.h.b16 %v881
      %v3466 = vunpack.c.l.b16 %v882
      %v3467 = vunpack.c.l.b16 %v883
      %v3468 = vunpack.c.h.b16 %v883
      %v3469 = vunpack.c.l.b16 %v884
      %v3470 = vunpack.c.l.b16 %v885
      %v3471 = vunpack.c.h.b16 %v885
      %v3472 = vunpack.c.l.b16 %v886
      %v3473 = vunpack.c.l.b16 %v887
      %v3474 = vunpack.c.h.b16 %v887
      %v3475 = vunpack.c.l.b16 %v888
      %v3476 = vunpack.c.l.b16 %v889
      %v3477 = vunpack.c.h.b16 %v889
      %v3478 = vunpack.c.l.b16 %v890
      %v3479 = vunpack.c.l.b16 %v891
      %v3480 = vunpack.c.h.b16 %v891
      %v3481 = vunpack.c.l.b16 %v892
      %v3482 = vunpack.c.l.b16 %v893
      %v3483 = vunpack.c.h.b16 %v893
      %v3484 = vunpack.c.l.b16 %v894
      %v3485 = vunpack.c.l.b16 %v895
      %v3486 = vunpack.c.h.b16 %v895
      %v3487 = vunpack.c.l.b16 %v896
      %v3488 = vunpack.c.l.b16 %v897
      %v3489 = vunpack.c.h.b16 %v897
      %v3490 = vunpack.c.l.b16 %v898
      %v3491 = vunpack.c.l.b16 %v899
      %v3492 = vunpack.c.h.b16 %v899
      %v3493 = vunpack.c.l.b16 %v900
      %v3494 = vunpack.c.l.b16 %v901
      %v3495 = vunpack.c.h.b16 %v901
      %v3496 = vunpack.c.l.b16 %v902
      %v3497 = vunpack.c.l.b16 %v903
      %v3498 = vunpack.c.h.b16 %v903
      %v3499 = vunpack.c.l.b16 %v904
      %v3500 = vunpack.c.l.b16 %v905
      %v3501 = vunpack.c.h.b16 %v905
      %v3502 = vunpack.c.l.b16 %v906
      %v3503 = vunpack.c.l.b16 %v907
      %v3504 = vunpack.c.h.b16 %v907
      %v3505 = vunpack.c.l.b16 %v908
      %v3506 = vunpack.c.l.b16 %v909
      %v3507 = vunpack.c.h.b16 %v909
      %v3508 = vunpack.c.l.b16 %v910
      %v3509 = vunpack.c.l.b16 %v911
      %v3510 = vunpack.c.h.b16 %v911
      %v3511 = vunpack.c.l.b16 %v912
      %v3512 = vunpack.c.l.b16 %v913
      %v3513 = vunpack.c.h.b16 %v913
      %v3514 = vunpack.c.l.b16 %v914
      %v3515 = vunpack.c.l.b16 %v915
      %v3516 = vunpack.c.h.b16 %v915
      %v3517 = vunpack.c.l.b16 %v916
      %v3518 = vunpack.c.l.b16 %v917
      %v3519 = vunpack.c.h.b16 %v917
      %v3520 = vunpack.c.l.b16 %v918
      %v3521 = vunpack.c.l.b16 %v919
      %v3522 = vunpack.c.h.b16 %v919
      %v3523 = vunpack.c.l.b16 %v920
      %v3524 = vunpack.c.l.b16 %v921
      %v3525 = vunpack.c.h.b16 %v921
      %v3526 = vunpack.c.l.b16 %v922
      %v3527 = vunpack.c.l.b16 %v923
      %v3528 = vunpack.c.h.b16 %v923
      %v3529 = vunpack.c.l.b16 %v924
      %v3530 = vunpack.c.l.b16 %v925
      %v3531 = vunpack.c.h.b16 %v925
      %v3532 = vunpack.c.l.b16 %v926
      %v3533 = vunpack.c.l.b16 %v927
      %v3534 = vunpack.c.h.b16 %v927
      %v3535 = vunpack.c.l.b16 %v928
      %v3536 = vunpack.c.l.b16 %v929
      %v3537 = vunpack.c.h.b16 %v929
      %v3538 = vunpack.c.l.b16 %v930
      %v3539 = vunpack.c.l.b16 %v931
      %v3540 = vunpack.c.h.b16 %v931
      %v3541 = vunpack.c.l.b16 %v932
      %v3542 = vunpack.c.l.b16 %v933
      %v3543 = vunpack.c.h.b16 %v933
      %v3544 = vunpack.c.l.b16 %v934
      %v3545 = vunpack.c.l.b16 %v935
      %v3546 = vunpack.c.h.b16 %v935
      %v3547 = vunpack.c.l.b16 %v936
      %v3548 = vunpack.c.l.b16 %v937
      %v3549 = vunpack.c.h.b16 %v937
      %v3550 = vunpack.c.l.b16 %v938
      %v3551 = vunpack.c.l.b16 %v939
      %v3552 = vunpack.c.h.b16 %v939
      %v3553 = vunpack.c.l.b16 %v940
      %v3554 = vunpack.c.l.b16 %v941
      %v3555 = vunpack.c.h.b16 %v941
      %v3556 = vunpack.c.l.b16 %v942
      %v3557 = vunpack.c.l.b16 %v943
      %v3558 = vunpack.c.h.b16 %v943
      %v3559 = vunpack.c.l.b16 %v944
      %v3560 = vunpack.c.l.b16 %v945
      %v3561 = vunpack.c.h.b16 %v945
      %v3562 = vunpack.c.l.b16 %v946
      %v3563 = vunpack.c.l.b16 %v947
      %v3564 = vunpack.c.h.b16 %v947
      %v3565 = vunpack.c.l.b16 %v948
      %v3566 = vunpack.c.l.b16 %v949
      %v3567 = vunpack.c.h.b16 %v949
      %v3568 = vunpack.c.l.b16 %v950
      %v3569 = vunpack.c.l.b16 %v951
      %v3570 = vunpack.c.h.b16 %v951
      %v3571 = vunpack.c.l.b16 %v952
      %v3572 = vunpack.c.l.b16 %v953
      %v3573 = vunpack.c.h.b16 %v953
      %v3574 = vunpack.c.l.b16 %v954
      %v3575 = vunpack.c.l.b16 %v955
      %v3576 = vunpack.c.h.b16 %v955
      %v3577 = vunpack.c.l.b16 %v956
      %v3578 = vunpack.c.l.b16 %v957
      %v3579 = vunpack.c.h.b16 %v957
      %v3580 = vunpack.c.l.b16 %v958
      %v3581 = vunpack.c.l.b16 %v959
      %v3582 = vunpack.c.h.b16 %v959
      %v3583 = vunpack.c.l.b16 %v960
      %v3584 = vunpack.c.l.b16 %v961
      %v3585 = vunpack.c.h.b16 %v961
      %v3586 = vunpack.c.l.b16 %v962
      %v3587 = vunpack.c.l.b16 %v963
      %v3588 = vunpack.c.h.b16 %v963
      %v3589 = vunpack.c.l.b16 %v964
      %v3590 = vunpack.c.l.b16 %v965
      %v3591 = vunpack.c.h.b16 %v965
      %v3592 = vunpack.c.l.b16 %v966
      %v3593 = vunpack.c.l.b16 %v967
      %v3594 = vunpack.c.h.b16 %v967
      %v3595 = vunpack.c.l.b16 %v968
      %v3596 = vunpack.c.l.b16 %v969
      %v3597 = vunpack.c.h.b16 %v969
      %v3598 = vunpack.c.l.b16 %v970
      %v3599 = vunpack.c.l.b16 %v971
      %v3600 = vunpack.c.h.b16 %v971
      %v3601 = vunpack.c.l.b16 %v972
      %v3602 = vunpack.c.l.b16 %v973
      %v3603 = vunpack.c.h.b16 %v973
      %v3604 = vunpack.c.l.b16 %v974
      %v3605 = vunpack.c.l.b16 %v975
      %v3606 = vunpack.c.h.b16 %v975
      %v3607 = vunpack.c.l.b16 %v976
      %v3608 = vunpack.c.l.b16 %v977
      %v3609 = vunpack.c.h.b16 %v977
      %v3610 = vunpack.c.l.b16 %v978
      %v3611 = vunpack.c.l.b16 %v979
      %v3612 = vunpack.c.h.b16 %v979
      %v3613 = vunpack.c.l.b16 %v980
      %v3614 = vunpack.c.l.b16 %v981
      %v3615 = vunpack.c.h.b16 %v981
      %v3616 = vunpack.c.l.b16 %v982
      %v3617 = vunpack.c.l.b16 %v983
      %v3618 = vunpack.c.h.b16 %v983
      %v3619 = vunpack.c.l.b16 %v984
      %v3620 = vunpack.c.l.b16 %v985
      %v3621 = vunpack.c.h.b16 %v985
      %v3622 = vunpack.c.l.b16 %v986
      %v3623 = vunpack.c.l.b16 %v987
      %v3624 = vunpack.c.h.b16 %v987
      %v3625 = vunpack.c.l.b16 %v988
      %v3626 = vunpack.c.l.b16 %v989
      %v3627 = vunpack.c.h.b16 %v989
      %v3628 = vunpack.c.l.b16 %v990
      %v3629 = vunpack.c.l.b16 %v991
      %v3630 = vunpack.c.h.b16 %v991
      %v3631 = vunpack.c.l.b16 %v992
      %v3632 = vunpack.c.l.b16 %v993
      %v3633 = vunpack.c.h.b16 %v993
      %v3634 = vunpack.c.l.b16 %v994
      %v3635 = vunpack.c.l.b16 %v995
      %v3636 = vunpack.c.h.b16 %v995
      %v3637 = vunpack.c.l.b16 %v996
      %v3638 = vunpack.c.l.b16 %v997
      %v3639 = vunpack.c.h.b16 %v997
      %v3640 = vunpack.c.l.b16 %v998
      %v3641 = vunpack.c.l.b16 %v999
      %v3642 = vunpack.c.h.b16 %v999
      %v3643 = vunpack.c.l.b16 %v1000
      %v3644 = vunpack.c.l.b16 %v1001
      %v3645 = vunpack.c.h.b16 %v1001
      %v3646 = vunpack.c.l.b16 %v1002
      %v3647 = vunpack.c.l.b16 %v1003
      %v3648 = vunpack.c.h.b16 %v1003
      %v3649 = vunpack.c.l.b16 %v1004
      %v3650 = vunpack.c.l.b16 %v1005
      %v3651 = vunpack.c.h.b16 %v1005
      %v3652 = vunpack.c.l.b16 %v1006
      %v3653 = vunpack.c.l.b16 %v1007
      %v3654 = vunpack.c.h.b16 %v1007
      %v3655 = vunpack.c.l.b16 %v1008
      %v3656 = vunpack.c.l.b16 %v1009
      %v3657 = vunpack.c.h.b16 %v1009
      %v3658 = vunpack.c.l.b16 %v1010
      %v3659 = vunpack.c.l.b16 %v1011
      %v3660 = vunpack.c.h.b16 %v1011
      %v3661 = vunpack.c.l.b16 %v1012
      %v3662 = vunpack.c.l.b16 %v1013
      %v3663 = vunpack.c.h.b16 %v1013
      %v3664 = vunpack.c.l.b16 %v1014
      %v3665 = vunpack.c.l.b16 %v1015
      %v3666 = vunpack.c.h.b16 %v1015
      %v3667 = vunpack.c.l.b16 %v1016
      %v3668 = vunpack.c.l.b16 %v1017
      %v3669 = vunpack.c.h.b16 %v1017
      %v3670 = vunpack.c.l.b16 %v1018
      %v3671 = vunpack.c.l.b16 %v1019
      %v3672 = vunpack.c.h.b16 %v1019
      %v3673 = vunpack.c.l.b16 %v1020
      %v3674 = vunpack.c.l.b16 %v1021
      %v3675 = vunpack.c.h.b16 %v1021
      %v3676 = vunpack.c.l.b16 %v1022
      %v3677 = vunpack.c.l.b16 %v1023
      %v3678 = vunpack.c.h.b16 %v1023
      %v3679 = vunpack.c.l.b16 %v1024
      %v3680 = vunpack.c.l.b16 %v1025
      %v3681 = vunpack.c.h.b16 %v1025
      %v3682 = vunpack.c.l.b16 %v1026
      %v3683 = vunpack.c.l.b16 %v1027
      %v3684 = vunpack.c.h.b16 %v1027
      %v3685 = vunpack.c.l.b16 %v1028
      %v3686 = vunpack.c.l.b16 %v1029
      %v3687 = vunpack.c.h.b16 %v1029
      %v3688 = vunpack.c.l.b16 %v1030
      %v3689 = vunpack.c.l.b16 %v1031
      %v3690 = vunpack.c.h.b16 %v1031
      %v3691 = vunpack.c.l.b16 %v1032
      %v3692 = vunpack.c.l.b16 %v1033
      %v3693 = vunpack.c.h.b16 %v1033
      %v3694 = vunpack.c.l.b16 %v1034
      %v3695 = vunpack.c.l.b16 %v1035
      %v3696 = vunpack.c.h.b16 %v1035
      %v3697 = vunpack.c.l.b16 %v1036
      %v3698 = vunpack.c.l.b16 %v1037
      %v3699 = vunpack.c.h.b16 %v1037
      %v3700 = vunpack.c.l.b16 %v1038
      %v3701 = vunpack.c.l.b16 %v1039
      %v3702 = vunpack.c.h.b16 %v1039
      %v3703 = vunpack.c.l.b16 %v1040
      %v3704 = vunpack.c.l.b16 %v1041
      %v3705 = vunpack.c.h.b16 %v1041
      %v3706 = vunpack.c.l.b16 %v1042
      %v3707 = vunpack.c.l.b16 %v1043
      %v3708 = vunpack.c.h.b16 %v1043
      %v3709 = vunpack.c.l.b16 %v1044
      %v3710 = vunpack.c.l.b16 %v1045
      %v3711 = vunpack.c.h.b16 %v1045
      %v3712 = vunpack.c.l.b16 %v1046
      %v3713 = vunpack.c.l.b16 %v1047
      %v3714 = vunpack.c.h.b16 %v1047
      %v3715 = vunpack.c.l.b16 %v1048
      %v3716 = vunpack.c.l.b16 %v1049
      %v3717 = vunpack.c.h.b16 %v1049
      %v3718 = vunpack.c.l.b16 %v1050
      %v3719 = vunpack.c.l.b16 %v1051
      %v3720 = vunpack.c.h.b16 %v1051
      %v3721 = vunpack.c.l.b16 %v1052
      %v3722 = vunpack.c.l.b16 %v1053
      %v3723 = vunpack.c.h.b16 %v1053
      %v3724 = vunpack.c.l.b16 %v1054
      %v3725 = vunpack.c.l.b16 %v1055
      %v3726 = vunpack.c.h.b16 %v1055
      %v3727 = vunpack.c.l.b16 %v1056
      %v3728 = vunpack.c.l.b16 %v1057
      %v3729 = vunpack.c.h.b16 %v1057
      %v3730 = vunpack.c.l.b16 %v1058
      %v3731 = vunpack.c.l.b16 %v1059
      %v3732 = vunpack.c.h.b16 %v1059
      %v3733 = vunpack.c.l.b16 %v1060
      %v3734 = vunpack.c.l.b16 %v1061
      %v3735 = vunpack.c.h.b16 %v1061
      %v3736 = vunpack.c.l.b16 %v1062
      %v3737 = vunpack.c.l.b16 %v1063
      %v3738 = vunpack.c.h.b16 %v1063
      %v3739 = vunpack.c.l.b16 %v1064
      %v3740 = vunpack.c.l.b16 %v1065
      %v3741 = vunpack.c.h.b16 %v1065
      %v3742 = vunpack.c.l.b16 %v1066
      %v3743 = vunpack.c.l.b16 %v1067
      %v3744 = vunpack.c.h.b16 %v1067
      %v3745 = vunpack.c.l.b16 %v1068
      %v3746 = vunpack.c.l.b16 %v1069
      %v3747 = vunpack.c.h.b16 %v1069
      %v3748 = vunpack.c.l.b16 %v1070
      %v3749 = vunpack.c.l.b16 %v1071
      %v3750 = vunpack.c.h.b16 %v1071
      %v3751 = vunpack.c.l.b16 %v1072
      %v3752 = vunpack.c.l.b16 %v1073
      %v3753 = vunpack.c.h.b16 %v1073
      %v3754 = vunpack.c.l.b16 %v1074
      %v3755 = vunpack.c.l.b16 %v1075
      %v3756 = vunpack.c.h.b16 %v1075
      %v3757 = vunpack.c.l.b16 %v1076
      %v3758 = vunpack.c.l.b16 %v1077
      %v3759 = vunpack.c.h.b16 %v1077
      %v3760 = vunpack.c.l.b16 %v1078
      %v3761 = vunpack.c.l.b16 %v1079
      %v3762 = vunpack.c.h.b16 %v1079
      %v3763 = vunpack.c.l.b16 %v1080
      %v3764 = vunpack.c.l.b16 %v1081
      %v3765 = vunpack.c.h.b16 %v1081
      %v3766 = vunpack.c.l.b16 %v1082
      %v3767 = vunpack.c.l.b16 %v1083
      %v3768 = vunpack.c.h.b16 %v1083
      %v3769 = vunpack.c.l.b16 %v1084
      %v3770 = vunpack.c.l.b16 %v1085
      %v3771 = vunpack.c.h.b16 %v1085
      %v3772 = vunpack.c.l.b16 %v1086
      %v3773 = vunpack.c.l.b16 %v1087
      %v3774 = vunpack.c.h.b16 %v1087
      %v3775 = vunpack.c.l.b16 %v1088
      %v3776 = vunpack.c.l.b16 %v1089
      %v3777 = vunpack.c.h.b16 %v1089
      %v3778 = vunpack.c.l.b16 %v1090
      %v3779 = vunpack.c.l.b16 %v1091
      %v3780 = vunpack.c.h.b16 %v1091
      %v3781 = vunpack.c.l.b16 %v1092
      %v3782 = vunpack.c.l.b16 %v1093
      %v3783 = vunpack.c.h.b16 %v1093
      %v3784 = vunpack.c.l.b16 %v1094
      %v3785 = vunpack.c.l.b16 %v1095
      %v3786 = vunpack.c.h.b16 %v1095
      %v3787 = vunpack.c.l.b16 %v1096
      %v3788 = vunpack.c.l.b16 %v1097
      %v3789 = vunpack.c.h.b16 %v1097
      %v3790 = vunpack.c.l.b16 %v1098
      %v3791 = vunpack.c.l.b16 %v1099
      %v3792 = vunpack.c.h.b16 %v1099
      %v3793 = vunpack.c.l.b16 %v1100
      %v3794 = vunpack.c.l.b16 %v1101
      %v3795 = vunpack.c.h.b16 %v1101
      %v3796 = vunpack.c.l.b16 %v1102
      %v3797 = vunpack.c.l.b16 %v1103
      %v3798 = vunpack.c.h.b16 %v1103
      %v3799 = vunpack.c.l.b16 %v1104
      %v3800 = vunpack.c.l.b16 %v1105
      %v3801 = vunpack.c.h.b16 %v1105
      %v3802 = vunpack.c.l.b16 %v1106
      %v3803 = vunpack.c.l.b16 %v1107
      %v3804 = vunpack.c.h.b16 %v1107
      %v3805 = vunpack.c.l.b16 %v1108
      %v3806 = vunpack.c.l.b16 %v1109
      %v3807 = vunpack.c.h.b16 %v1109
      %v3808 = vunpack.c.l.b16 %v1110
      %v3809 = vunpack.c.l.b16 %v1111
      %v3810 = vunpack.c.h.b16 %v1111
      %v3811 = vunpack.c.l.b16 %v1112
      %v3812 = vunpack.c.l.b16 %v1113
      %v3813 = vunpack.c.h.b16 %v1113
      %v3814 = vunpack.c.l.b16 %v1114
      %v3815 = vunpack.c.l.b16 %v1115
      %v3816 = vunpack.c.h.b16 %v1115
      %v3817 = vunpack.c.l.b16 %v1116
      %v3818 = vunpack.c.l.b16 %v1117
      %v3819 = vunpack.c.h.b16 %v1117
      %v3820 = vunpack.c.l.b16 %v1118
      %v3821 = vunpack.c.l.b16 %v1119
      %v3822 = vunpack.c.h.b16 %v1119
      %v3823 = vunpack.c.l.b16 %v1120
      %v3824 = vunpack.c.l.b16 %v1121
      %v3825 = vunpack.c.h.b16 %v1121
      %v3826 = vunpack.c.l.b16 %v1122
      %v3827 = vunpack.c.l.b16 %v1123
      %v3828 = vunpack.c.h.b16 %v1123
      %v3829 = vunpack.c.l.b16 %v1124
      %v3830 = vunpack.c.l.b16 %v1125
      %v3831 = vunpack.c.h.b16 %v1125
      %v3832 = vunpack.c.l.b16 %v1126
      %v3833 = vunpack.c.l.b16 %v1127
      %v3834 = vunpack.c.h.b16 %v1127
      %v3835 = vunpack.c.l.b16 %v1128
      %v3836 = vunpack.c.l.b16 %v1129
      %v3837 = vunpack.c.h.b16 %v1129
      %v3838 = vunpack.c.l.b16 %v1130
      %v3839 = vunpack.c.l.b16 %v1131
      %v3840 = vunpack.c.h.b16 %v1131
      %v3841 = vunpack.c.l.b16 %v1132
      %v3842 = vunpack.c.l.b16 %v1133
      %v3843 = vunpack.c.h.b16 %v1133
      %v3844 = vunpack.c.l.b16 %v1134
      %v3845 = vunpack.c.l.b16 %v1135
      %v3846 = vunpack.c.h.b16 %v1135
      %v3847 = vunpack.c.l.b16 %v1136
      %v3848 = vunpack.c.l.b16 %v1137
      %v3849 = vunpack.c.h.b16 %v1137
      %v3850 = vunpack.c.l.b16 %v1138
      %v3851 = vunpack.c.l.b16 %v1139
      %v3852 = vunpack.c.h.b16 %v1139
      %v3853 = vunpack.c.l.b16 %v1140
      %v3854 = vunpack.c.l.b16 %v1141
      %v3855 = vunpack.c.h.b16 %v1141
      %v3856 = vunpack.c.l.b16 %v1142
      %v3857 = vunpack.c.l.b16 %v1143
      %v3858 = vunpack.c.h.b16 %v1143
      %v3859 = vunpack.c.l.b16 %v1144
      %v3860 = vunpack.c.l.b16 %v1145
      %v3861 = vunpack.c.h.b16 %v1145
      %v3862 = vunpack.c.l.b16 %v1146
      %v3863 = vunpack.c.l.b16 %v1147
      %v3864 = vunpack.c.h.b16 %v1147
      %v3865 = vunpack.c.l.b16 %v1148
      %v3866 = vunpack.c.l.b16 %v1149
      %v3867 = vunpack.c.h.b16 %v1149
      %v3868 = vunpack.c.l.b16 %v1150
      %v3869 = vunpack.c.l.b16 %v1151
      %v3870 = vunpack.c.h.b16 %v1151
      %v3871 = vunpack.c.l.b16 %v1152
      %v3872 = vunpack.c.l.b16 %v1153
      %v3873 = vunpack.c.h.b16 %v1153
      %v3874 = vunpack.c.l.b16 %v1154
      %v3875 = vunpack.c.l.b16 %v1155
      %v3876 = vunpack.c.h.b16 %v1155
      %v3877 = vunpack.c.l.b16 %v1156
      %v3878 = vunpack.c.l.b16 %v1157
      %v3879 = vunpack.c.h.b16 %v1157
      %v3880 = vunpack.c.l.b16 %v1158
      %v3881 = vunpack.c.l.b16 %v1159
      %v3882 = vunpack.c.h.b16 %v1159
      %v3883 = vunpack.c.l.b16 %v1160
      %v3884 = vunpack.c.l.b16 %v1161
      %v3885 = vunpack.c.h.b16 %v1161
      %v3886 = vunpack.c.l.b16 %v1162
      %v3887 = vunpack.c.l.b16 %v1163
      %v3888 = vunpack.c.h.b16 %v1163
      %v3889 = vunpack.c.l.b16 %v1164
      %v3890 = vunpack.c.l.b16 %v1165
      %v3891 = vunpack.c.h.b16 %v1165
      %v3892 = vunpack.c.l.b16 %v1166
      %v3893 = vunpack.c.l.b16 %v1167
      %v3894 = vunpack.c.h.b16 %v1167
      %v3895 = vunpack.c.l.b16 %v1168
      %v3896 = vunpack.c.l.b16 %v1169
      %v3897 = vunpack.c.h.b16 %v1169
      %v3898 = vunpack.c.l.b16 %v1170
      %v3899 = vunpack.c.l.b16 %v1171
      %v3900 = vunpack.c.h.b16 %v1171
      %v3901 = vunpack.c.l.b16 %v1172
      %v3902 = vunpack.c.l.b16 %v1173
      %v3903 = vunpack.c.h.b16 %v1173
      %v3904 = vunpack.c.l.b16 %v1174
      %v3905 = vunpack.c.l.b16 %v1175
      %v3906 = vunpack.c.h.b16 %v1175
      %v3907 = vunpack.c.l.b16 %v1176
      %v3908 = vunpack.c.l.b16 %v1177
      %v3909 = vunpack.c.h.b16 %v1177
      %v3910 = vunpack.c.l.b16 %v1178
      %v3911 = vunpack.c.l.b16 %v1179
      %v3912 = vunpack.c.h.b16 %v1179
      %v3913 = vunpack.c.l.b16 %v1180
      %v3914 = vunpack.c.l.b16 %v1181
      %v3915 = vunpack.c.h.b16 %v1181
      %v3916 = vunpack.c.l.b16 %v1182
      %v3917 = vunpack.c.l.b16 %v1183
      %v3918 = vunpack.c.h.b16 %v1183
      %v3919 = vunpack.c.l.b16 %v1184
      %v3920 = vunpack.c.l.b16 %v1185
      %v3921 = vunpack.c.h.b16 %v1185
      %v3922 = vunpack.c.l.b16 %v1186
      %v3923 = vunpack.c.l.b16 %v1187
      %v3924 = vunpack.c.h.b16 %v1187
      %v3925 = vunpack.c.l.b16 %v1188
      %v3926 = vunpack.c.l.b16 %v1189
      %v3927 = vunpack.c.h.b16 %v1189
      %v3928 = vunpack.c.l.b16 %v1190
      %v3929 = vunpack.c.l.b16 %v1191
      %v3930 = vunpack.c.h.b16 %v1191
      %v3931 = vunpack.c.l.b16 %v1192
      %v3932 = vunpack.c.l.b16 %v1193
      %v3933 = vunpack.c.h.b16 %v1193
      %v3934 = vunpack.c.l.b16 %v1194
      %v3935 = vunpack.c.l.b16 %v1195
      %v3936 = vunpack.c.h.b16 %v1195
      %v3937 = vunpack.c.l.b16 %v1196
      %v3938 = vunpack.c.l.b16 %v1197
      %v3939 = vunpack.c.h.b16 %v1197
      %v3940 = vunpack.c.l.b16 %v1198
      %v3941 = vunpack.c.l.b16 %v1199
      %v3942 = vunpack.c.h.b16 %v1199
      %v3943 = vunpack.c.l.b16 %v1200
      %v3944 = vunpack.c.l.b16 %v1201
      %v3945 = vunpack.c.h.b16 %v1201
      %v3946 = vunpack.c.l.b16 %v1202
      %v3947 = vunpack.c.l.b16 %v1203
      %v3948 = vunpack.c.h.b16 %v1203
      %v3949 = vunpack.c.l.b16 %v1204
      %v3950 = vunpack.c.l.b16 %v1205
      %v3951 = vunpack.c.h.b16 %v1205
      %v3952 = vunpack.c.l.b16 %v1206
      %v3953 = vunpack.c.l.b16 %v1207
      %v3954 = vunpack.c.h.b16 %v1207
      %v3955 = vunpack.c.l.b16 %v1208
      %v3956 = vunpack.c.l.b16 %v1209
      %v3957 = vunpack.c.h.b16 %v1209
      %v3958 = vunpack.c.l.b16 %v1210
      %v3959 = vunpack.c.l.b16 %v1211
      %v3960 = vunpack.c.h.b16 %v1211
      %v3961 = vunpack.c.l.b16 %v1212
      %v3962 = vunpack.c.l.b16 %v1213
      %v3963 = vunpack.c.h.b16 %v1213
      %v3964 = vunpack.c.l.b16 %v1214
      %v3965 = vunpack.c.l.b16 %v1215
      %v3966 = vunpack.c.h.b16 %v1215
      %v3967 = vunpack.c.l.b16 %v1216
      %v3968 = vunpack.c.l.b16 %v1217
      %v3969 = vunpack.c.h.b16 %v1217
      %v3970 = vunpack.c.l.b16 %v1218
      %v3971 = vunpack.c.l.b16 %v1219
      %v3972 = vunpack.c.h.b16 %v1219
      %v3973 = vunpack.c.l.b16 %v1220
      %v3974 = vunpack.c.l.b16 %v1221
      %v3975 = vunpack.c.h.b16 %v1221
      %v3976 = vunpack.c.l.b16 %v1222
      %v3977 = vunpack.c.l.b16 %v1223
      %v3978 = vunpack.c.h.b16 %v1223
      %v3979 = vunpack.c.l.b16 %v1224
      %v3980 = vunpack.c.l.b16 %v1225
      %v3981 = vunpack.c.h.b16 %v1225
      %v3982 = vunpack.c.l.b16 %v1226
      %v3983 = vunpack.c.l.b16 %v1227
      %v3984 = vunpack.c.h.b16 %v1227
      %v3985 = vunpack.c.l.b16 %v1228
      %v3986 = vpack.c.b16 %v2981, %v2978
      %v3987 = vpack.c.b16 %v2982, %v2979
      %v3988 = vpack.c.b16 %v2983, %v2980
      %v3989 = vpack.c.b16 %v2987, %v2984
      %v3990 = vpack.c.b16 %v2988, %v2985
      %v3991 = vpack.c.b16 %v2989, %v2986
      %v3992 = vpack.c.b16 %v2993, %v2990
      %v3993 = vpack.c.b16 %v2994, %v2991
      %v3994 = vpack.c.b16 %v2995, %v2992
      %v3995 = vpack.c.b16 %v2999, %v2996
      %v3996 = vpack.c.b16 %v3000, %v2997
      %v3997 = vpack.c.b16 %v3001, %v2998
      %v3998 = vpack.c.b16 %v3005, %v3002
      %v3999 = vpack.c.b16 %v3006, %v3003
      %v4000 = vpack.c.b16 %v3007, %v3004
      %v4001 = vpack.c.b16 %v3011, %v3008
      %v4002 = vpack.c.b16 %v3012, %v3009
      %v4003 = vpack.c.b16 %v3013, %v3010
      %v4004 = vpack.c.b16 %v3017, %v3014
      %v4005 = vpack.c.b16 %v3018, %v3015
      %v4006 = vpack.c.b16 %v3019, %v3016
      %v4007 = vpack.c.b16 %v3023, %v3020
      %v4008 = vpack.c.b16 %v3024, %v3021
      %v4009 = vpack.c.b16 %v3025, %v3022
      %v4010 = vpack.c.b16 %v3029, %v3026
      %v4011 = vpack.c.b16 %v3030, %v3027
      %v4012 = vpack.c.b16 %v3031, %v3028
      %v4013 = vpack.c.b16 %v3035, %v3032
      %v4014 = vpack.c.b16 %v3036, %v3033
      %v4015 = vpack.c.b16 %v3037, %v3034
      %v4016 = vpack.c.b16 %v3041, %v3038
      %v4017 = vpack.c.b16 %v3042, %v3039
      %v4018 = vpack.c.b16 %v3043, %v3040
      %v4019 = vpack.c.b16 %v3047, %v3044
      %v4020 = vpack.c.b16 %v3048, %v3045
      %v4021 = vpack.c.b16 %v3049, %v3046
      %v4022 = vpack.c.b16 %v3053, %v3050
      %v4023 = vpack.c.b16 %v3054, %v3051
      %v4024 = vpack.c.b16 %v3055, %v3052
      %v4025 = vpack.c.b16 %v3059, %v3056
      %v4026 = vpack.c.b16 %v3060, %v3057
      %v4027 = vpack.c.b16 %v3061, %v3058
      %v4028 = vpack.c.b16 %v3065, %v3062
      %v4029 = vpack.c.b16 %v3066, %v3063
      %v4030 = vpack.c.b16 %v3067, %v3064
      %v4031 = vpack.c.b16 %v3071, %v3068
      %v4032 = vpack.c.b16 %v3072, %v3069
      %v4033 = vpack.c.b16 %v3073, %v3070
      %v4034 = vpack.c.b16 %v3077, %v3074
      %v4035 = vpack.c.b16 %v3078, %v3075
      %v4036 = vpack.c.b16 %v3079, %v3076
      %v4037 = vpack.c.b16 %v3083, %v3080
      %v4038 = vpack.c.b16 %v3084, %v3081
      %v4039 = vpack.c.b16 %v3085, %v3082
      %v4040 = vpack.c.b16 %v3089, %v3086
      %v4041 = vpack.c.b16 %v3090, %v3087
      %v4042 = vpack.c.b16 %v3091, %v3088
      %v4043 = vpack.c.b16 %v3095, %v3092
      %v4044 = vpack.c.b16 %v3096, %v3093
      %v4045 = vpack.c.b16 %v3097, %v3094
      %v4046 = vpack.c.b16 %v3101, %v3098
      %v4047 = vpack.c.b16 %v3102, %v3099
      %v4048 = vpack.c.b16 %v3103, %v3100
      %v4049 = vpack.c.b16 %v3107, %v3104
      %v4050 = vpack.c.b16 %v3108, %v3105
      %v4051 = vpack.c.b16 %v3109, %v3106
      %v4052 = vpack.c.b16 %v3113, %v3110
      %v4053 = vpack.c.b16 %v3114, %v3111
      %v4054 = vpack.c.b16 %v3115, %v3112
      %v4055 = vpack.c.b16 %v3119, %v3116
      %v4056 = vpack.c.b16 %v3120, %v3117
      %v4057 = vpack.c.b16 %v3121, %v3118
      %v4058 = vpack.c.b16 %v3125, %v3122
      %v4059 = vpack.c.b16 %v3126, %v3123
      %v4060 = vpack.c.b16 %v3127, %v3124
      %v4061 = vpack.c.b16 %v3131, %v3128
      %v4062 = vpack.c.b16 %v3132, %v3129
      %v4063 = vpack.c.b16 %v3133, %v3130
      %v4064 = vpack.c.b16 %v3137, %v3134
      %v4065 = vpack.c.b16 %v3138, %v3135
      %v4066 = vpack.c.b16 %v3139, %v3136
      %v4067 = vpack.c.b16 %v3143, %v3140
      %v4068 = vpack.c.b16 %v3144, %v3141
      %v4069 = vpack.c.b16 %v3145, %v3142
      %v4070 = vpack.c.b16 %v3149, %v3146
      %v4071 = vpack.c.b16 %v3150, %v3147
      %v4072 = vpack.c.b16 %v3151, %v3148
      %v4073 = vpack.c.b16 %v3155, %v3152
      %v4074 = vpack.c.b16 %v3156, %v3153
      %v4075 = vpack.c.b16 %v3157, %v3154
      %v4076 = vpack.c.b16 %v3161, %v3158
      %v4077 = vpack.c.b16 %v3162, %v3159
      %v4078 = vpack.c.b16 %v3163, %v3160
      %v4079 = vpack.c.b16 %v3167, %v3164
      %v4080 = vpack.c.b16 %v3168, %v3165
      %v4081 = vpack.c.b16 %v3169, %v3166
      %v4082 = vpack.c.b16 %v3173, %v3170
      %v4083 = vpack.c.b16 %v3174, %v3171
      %v4084 = vpack.c.b16 %v3175, %v3172
      %v4085 = vpack.c.b16 %v3179, %v3176
      %v4086 = vpack.c.b16 %v3180, %v3177
      %v4087 = vpack.c.b16 %v3181, %v3178
      %v4088 = vpack.c.b16 %v3185, %v3182
      %v4089 = vpack.c.b16 %v3186, %v3183
      %v4090 = vpack.c.b16 %v3187, %v3184
      %v4091 = vpack.c.b16 %v3191, %v3188
      %v4092 = vpack.c.b16 %v3192, %v3189
      %v4093 = vpack.c.b16 %v3193, %v3190
      %v4094 = vpack.c.b16 %v3197, %v3194
      %v4095 = vpack.c.b16 %v3198, %v3195
      %v4096 = vpack.c.b16 %v3199, %v3196
      %v4097 = vpack.c.b16 %v3203, %v3200
      %v4098 = vpack.c.b16 %v3204, %v3201
      %v4099 = vpack.c.b16 %v3205, %v3202
      %v4100 = vpack.c.b16 %v3209, %v3206
      %v4101 = vpack.c.b16 %v3210, %v3207
      %v4102 = vpack.c.b16 %v3211, %v3208
      %v4103 = vpack.c.b16 %v3215, %v3212
      %v4104 = vpack.c.b16 %v3216, %v3213
      %v4105 = vpack.c.b16 %v3217, %v3214
      %v4106 = vpack.c.b16 %v3221, %v3218
      %v4107 = vpack.c.b16 %v3222, %v3219
      %v4108 = vpack.c.b16 %v3223, %v3220
      %v4109 = vpack.c.b16 %v3227, %v3224
      %v4110 = vpack.c.b16 %v3228, %v3225
      %v4111 = vpack.c.b16 %v3229, %v3226
      %v4112 = vpack.c.b16 %v3233, %v3230
      %v4113 = vpack.c.b16 %v3234, %v3231
      %v4114 = vpack.c.b16 %v3235, %v3232
      %v4115 = vpack.c.b16 %v3239, %v3236
      %v4116 = vpack.c.b16 %v3240, %v3237
      %v4117 = vpack.c.b16 %v3241, %v3238
      %v4118 = vpack.c.b16 %v3245, %v3242
      %v4119 = vpack.c.b16 %v3246, %v3243
      %v4120 = vpack.c.b16 %v3247, %v3244
      %v4121 = vpack.c.b16 %v3251, %v3248
      %v4122 = vpack.c.b16 %v3252, %v3249
      %v4123 = vpack.c.b16 %v3253, %v3250
      %v4124 = vpack.c.b16 %v3257, %v3254
      %v4125 = vpack.c.b16 %v3258, %v3255
      %v4126 = vpack.c.b16 %v3259, %v3256
      %v4127 = vpack.c.b16 %v3263, %v3260
      %v4128 = vpack.c.b16 %v3264, %v3261
      %v4129 = vpack.c.b16 %v3265, %v3262
      %v4130 = vpack.c.b16 %v3269, %v3266
      %v4131 = vpack.c.b16 %v3270, %v3267
      %v4132 = vpack.c.b16 %v3271, %v3268
      %v4133 = vpack.c.b16 %v3275, %v3272
      %v4134 = vpack.c.b16 %v3276, %v3273
      %v4135 = vpack.c.b16 %v3277, %v3274
      %v4136 = vpack.c.b16 %v3281, %v3278
      %v4137 = vpack.c.b16 %v3282, %v3279
      %v4138 = vpack.c.b16 %v3283, %v3280
      %v4139 = vpack.c.b16 %v3287, %v3284
      %v4140 = vpack.c.b16 %v3288, %v3285
      %v4141 = vpack.c.b16 %v3289, %v3286
      %v4142 = vpack.c.b16 %v3293, %v3290
      %v4143 = vpack.c.b16 %v3294, %v3291
      %v4144 = vpack.c.b16 %v3295, %v3292
      %v4145 = vpack.c.b16 %v3299, %v3296
      %v4146 = vpack.c.b16 %v3300, %v3297
      %v4147 = vpack.c.b16 %v3301, %v3298
      %v4148 = vpack.c.b16 %v3305, %v3302
      %v4149 = vpack.c.b16 %v3306, %v3303
      %v4150 = vpack.c.b16 %v3307, %v3304
      %v4151 = vpack.c.b16 %v3311, %v3308
      %v4152 = vpack.c.b16 %v3312, %v3309
      %v4153 = vpack.c.b16 %v3313, %v3310
      %v4154 = vpack.c.b16 %v3317, %v3314
      %v4155 = vpack.c.b16 %v3318, %v3315
      %v4156 = vpack.c.b16 %v3319, %v3316
      %v4157 = vpack.c.b16 %v3323, %v3320
      %v4158 = vpack.c.b16 %v3324, %v3321
      %v4159 = vpack.c.b16 %v3325, %v3322
      %v4160 = vpack.c.b16 %v3329, %v3326
      %v4161 = vpack.c.b16 %v3330, %v3327
      %v4162 = vpack.c.b16 %v3331, %v3328
      %v4163 = vpack.c.b16 %v3335, %v3332
      %v4164 = vpack.c.b16 %v3336, %v3333
      %v4165 = vpack.c.b16 %v3337, %v3334
      %v4166 = vpack.c.b16 %v3341, %v3338
      %v4167 = vpack.c.b16 %v3342, %v3339
      %v4168 = vpack.c.b16 %v3343, %v3340
      %v4169 = vpack.c.b16 %v3347, %v3344
      %v4170 = vpack.c.b16 %v3348, %v3345
      %v4171 = vpack.c.b16 %v3349, %v3346
      %v4172 = vpack.c.b16 %v3353, %v3350
      %v4173 = vpack.c.b16 %v3354, %v3351
      %v4174 = vpack.c.b16 %v3355, %v3352
      %v4175 = vpack.c.b16 %v3359, %v3356
      %v4176 = vpack.c.b16 %v3360, %v3357
      %v4177 = vpack.c.b16 %v3361, %v3358
      %v4178 = vpack.c.b16 %v3365, %v3362
      %v4179 = vpack.c.b16 %v3366, %v3363
      %v4180 = vpack.c.b16 %v3367, %v3364
      %v4181 = vpack.c.b16 %v3371, %v3368
      %v4182 = vpack.c.b16 %v3372, %v3369
      %v4183 = vpack.c.b16 %v3373, %v3370
      %v4184 = vpack.c.b16 %v3377, %v3374
      %v4185 = vpack.c.b16 %v3378, %v3375
      %v4186 = vpack.c.b16 %v3379, %v3376
      %v4187 = vpack.c.b16 %v3383, %v3380
      %v4188 = vpack.c.b16 %v3384, %v3381
      %v4189 = vpack.c.b16 %v3385, %v3382
      %v4190 = vpack.c.b16 %v3389, %v3386
      %v4191 = vpack.c.b16 %v3390, %v3387
      %v4192 = vpack.c.b16 %v3391, %v3388
      %v4193 = vpack.c.b16 %v3395, %v3392
      %v4194 = vpack.c.b16 %v3396, %v3393
      %v4195 = vpack.c.b16 %v3397, %v3394
      %v4196 = vpack.c.b16 %v3401, %v3398
      %v4197 = vpack.c.b16 %v3402, %v3399
      %v4198 = vpack.c.b16 %v3403, %v3400
      %v4199 = vpack.c.b16 %v3407, %v3404
      %v4200 = vpack.c.b16 %v3408, %v3405
      %v4201 = vpack.c.b16 %v3409, %v3406
      %v4202 = vpack.c.b16 %v3413, %v3410
      %v4203 = vpack.c.b16 %v3414, %v3411
      %v4204 = vpack.c.b16 %v3415, %v3412
      %v4205 = vpack.c.b16 %v3419, %v3416
      %v4206 = vpack.c.b16 %v3420, %v3417
      %v4207 = vpack.c.b16 %v3421, %v3418
      %v4208 = vpack.c.b16 %v3425, %v3422
      %v4209 = vpack.c.b16 %v3426, %v3423
      %v4210 = vpack.c.b16 %v3427, %v3424
      %v4211 = vpack.c.b16 %v3431, %v3428
      %v4212 = vpack.c.b16 %v3432, %v3429
      %v4213 = vpack.c.b16 %v3433, %v3430
      %v4214 = vpack.c.b16 %v3437, %v3434
      %v4215 = vpack.c.b16 %v3438, %v3435
      %v4216 = vpack.c.b16 %v3439, %v3436
      %v4217 = vpack.c.b16 %v3443, %v3440
      %v4218 = vpack.c.b16 %v3444, %v3441
      %v4219 = vpack.c.b16 %v3445, %v3442
      %v4220 = vpack.c.b16 %v3449, %v3446
      %v4221 = vpack.c.b16 %v3450, %v3447
      %v4222 = vpack.c.b16 %v3451, %v3448
      %v4223 = vpack.c.b16 %v3455, %v3452
      %v4224 = vpack.c.b16 %v3456, %v3453
      %v4225 = vpack.c.b16 %v3457, %v3454
      %v4226 = vpack.c.b16 %v3461, %v3458
      %v4227 = vpack.c.b16 %v3462, %v3459
      %v4228 = vpack.c.b16 %v3463, %v3460
      %v4229 = vpack.c.b16 %v3467, %v3464
      %v4230 = vpack.c.b16 %v3468, %v3465
      %v4231 = vpack.c.b16 %v3469, %v3466
      %v4232 = vpack.c.b16 %v3473, %v3470
      %v4233 = vpack.c.b16 %v3474, %v3471
      %v4234 = vpack.c.b16 %v3475, %v3472
      %v4235 = vpack.c.b16 %v3479, %v3476
      %v4236 = vpack.c.b16 %v3480, %v3477
      %v4237 = vpack.c.b16 %v3481, %v3478
      %v4238 = vpack.c.b16 %v3485, %v3482
      %v4239 = vpack.c.b16 %v3486, %v3483
      %v4240 = vpack.c.b16 %v3487, %v3484
      %v4241 = vpack.c.b16 %v3491, %v3488
      %v4242 = vpack.c.b16 %v3492, %v3489
      %v4243 = vpack.c.b16 %v3493, %v3490
      %v4244 = vpack.c.b16 %v3497, %v3494
      %v4245 = vpack.c.b16 %v3498, %v3495
      %v4246 = vpack.c.b16 %v3499, %v3496
      %v4247 = vpack.c.b16 %v3503, %v3500
      %v4248 = vpack.c.b16 %v3504, %v3501
      %v4249 = vpack.c.b16 %v3505, %v3502
      %v4250 = vpack.c.b16 %v3509, %v3506
      %v4251 = vpack.c.b16 %v3510, %v3507
      %v4252 = vpack.c.b16 %v3511, %v3508
      %v4253 = vpack.c.b16 %v3515, %v3512
      %v4254 = vpack.c.b16 %v3516, %v3513
      %v4255 = vpack.c.b16 %v3517, %v3514
      %v4256 = vpack.c.b16 %v3521, %v3518
      %v4257 = vpack.c.b16 %v3522, %v3519
      %v4258 = vpack.c.b16 %v3523, %v3520
      %v4259 = vpack.c.b16 %v3527, %v3524
      %v4260 = vpack.c.b16 %v3528, %v3525
      %v4261 = vpack.c.b16 %v3529, %v3526
      %v4262 = vpack.c.b16 %v3533, %v3530
      %v4263 = vpack.c.b16 %v3534, %v3531
      %v4264 = vpack.c.b16 %v3535, %v3532
      %v4265 = vpack.c.b16 %v3539, %v3536
      %v4266 = vpack.c.b16 %v3540, %v3537
      %v4267 = vpack.c.b16 %v3541, %v3538
      %v4268 = vpack.c.b16 %v3545, %v3542
      %v4269 = vpack.c.b16 %v3546, %v3543
      %v4270 = vpack.c.b16 %v3547, %v3544
      %v4271 = vpack.c.b16 %v3551, %v3548
      %v4272 = vpack.c.b16 %v3552, %v3549
      %v4273 = vpack.c.b16 %v3553, %v3550
      %v4274 = vpack.c.b16 %v3557, %v3554
      %v4275 = vpack.c.b16 %v3558, %v3555
      %v4276 = vpack.c.b16 %v3559, %v3556
      %v4277 = vpack.c.b16 %v3563, %v3560
      %v4278 = vpack.c.b16 %v3564, %v3561
      %v4279 = vpack.c.b16 %v3565, %v3562
      %v4280 = vpack.c.b16 %v3569, %v3566
      %v4281 = vpack.c.b16 %v3570, %v3567
      %v4282 = vpack.c.b16 %v3571, %v3568
      %v4283 = vpack.c.b16 %v3575, %v3572
      %v4284 = vpack.c.b16 %v3576, %v3573
      %v4285 = vpack.c.b16 %v3577, %v3574
      %v4286 = vpack.c.b16 %v3581, %v3578
      %v4287 = vpack.c.b16 %v3582, %v3579
      %v4288 = vpack.c.b16 %v3583, %v3580
      %v4289 = vpack.c.b16 %v3587, %v3584
      %v4290 = vpack.c.b16 %v3588, %v3585
      %v4291 = vpack.c.b16 %v3589, %v3586
      %v4292 = vpack.c.b16 %v3593, %v3590
      %v4293 = vpack.c.b16 %v3594, %v3591
      %v4294 = vpack.c.b16 %v3595, %v3592
      %v4295 = vpack.c.b16 %v3599, %v3596
      %v4296 = vpack.c.b16 %v3600, %v3597
      %v4297 = vpack.c.b16 %v3601, %v3598
      %v4298 = vpack.c.b16 %v3605, %v3602
      %v4299 = vpack.c.b16 %v3606, %v3603
      %v4300 = vpack.c.b16 %v3607, %v3604
      %v4301 = vpack.c.b16 %v3611, %v3608
      %v4302 = vpack.c.b16 %v3612, %v3609
      %v4303 = vpack.c.b16 %v3613, %v3610
      %v4304 = vpack.c.b16 %v3617, %v3614
      %v4305 = vpack.c.b16 %v3618, %v3615
      %v4306 = vpack.c.b16 %v3619, %v3616
      %v4307 = vpack.c.b16 %v3623, %v3620
      %v4308 = vpack.c.b16 %v3624, %v3621
      %v4309 = vpack.c.b16 %v3625, %v3622
      %v4310 = vpack.c.b16 %v3629, %v3626
      %v4311 = vpack.c.b16 %v3630, %v3627
      %v4312 = vpack.c.b16 %v3631, %v3628
      %v4313 = vpack.c.b16 %v3635, %v3632
      %v4314 = vpack.c.b16 %v3636, %v3633
      %v4315 = vpack.c.b16 %v3637, %v3634
      %v4316 = vpack.c.b16 %v3641, %v3638
      %v4317 = vpack.c.b16 %v3642, %v3639
      %v4318 = vpack.c.b16 %v3643, %v3640
      %v4319 = vpack.c.b16 %v3647, %v3644
      %v4320 = vpack.c.b16 %v3648, %v3645
      %v4321 = vpack.c.b16 %v3649, %v3646
      %v4322 = vpack.c.b16 %v3653, %v3650
      %v4323 = vpack.c.b16 %v3654, %v3651
      %v4324 = vpack.c.b16 %v3655, %v3652
      %v4325 = vpack.c.b16 %v3659, %v3656
      %v4326 = vpack.c.b16 %v3660, %v3657
      %v4327 = vpack.c.b16 %v3661, %v3658
      %v4328 = vpack.c.b16 %v3665, %v3662
      %v4329 = vpack.c.b16 %v3666, %v3663
      %v4330 = vpack.c.b16 %v3667, %v3664
      %v4331 = vpack.c.b16 %v3671, %v3668
      %v4332 = vpack.c.b16 %v3672, %v3669
      %v4333 = vpack.c.b16 %v3673, %v3670
      %v4334 = vpack.c.b16 %v3677, %v3674
      %v4335 = vpack.c.b16 %v3678, %v3675
      %v4336 = vpack.c.b16 %v3679, %v3676
      %v4337 = vpack.c.b16 %v3683, %v3680
      %v4338 = vpack.c.b16 %v3684, %v3681
      %v4339 = vpack.c.b16 %v3685, %v3682
      %v4340 = vpack.c.b16 %v3689, %v3686
      %v4341 = vpack.c.b16 %v3690, %v3687
      %v4342 = vpack.c.b16 %v3691, %v3688
      %v4343 = vpack.c.b16 %v3695, %v3692
      %v4344 = vpack.c.b16 %v3696, %v3693
      %v4345 = vpack.c.b16 %v3697, %v3694
      %v4346 = vpack.c.b16 %v3701, %v3698
      %v4347 = vpack.c.b16 %v3702, %v3699
      %v4348 = vpack.c.b16 %v3703, %v3700
      %v4349 = vpack.c.b16 %v3707, %v3704
      %v4350 = vpack.c.b16 %v3708, %v3705
      %v4351 = vpack.c.b16 %v3709, %v3706
      %v4352 = vpack.c.b16 %v3713, %v3710
      %v4353 = vpack.c.b16 %v3714, %v3711
      %v4354 = vpack.c.b16 %v3715, %v3712
      %v4355 = vpack.c.b16 %v3719, %v3716
      %v4356 = vpack.c.b16 %v3720, %v3717
      %v4357 = vpack.c.b16 %v3721, %v3718
      %v4358 = vpack.c.b16 %v3725, %v3722
      %v4359 = vpack.c.b16 %v3726, %v3723
      %v4360 = vpack.c.b16 %v3727, %v3724
      %v4361 = vpack.c.b16 %v3731, %v3728
      %v4362 = vpack.c.b16 %v3732, %v3729
      %v4363 = vpack.c.b16 %v3733, %v3730
      %v4364 = vpack.c.b16 %v3737, %v3734
      %v4365 = vpack.c.b16 %v3738, %v3735
      %v4366 = vpack.c.b16 %v3739, %v3736
      %v4367 = vpack.c.b16 %v3743, %v3740
      %v4368 = vpack.c.b16 %v3744, %v3741
      %v4369 = vpack.c.b16 %v3745, %v3742
      %v4370 = vpack.c.b16 %v3749, %v3746
      %v4371 = vpack.c.b16 %v3750, %v3747
      %v4372 = vpack.c.b16 %v3751, %v3748
      %v4373 = vpack.c.b16 %v3755, %v3752
      %v4374 = vpack.c.b16 %v3756, %v3753
      %v4375 = vpack.c.b16 %v3757, %v3754
      %v4376 = vpack.c.b16 %v3761, %v3758
      %v4377 = vpack.c.b16 %v3762, %v3759
      %v4378 = vpack.c.b16 %v3763, %v3760
      %v4379 = vpack.c.b16 %v3767, %v3764
      %v4380 = vpack.c.b16 %v3768, %v3765
      %v4381 = vpack.c.b16 %v3769, %v3766
      %v4382 = vpack.c.b16 %v3773, %v3770
      %v4383 = vpack.c.b16 %v3774, %v3771
      %v4384 = vpack.c.b16 %v3775, %v3772
      %v4385 = vpack.c.b16 %v3779, %v3776
      %v4386 = vpack.c.b16 %v3780, %v3777
      %v4387 = vpack.c.b16 %v3781, %v3778
      %v4388 = vpack.c.b16 %v3785, %v3782
      %v4389 = vpack.c.b16 %v3786, %v3783
      %v4390 = vpack.c.b16 %v3787, %v3784
      %v4391 = vpack.c.b16 %v3791, %v3788
      %v4392 = vpack.c.b16 %v3792, %v3789
      %v4393 = vpack.c.b16 %v3793, %v3790
      %v4394 = vpack.c.b16 %v3797, %v3794
      %v4395 = vpack.c.b16 %v3798, %v3795
      %v4396 = vpack.c.b16 %v3799, %v3796
      %v4397 = vpack.c.b16 %v3803, %v3800
      %v4398 = vpack.c.b16 %v3804, %v3801
      %v4399 = vpack.c.b16 %v3805, %v3802
      %v4400 = vpack.c.b16 %v3809, %v3806
      %v4401 = vpack.c.b16 %v3810, %v3807
      %v4402 = vpack.c.b16 %v3811, %v3808
      %v4403 = vpack.c.b16 %v3815, %v3812
      %v4404 = vpack.c.b16 %v3816, %v3813
      %v4405 = vpack.c.b16 %v3817, %v3814
      %v4406 = vpack.c.b16 %v3821, %v3818
      %v4407 = vpack.c.b16 %v3822, %v3819
      %v4408 = vpack.c.b16 %v3823, %v3820
      %v4409 = vpack.c.b16 %v3827, %v3824
      %v4410 = vpack.c.b16 %v3828, %v3825
      %v4411 = vpack.c.b16 %v3829, %v3826
      %v4412 = vpack.c.b16 %v3833, %v3830
      %v4413 = vpack.c.b16 %v3834, %v3831
      %v4414 = vpack.c.b16 %v3835, %v3832
      %v4415 = vpack.c.b16 %v3839, %v3836
      %v4416 = vpack.c.b16 %v3840, %v3837
      %v4417 = vpack.c.b16 %v3841, %v3838
      %v4418 = vpack.c.b16 %v3845, %v3842
      %v4419 = vpack.c.b16 %v3846, %v3843
      %v4420 = vpack.c.b16 %v3847, %v3844
      %v4421 = vpack.c.b16 %v3851, %v3848
      %v4422 = vpack.c.b16 %v3852, %v3849
      %v4423 = vpack.c.b16 %v3853, %v3850
      %v4424 = vpack.c.b16 %v3857, %v3854
      %v4425 = vpack.c.b16 %v3858, %v3855
      %v4426 = vpack.c.b16 %v3859, %v3856
      %v4427 = vpack.c.b16 %v3863, %v3860
      %v4428 = vpack.c.b16 %v3864, %v3861
      %v4429 = vpack.c.b16 %v3865, %v3862
      %v4430 = vpack.c.b16 %v3869, %v3866
      %v4431 = vpack.c.b16 %v3870, %v3867
      %v4432 = vpack.c.b16 %v3871, %v3868
      %v4433 = vpack.c.b16 %v3875, %v3872
      %v4434 = vpack.c.b16 %v3876, %v3873
      %v4435 = vpack.c.b16 %v3877, %v3874
      %v4436 = vpack.c.b16 %v3881, %v3878
      %v4437 = vpack.c.b16 %v3882, %v3879
      %v4438 = vpack.c.b16 %v3883, %v3880
      %v4439 = vpack.c.b16 %v3887, %v3884
      %v4440 = vpack.c.b16 %v3888, %v3885
      %v4441 = vpack.c.b16 %v3889, %v3886
      %v4442 = vpack.c.b16 %v3893, %v3890
      %v4443 = vpack.c.b16 %v3894, %v3891
      %v4444 = vpack.c.b16 %v3895, %v3892
      %v4445 = vpack.c.b16 %v3899, %v3896
      %v4446 = vpack.c.b16 %v3900, %v3897
      %v4447 = vpack.c.b16 %v3901, %v3898
      %v4448 = vpack.c.b16 %v3905, %v3902
      %v4449 = vpack.c.b16 %v3906, %v3903
      %v4450 = vpack.c.b16 %v3907, %v3904
      %v4451 = vpack.c.b16 %v3911, %v3908
      %v4452 = vpack.c.b16 %v3912, %v3909
      %v4453 = vpack.c.b16 %v3913, %v3910
      %v4454 = vpack.c.b16 %v3917, %v3914
      %v4455 = vpack.c.b16 %v3918, %v3915
      %v4456 = vpack.c.b16 %v3919, %v3916
      %v4457 = vpack.c.b16 %v3923, %v3920
      %v4458 = vpack.c.b16 %v3924, %v3921
      %v4459 = vpack.c.b16 %v3925, %v3922
      %v4460 = vpack.c.b16 %v3929, %v3926
      %v4461 = vpack.c.b16 %v3930, %v3927
      %v4462 = vpack.c.b16 %v3931, %v3928
      %v4463 = vpack.c.b16 %v3935, %v3932
      %v4464 = vpack.c.b16 %v3936, %v3933
      %v4465 = vpack.c.b16 %v3937, %v3934
      %v4466 = vpack.c.b16 %v3941, %v3938
      %v4467 = vpack.c.b16 %v3942, %v3939
      %v4468 = vpack.c.b16 %v3943, %v3940
      %v4469 = vpack.c.b16 %v3947, %v3944
      %v4470 = vpack.c.b16 %v3948, %v3945
      %v4471 = vpack.c.b16 %v3949, %v3946
      %v4472 = vpack.c.b16 %v3953, %v3950
      %v4473 = vpack.c.b16 %v3954, %v3951
      %v4474 = vpack.c.b16 %v3955, %v3952
      %v4475 = vpack.c.b16 %v3959, %v3956
      %v4476 = vpack.c.b16 %v3960, %v3957
      %v4477 = vpack.c.b16 %v3961, %v3958
      %v4478 = vpack.c.b16 %v3965, %v3962
      %v4479 = vpack.c.b16 %v3966, %v3963
      %v4480 = vpack.c.b16 %v3967, %v3964
      %v4481 = vpack.c.b16 %v3971, %v3968
      %v4482 = vpack.c.b16 %v3972, %v3969
      %v4483 = vpack.c.b16 %v3973, %v3970
      %v4484 = vpack.c.b16 %v3977, %v3974
      %v4485 = vpack.c.b16 %v3978, %v3975
      %v4486 = vpack.c.b16 %v3979, %v3976
      %v4487 = vpack.c.b16 %v3983, %v3980
      %v4488 = vpack.c.b16 %v3984, %v3981
      %v4489 = vpack.c.b16 %v3985, %v3982
      %4994 = vmatprep.subr.bf16.mxu0 %v3987
      %4995 = vmatpush1.bf16.msra.mxu0 %v3986
      %4996 = vmatprep.subr.bf16.mxu0 %v3990
      %4997 = vmatpush1.bf16.msra.mxu0 %v3989
      %4998 = vmatprep.subr.bf16.mxu0 %v3993
      %4999 = vmatpush1.bf16.msra.mxu0 %v3992
      %5000 = vmatprep.subr.bf16.mxu0 %v3996
      %5001 = vmatpush1.bf16.msra.mxu0 %v3995
      %5002 = vmatprep.subr.bf16.mxu0 %v3999
      %5003 = vmatpush1.bf16.msra.mxu0 %v3998
      %5004 = vmatprep.subr.bf16.mxu0 %v4002
      %5005 = vmatpush1.bf16.msra.mxu0 %v4001
      %5006 = vmatprep.subr.bf16.mxu0 %v4005
      %5007 = vmatpush1.bf16.msra.mxu0 %v4004
      %5008 = vmatprep.subr.bf16.mxu0 %v4008
      %5009 = vmatpush1.bf16.msra.mxu0 %v4007
      %5010 = vmatprep.subr.bf16.mxu0 %v4011
      %5011 = vmatpush1.bf16.msra.mxu0 %v4010
      %5012 = vmatprep.subr.bf16.mxu0 %v4014
      %5013 = vmatpush1.bf16.msra.mxu0 %v4013
      %5014 = vmatprep.subr.bf16.mxu0 %v4017
      %5015 = vmatpush1.bf16.msra.mxu0 %v4016
      %5016 = vmatprep.subr.bf16.mxu0 %v4020
      %5017 = vmatpush1.bf16.msra.mxu0 %v4019
      %5018 = vmatprep.subr.bf16.mxu0 %v4023
      %5019 = vmatpush1.bf16.msra.mxu0 %v4022
      %5020 = vmatprep.subr.bf16.mxu0 %v4026
      %5021 = vmatpush1.bf16.msra.mxu0 %v4025
      %5022 = vmatprep.subr.bf16.mxu0 %v4029
      %5023 = vmatpush1.bf16.msra.mxu0 %v4028
      %5024 = vmatprep.subr.bf16.mxu0 %v4032
      %5025 = vmatpush1.bf16.msra.mxu0 %v4031
      %5026 = vmatprep.mubr.bf16.mxu0 %v1887
      %5027 = vmatmul.mubr.bf16.gmra.mrb[0].mxu0 %v1886
      %v5028 = vpop.f32.mrb[0].mxu0
      %v5029 = vadd.f32 %v1234, %v5028
      %v5030 = vpop.f32.mrb[0].mxu0
      %v5031 = vadd.f32 %v1238, %v5030
      %v5032 = vpop.f32.mrb[0].mxu0
      %v5033 = vadd.f32 %v1234, %v5032
      %v5034 = vpop.f32.mrb[0].mxu0
      %v5035 = vadd.f32 %v1238, %v5034
      %5036 = vmatprep.mubr.bf16.mxu0 %v1908
      %5037 = vmatmul.mubr.bf16.gmra.mrb[0].mxu0 %v1907
      %v5038 = vpop.f32.mrb[0].mxu0
      %v5039 = vadd.f32 %v1234, %v5038
      %v5040 = vpop.f32.mrb[0].mxu0
      %v5041 = vadd.f32 %v1238, %v5040
      %v5042 = vpop.f32.mrb[0].mxu0
      %v5043 = vadd.f32 %v1234, %v5042
      %v5044 = vpop.f32.mrb[0].mxu0
      %v5045 = vadd.f32 %v1238, %v5044
      %5046 = vmatprep.mubr.bf16.mxu0 %v1929
      %5047 = vmatmul.mubr.bf16.gmra.mrb[0].mxu0 %v1928
      %v5048 = vpop.f32.mrb[0].mxu0
      %v5049 = vadd.f32 %v1234, %v5048
      %v5050 = vpop.f32.mrb[0].mxu0
      %v5051 = vadd.f32 %v1238, %v5050
      %v5052 = vpop.f32.mrb[0].mxu0
      %v5053 = vadd.f32 %v1234, %v5052
      %v5054 = vpop.f32.mrb[0].mxu0
      %v5055 = vadd.f32 %v1238, %v5054
      %5056 = vmatprep.mubr.bf16.mxu0 %v1950
      %5057 = vmatmul.mubr.bf16.gmra.mrb[0].mxu0 %v1949
      %v5058 = vpop.f32.mrb[0].mxu0
      %v5059 = vadd.f32 %v1234, %v5058
      %v5060 = vpop.f32.mrb[0].mxu0
      %v5061 = vadd.f32 %v1238, %v5060
      %v5062 = vpop.f32.mrb[0].mxu0
      %v5063 = vadd.f32 %v1234, %v5062
      %v5064 = vpop.f32.mrb[0].mxu0
      %v5065 = vadd.f32 %v1238, %v5064
      %5066 = vmatprep.mubr.bf16.mxu0 %v1971
      %5067 = vmatmul.mubr.bf16.gmra.mrb[0].mxu0 %v1970
      %v5068 = vpop.f32.mrb[0].mxu0
      %v5069 = vadd.f32 %v1234, %v5068
      %v5070 = vpop.f32.mrb[0].mxu0
      %v5071 = vadd.f32 %v1238, %v5070
      %v5072 = vpop.f32.mrb[0].mxu0
      %v5073 = vadd.f32 %v1234, %v5072
      %v5074 = vpop.f32.mrb[0].mxu0
      %v5075 = vadd.f32 %v1238, %v5074
      %5076 = vmatprep.mubr.bf16.mxu0 %v1992
      %5077 = vmatmul.mubr.bf16.gmra.mrb[0].mxu0 %v1991
      %v5078 = vpop.f32.mrb[0].mxu0
      %v5079 = vadd.f32 %v1234, %v5078
      %v5080 = vpop.f32.mrb[0].mxu0
      %v5081 = vadd.f32 %v1238, %v5080
      %v5082 = vpop.f32.mrb[0].mxu0
      %v5083 = vadd.f32 %v1234, %v5082
      %v5084 = vpop.f32.mrb[0].mxu0
      %v5085 = vadd.f32 %v1238, %v5084
      %5086 = vmatprep.mubr.bf16.mxu0 %v2013
      %5087 = vmatmul.mubr.bf16.gmra.mrb[0].mxu0 %v2012
      %v5088 = vpop.f32.mrb[0].mxu0
      %v5089 = vadd.f32 %v1234, %v5088
      %v5090 = vpop.f32.mrb[0].mxu0
      %v5091 = vadd.f32 %v1238, %v5090
      %v5092 = vpop.f32.mrb[0].mxu0
      %v5093 = vadd.f32 %v1234, %v5092
      %v5094 = vpop.f32.mrb[0].mxu0
      %v5095 = vadd.f32 %v1238, %v5094
      %5096 = vmatprep.mubr.bf16.mxu0 %v2034
      %5097 = vmatmul.mubr.bf16.gmra.mrb[0].mxu0 %v2033
      %v5098 = vpop.f32.mrb[0].mxu0
      %v5099 = vadd.f32 %v1234, %v5098
      %v5100 = vpop.f32.mrb[0].mxu0
      %v5101 = vadd.f32 %v1238, %v5100
      %v5102 = vpop.f32.mrb[0].mxu0
      %v5103 = vadd.f32 %v1234, %v5102
      %v5104 = vpop.f32.mrb[0].mxu0
      %v5105 = vadd.f32 %v1238, %v5104
      %5106 = vmatprep.mubr.bf16.mxu0 %v2055
      %5107 = vmatmul.mubr.bf16.gmra.mrb[0].mxu0 %v2054
      %v5108 = vpop.f32.mrb[0].mxu0
      %v5109 = vadd.f32 %v1234, %v5108
      %v5110 = vpop.f32.mrb[0].mxu0
      %v5111 = vadd.f32 %v1238, %v5110
      %v5112 = vpop.f32.mrb[0].mxu0
      %v5113 = vadd.f32 %v1234, %v5112
      %v5114 = vpop.f32.mrb[0].mxu0
      %v5115 = vadd.f32 %v1238, %v5114
      %5116 = vmatprep.mubr.bf16.mxu0 %v2076
      %5117 = vmatmul.mubr.bf16.gmra.mrb[0].mxu0 %v2075
      %v5118 = vpop.f32.mrb[0].mxu0
      %v5119 = vadd.f32 %v1234, %v5118
      %v5120 = vpop.f32.mrb[0].mxu0
      %v5121 = vadd.f32 %v1238, %v5120
      %v5122 = vpop.f32.mrb[0].mxu0
      %v5123 = vadd.f32 %v1234, %v5122
      %v5124 = vpop.f32.mrb[0].mxu0
      %v5125 = vadd.f32 %v1238, %v5124
      %5126 = vdwg.mxu0
      %5127 = vmatprep.subr.bf16.mxu0 %v4035
      %5128 = vmatpush1.bf16.msra.mxu0 %v4034
      %5129 = vmatprep.subr.bf16.mxu0 %v4038
      %5130 = vmatpush1.bf16.msra.mxu0 %v4037
      %5131 = vmatprep.subr.bf16.mxu0 %v4041
      %5132 = vmatpush1.bf16.msra.mxu0 %v4040
      %5133 = vmatprep.subr.bf16.mxu0 %v4044
      %5134 = vmatpush1.bf16.msra.mxu0 %v4043
      %5135 = vmatprep.subr.bf16.mxu0 %v4047
      %5136 = vmatpush1.bf16.msra.mxu0 %v4046
      %5137 = vmatprep.subr.bf16.mxu0 %v4050
      %5138 = vmatpush1.bf16.msra.mxu0 %v4049
      %5139 = vmatprep.subr.bf16.mxu0 %v4053
      %5140 = vmatpush1.bf16.msra.mxu0 %v4052
      %5141 = vmatprep.subr.bf16.mxu0 %v4056
      %5142 = vmatpush1.bf16.msra.mxu0 %v4055
      %5143 = vmatprep.subr.bf16.mxu0 %v4059
      %5144 = vmatpush1.bf16.msra.mxu0 %v4058
      %5145 = vmatprep.subr.bf16.mxu0 %v4062
      %5146 = vmatpush1.bf16.msra.mxu0 %v4061
      %5147 = vmatprep.subr.bf16.mxu0 %v4065
      %5148 = vmatpush1.bf16.msra.mxu0 %v4064
      %5149 = vmatprep.subr.bf16.mxu0 %v4068
      %5150 = vmatpush1.bf16.msra.mxu0 %v4067
      %5151 = vmatprep.subr.bf16.mxu0 %v4071
      %5152 = vmatpush1.bf16.msra.mxu0 %v4070
      %5153 = vmatprep.subr.bf16.mxu0 %v4074
      %5154 = vmatpush1.bf16.msra.mxu0 %v4073
      %5155 = vmatprep.subr.bf16.mxu0 %v4077
      %5156 = vmatpush1.bf16.msra.mxu0 %v4076
      %5157 = vmatprep.subr.bf16.mxu0 %v4080
      %5158 = vmatpush1.bf16.msra.mxu0 %v4079
      %5159 = vmatprep.mubr.bf16.mxu0 %v1889
      %5160 = vmatmul.mubr.bf16.gmra.mrb[0].mxu0 %v1888
      %v5161 = vpop.f32.mrb[0].mxu0
      %v5162 = vadd.f32 %v5029, %v5161
      %v5163 = vpop.f32.mrb[0].mxu0
      %v5164 = vadd.f32 %v5031, %v5163
      %v5165 = vpop.f32.mrb[0].mxu0
      %v5166 = vadd.f32 %v5033, %v5165
      %v5167 = vpop.f32.mrb[0].mxu0
      %v5168 = vadd.f32 %v5035, %v5167
      %5169 = vmatprep.mubr.bf16.mxu0 %v1910
      %5170 = vmatmul.mubr.bf16.gmra.mrb[0].mxu0 %v1909
      %v5171 = vpop.f32.mrb[0].mxu0
      %v5172 = vadd.f32 %v5039, %v5171
      %v5173 = vpop.f32.mrb[0].mxu0
      %v5174 = vadd.f32 %v5041, %v5173
      %v5175 = vpop.f32.mrb[0].mxu0
      %v5176 = vadd.f32 %v5043, %v5175
      %v5177 = vpop.f32.mrb[0].mxu0
      %v5178 = vadd.f32 %v5045, %v5177
      %5179 = vmatprep.mubr.bf16.mxu0 %v1931
      %5180 = vmatmul.mubr.bf16.gmra.mrb[0].mxu0 %v1930
      %v5181 = vpop.f32.mrb[0].mxu0
      %v5182 = vadd.f32 %v5049, %v5181
      %v5183 = vpop.f32.mrb[0].mxu0
      %v5184 = vadd.f32 %v5051, %v5183
      %v5185 = vpop.f32.mrb[0].mxu0
      %v5186 = vadd.f32 %v5053, %v5185
      %v5187 = vpop.f32.mrb[0].mxu0
      %v5188 = vadd.f32 %v5055, %v5187
      %5189 = vmatprep.mubr.bf16.mxu0 %v1952
      %5190 = vmatmul.mubr.bf16.gmra.mrb[0].mxu0 %v1951
      %v5191 = vpop.f32.mrb[0].mxu0
      %v5192 = vadd.f32 %v5059, %v5191
      %v5193 = vpop.f32.mrb[0].mxu0
      %v5194 = vadd.f32 %v5061, %v5193
      %v5195 = vpop.f32.mrb[0].mxu0
      %v5196 = vadd.f32 %v5063, %v5195
      %v5197 = vpop.f32.mrb[0].mxu0
      %v5198 = vadd.f32 %v5065, %v5197
      %5199 = vmatprep.mubr.bf16.mxu0 %v1973
      %5200 = vmatmul.mubr.bf16.gmra.mrb[0].mxu0 %v1972
      %v5201 = vpop.f32.mrb[0].mxu0
      %v5202 = vadd.f32 %v5069, %v5201
      %v5203 = vpop.f32.mrb[0].mxu0
      %v5204 = vadd.f32 %v5071, %v5203
      %v5205 = vpop.f32.mrb[0].mxu0
      %v5206 = vadd.f32 %v5073, %v5205
      %v5207 = vpop.f32.mrb[0].mxu0
      %v5208 = vadd.f32 %v5075, %v5207
      %5209 = vmatprep.mubr.bf16.mxu0 %v1994
      %5210 = vmatmul.mubr.bf16.gmra.mrb[0].mxu0 %v1993
      %v5211 = vpop.f32.mrb[0].mxu0
      %v5212 = vadd.f32 %v5079, %v5211
      %v5213 = vpop.f32.mrb[0].mxu0
      %v5214 = vadd.f32 %v5081, %v5213
      %v5215 = vpop.f32.mrb[0].mxu0
      %v5216 = vadd.f32 %v5083, %v5215
      %v5217 = vpop.f32.mrb[0].mxu0
      %v5218 = vadd.f32 %v5085, %v5217
      %5219 = vmatprep.mubr.bf16.mxu0 %v2015
      %5220 = vmatmul.mubr.bf16.gmra.mrb[0].mxu0 %v2014
      %v5221 = vpop.f32.mrb[0].mxu0
      %v5222 = vadd.f32 %v5089, %v5221
      %v5223 = vpop.f32.mrb[0].mxu0
      %v5224 = vadd.f32 %v5091, %v5223
      %v5225 = vpop.f32.mrb[0].mxu0
      %v5226 = vadd.f32 %v5093, %v5225
      %v5227 = vpop.f32.mrb[0].mxu0
      %v5228 = vadd.f32 %v5095, %v5227
      %5229 = vmatprep.mubr.bf16.mxu0 %v2036
      %5230 = vmatmul.mubr.bf16.gmra.mrb[0].mxu0 %v2035
      %v5231 = vpop.f32.mrb[0].mxu0
      %v5232 = vadd.f32 %v5099, %v5231
      %v5233 = vpop.f32.mrb[0].mxu0
      %v5234 = vadd.f32 %v5101, %v5233
      %v5235 = vpop.f32.mrb[0].mxu0
      %v5236 = vadd.f32 %v5103, %v5235
      %v5237 = vpop.f32.mrb[0].mxu0
      %v5238 = vadd.f32 %v5105, %v5237
      %5239 = vmatprep.mubr.bf16.mxu0 %v2057
      %5240 = vmatmul.mubr.bf16.gmra.mrb[0].mxu0 %v2056
      %v5241 = vpop.f32.mrb[0].mxu0
      %v5242 = vadd.f32 %v5109, %v5241
      %v5243 = vpop.f32.mrb[0].mxu0
      %v5244 = vadd.f32 %v5111, %v5243
      %v5245 = vpop.f32.mrb[0].mxu0
      %v5246 = vadd.f32 %v5113, %v5245
      %v5247 = vpop.f32.mrb[0].mxu0
      %v5248 = vadd.f32 %v5115, %v5247
      %5249 = vmatprep.mubr.bf16.mxu0 %v2078
      %5250 = vmatmul.mubr.bf16.gmra.mrb[0].mxu0 %v2077
      %v5251 = vpop.f32.mrb[0].mxu0
      %v5252 = vadd.f32 %v5119, %v5251
      %v5253 = vpop.f32.mrb[0].mxu0
      %v5254 = vadd.f32 %v5121, %v5253
      %v5255 = vpop.f32.mrb[0].mxu0
      %v5256 = vadd.f32 %v5123, %v5255
      %v5257 = vpop.f32.mrb[0].mxu0
      %v5258 = vadd.f32 %v5125, %v5257
      %5259 = vdwg.mxu0
      %5260 = vmatprep.subr.bf16.mxu0 %v4083
      %5261 = vmatpush1.bf16.msra.mxu0 %v4082
      %5262 = vmatprep.subr.bf16.mxu0 %v4086
      %5263 = vmatpush1.bf16.msra.mxu0 %v4085
      %5264 = vmatprep.subr.bf16.mxu0 %v4089
      %5265 = vmatpush1.bf16.msra.mxu0 %v4088
      %5266 = vmatprep.subr.bf16.mxu0 %v4092
      %5267 = vmatpush1.bf16.msra.mxu0 %v4091
      %5268 = vmatprep.subr.bf16.mxu0 %v4095
      %5269 = vmatpush1.bf16.msra.mxu0 %v4094
      %5270 = vmatprep.subr.bf16.mxu0 %v4098
      %5271 = vmatpush1.bf16.msra.mxu0 %v4097
      %5272 = vmatprep.subr.bf16.mxu0 %v4101
      %5273 = vmatpush1.bf16.msra.mxu0 %v4100
      %5274 = vmatprep.subr.bf16.mxu0 %v4104
      %5275 = vmatpush1.bf16.msra.mxu0 %v4103
      %5276 = vmatprep.subr.bf16.mxu0 %v4107
      %5277 = vmatpush1.bf16.msra.mxu0 %v4106
      %5278 = vmatprep.subr.bf16.mxu0 %v4110
      %5279 = vmatpush1.bf16.msra.mxu0 %v4109
      %5280 = vmatprep.subr.bf16.mxu0 %v4113
      %5281 = vmatpush1.bf16.msra.mxu0 %v4112
      %5282 = vmatprep.subr.bf16.mxu0 %v4116
      %5283 = vmatpush1.bf16.msra.mxu0 %v4115
      %5284 = vmatprep.subr.bf16.mxu0 %v4119
      %5285 = vmatpush1.bf16.msra.mxu0 %v4118
      %5286 = vmatprep.subr.bf16.mxu0 %v4122
      %5287 = vmatpush1.bf16.msra.mxu0 %v4121
      %5288 = vmatprep.subr.bf16.mxu0 %v4125
      %5289 = vmatpush1.bf16.msra.mxu0 %v4124
      %5290 = vmatprep.subr.bf16.mxu0 %v4128
      %5291 = vmatpush1.bf16.msra.mxu0 %v4127
      %5292 = vmatprep.mubr.bf16.mxu0 %v1891
      %5293 = vmatmul.mubr.bf16.gmra.mrb[0].mxu0 %v1890
      %v5294 = vpop.f32.mrb[0].mxu0
      %v5295 = vadd.f32 %v5162, %v5294
      %v5296 = vpop.f32.mrb[0].mxu0
      %v5297 = vadd.f32 %v5164, %v5296
      %v5298 = vpop.f32.mrb[0].mxu0
      %v5299 = vadd.f32 %v5166, %v5298
      %v5300 = vpop.f32.mrb[0].mxu0
      %v5301 = vadd.f32 %v5168, %v5300
      %5302 = vmatprep.mubr.bf16.mxu0 %v1912
      %5303 = vmatmul.mubr.bf16.gmra.mrb[0].mxu0 %v1911
      %v5304 = vpop.f32.mrb[0].mxu0
      %v5305 = vadd.f32 %v5172, %v5304
      %v5306 = vpop.f32.mrb[0].mxu0
      %v5307 = vadd.f32 %v5174, %v5306
      %v5308 = vpop.f32.mrb[0].mxu0
      %v5309 = vadd.f32 %v5176, %v5308
      %v5310 = vpop.f32.mrb[0].mxu0
      %v5311 = vadd.f32 %v5178, %v5310
      %5312 = vmatprep.mubr.bf16.mxu0 %v1933
      %5313 = vmatmul.mubr.bf16.gmra.mrb[0].mxu0 %v1932
      %v5314 = vpop.f32.mrb[0].mxu0
      %v5315 = vadd.f32 %v5182, %v5314
      %v5316 = vpop.f32.mrb[0].mxu0
      %v5317 = vadd.f32 %v5184, %v5316
      %v5318 = vpop.f32.mrb[0].mxu0
      %v5319 = vadd.f32 %v5186, %v5318
      %v5320 = vpop.f32.mrb[0].mxu0
      %v5321 = vadd.f32 %v5188, %v5320
      %5322 = vmatprep.mubr.bf16.mxu0 %v1954
      %5323 = vmatmul.mubr.bf16.gmra.mrb[0].mxu0 %v1953
      %v5324 = vpop.f32.mrb[0].mxu0
      %v5325 = vadd.f32 %v5192, %v5324
      %v5326 = vpop.f32.mrb[0].mxu0
      %v5327 = vadd.f32 %v5194, %v5326
      %v5328 = vpop.f32.mrb[0].mxu0
      %v5329 = vadd.f32 %v5196, %v5328
      %v5330 = vpop.f32.mrb[0].mxu0
      %v5331 = vadd.f32 %v5198, %v5330
      %5332 = vmatprep.mubr.bf16.mxu0 %v1975
      %5333 = vmatmul.mubr.bf16.gmra.mrb[0].mxu0 %v1974
      %v5334 = vpop.f32.mrb[0].mxu0
      %v5335 = vadd.f32 %v5202, %v5334
      %v5336 = vpop.f32.mrb[0].mxu0
      %v5337 = vadd.f32 %v5204, %v5336
      %v5338 = vpop.f32.mrb[0].mxu0
      %v5339 = vadd.f32 %v5206, %v5338
      %v5340 = vpop.f32.mrb[0].mxu0
      %v5341 = vadd.f32 %v5208, %v5340
      %5342 = vmatprep.mubr.bf16.mxu0 %v1996
      %5343 = vmatmul.mubr.bf16.gmra.mrb[0].mxu0 %v1995
      %v5344 = vpop.f32.mrb[0].mxu0
      %v5345 = vadd.f32 %v5212, %v5344
      %v5346 = vpop.f32.mrb[0].mxu0
      %v5347 = vadd.f32 %v5214, %v5346
      %v5348 = vpop.f32.mrb[0].mxu0
      %v5349 = vadd.f32 %v5216, %v5348
      %v5350 = vpop.f32.mrb[0].mxu0
      %v5351 = vadd.f32 %v5218, %v5350
      %5352 = vmatprep.mubr.bf16.mxu0 %v2017
      %5353 = vmatmul.mubr.bf16.gmra.mrb[0].mxu0 %v2016
      %v5354 = vpop.f32.mrb[0].mxu0
      %v5355 = vadd.f32 %v5222, %v5354
      %v5356 = vpop.f32.mrb[0].mxu0
      %v5357 = vadd.f32 %v5224, %v5356
      %v5358 = vpop.f32.mrb[0].mxu0
      %v5359 = vadd.f32 %v5226, %v5358
      %v5360 = vpop.f32.mrb[0].mxu0
      %v5361 = vadd.f32 %v5228, %v5360
      %5362 = vmatprep.mubr.bf16.mxu0 %v2038
      %5363 = vmatmul.mubr.bf16.gmra.mrb[0].mxu0 %v2037
      %v5364 = vpop.f32.mrb[0].mxu0
      %v5365 = vadd.f32 %v5232, %v5364
      %v5366 = vpop.f32.mrb[0].mxu0
      %v5367 = vadd.f32 %v5234, %v5366
      %v5368 = vpop.f32.mrb[0].mxu0
      %v5369 = vadd.f32 %v5236, %v5368
      %v5370 = vpop.f32.mrb[0].mxu0
      %v5371 = vadd.f32 %v5238, %v5370
      %5372 = vmatprep.mubr.bf16.mxu0 %v2059
      %5373 = vmatmul.mubr.bf16.gmra.mrb[0].mxu0 %v2058
      %v5374 = vpop.f32.mrb[0].mxu0
      %v5375 = vadd.f32 %v5242, %v5374
      %v5376 = vpop.f32.mrb[0].mxu0
      %v5377 = vadd.f32 %v5244, %v5376
      %v5378 = vpop.f32.mrb[0].mxu0
      %v5379 = vadd.f32 %v5246, %v5378
      %v5380 = vpop.f32.mrb[0].mxu0
      %v5381 = vadd.f32 %v5248, %v5380
      %5382 = vmatprep.mubr.bf16.mxu0 %v2080
      %5383 = vmatmul.mubr.bf16.gmra.mrb[0].mxu0 %v2079
      %v5384 = vpop.f32.mrb[0].mxu0
      %v5385 = vadd.f32 %v5252, %v5384
      %v5386 = vpop.f32.mrb[0].mxu0
      %v5387 = vadd.f32 %v5254, %v5386
      %v5388 = vpop.f32.mrb[0].mxu0
      %v5389 = vadd.f32 %v5256, %v5388
      %v5390 = vpop.f32.mrb[0].mxu0
      %v5391 = vadd.f32 %v5258, %v5390
      %5392 = vdwg.mxu0
      %5393 = vmatprep.subr.bf16.mxu0 %v4131
      %5394 = vmatpush1.bf16.msra.mxu0 %v4130
      %5395 = vmatprep.subr.bf16.mxu0 %v4134
      %5396 = vmatpush1.bf16.msra.mxu0 %v4133
      %5397 = vmatprep.subr.bf16.mxu0 %v4137
      %5398 = vmatpush1.bf16.msra.mxu0 %v4136
      %5399 = vmatprep.subr.bf16.mxu0 %v4140
      %5400 = vmatpush1.bf16.msra.mxu0 %v4139
      %5401 = vmatprep.subr.bf16.mxu0 %v4143
      %5402 = vmatpush1.bf16.msra.mxu0 %v4142
      %5403 = vmatprep.subr.bf16.mxu0 %v4146
      %5404 = vmatpush1.bf16.msra.mxu0 %v4145
      %5405 = vmatprep.subr.bf16.mxu0 %v4149
      %5406 = vmatpush1.bf16.msra.mxu0 %v4148
      %5407 = vmatprep.subr.bf16.mxu0 %v4152
      %5408 = vmatpush1.bf16.msra.mxu0 %v4151
      %5409 = vmatprep.subr.bf16.mxu0 %v4155
      %5410 = vmatpush1.bf16.msra.mxu0 %v4154
      %5411 = vmatprep.subr.bf16.mxu0 %v4158
      %5412 = vmatpush1.bf16.msra.mxu0 %v4157
      %5413 = vmatprep.subr.bf16.mxu0 %v4161
      %5414 = vmatpush1.bf16.msra.mxu0 %v4160
      %5415 = vmatprep.subr.bf16.mxu0 %v4164
      %5416 = vmatpush1.bf16.msra.mxu0 %v4163
      %5417 = vmatprep.subr.bf16.mxu0 %v4167
      %5418 = vmatpush1.bf16.msra.mxu0 %v4166
      %5419 = vmatprep.subr.bf16.mxu0 %v4170
      %5420 = vmatpush1.bf16.msra.mxu0 %v4169
      %5421 = vmatprep.subr.bf16.mxu0 %v4173
      %5422 = vmatpush1.bf16.msra.mxu0 %v4172
      %5423 = vmatprep.subr.bf16.mxu0 %v4176
      %5424 = vmatpush1.bf16.msra.mxu0 %v4175
      %5425 = vmatprep.mubr.bf16.mxu0 %v1893
      %5426 = vmatmul.mubr.bf16.gmra.mrb[0].mxu0 %v1892
      %v5427 = vpop.f32.mrb[0].mxu0
      %v5428 = vadd.f32 %v5295, %v5427
      %v5429 = vpop.f32.mrb[0].mxu0
      %v5430 = vadd.f32 %v5297, %v5429
      %v5431 = vpop.f32.mrb[0].mxu0
      %v5432 = vadd.f32 %v5299, %v5431
      %v5433 = vpop.f32.mrb[0].mxu0
      %v5434 = vadd.f32 %v5301, %v5433
      %5435 = vmatprep.mubr.bf16.mxu0 %v1914
      %5436 = vmatmul.mubr.bf16.gmra.mrb[0].mxu0 %v1913
      %v5437 = vpop.f32.mrb[0].mxu0
      %v5438 = vadd.f32 %v5305, %v5437
      %v5439 = vpop.f32.mrb[0].mxu0
      %v5440 = vadd.f32 %v5307, %v5439
      %v5441 = vpop.f32.mrb[0].mxu0
      %v5442 = vadd.f32 %v5309, %v5441
      %v5443 = vpop.f32.mrb[0].mxu0
      %v5444 = vadd.f32 %v5311, %v5443
      %5445 = vmatprep.mubr.bf16.mxu0 %v1935
      %5446 = vmatmul.mubr.bf16.gmra.mrb[0].mxu0 %v1934
      %v5447 = vpop.f32.mrb[0].mxu0
      %v5448 = vadd.f32 %v5315, %v5447
      %v5449 = vpop.f32.mrb[0].mxu0
      %v5450 = vadd.f32 %v5317, %v5449
      %v5451 = vpop.f32.mrb[0].mxu0
      %v5452 = vadd.f32 %v5319, %v5451
      %v5453 = vpop.f32.mrb[0].mxu0
      %v5454 = vadd.f32 %v5321, %v5453
      %5455 = vmatprep.mubr.bf16.mxu0 %v1956
      %5456 = vmatmul.mubr.bf16.gmra.mrb[0].mxu0 %v1955
      %v5457 = vpop.f32.mrb[0].mxu0
      %v5458 = vadd.f32 %v5325, %v5457
      %v5459 = vpop.f32.mrb[0].mxu0
      %v5460 = vadd.f32 %v5327, %v5459
      %v5461 = vpop.f32.mrb[0].mxu0
      %v5462 = vadd.f32 %v5329, %v5461
      %v5463 = vpop.f32.mrb[0].mxu0
      %v5464 = vadd.f32 %v5331, %v5463
      %5465 = vmatprep.mubr.bf16.mxu0 %v1977
      %5466 = vmatmul.mubr.bf16.gmra.mrb[0].mxu0 %v1976
      %v5467 = vpop.f32.mrb[0].mxu0
      %v5468 = vadd.f32 %v5335, %v5467
      %v5469 = vpop.f32.mrb[0].mxu0
      %v5470 = vadd.f32 %v5337, %v5469
      %v5471 = vpop.f32.mrb[0].mxu0
      %v5472 = vadd.f32 %v5339, %v5471
      %v5473 = vpop.f32.mrb[0].mxu0
      %v5474 = vadd.f32 %v5341, %v5473
      %5475 = vmatprep.mubr.bf16.mxu0 %v1998
      %5476 = vmatmul.mubr.bf16.gmra.mrb[0].mxu0 %v1997
      %v5477 = vpop.f32.mrb[0].mxu0
      %v5478 = vadd.f32 %v5345, %v5477
      %v5479 = vpop.f32.mrb[0].mxu0
      %v5480 = vadd.f32 %v5347, %v5479
      %v5481 = vpop.f32.mrb[0].mxu0
      %v5482 = vadd.f32 %v5349, %v5481
      %v5483 = vpop.f32.mrb[0].mxu0
      %v5484 = vadd.f32 %v5351, %v5483
      %5485 = vmatprep.mubr.bf16.mxu0 %v2019
      %5486 = vmatmul.mubr.bf16.gmra.mrb[0].mxu0 %v2018
      %v5487 = vpop.f32.mrb[0].mxu0
      %v5488 = vadd.f32 %v5355, %v5487
      %v5489 = vpop.f32.mrb[0].mxu0
      %v5490 = vadd.f32 %v5357, %v5489
      %v5491 = vpop.f32.mrb[0].mxu0
      %v5492 = vadd.f32 %v5359, %v5491
      %v5493 = vpop.f32.mrb[0].mxu0
      %v5494 = vadd.f32 %v5361, %v5493
      %5495 = vmatprep.mubr.bf16.mxu0 %v2040
      %5496 = vmatmul.mubr.bf16.gmra.mrb[0].mxu0 %v2039
      %v5497 = vpop.f32.mrb[0].mxu0
      %v5498 = vadd.f32 %v5365, %v5497
      %v5499 = vpop.f32.mrb[0].mxu0
      %v5500 = vadd.f32 %v5367, %v5499
      %v5501 = vpop.f32.mrb[0].mxu0
      %v5502 = vadd.f32 %v5369, %v5501
      %v5503 = vpop.f32.mrb[0].mxu0
      %v5504 = vadd.f32 %v5371, %v5503
      %5505 = vmatprep.mubr.bf16.mxu0 %v2061
      %5506 = vmatmul.mubr.bf16.gmra.mrb[0].mxu0 %v2060
      %v5507 = vpop.f32.mrb[0].mxu0
      %v5508 = vadd.f32 %v5375, %v5507
      %v5509 = vpop.f32.mrb[0].mxu0
      %v5510 = vadd.f32 %v5377, %v5509
      %v5511 = vpop.f32.mrb[0].mxu0
      %v5512 = vadd.f32 %v5379, %v5511
      %v5513 = vpop.f32.mrb[0].mxu0
      %v5514 = vadd.f32 %v5381, %v5513
      %5515 = vmatprep.mubr.bf16.mxu0 %v2082
      %5516 = vmatmul.mubr.bf16.gmra.mrb[0].mxu0 %v2081
      %v5517 = vpop.f32.mrb[0].mxu0
      %v5518 = vadd.f32 %v5385, %v5517
      %v5519 = vpop.f32.mrb[0].mxu0
      %v5520 = vadd.f32 %v5387, %v5519
      %v5521 = vpop.f32.mrb[0].mxu0
      %v5522 = vadd.f32 %v5389, %v5521
      %v5523 = vpop.f32.mrb[0].mxu0
      %v5524 = vadd.f32 %v5391, %v5523
      %5525 = vdwg.mxu0
      %5526 = vmatprep.subr.bf16.mxu0 %v4179
      %5527 = vmatpush1.bf16.msra.mxu0 %v4178
      %5528 = vmatprep.subr.bf16.mxu0 %v4182
      %5529 = vmatpush1.bf16.msra.mxu0 %v4181
      %5530 = vmatprep.subr.bf16.mxu0 %v4185
      %5531 = vmatpush1.bf16.msra.mxu0 %v4184
      %5532 = vmatprep.subr.bf16.mxu0 %v4188
      %5533 = vmatpush1.bf16.msra.mxu0 %v4187
      %5534 = vmatprep.subr.bf16.mxu0 %v4191
      %5535 = vmatpush1.bf16.msra.mxu0 %v4190
      %5536 = vmatprep.subr.bf16.mxu0 %v4194
      %5537 = vmatpush1.bf16.msra.mxu0 %v4193
      %5538 = vmatprep.subr.bf16.mxu0 %v4197
      %5539 = vmatpush1.bf16.msra.mxu0 %v4196
      %5540 = vmatprep.subr.bf16.mxu0 %v4200
      %5541 = vmatpush1.bf16.msra.mxu0 %v4199
      %5542 = vmatprep.subr.bf16.mxu0 %v4203
      %5543 = vmatpush1.bf16.msra.mxu0 %v4202
      %5544 = vmatprep.subr.bf16.mxu0 %v4206
      %5545 = vmatpush1.bf16.msra.mxu0 %v4205
      %5546 = vmatprep.subr.bf16.mxu0 %v4209
      %5547 = vmatpush1.bf16.msra.mxu0 %v4208
      %5548 = vmatprep.subr.bf16.mxu0 %v4212
      %5549 = vmatpush1.bf16.msra.mxu0 %v4211
      %5550 = vmatprep.subr.bf16.mxu0 %v4215
      %5551 = vmatpush1.bf16.msra.mxu0 %v4214
      %5552 = vmatprep.subr.bf16.mxu0 %v4218
      %5553 = vmatpush1.bf16.msra.mxu0 %v4217
      %5554 = vmatprep.subr.bf16.mxu0 %v4221
      %5555 = vmatpush1.bf16.msra.mxu0 %v4220
      %5556 = vmatprep.subr.bf16.mxu0 %v4224
      %5557 = vmatpush1.bf16.msra.mxu0 %v4223
      %5558 = vmatprep.mubr.bf16.mxu0 %v1895
      %5559 = vmatmul.mubr.bf16.gmra.mrb[0].mxu0 %v1894
      %v5560 = vpop.f32.mrb[0].mxu0
      %v5561 = vadd.f32 %v5428, %v5560
      %v5562 = vpop.f32.mrb[0].mxu0
      %v5563 = vadd.f32 %v5430, %v5562
      %v5564 = vpop.f32.mrb[0].mxu0
      %v5565 = vadd.f32 %v5432, %v5564
      %v5566 = vpop.f32.mrb[0].mxu0
      %v5567 = vadd.f32 %v5434, %v5566
      %5568 = vmatprep.mubr.bf16.mxu0 %v1916
      %5569 = vmatmul.mubr.bf16.gmra.mrb[0].mxu0 %v1915
      %v5570 = vpop.f32.mrb[0].mxu0
      %v5571 = vadd.f32 %v5438, %v5570
      %v5572 = vpop.f32.mrb[0].mxu0
      %v5573 = vadd.f32 %v5440, %v5572
      %v5574 = vpop.f32.mrb[0].mxu0
      %v5575 = vadd.f32 %v5442, %v5574
      %v5576 = vpop.f32.mrb[0].mxu0
      %v5577 = vadd.f32 %v5444, %v5576
      %5578 = vmatprep.mubr.bf16.mxu0 %v1937
      %5579 = vmatmul.mubr.bf16.gmra.mrb[0].mxu0 %v1936
      %v5580 = vpop.f32.mrb[0].mxu0
      %v5581 = vadd.f32 %v5448, %v5580
      %v5582 = vpop.f32.mrb[0].mxu0
      %v5583 = vadd.f32 %v5450, %v5582
      %v5584 = vpop.f32.mrb[0].mxu0
      %v5585 = vadd.f32 %v5452, %v5584
      %v5586 = vpop.f32.mrb[0].mxu0
      %v5587 = vadd.f32 %v5454, %v5586
      %5588 = vmatprep.mubr.bf16.mxu0 %v1958
      %5589 = vmatmul.mubr.bf16.gmra.mrb[0].mxu0 %v1957
      %v5590 = vpop.f32.mrb[0].mxu0
      %v5591 = vadd.f32 %v5458, %v5590
      %v5592 = vpop.f32.mrb[0].mxu0
      %v5593 = vadd.f32 %v5460, %v5592
      %v5594 = vpop.f32.mrb[0].mxu0
      %v5595 = vadd.f32 %v5462, %v5594
      %v5596 = vpop.f32.mrb[0].mxu0
      %v5597 = vadd.f32 %v5464, %v5596
      %5598 = vmatprep.mubr.bf16.mxu0 %v1979
      %5599 = vmatmul.mubr.bf16.gmra.mrb[0].mxu0 %v1978
      %v5600 = vpop.f32.mrb[0].mxu0
      %v5601 = vadd.f32 %v5468, %v5600
      %v5602 = vpop.f32.mrb[0].mxu0
      %v5603 = vadd.f32 %v5470, %v5602
      %v5604 = vpop.f32.mrb[0].mxu0
      %v5605 = vadd.f32 %v5472, %v5604
      %v5606 = vpop.f32.mrb[0].mxu0
      %v5607 = vadd.f32 %v5474, %v5606
      %5608 = vmatprep.mubr.bf16.mxu0 %v2000
      %5609 = vmatmul.mubr.bf16.gmra.mrb[0].mxu0 %v1999
      %v5610 = vpop.f32.mrb[0].mxu0
      %v5611 = vadd.f32 %v5478, %v5610
      %v5612 = vpop.f32.mrb[0].mxu0
      %v5613 = vadd.f32 %v5480, %v5612
      %v5614 = vpop.f32.mrb[0].mxu0
      %v5615 = vadd.f32 %v5482, %v5614
      %v5616 = vpop.f32.mrb[0].mxu0
      %v5617 = vadd.f32 %v5484, %v5616
      %5618 = vmatprep.mubr.bf16.mxu0 %v2021
      %5619 = vmatmul.mubr.bf16.gmra.mrb[0].mxu0 %v2020
      %v5620 = vpop.f32.mrb[0].mxu0
      %v5621 = vadd.f32 %v5488, %v5620
      %v5622 = vpop.f32.mrb[0].mxu0
      %v5623 = vadd.f32 %v5490, %v5622
      %v5624 = vpop.f32.mrb[0].mxu0
      %v5625 = vadd.f32 %v5492, %v5624
      %v5626 = vpop.f32.mrb[0].mxu0
      %v5627 = vadd.f32 %v5494, %v5626
      %5628 = vmatprep.mubr.bf16.mxu0 %v2042
      %5629 = vmatmul.mubr.bf16.gmra.mrb[0].mxu0 %v2041
      %v5630 = vpop.f32.mrb[0].mxu0
      %v5631 = vadd.f32 %v5498, %v5630
      %v5632 = vpop.f32.mrb[0].mxu0
      %v5633 = vadd.f32 %v5500, %v5632
      %v5634 = vpop.f32.mrb[0].mxu0
      %v5635 = vadd.f32 %v5502, %v5634
      %v5636 = vpop.f32.mrb[0].mxu0
      %v5637 = vadd.f32 %v5504, %v5636
      %5638 = vmatprep.mubr.bf16.mxu0 %v2063
      %5639 = vmatmul.mubr.bf16.gmra.mrb[0].mxu0 %v2062
      %v5640 = vpop.f32.mrb[0].mxu0
      %v5641 = vadd.f32 %v5508, %v5640
      %v5642 = vpop.f32.mrb[0].mxu0
      %v5643 = vadd.f32 %v5510, %v5642
      %v5644 = vpop.f32.mrb[0].mxu0
      %v5645 = vadd.f32 %v5512, %v5644
      %v5646 = vpop.f32.mrb[0].mxu0
      %v5647 = vadd.f32 %v5514, %v5646
      %5648 = vmatprep.mubr.bf16.mxu0 %v2084
      %5649 = vmatmul.mubr.bf16.gmra.mrb[0].mxu0 %v2083
      %v5650 = vpop.f32.mrb[0].mxu0
      %v5651 = vadd.f32 %v5518, %v5650
      %v5652 = vpop.f32.mrb[0].mxu0
      %v5653 = vadd.f32 %v5520, %v5652
      %v5654 = vpop.f32.mrb[0].mxu0
      %v5655 = vadd.f32 %v5522, %v5654
      %v5656 = vpop.f32.mrb[0].mxu0
      %v5657 = vadd.f32 %v5524, %v5656
      %5658 = vdwg.mxu0
      %5659 = vmatprep.subr.bf16.mxu0 %v4227
      %5660 = vmatpush1.bf16.msra.mxu0 %v4226
      %5661 = vmatprep.subr.bf16.mxu0 %v4230
      %5662 = vmatpush1.bf16.msra.mxu0 %v4229
      %5663 = vmatprep.subr.bf16.mxu0 %v4233
      %5664 = vmatpush1.bf16.msra.mxu0 %v4232
      %5665 = vmatprep.subr.bf16.mxu0 %v4236
      %5666 = vmatpush1.bf16.msra.mxu0 %v4235
      %5667 = vmatprep.subr.bf16.mxu0 %v4239
      %5668 = vmatpush1.bf16.msra.mxu0 %v4238
      %5669 = vmatprep.subr.bf16.mxu0 %v4242
      %5670 = vmatpush1.bf16.msra.mxu0 %v4241
      %5671 = vmatprep.subr.bf16.mxu0 %v4245
      %5672 = vmatpush1.bf16.msra.mxu0 %v4244
      %5673 = vmatprep.subr.bf16.mxu0 %v4248
      %5674 = vmatpush1.bf16.msra.mxu0 %v4247
      %5675 = vmatprep.subr.bf16.mxu0 %v4251
      %5676 = vmatpush1.bf16.msra.mxu0 %v4250
      %5677 = vmatprep.subr.bf16.mxu0 %v4254
      %5678 = vmatpush1.bf16.msra.mxu0 %v4253
      %5679 = vmatprep.subr.bf16.mxu0 %v4257
      %5680 = vmatpush1.bf16.msra.mxu0 %v4256
      %5681 = vmatprep.subr.bf16.mxu0 %v4260
      %5682 = vmatpush1.bf16.msra.mxu0 %v4259
      %5683 = vmatprep.subr.bf16.mxu0 %v4263
      %5684 = vmatpush1.bf16.msra.mxu0 %v4262
      %5685 = vmatprep.subr.bf16.mxu0 %v4266
      %5686 = vmatpush1.bf16.msra.mxu0 %v4265
      %5687 = vmatprep.subr.bf16.mxu0 %v4269
      %5688 = vmatpush1.bf16.msra.mxu0 %v4268
      %5689 = vmatprep.subr.bf16.mxu0 %v4272
      %5690 = vmatpush1.bf16.msra.mxu0 %v4271
      %5691 = vmatprep.mubr.bf16.mxu0 %v1897
      %5692 = vmatmul.mubr.bf16.gmra.mrb[0].mxu0 %v1896
      %v5693 = vpop.f32.mrb[0].mxu0
      %v5694 = vadd.f32 %v5561, %v5693
      %v5695 = vpop.f32.mrb[0].mxu0
      %v5696 = vadd.f32 %v5563, %v5695
      %v5697 = vpop.f32.mrb[0].mxu0
      %v5698 = vadd.f32 %v5565, %v5697
      %v5699 = vpop.f32.mrb[0].mxu0
      %v5700 = vadd.f32 %v5567, %v5699
      %5701 = vmatprep.mubr.bf16.mxu0 %v1918
      %5702 = vmatmul.mubr.bf16.gmra.mrb[0].mxu0 %v1917
      %v5703 = vpop.f32.mrb[0].mxu0
      %v5704 = vadd.f32 %v5571, %v5703
      %v5705 = vpop.f32.mrb[0].mxu0
      %v5706 = vadd.f32 %v5573, %v5705
      %v5707 = vpop.f32.mrb[0].mxu0
      %v5708 = vadd.f32 %v5575, %v5707
      %v5709 = vpop.f32.mrb[0].mxu0
      %v5710 = vadd.f32 %v5577, %v5709
      %5711 = vmatprep.mubr.bf16.mxu0 %v1939
      %5712 = vmatmul.mubr.bf16.gmra.mrb[0].mxu0 %v1938
      %v5713 = vpop.f32.mrb[0].mxu0
      %v5714 = vadd.f32 %v5581, %v5713
      %v5715 = vpop.f32.mrb[0].mxu0
      %v5716 = vadd.f32 %v5583, %v5715
      %v5717 = vpop.f32.mrb[0].mxu0
      %v5718 = vadd.f32 %v5585, %v5717
      %v5719 = vpop.f32.mrb[0].mxu0
      %v5720 = vadd.f32 %v5587, %v5719
      %5721 = vmatprep.mubr.bf16.mxu0 %v1960
      %5722 = vmatmul.mubr.bf16.gmra.mrb[0].mxu0 %v1959
      %v5723 = vpop.f32.mrb[0].mxu0
      %v5724 = vadd.f32 %v5591, %v5723
      %v5725 = vpop.f32.mrb[0].mxu0
      %v5726 = vadd.f32 %v5593, %v5725
      %v5727 = vpop.f32.mrb[0].mxu0
      %v5728 = vadd.f32 %v5595, %v5727
      %v5729 = vpop.f32.mrb[0].mxu0
      %v5730 = vadd.f32 %v5597, %v5729
      %5731 = vmatprep.mubr.bf16.mxu0 %v1981
      %5732 = vmatmul.mubr.bf16.gmra.mrb[0].mxu0 %v1980
      %v5733 = vpop.f32.mrb[0].mxu0
      %v5734 = vadd.f32 %v5601, %v5733
      %v5735 = vpop.f32.mrb[0].mxu0
      %v5736 = vadd.f32 %v5603, %v5735
      %v5737 = vpop.f32.mrb[0].mxu0
      %v5738 = vadd.f32 %v5605, %v5737
      %v5739 = vpop.f32.mrb[0].mxu0
      %v5740 = vadd.f32 %v5607, %v5739
      %5741 = vmatprep.mubr.bf16.mxu0 %v2002
      %5742 = vmatmul.mubr.bf16.gmra.mrb[0].mxu0 %v2001
      %v5743 = vpop.f32.mrb[0].mxu0
      %v5744 = vadd.f32 %v5611, %v5743
      %v5745 = vpop.f32.mrb[0].mxu0
      %v5746 = vadd.f32 %v5613, %v5745
      %v5747 = vpop.f32.mrb[0].mxu0
      %v5748 = vadd.f32 %v5615, %v5747
      %v5749 = vpop.f32.mrb[0].mxu0
      %v5750 = vadd.f32 %v5617, %v5749
      %5751 = vmatprep.mubr.bf16.mxu0 %v2023
      %5752 = vmatmul.mubr.bf16.gmra.mrb[0].mxu0 %v2022
      %v5753 = vpop.f32.mrb[0].mxu0
      %v5754 = vadd.f32 %v5621, %v5753
      %v5755 = vpop.f32.mrb[0].mxu0
      %v5756 = vadd.f32 %v5623, %v5755
      %v5757 = vpop.f32.mrb[0].mxu0
      %v5758 = vadd.f32 %v5625, %v5757
      %v5759 = vpop.f32.mrb[0].mxu0
      %v5760 = vadd.f32 %v5627, %v5759
      %5761 = vmatprep.mubr.bf16.mxu0 %v2044
      %5762 = vmatmul.mubr.bf16.gmra.mrb[0].mxu0 %v2043
      %v5763 = vpop.f32.mrb[0].mxu0
      %v5764 = vadd.f32 %v5631, %v5763
      %v5765 = vpop.f32.mrb[0].mxu0
      %v5766 = vadd.f32 %v5633, %v5765
      %v5767 = vpop.f32.mrb[0].mxu0
      %v5768 = vadd.f32 %v5635, %v5767
      %v5769 = vpop.f32.mrb[0].mxu0
      %v5770 = vadd.f32 %v5637, %v5769
      %5771 = vmatprep.mubr.bf16.mxu0 %v2065
      %5772 = vmatmul.mubr.bf16.gmra.mrb[0].mxu0 %v2064
      %v5773 = vpop.f32.mrb[0].mxu0
      %v5774 = vadd.f32 %v5641, %v5773
      %v5775 = vpop.f32.mrb[0].mxu0
      %v5776 = vadd.f32 %v5643, %v5775
      %v5777 = vpop.f32.mrb[0].mxu0
      %v5778 = vadd.f32 %v5645, %v5777
      %v5779 = vpop.f32.mrb[0].mxu0
      %v5780 = vadd.f32 %v5647, %v5779
      %5781 = vmatprep.mubr.bf16.mxu0 %v2086
      %5782 = vmatmul.mubr.bf16.gmra.mrb[0].mxu0 %v2085
      %v5783 = vpop.f32.mrb[0].mxu0
      %v5784 = vadd.f32 %v5651, %v5783
      %v5785 = vpop.f32.mrb[0].mxu0
      %v5786 = vadd.f32 %v5653, %v5785
      %v5787 = vpop.f32.mrb[0].mxu0
      %v5788 = vadd.f32 %v5655, %v5787
      %v5789 = vpop.f32.mrb[0].mxu0
      %v5790 = vadd.f32 %v5657, %v5789
      %5791 = vdwg.mxu0
      %5792 = vmatprep.subr.bf16.mxu0 %v4275
      %5793 = vmatpush1.bf16.msra.mxu0 %v4274
      %5794 = vmatprep.subr.bf16.mxu0 %v4278
      %5795 = vmatpush1.bf16.msra.mxu0 %v4277
      %5796 = vmatprep.subr.bf16.mxu0 %v4281
      %5797 = vmatpush1.bf16.msra.mxu0 %v4280
      %5798 = vmatprep.subr.bf16.mxu0 %v4284
      %5799 = vmatpush1.bf16.msra.mxu0 %v4283
      %5800 = vmatprep.subr.bf16.mxu0 %v4287
      %5801 = vmatpush1.bf16.msra.mxu0 %v4286
      %5802 = vmatprep.subr.bf16.mxu0 %v4290
      %5803 = vmatpush1.bf16.msra.mxu0 %v4289
      %5804 = vmatprep.subr.bf16.mxu0 %v4293
      %5805 = vmatpush1.bf16.msra.mxu0 %v4292
      %5806 = vmatprep.subr.bf16.mxu0 %v4296
      %5807 = vmatpush1.bf16.msra.mxu0 %v4295
      %5808 = vmatprep.subr.bf16.mxu0 %v4299
      %5809 = vmatpush1.bf16.msra.mxu0 %v4298
      %5810 = vmatprep.subr.bf16.mxu0 %v4302
      %5811 = vmatpush1.bf16.msra.mxu0 %v4301
      %5812 = vmatprep.subr.bf16.mxu0 %v4305
      %5813 = vmatpush1.bf16.msra.mxu0 %v4304
      %5814 = vmatprep.subr.bf16.mxu0 %v4308
      %5815 = vmatpush1.bf16.msra.mxu0 %v4307
      %5816 = vmatprep.subr.bf16.mxu0 %v4311
      %5817 = vmatpush1.bf16.msra.mxu0 %v4310
      %5818 = vmatprep.subr.bf16.mxu0 %v4314
      %5819 = vmatpush1.bf16.msra.mxu0 %v4313
      %5820 = vmatprep.subr.bf16.mxu0 %v4317
      %5821 = vmatpush1.bf16.msra.mxu0 %v4316
      %5822 = vmatprep.subr.bf16.mxu0 %v4320
      %5823 = vmatpush1.bf16.msra.mxu0 %v4319
      %5824 = vmatprep.mubr.bf16.mxu0 %v1899
      %5825 = vmatmul.mubr.bf16.gmra.mrb[0].mxu0 %v1898
      %v5826 = vpop.f32.mrb[0].mxu0
      %v5827 = vadd.f32 %v5694, %v5826
      %v5828 = vpop.f32.mrb[0].mxu0
      %v5829 = vadd.f32 %v5696, %v5828
      %v5830 = vpop.f32.mrb[0].mxu0
      %v5831 = vadd.f32 %v5698, %v5830
      %v5832 = vpop.f32.mrb[0].mxu0
      %v5833 = vadd.f32 %v5700, %v5832
      %5834 = vmatprep.mubr.bf16.mxu0 %v1920
      %5835 = vmatmul.mubr.bf16.gmra.mrb[0].mxu0 %v1919
      %v5836 = vpop.f32.mrb[0].mxu0
      %v5837 = vadd.f32 %v5704, %v5836
      %v5838 = vpop.f32.mrb[0].mxu0
      %v5839 = vadd.f32 %v5706, %v5838
      %v5840 = vpop.f32.mrb[0].mxu0
      %v5841 = vadd.f32 %v5708, %v5840
      %v5842 = vpop.f32.mrb[0].mxu0
      %v5843 = vadd.f32 %v5710, %v5842
      %5844 = vmatprep.mubr.bf16.mxu0 %v1941
      %5845 = vmatmul.mubr.bf16.gmra.mrb[0].mxu0 %v1940
      %v5846 = vpop.f32.mrb[0].mxu0
      %v5847 = vadd.f32 %v5714, %v5846
      %v5848 = vpop.f32.mrb[0].mxu0
      %v5849 = vadd.f32 %v5716, %v5848
      %v5850 = vpop.f32.mrb[0].mxu0
      %v5851 = vadd.f32 %v5718, %v5850
      %v5852 = vpop.f32.mrb[0].mxu0
      %v5853 = vadd.f32 %v5720, %v5852
      %5854 = vmatprep.mubr.bf16.mxu0 %v1962
      %5855 = vmatmul.mubr.bf16.gmra.mrb[0].mxu0 %v1961
      %v5856 = vpop.f32.mrb[0].mxu0
      %v5857 = vadd.f32 %v5724, %v5856
      %v5858 = vpop.f32.mrb[0].mxu0
      %v5859 = vadd.f32 %v5726, %v5858
      %v5860 = vpop.f32.mrb[0].mxu0
      %v5861 = vadd.f32 %v5728, %v5860
      %v5862 = vpop.f32.mrb[0].mxu0
      %v5863 = vadd.f32 %v5730, %v5862
      %5864 = vmatprep.mubr.bf16.mxu0 %v1983
      %5865 = vmatmul.mubr.bf16.gmra.mrb[0].mxu0 %v1982
      %v5866 = vpop.f32.mrb[0].mxu0
      %v5867 = vadd.f32 %v5734, %v5866
      %v5868 = vpop.f32.mrb[0].mxu0
      %v5869 = vadd.f32 %v5736, %v5868
      %v5870 = vpop.f32.mrb[0].mxu0
      %v5871 = vadd.f32 %v5738, %v5870
      %v5872 = vpop.f32.mrb[0].mxu0
      %v5873 = vadd.f32 %v5740, %v5872
      %5874 = vmatprep.mubr.bf16.mxu0 %v2004
      %5875 = vmatmul.mubr.bf16.gmra.mrb[0].mxu0 %v2003
      %v5876 = vpop.f32.mrb[0].mxu0
      %v5877 = vadd.f32 %v5744, %v5876
      %v5878 = vpop.f32.mrb[0].mxu0
      %v5879 = vadd.f32 %v5746, %v5878
      %v5880 = vpop.f32.mrb[0].mxu0
      %v5881 = vadd.f32 %v5748, %v5880
      %v5882 = vpop.f32.mrb[0].mxu0
      %v5883 = vadd.f32 %v5750, %v5882
      %5884 = vmatprep.mubr.bf16.mxu0 %v2025
      %5885 = vmatmul.mubr.bf16.gmra.mrb[0].mxu0 %v2024
      %v5886 = vpop.f32.mrb[0].mxu0
      %v5887 = vadd.f32 %v5754, %v5886
      %v5888 = vpop.f32.mrb[0].mxu0
      %v5889 = vadd.f32 %v5756, %v5888
      %v5890 = vpop.f32.mrb[0].mxu0
      %v5891 = vadd.f32 %v5758, %v5890
      %v5892 = vpop.f32.mrb[0].mxu0
      %v5893 = vadd.f32 %v5760, %v5892
      %5894 = vmatprep.mubr.bf16.mxu0 %v2046
      %5895 = vmatmul.mubr.bf16.gmra.mrb[0].mxu0 %v2045
      %v5896 = vpop.f32.mrb[0].mxu0
      %v5897 = vadd.f32 %v5764, %v5896
      %v5898 = vpop.f32.mrb[0].mxu0
      %v5899 = vadd.f32 %v5766, %v5898
      %v5900 = vpop.f32.mrb[0].mxu0
      %v5901 = vadd.f32 %v5768, %v5900
      %v5902 = vpop.f32.mrb[0].mxu0
      %v5903 = vadd.f32 %v5770, %v5902
      %5904 = vmatprep.mubr.bf16.mxu0 %v2067
      %5905 = vmatmul.mubr.bf16.gmra.mrb[0].mxu0 %v2066
      %v5906 = vpop.f32.mrb[0].mxu0
      %v5907 = vadd.f32 %v5774, %v5906
      %v5908 = vpop.f32.mrb[0].mxu0
      %v5909 = vadd.f32 %v5776, %v5908
      %v5910 = vpop.f32.mrb[0].mxu0
      %v5911 = vadd.f32 %v5778, %v5910
      %v5912 = vpop.f32.mrb[0].mxu0
      %v5913 = vadd.f32 %v5780, %v5912
      %5914 = vmatprep.mubr.bf16.mxu0 %v2088
      %5915 = vmatmul.mubr.bf16.gmra.mrb[0].mxu0 %v2087
      %v5916 = vpop.f32.mrb[0].mxu0
      %v5917 = vadd.f32 %v5784, %v5916
      %v5918 = vpop.f32.mrb[0].mxu0
      %v5919 = vadd.f32 %v5786, %v5918
      %v5920 = vpop.f32.mrb[0].mxu0
      %v5921 = vadd.f32 %v5788, %v5920
      %v5922 = vpop.f32.mrb[0].mxu0
      %v5923 = vadd.f32 %v5790, %v5922
      %5924 = vdwg.mxu0
      %5925 = vmatprep.subr.bf16.mxu0 %v4323
      %5926 = vmatpush1.bf16.msra.mxu0 %v4322
      %5927 = vmatprep.subr.bf16.mxu0 %v4326
      %5928 = vmatpush1.bf16.msra.mxu0 %v4325
      %5929 = vmatprep.subr.bf16.mxu0 %v4329
      %5930 = vmatpush1.bf16.msra.mxu0 %v4328
      %5931 = vmatprep.subr.bf16.mxu0 %v4332
      %5932 = vmatpush1.bf16.msra.mxu0 %v4331
      %5933 = vmatprep.subr.bf16.mxu0 %v4335
      %5934 = vmatpush1.bf16.msra.mxu0 %v4334
      %5935 = vmatprep.subr.bf16.mxu0 %v4338
      %5936 = vmatpush1.bf16.msra.mxu0 %v4337
      %5937 = vmatprep.subr.bf16.mxu0 %v4341
      %5938 = vmatpush1.bf16.msra.mxu0 %v4340
      %5939 = vmatprep.subr.bf16.mxu0 %v4344
      %5940 = vmatpush1.bf16.msra.mxu0 %v4343
      %5941 = vmatprep.subr.bf16.mxu0 %v4347
      %5942 = vmatpush1.bf16.msra.mxu0 %v4346
      %5943 = vmatprep.subr.bf16.mxu0 %v4350
      %5944 = vmatpush1.bf16.msra.mxu0 %v4349
      %5945 = vmatprep.subr.bf16.mxu0 %v4353
      %5946 = vmatpush1.bf16.msra.mxu0 %v4352
      %5947 = vmatprep.subr.bf16.mxu0 %v4356
      %5948 = vmatpush1.bf16.msra.mxu0 %v4355
      %5949 = vmatprep.subr.bf16.mxu0 %v4359
      %5950 = vmatpush1.bf16.msra.mxu0 %v4358
      %5951 = vmatprep.subr.bf16.mxu0 %v4362
      %5952 = vmatpush1.bf16.msra.mxu0 %v4361
      %5953 = vmatprep.subr.bf16.mxu0 %v4365
      %5954 = vmatpush1.bf16.msra.mxu0 %v4364
      %5955 = vmatprep.subr.bf16.mxu0 %v4368
      %5956 = vmatpush1.bf16.msra.mxu0 %v4367
      %5957 = vmatprep.mubr.bf16.mxu0 %v1901
      %5958 = vmatmul.mubr.bf16.gmra.mrb[0].mxu0 %v1900
      %v5959 = vpop.f32.mrb[0].mxu0
      %v5960 = vadd.f32 %v5827, %v5959
      %v5961 = vpop.f32.mrb[0].mxu0
      %v5962 = vadd.f32 %v5829, %v5961
      %v5963 = vpop.f32.mrb[0].mxu0
      %v5964 = vadd.f32 %v5831, %v5963
      %v5965 = vpop.f32.mrb[0].mxu0
      %v5966 = vadd.f32 %v5833, %v5965
      %5967 = vmatprep.mubr.bf16.mxu0 %v1922
      %5968 = vmatmul.mubr.bf16.gmra.mrb[0].mxu0 %v1921
      %v5969 = vpop.f32.mrb[0].mxu0
      %v5970 = vadd.f32 %v5837, %v5969
      %v5971 = vpop.f32.mrb[0].mxu0
      %v5972 = vadd.f32 %v5839, %v5971
      %v5973 = vpop.f32.mrb[0].mxu0
      %v5974 = vadd.f32 %v5841, %v5973
      %v5975 = vpop.f32.mrb[0].mxu0
      %v5976 = vadd.f32 %v5843, %v5975
      %5977 = vmatprep.mubr.bf16.mxu0 %v1943
      %5978 = vmatmul.mubr.bf16.gmra.mrb[0].mxu0 %v1942
      %v5979 = vpop.f32.mrb[0].mxu0
      %v5980 = vadd.f32 %v5847, %v5979
      %v5981 = vpop.f32.mrb[0].mxu0
      %v5982 = vadd.f32 %v5849, %v5981
      %v5983 = vpop.f32.mrb[0].mxu0
      %v5984 = vadd.f32 %v5851, %v5983
      %v5985 = vpop.f32.mrb[0].mxu0
      %v5986 = vadd.f32 %v5853, %v5985
      %5987 = vmatprep.mubr.bf16.mxu0 %v1964
      %5988 = vmatmul.mubr.bf16.gmra.mrb[0].mxu0 %v1963
      %v5989 = vpop.f32.mrb[0].mxu0
      %v5990 = vadd.f32 %v5857, %v5989
      %v5991 = vpop.f32.mrb[0].mxu0
      %v5992 = vadd.f32 %v5859, %v5991
      %v5993 = vpop.f32.mrb[0].mxu0
      %v5994 = vadd.f32 %v5861, %v5993
      %v5995 = vpop.f32.mrb[0].mxu0
      %v5996 = vadd.f32 %v5863, %v5995
      %5997 = vmatprep.mubr.bf16.mxu0 %v1985
      %5998 = vmatmul.mubr.bf16.gmra.mrb[0].mxu0 %v1984
      %v5999 = vpop.f32.mrb[0].mxu0
      %v6000 = vadd.f32 %v5867, %v5999
      %v6001 = vpop.f32.mrb[0].mxu0
      %v6002 = vadd.f32 %v5869, %v6001
      %v6003 = vpop.f32.mrb[0].mxu0
      %v6004 = vadd.f32 %v5871, %v6003
      %v6005 = vpop.f32.mrb[0].mxu0
      %v6006 = vadd.f32 %v5873, %v6005
      %6007 = vmatprep.mubr.bf16.mxu0 %v2006
      %6008 = vmatmul.mubr.bf16.gmra.mrb[0].mxu0 %v2005
      %v6009 = vpop.f32.mrb[0].mxu0
      %v6010 = vadd.f32 %v5877, %v6009
      %v6011 = vpop.f32.mrb[0].mxu0
      %v6012 = vadd.f32 %v5879, %v6011
      %v6013 = vpop.f32.mrb[0].mxu0
      %v6014 = vadd.f32 %v5881, %v6013
      %v6015 = vpop.f32.mrb[0].mxu0
      %v6016 = vadd.f32 %v5883, %v6015
      %6017 = vmatprep.mubr.bf16.mxu0 %v2027
      %6018 = vmatmul.mubr.bf16.gmra.mrb[0].mxu0 %v2026
      %v6019 = vpop.f32.mrb[0].mxu0
      %v6020 = vadd.f32 %v5887, %v6019
      %v6021 = vpop.f32.mrb[0].mxu0
      %v6022 = vadd.f32 %v5889, %v6021
      %v6023 = vpop.f32.mrb[0].mxu0
      %v6024 = vadd.f32 %v5891, %v6023
      %v6025 = vpop.f32.mrb[0].mxu0
      %v6026 = vadd.f32 %v5893, %v6025
      %6027 = vmatprep.mubr.bf16.mxu0 %v2048
      %6028 = vmatmul.mubr.bf16.gmra.mrb[0].mxu0 %v2047
      %v6029 = vpop.f32.mrb[0].mxu0
      %v6030 = vadd.f32 %v5897, %v6029
      %v6031 = vpop.f32.mrb[0].mxu0
      %v6032 = vadd.f32 %v5899, %v6031
      %v6033 = vpop.f32.mrb[0].mxu0
      %v6034 = vadd.f32 %v5901, %v6033
      %v6035 = vpop.f32.mrb[0].mxu0
      %v6036 = vadd.f32 %v5903, %v6035
      %6037 = vmatprep.mubr.bf16.mxu0 %v2069
      %6038 = vmatmul.mubr.bf16.gmra.mrb[0].mxu0 %v2068
      %v6039 = vpop.f32.mrb[0].mxu0
      %v6040 = vadd.f32 %v5907, %v6039
      %v6041 = vpop.f32.mrb[0].mxu0
      %v6042 = vadd.f32 %v5909, %v6041
      %v6043 = vpop.f32.mrb[0].mxu0
      %v6044 = vadd.f32 %v5911, %v6043
      %v6045 = vpop.f32.mrb[0].mxu0
      %v6046 = vadd.f32 %v5913, %v6045
      %6047 = vmatprep.mubr.bf16.mxu0 %v2090
      %6048 = vmatmul.mubr.bf16.gmra.mrb[0].mxu0 %v2089
      %v6049 = vpop.f32.mrb[0].mxu0
      %v6050 = vadd.f32 %v5917, %v6049
      %v6051 = vpop.f32.mrb[0].mxu0
      %v6052 = vadd.f32 %v5919, %v6051
      %v6053 = vpop.f32.mrb[0].mxu0
      %v6054 = vadd.f32 %v5921, %v6053
      %v6055 = vpop.f32.mrb[0].mxu0
      %v6056 = vadd.f32 %v5923, %v6055
      %6057 = vdwg.mxu0
      %6058 = vmatprep.subr.bf16.mxu0 %v4371
      %6059 = vmatpush1.bf16.msra.mxu0 %v4370
      %6060 = vmatprep.subr.bf16.mxu0 %v4374
      %6061 = vmatpush1.bf16.msra.mxu0 %v4373
      %6062 = vmatprep.subr.bf16.mxu0 %v4377
      %6063 = vmatpush1.bf16.msra.mxu0 %v4376
      %6064 = vmatprep.subr.bf16.mxu0 %v4380
      %6065 = vmatpush1.bf16.msra.mxu0 %v4379
      %6066 = vmatprep.subr.bf16.mxu0 %v4383
      %6067 = vmatpush1.bf16.msra.mxu0 %v4382
      %6068 = vmatprep.subr.bf16.mxu0 %v4386
      %6069 = vmatpush1.bf16.msra.mxu0 %v4385
      %6070 = vmatprep.subr.bf16.mxu0 %v4389
      %6071 = vmatpush1.bf16.msra.mxu0 %v4388
      %6072 = vmatprep.subr.bf16.mxu0 %v4392
      %6073 = vmatpush1.bf16.msra.mxu0 %v4391
      %6074 = vmatprep.subr.bf16.mxu0 %v4395
      %6075 = vmatpush1.bf16.msra.mxu0 %v4394
      %6076 = vmatprep.subr.bf16.mxu0 %v4398
      %6077 = vmatpush1.bf16.msra.mxu0 %v4397
      %6078 = vmatprep.subr.bf16.mxu0 %v4401
      %6079 = vmatpush1.bf16.msra.mxu0 %v4400
      %6080 = vmatprep.subr.bf16.mxu0 %v4404
      %6081 = vmatpush1.bf16.msra.mxu0 %v4403
      %6082 = vmatprep.subr.bf16.mxu0 %v4407
      %6083 = vmatpush1.bf16.msra.mxu0 %v4406
      %6084 = vmatprep.subr.bf16.mxu0 %v4410
      %6085 = vmatpush1.bf16.msra.mxu0 %v4409
      %6086 = vmatprep.subr.bf16.mxu0 %v4413
      %6087 = vmatpush1.bf16.msra.mxu0 %v4412
      %6088 = vmatprep.subr.bf16.mxu0 %v4416
      %6089 = vmatpush1.bf16.msra.mxu0 %v4415
      %6090 = vmatprep.mubr.bf16.mxu0 %v1903
      %6091 = vmatmul.mubr.bf16.gmra.mrb[0].mxu0 %v1902
      %v6092 = vpop.f32.mrb[0].mxu0
      %v6093 = vadd.f32 %v5960, %v6092
      %v6094 = vpop.f32.mrb[0].mxu0
      %v6095 = vadd.f32 %v5962, %v6094
      %v6096 = vpop.f32.mrb[0].mxu0
      %v6097 = vadd.f32 %v5964, %v6096
      %v6098 = vpop.f32.mrb[0].mxu0
      %v6099 = vadd.f32 %v5966, %v6098
      %6100 = vmatprep.mubr.bf16.mxu0 %v1924
      %6101 = vmatmul.mubr.bf16.gmra.mrb[0].mxu0 %v1923
      %v6102 = vpop.f32.mrb[0].mxu0
      %v6103 = vadd.f32 %v5970, %v6102
      %v6104 = vpop.f32.mrb[0].mxu0
      %v6105 = vadd.f32 %v5972, %v6104
      %v6106 = vpop.f32.mrb[0].mxu0
      %v6107 = vadd.f32 %v5974, %v6106
      %v6108 = vpop.f32.mrb[0].mxu0
      %v6109 = vadd.f32 %v5976, %v6108
      %6110 = vmatprep.mubr.bf16.mxu0 %v1945
      %6111 = vmatmul.mubr.bf16.gmra.mrb[0].mxu0 %v1944
      %v6112 = vpop.f32.mrb[0].mxu0
      %v6113 = vadd.f32 %v5980, %v6112
      %v6114 = vpop.f32.mrb[0].mxu0
      %v6115 = vadd.f32 %v5982, %v6114
      %v6116 = vpop.f32.mrb[0].mxu0
      %v6117 = vadd.f32 %v5984, %v6116
      %v6118 = vpop.f32.mrb[0].mxu0
      %v6119 = vadd.f32 %v5986, %v6118
      %6120 = vmatprep.mubr.bf16.mxu0 %v1966
      %6121 = vmatmul.mubr.bf16.gmra.mrb[0].mxu0 %v1965
      %v6122 = vpop.f32.mrb[0].mxu0
      %v6123 = vadd.f32 %v5990, %v6122
      %v6124 = vpop.f32.mrb[0].mxu0
      %v6125 = vadd.f32 %v5992, %v6124
      %v6126 = vpop.f32.mrb[0].mxu0
      %v6127 = vadd.f32 %v5994, %v6126
      %v6128 = vpop.f32.mrb[0].mxu0
      %v6129 = vadd.f32 %v5996, %v6128
      %6130 = vmatprep.mubr.bf16.mxu0 %v1987
      %6131 = vmatmul.mubr.bf16.gmra.mrb[0].mxu0 %v1986
      %v6132 = vpop.f32.mrb[0].mxu0
      %v6133 = vadd.f32 %v6000, %v6132
      %v6134 = vpop.f32.mrb[0].mxu0
      %v6135 = vadd.f32 %v6002, %v6134
      %v6136 = vpop.f32.mrb[0].mxu0
      %v6137 = vadd.f32 %v6004, %v6136
      %v6138 = vpop.f32.mrb[0].mxu0
      %v6139 = vadd.f32 %v6006, %v6138
      %6140 = vmatprep.mubr.bf16.mxu0 %v2008
      %6141 = vmatmul.mubr.bf16.gmra.mrb[0].mxu0 %v2007
      %v6142 = vpop.f32.mrb[0].mxu0
      %v6143 = vadd.f32 %v6010, %v6142
      %v6144 = vpop.f32.mrb[0].mxu0
      %v6145 = vadd.f32 %v6012, %v6144
      %v6146 = vpop.f32.mrb[0].mxu0
      %v6147 = vadd.f32 %v6014, %v6146
      %v6148 = vpop.f32.mrb[0].mxu0
      %v6149 = vadd.f32 %v6016, %v6148
      %6150 = vmatprep.mubr.bf16.mxu0 %v2029
      %6151 = vmatmul.mubr.bf16.gmra.mrb[0].mxu0 %v2028
      %v6152 = vpop.f32.mrb[0].mxu0
      %v6153 = vadd.f32 %v6020, %v6152
      %v6154 = vpop.f32.mrb[0].mxu0
      %v6155 = vadd.f32 %v6022, %v6154
      %v6156 = vpop.f32.mrb[0].mxu0
      %v6157 = vadd.f32 %v6024, %v6156
      %v6158 = vpop.f32.mrb[0].mxu0
      %v6159 = vadd.f32 %v6026, %v6158
      %6160 = vmatprep.mubr.bf16.mxu0 %v2050
      %6161 = vmatmul.mubr.bf16.gmra.mrb[0].mxu0 %v2049
      %v6162 = vpop.f32.mrb[0].mxu0
      %v6163 = vadd.f32 %v6030, %v6162
      %v6164 = vpop.f32.mrb[0].mxu0
      %v6165 = vadd.f32 %v6032, %v6164
      %v6166 = vpop.f32.mrb[0].mxu0
      %v6167 = vadd.f32 %v6034, %v6166
      %v6168 = vpop.f32.mrb[0].mxu0
      %v6169 = vadd.f32 %v6036, %v6168
      %6170 = vmatprep.mubr.bf16.mxu0 %v2071
      %6171 = vmatmul.mubr.bf16.gmra.mrb[0].mxu0 %v2070
      %v6172 = vpop.f32.mrb[0].mxu0
      %v6173 = vadd.f32 %v6040, %v6172
      %v6174 = vpop.f32.mrb[0].mxu0
      %v6175 = vadd.f32 %v6042, %v6174
      %v6176 = vpop.f32.mrb[0].mxu0
      %v6177 = vadd.f32 %v6044, %v6176
      %v6178 = vpop.f32.mrb[0].mxu0
      %v6179 = vadd.f32 %v6046, %v6178
      %6180 = vmatprep.mubr.bf16.mxu0 %v2092
      %6181 = vmatmul.mubr.bf16.gmra.mrb[0].mxu0 %v2091
      %v6182 = vpop.f32.mrb[0].mxu0
      %v6183 = vadd.f32 %v6050, %v6182
      %v6184 = vpop.f32.mrb[0].mxu0
      %v6185 = vadd.f32 %v6052, %v6184
      %v6186 = vpop.f32.mrb[0].mxu0
      %v6187 = vadd.f32 %v6054, %v6186
      %v6188 = vpop.f32.mrb[0].mxu0
      %v6189 = vadd.f32 %v6056, %v6188
      %6190 = vdwg.mxu0
      %6191 = vmatprep.subr.bf16.mxu0 %v4419
      %6192 = vmatpush1.bf16.msra.mxu0 %v4418
      %6193 = vmatprep.subr.bf16.mxu0 %v4422
      %6194 = vmatpush1.bf16.msra.mxu0 %v4421
      %6195 = vmatprep.subr.bf16.mxu0 %v4425
      %6196 = vmatpush1.bf16.msra.mxu0 %v4424
      %6197 = vmatprep.subr.bf16.mxu0 %v4428
      %6198 = vmatpush1.bf16.msra.mxu0 %v4427
      %6199 = vmatprep.subr.bf16.mxu0 %v4431
      %6200 = vmatpush1.bf16.msra.mxu0 %v4430
      %6201 = vmatprep.subr.bf16.mxu0 %v4434
      %6202 = vmatpush1.bf16.msra.mxu0 %v4433
      %6203 = vmatprep.subr.bf16.mxu0 %v4437
      %6204 = vmatpush1.bf16.msra.mxu0 %v4436
      %6205 = vmatprep.subr.bf16.mxu0 %v4440
      %6206 = vmatpush1.bf16.msra.mxu0 %v4439
      %6207 = vmatprep.subr.bf16.mxu0 %v4443
      %6208 = vmatpush1.bf16.msra.mxu0 %v4442
      %6209 = vmatprep.subr.bf16.mxu0 %v4446
      %6210 = vmatpush1.bf16.msra.mxu0 %v4445
      %6211 = vmatprep.subr.bf16.mxu0 %v4449
      %6212 = vmatpush1.bf16.msra.mxu0 %v4448
      %6213 = vmatprep.subr.bf16.mxu0 %v4452
      %6214 = vmatpush1.bf16.msra.mxu0 %v4451
      %6215 = vmatprep.subr.bf16.mxu0 %v4455
      %6216 = vmatpush1.bf16.msra.mxu0 %v4454
      %6217 = vmatprep.subr.bf16.mxu0 %v4458
      %6218 = vmatpush1.bf16.msra.mxu0 %v4457
      %6219 = vmatprep.subr.bf16.mxu0 %v4461
      %6220 = vmatpush1.bf16.msra.mxu0 %v4460
      %6221 = vmatprep.subr.bf16.mxu0 %v4464
      %6222 = vmatpush1.bf16.msra.mxu0 %v4463
      %6223 = vmatprep.mubr.bf16.mxu0 %v1905
      %6224 = vmatmul.mubr.bf16.gmra.mrb[0].mxu0 %v1904
      %v6225 = vpop.f32.mrb[0].mxu0
      %v6226 = vadd.f32 %v6093, %v6225
      %v6227 = vpop.f32.mrb[0].mxu0
      %v6228 = vadd.f32 %v6095, %v6227
      %v6229 = vpop.f32.mrb[0].mxu0
      %v6230 = vadd.f32 %v6097, %v6229
      %v6231 = vpop.f32.mrb[0].mxu0
      %v6232 = vadd.f32 %v6099, %v6231
      %6233 = vmatprep.mubr.bf16.mxu0 %v1926
      %6234 = vmatmul.mubr.bf16.gmra.mrb[0].mxu0 %v1925
      %v6235 = vpop.f32.mrb[0].mxu0
      %v6236 = vadd.f32 %v6103, %v6235
      %v6237 = vpop.f32.mrb[0].mxu0
      %v6238 = vadd.f32 %v6105, %v6237
      %v6239 = vpop.f32.mrb[0].mxu0
      %v6240 = vadd.f32 %v6107, %v6239
      %v6241 = vpop.f32.mrb[0].mxu0
      %v6242 = vadd.f32 %v6109, %v6241
      %6243 = vmatprep.mubr.bf16.mxu0 %v1947
      %6244 = vmatmul.mubr.bf16.gmra.mrb[0].mxu0 %v1946
      %v6245 = vpop.f32.mrb[0].mxu0
      %v6246 = vadd.f32 %v6113, %v6245
      %v6247 = vpop.f32.mrb[0].mxu0
      %v6248 = vadd.f32 %v6115, %v6247
      %v6249 = vpop.f32.mrb[0].mxu0
      %v6250 = vadd.f32 %v6117, %v6249
      %v6251 = vpop.f32.mrb[0].mxu0
      %v6252 = vadd.f32 %v6119, %v6251
      %6253 = vmatprep.mubr.bf16.mxu0 %v1968
      %6254 = vmatmul.mubr.bf16.gmra.mrb[0].mxu0 %v1967
      %v6255 = vpop.f32.mrb[0].mxu0
      %v6256 = vadd.f32 %v6123, %v6255
      %v6257 = vpop.f32.mrb[0].mxu0
      %v6258 = vadd.f32 %v6125, %v6257
      %v6259 = vpop.f32.mrb[0].mxu0
      %v6260 = vadd.f32 %v6127, %v6259
      %v6261 = vpop.f32.mrb[0].mxu0
      %v6262 = vadd.f32 %v6129, %v6261
      %6263 = vmatprep.mubr.bf16.mxu0 %v1989
      %6264 = vmatmul.mubr.bf16.gmra.mrb[0].mxu0 %v1988
      %v6265 = vpop.f32.mrb[0].mxu0
      %v6266 = vadd.f32 %v6133, %v6265
      %v6267 = vpop.f32.mrb[0].mxu0
      %v6268 = vadd.f32 %v6135, %v6267
      %v6269 = vpop.f32.mrb[0].mxu0
      %v6270 = vadd.f32 %v6137, %v6269
      %v6271 = vpop.f32.mrb[0].mxu0
      %v6272 = vadd.f32 %v6139, %v6271
      %6273 = vmatprep.mubr.bf16.mxu0 %v2010
      %6274 = vmatmul.mubr.bf16.gmra.mrb[0].mxu0 %v2009
      %v6275 = vpop.f32.mrb[0].mxu0
      %v6276 = vadd.f32 %v6143, %v6275
      %v6277 = vpop.f32.mrb[0].mxu0
      %v6278 = vadd.f32 %v6145, %v6277
      %v6279 = vpop.f32.mrb[0].mxu0
      %v6280 = vadd.f32 %v6147, %v6279
      %v6281 = vpop.f32.mrb[0].mxu0
      %v6282 = vadd.f32 %v6149, %v6281
      %6283 = vmatprep.mubr.bf16.mxu0 %v2031
      %6284 = vmatmul.mubr.bf16.gmra.mrb[0].mxu0 %v2030
      %v6285 = vpop.f32.mrb[0].mxu0
      %v6286 = vadd.f32 %v6153, %v6285
      %v6287 = vpop.f32.mrb[0].mxu0
      %v6288 = vadd.f32 %v6155, %v6287
      %v6289 = vpop.f32.mrb[0].mxu0
      %v6290 = vadd.f32 %v6157, %v6289
      %v6291 = vpop.f32.mrb[0].mxu0
      %v6292 = vadd.f32 %v6159, %v6291
      %6293 = vmatprep.mubr.bf16.mxu0 %v2052
      %6294 = vmatmul.mubr.bf16.gmra.mrb[0].mxu0 %v2051
      %v6295 = vpop.f32.mrb[0].mxu0
      %v6296 = vadd.f32 %v6163, %v6295
      %v6297 = vpop.f32.mrb[0].mxu0
      %v6298 = vadd.f32 %v6165, %v6297
      %v6299 = vpop.f32.mrb[0].mxu0
      %v6300 = vadd.f32 %v6167, %v6299
      %v6301 = vpop.f32.mrb[0].mxu0
      %v6302 = vadd.f32 %v6169, %v6301
      %6303 = vmatprep.mubr.bf16.mxu0 %v2073
      %6304 = vmatmul.mubr.bf16.gmra.mrb[0].mxu0 %v2072
      %v6305 = vpop.f32.mrb[0].mxu0
      %v6306 = vadd.f32 %v6173, %v6305
      %v6307 = vpop.f32.mrb[0].mxu0
      %v6308 = vadd.f32 %v6175, %v6307
      %v6309 = vpop.f32.mrb[0].mxu0
      %v6310 = vadd.f32 %v6177, %v6309
      %v6311 = vpop.f32.mrb[0].mxu0
      %v6312 = vadd.f32 %v6179, %v6311
      %6313 = vmatprep.mubr.bf16.mxu0 %v2094
      %6314 = vmatmul.mubr.bf16.gmra.mrb[0].mxu0 %v2093
      %v6315 = vpop.f32.mrb[0].mxu0
      %v6316 = vadd.f32 %v6183, %v6315
      %v6317 = vpop.f32.mrb[0].mxu0
      %v6318 = vadd.f32 %v6185, %v6317
      %v6319 = vpop.f32.mrb[0].mxu0
      %v6320 = vadd.f32 %v6187, %v6319
      %v6321 = vpop.f32.mrb[0].mxu0
      %v6322 = vadd.f32 %v6189, %v6321
      %6323 = vdwg.mxu0
      %6324 = vmatprep.subr.bf16.mxu0 %v4467
      %6325 = vmatpush1.bf16.msra.mxu0 %v4466
      %6326 = vmatprep.subr.bf16.mxu0 %v4470
      %6327 = vmatpush1.bf16.msra.mxu0 %v4469
      %6328 = vmatprep.subr.bf16.mxu0 %v4473
      %6329 = vmatpush1.bf16.msra.mxu0 %v4472
      %6330 = vmatprep.subr.bf16.mxu0 %v4476
      %6331 = vmatpush1.bf16.msra.mxu0 %v4475
      %6332 = vmatprep.subr.bf16.mxu0 %v4479
      %6333 = vmatpush1.bf16.msra.mxu0 %v4478
      %6334 = vmatprep.subr.bf16.mxu0 %v4482
      %6335 = vmatpush1.bf16.msra.mxu0 %v4481
      %6336 = vmatprep.subr.bf16.mxu0 %v4485
      %6337 = vmatpush1.bf16.msra.mxu0 %v4484
      %6338 = vmatprep.subr.bf16.mxu0 %v4488
      %6339 = vmatpush1.bf16.msra.mxu0 %v4487
      %6340 = vmatprep.subr.bf16.mxu0 0
      %6341 = vmatpush1.bf16.msra.mxu0 0
      %6342 = vmatprep.subr.bf16.mxu0 0
      %6343 = vmatpush1.bf16.msra.mxu0 0
      %6344 = vmatprep.subr.bf16.mxu0 0
      %6345 = vmatpush1.bf16.msra.mxu0 0
      %6346 = vmatprep.subr.bf16.mxu0 0
      %6347 = vmatpush1.bf16.msra.mxu0 0
      %6348 = vmatprep.subr.bf16.mxu0 0
      %6349 = vmatpush1.bf16.msra.mxu0 0
      %6350 = vmatprep.subr.bf16.mxu0 0
      %6351 = vmatpush1.bf16.msra.mxu0 0
      %6352 = vmatprep.subr.bf16.mxu0 0
      %6353 = vmatpush1.bf16.msra.mxu0 0
      %6354 = vmatprep.subr.bf16.mxu0 0
      %6355 = vmatpush1.bf16.msra.mxu0 0
      %6356 = vmatprep.mubr.bf16.mxu0 0
      %6357 = vmatmul.mubr.bf16.gmra.mrb[0].mxu0 %v1906
      %v6358 = vpop.f32.mrb[0].mxu0
      %v6359 = vadd.f32 %v6226, %v6358
      %v6360 = vpop.f32.mrb[0].mxu0
      %v6361 = vadd.f32 %v6228, %v6360
      %v6362 = vpop.f32.mrb[0].mxu0
      %v6363 = vadd.f32 %v6230, %v6362
      %v6364 = vpop.f32.mrb[0].mxu0
      %v6365 = vadd.f32 %v6232, %v6364
      %6366 = vmatprep.mubr.bf16.mxu0 0
      %6367 = vmatmul.mubr.bf16.gmra.mrb[0].mxu0 %v1927
      %v6368 = vpop.f32.mrb[0].mxu0
      %v6369 = vadd.f32 %v6236, %v6368
      %v6370 = vpop.f32.mrb[0].mxu0
      %v6371 = vadd.f32 %v6238, %v6370
      %v6372 = vpop.f32.mrb[0].mxu0
      %v6373 = vadd.f32 %v6240, %v6372
      %v6374 = vpop.f32.mrb[0].mxu0
      %v6375 = vadd.f32 %v6242, %v6374
      %6376 = vmatprep.mubr.bf16.mxu0 0
      %6377 = vmatmul.mubr.bf16.gmra.mrb[0].mxu0 %v1948
      %v6378 = vpop.f32.mrb[0].mxu0
      %v6379 = vadd.f32 %v6246, %v6378
      %v6380 = vpop.f32.mrb[0].mxu0
      %v6381 = vadd.f32 %v6248, %v6380
      %v6382 = vpop.f32.mrb[0].mxu0
      %v6383 = vadd.f32 %v6250, %v6382
      %v6384 = vpop.f32.mrb[0].mxu0
      %v6385 = vadd.f32 %v6252, %v6384
      %6386 = vmatprep.mubr.bf16.mxu0 0
      %6387 = vmatmul.mubr.bf16.gmra.mrb[0].mxu0 %v1969
      %v6388 = vpop.f32.mrb[0].mxu0
      %v6389 = vadd.f32 %v6256, %v6388
      %v6390 = vpop.f32.mrb[0].mxu0
      %v6391 = vadd.f32 %v6258, %v6390
      %v6392 = vpop.f32.mrb[0].mxu0
      %v6393 = vadd.f32 %v6260, %v6392
      %v6394 = vpop.f32.mrb[0].mxu0
      %v6395 = vadd.f32 %v6262, %v6394
      %6396 = vmatprep.mubr.bf16.mxu0 0
      %6397 = vmatmul.mubr.bf16.gmra.mrb[0].mxu0 %v1990
      %v6398 = vpop.f32.mrb[0].mxu0
      %v6399 = vadd.f32 %v6266, %v6398
      %v6400 = vpop.f32.mrb[0].mxu0
      %v6401 = vadd.f32 %v6268, %v6400
      %v6402 = vpop.f32.mrb[0].mxu0
      %v6403 = vadd.f32 %v6270, %v6402
      %v6404 = vpop.f32.mrb[0].mxu0
      %v6405 = vadd.f32 %v6272, %v6404
      %6406 = vmatprep.mubr.bf16.mxu0 0
      %6407 = vmatmul.mubr.bf16.gmra.mrb[0].mxu0 %v2011
      %v6408 = vpop.f32.mrb[0].mxu0
      %v6409 = vadd.f32 %v6276, %v6408
      %v6410 = vpop.f32.mrb[0].mxu0
      %v6411 = vadd.f32 %v6278, %v6410
      %v6412 = vpop.f32.mrb[0].mxu0
      %v6413 = vadd.f32 %v6280, %v6412
      %v6414 = vpop.f32.mrb[0].mxu0
      %v6415 = vadd.f32 %v6282, %v6414
      %6416 = vmatprep.mubr.bf16.mxu0 0
      %6417 = vmatmul.mubr.bf16.gmra.mrb[0].mxu0 %v2032
      %v6418 = vpop.f32.mrb[0].mxu0
      %v6419 = vadd.f32 %v6286, %v6418
      %v6420 = vpop.f32.mrb[0].mxu0
      %v6421 = vadd.f32 %v6288, %v6420
      %v6422 = vpop.f32.mrb[0].mxu0
      %v6423 = vadd.f32 %v6290, %v6422
      %v6424 = vpop.f32.mrb[0].mxu0
      %v6425 = vadd.f32 %v6292, %v6424
      %6426 = vmatprep.mubr.bf16.mxu0 0
      %6427 = vmatmul.mubr.bf16.gmra.mrb[0].mxu0 %v2053
      %v6428 = vpop.f32.mrb[0].mxu0
      %v6429 = vadd.f32 %v6296, %v6428
      %v6430 = vpop.f32.mrb[0].mxu0
      %v6431 = vadd.f32 %v6298, %v6430
      %v6432 = vpop.f32.mrb[0].mxu0
      %v6433 = vadd.f32 %v6300, %v6432
      %v6434 = vpop.f32.mrb[0].mxu0
      %v6435 = vadd.f32 %v6302, %v6434
      %6436 = vmatprep.mubr.bf16.mxu0 0
      %6437 = vmatmul.mubr.bf16.gmra.mrb[0].mxu0 %v2074
      %v6438 = vpop.f32.mrb[0].mxu0
      %v6439 = vadd.f32 %v6306, %v6438
      %v6440 = vpop.f32.mrb[0].mxu0
      %v6441 = vadd.f32 %v6308, %v6440
      %v6442 = vpop.f32.mrb[0].mxu0
      %v6443 = vadd.f32 %v6310, %v6442
      %v6444 = vpop.f32.mrb[0].mxu0
      %v6445 = vadd.f32 %v6312, %v6444
      %6446 = vmatprep.mubr.bf16.mxu0 0
      %6447 = vmatmul.mubr.bf16.gmra.mrb[0].mxu0 %v2095
      %v6448 = vpop.f32.mrb[0].mxu0
      %v6449 = vadd.f32 %v6316, %v6448
      %v6450 = vpop.f32.mrb[0].mxu0
      %v6451 = vadd.f32 %v6318, %v6450
      %v6452 = vpop.f32.mrb[0].mxu0
      %v6453 = vadd.f32 %v6320, %v6452
      %v6454 = vpop.f32.mrb[0].mxu0
      %v6455 = vadd.f32 %v6322, %v6454
      %6456 = vdwg.mxu0
      %6457 = vmatprep.subr.bf16.mxu0 0
      %6458 = vmatpush1.bf16.msra.mxu0 %v3988
      %6459 = vmatprep.subr.bf16.mxu0 0
      %6460 = vmatpush1.bf16.msra.mxu0 %v3991
      %6461 = vmatprep.subr.bf16.mxu0 0
      %6462 = vmatpush1.bf16.msra.mxu0 %v3994
      %6463 = vmatprep.subr.bf16.mxu0 0
      %6464 = vmatpush1.bf16.msra.mxu0 %v3997
      %6465 = vmatprep.subr.bf16.mxu0 0
      %6466 = vmatpush1.bf16.msra.mxu0 %v4000
      %6467 = vmatprep.subr.bf16.mxu0 0
      %6468 = vmatpush1.bf16.msra.mxu0 %v4003
      %6469 = vmatprep.subr.bf16.mxu0 0
      %6470 = vmatpush1.bf16.msra.mxu0 %v4006
      %6471 = vmatprep.subr.bf16.mxu0 0
      %6472 = vmatpush1.bf16.msra.mxu0 %v4009
      %6473 = vmatprep.subr.bf16.mxu0 0
      %6474 = vmatpush1.bf16.msra.mxu0 %v4012
      %6475 = vmatprep.subr.bf16.mxu0 0
      %6476 = vmatpush1.bf16.msra.mxu0 %v4015
      %6477 = vmatprep.subr.bf16.mxu0 0
      %6478 = vmatpush1.bf16.msra.mxu0 %v4018
      %6479 = vmatprep.subr.bf16.mxu0 0
      %6480 = vmatpush1.bf16.msra.mxu0 %v4021
      %6481 = vmatprep.subr.bf16.mxu0 0
      %6482 = vmatpush1.bf16.msra.mxu0 %v4024
      %6483 = vmatprep.subr.bf16.mxu0 0
      %6484 = vmatpush1.bf16.msra.mxu0 %v4027
      %6485 = vmatprep.subr.bf16.mxu0 0
      %6486 = vmatpush1.bf16.msra.mxu0 %v4030
      %6487 = vmatprep.subr.bf16.mxu0 0
      %6488 = vmatpush1.bf16.msra.mxu0 %v4033
      %6489 = vmatprep.mubr.bf16.mxu0 %v1887
      %6490 = vmatmul.mubr.bf16.gmra.mrb[0].mxu0 %v1886
      %v6491 = vpop.f32.mrb[0].mxu0
      %v6492 = vadd.f32 %v1242, %v6491
      %v6493 = vpop.f32.mrb[0].mxu0
      %v6494 = vpop.f32.mrb[0].mxu0
      %v6495 = vadd.f32 %v1242, %v6494
      %v6496 = vpop.f32.mrb[0].mxu0
      %6497 = vmatprep.mubr.bf16.mxu0 %v1908
      %6498 = vmatmul.mubr.bf16.gmra.mrb[0].mxu0 %v1907
      %v6499 = vpop.f32.mrb[0].mxu0
      %v6500 = vadd.f32 %v1242, %v6499
      %v6501 = vpop.f32.mrb[0].mxu0
      %v6502 = vpop.f32.mrb[0].mxu0
      %v6503 = vadd.f32 %v1242, %v6502
      %v6504 = vpop.f32.mrb[0].mxu0
      %6505 = vmatprep.mubr.bf16.mxu0 %v1929
      %6506 = vmatmul.mubr.bf16.gmra.mrb[0].mxu0 %v1928
      %v6507 = vpop.f32.mrb[0].mxu0
      %v6508 = vadd.f32 %v1242, %v6507
      %v6509 = vpop.f32.mrb[0].mxu0
      %v6510 = vpop.f32.mrb[0].mxu0
      %v6511 = vadd.f32 %v1242, %v6510
      %v6512 = vpop.f32.mrb[0].mxu0
      %6513 = vmatprep.mubr.bf16.mxu0 %v1950
      %6514 = vmatmul.mubr.bf16.gmra.mrb[0].mxu0 %v1949
      %v6515 = vpop.f32.mrb[0].mxu0
      %v6516 = vadd.f32 %v1242, %v6515
      %v6517 = vpop.f32.mrb[0].mxu0
      %v6518 = vpop.f32.mrb[0].mxu0
      %v6519 = vadd.f32 %v1242, %v6518
      %v6520 = vpop.f32.mrb[0].mxu0
      %6521 = vmatprep.mubr.bf16.mxu0 %v1971
      %6522 = vmatmul.mubr.bf16.gmra.mrb[0].mxu0 %v1970
      %v6523 = vpop.f32.mrb[0].mxu0
      %v6524 = vadd.f32 %v1242, %v6523
      %v6525 = vpop.f32.mrb[0].mxu0
      %v6526 = vpop.f32.mrb[0].mxu0
      %v6527 = vadd.f32 %v1242, %v6526
      %v6528 = vpop.f32.mrb[0].mxu0
      %6529 = vmatprep.mubr.bf16.mxu0 %v1992
      %6530 = vmatmul.mubr.bf16.gmra.mrb[0].mxu0 %v1991
      %v6531 = vpop.f32.mrb[0].mxu0
      %v6532 = vadd.f32 %v1242, %v6531
      %v6533 = vpop.f32.mrb[0].mxu0
      %v6534 = vpop.f32.mrb[0].mxu0
      %v6535 = vadd.f32 %v1242, %v6534
      %v6536 = vpop.f32.mrb[0].mxu0
      %6537 = vmatprep.mubr.bf16.mxu0 %v2013
      %6538 = vmatmul.mubr.bf16.gmra.mrb[0].mxu0 %v2012
      %v6539 = vpop.f32.mrb[0].mxu0
      %v6540 = vadd.f32 %v1242, %v6539
      %v6541 = vpop.f32.mrb[0].mxu0
      %v6542 = vpop.f32.mrb[0].mxu0
      %v6543 = vadd.f32 %v1242, %v6542
      %v6544 = vpop.f32.mrb[0].mxu0
      %6545 = vmatprep.mubr.bf16.mxu0 %v2034
      %6546 = vmatmul.mubr.bf16.gmra.mrb[0].mxu0 %v2033
      %v6547 = vpop.f32.mrb[0].mxu0
      %v6548 = vadd.f32 %v1242, %v6547
      %v6549 = vpop.f32.mrb[0].mxu0
      %v6550 = vpop.f32.mrb[0].mxu0
      %v6551 = vadd.f32 %v1242, %v6550
      %v6552 = vpop.f32.mrb[0].mxu0
      %6553 = vmatprep.mubr.bf16.mxu0 %v2055
      %6554 = vmatmul.mubr.bf16.gmra.mrb[0].mxu0 %v2054
      %v6555 = vpop.f32.mrb[0].mxu0
      %v6556 = vadd.f32 %v1242, %v6555
      %v6557 = vpop.f32.mrb[0].mxu0
      %v6558 = vpop.f32.mrb[0].mxu0
      %v6559 = vadd.f32 %v1242, %v6558
      %v6560 = vpop.f32.mrb[0].mxu0
      %6561 = vmatprep.mubr.bf16.mxu0 %v2076
      %6562 = vmatmul.mubr.bf16.gmra.mrb[0].mxu0 %v2075
      %v6563 = vpop.f32.mrb[0].mxu0
      %v6564 = vadd.f32 %v1242, %v6563
      %v6565 = vpop.f32.mrb[0].mxu0
      %v6566 = vpop.f32.mrb[0].mxu0
      %v6567 = vadd.f32 %v1242, %v6566
      %v6568 = vpop.f32.mrb[0].mxu0
      %6569 = vdwg.mxu0
      %6570 = vmatprep.subr.bf16.mxu0 0
      %6571 = vmatpush1.bf16.msra.mxu0 %v4036
      %6572 = vmatprep.subr.bf16.mxu0 0
      %6573 = vmatpush1.bf16.msra.mxu0 %v4039
      %6574 = vmatprep.subr.bf16.mxu0 0
      %6575 = vmatpush1.bf16.msra.mxu0 %v4042
      %6576 = vmatprep.subr.bf16.mxu0 0
      %6577 = vmatpush1.bf16.msra.mxu0 %v4045
      %6578 = vmatprep.subr.bf16.mxu0 0
      %6579 = vmatpush1.bf16.msra.mxu0 %v4048
      %6580 = vmatprep.subr.bf16.mxu0 0
      %6581 = vmatpush1.bf16.msra.mxu0 %v4051
      %6582 = vmatprep.subr.bf16.mxu0 0
      %6583 = vmatpush1.bf16.msra.mxu0 %v4054
      %6584 = vmatprep.subr.bf16.mxu0 0
      %6585 = vmatpush1.bf16.msra.mxu0 %v4057
      %6586 = vmatprep.subr.bf16.mxu0 0
      %6587 = vmatpush1.bf16.msra.mxu0 %v4060
      %6588 = vmatprep.subr.bf16.mxu0 0
      %6589 = vmatpush1.bf16.msra.mxu0 %v4063
      %6590 = vmatprep.subr.bf16.mxu0 0
      %6591 = vmatpush1.bf16.msra.mxu0 %v4066
      %6592 = vmatprep.subr.bf16.mxu0 0
      %6593 = vmatpush1.bf16.msra.mxu0 %v4069
      %6594 = vmatprep.subr.bf16.mxu0 0
      %6595 = vmatpush1.bf16.msra.mxu0 %v4072
      %6596 = vmatprep.subr.bf16.mxu0 0
      %6597 = vmatpush1.bf16.msra.mxu0 %v4075
      %6598 = vmatprep.subr.bf16.mxu0 0
      %6599 = vmatpush1.bf16.msra.mxu0 %v4078
      %6600 = vmatprep.subr.bf16.mxu0 0
      %6601 = vmatpush1.bf16.msra.mxu0 %v4081
      %6602 = vmatprep.mubr.bf16.mxu0 %v1889
      %6603 = vmatmul.mubr.bf16.gmra.mrb[0].mxu0 %v1888
      %v6604 = vpop.f32.mrb[0].mxu0
      %v6605 = vadd.f32 %v6492, %v6604
      %v6606 = vpop.f32.mrb[0].mxu0
      %v6607 = vpop.f32.mrb[0].mxu0
      %v6608 = vadd.f32 %v6495, %v6607
      %v6609 = vpop.f32.mrb[0].mxu0
      %6610 = vmatprep.mubr.bf16.mxu0 %v1910
      %6611 = vmatmul.mubr.bf16.gmra.mrb[0].mxu0 %v1909
      %v6612 = vpop.f32.mrb[0].mxu0
      %v6613 = vadd.f32 %v6500, %v6612
      %v6614 = vpop.f32.mrb[0].mxu0
      %v6615 = vpop.f32.mrb[0].mxu0
      %v6616 = vadd.f32 %v6503, %v6615
      %v6617 = vpop.f32.mrb[0].mxu0
      %6618 = vmatprep.mubr.bf16.mxu0 %v1931
      %6619 = vmatmul.mubr.bf16.gmra.mrb[0].mxu0 %v1930
      %v6620 = vpop.f32.mrb[0].mxu0
      %v6621 = vadd.f32 %v6508, %v6620
      %v6622 = vpop.f32.mrb[0].mxu0
      %v6623 = vpop.f32.mrb[0].mxu0
      %v6624 = vadd.f32 %v6511, %v6623
      %v6625 = vpop.f32.mrb[0].mxu0
      %6626 = vmatprep.mubr.bf16.mxu0 %v1952
      %6627 = vmatmul.mubr.bf16.gmra.mrb[0].mxu0 %v1951
      %v6628 = vpop.f32.mrb[0].mxu0
      %v6629 = vadd.f32 %v6516, %v6628
      %v6630 = vpop.f32.mrb[0].mxu0
      %v6631 = vpop.f32.mrb[0].mxu0
      %v6632 = vadd.f32 %v6519, %v6631
      %v6633 = vpop.f32.mrb[0].mxu0
      %6634 = vmatprep.mubr.bf16.mxu0 %v1973
      %6635 = vmatmul.mubr.bf16.gmra.mrb[0].mxu0 %v1972
      %v6636 = vpop.f32.mrb[0].mxu0
      %v6637 = vadd.f32 %v6524, %v6636
      %v6638 = vpop.f32.mrb[0].mxu0
      %v6639 = vpop.f32.mrb[0].mxu0
      %v6640 = vadd.f32 %v6527, %v6639
      %v6641 = vpop.f32.mrb[0].mxu0
      %6642 = vmatprep.mubr.bf16.mxu0 %v1994
      %6643 = vmatmul.mubr.bf16.gmra.mrb[0].mxu0 %v1993
      %v6644 = vpop.f32.mrb[0].mxu0
      %v6645 = vadd.f32 %v6532, %v6644
      %v6646 = vpop.f32.mrb[0].mxu0
      %v6647 = vpop.f32.mrb[0].mxu0
      %v6648 = vadd.f32 %v6535, %v6647
      %v6649 = vpop.f32.mrb[0].mxu0
      %6650 = vmatprep.mubr.bf16.mxu0 %v2015
      %6651 = vmatmul.mubr.bf16.gmra.mrb[0].mxu0 %v2014
      %v6652 = vpop.f32.mrb[0].mxu0
      %v6653 = vadd.f32 %v6540, %v6652
      %v6654 = vpop.f32.mrb[0].mxu0
      %v6655 = vpop.f32.mrb[0].mxu0
      %v6656 = vadd.f32 %v6543, %v6655
      %v6657 = vpop.f32.mrb[0].mxu0
      %6658 = vmatprep.mubr.bf16.mxu0 %v2036
      %6659 = vmatmul.mubr.bf16.gmra.mrb[0].mxu0 %v2035
      %v6660 = vpop.f32.mrb[0].mxu0
      %v6661 = vadd.f32 %v6548, %v6660
      %v6662 = vpop.f32.mrb[0].mxu0
      %v6663 = vpop.f32.mrb[0].mxu0
      %v6664 = vadd.f32 %v6551, %v6663
      %v6665 = vpop.f32.mrb[0].mxu0
      %6666 = vmatprep.mubr.bf16.mxu0 %v2057
      %6667 = vmatmul.mubr.bf16.gmra.mrb[0].mxu0 %v2056
      %v6668 = vpop.f32.mrb[0].mxu0
      %v6669 = vadd.f32 %v6556, %v6668
      %v6670 = vpop.f32.mrb[0].mxu0
      %v6671 = vpop.f32.mrb[0].mxu0
      %v6672 = vadd.f32 %v6559, %v6671
      %v6673 = vpop.f32.mrb[0].mxu0
      %6674 = vmatprep.mubr.bf16.mxu0 %v2078
      %6675 = vmatmul.mubr.bf16.gmra.mrb[0].mxu0 %v2077
      %v6676 = vpop.f32.mrb[0].mxu0
      %v6677 = vadd.f32 %v6564, %v6676
      %v6678 = vpop.f32.mrb[0].mxu0
      %v6679 = vpop.f32.mrb[0].mxu0
      %v6680 = vadd.f32 %v6567, %v6679
      %v6681 = vpop.f32.mrb[0].mxu0
      %6682 = vdwg.mxu0
      %6683 = vmatprep.subr.bf16.mxu0 0
      %6684 = vmatpush1.bf16.msra.mxu0 %v4084
      %6685 = vmatprep.subr.bf16.mxu0 0
      %6686 = vmatpush1.bf16.msra.mxu0 %v4087
      %6687 = vmatprep.subr.bf16.mxu0 0
      %6688 = vmatpush1.bf16.msra.mxu0 %v4090
      %6689 = vmatprep.subr.bf16.mxu0 0
      %6690 = vmatpush1.bf16.msra.mxu0 %v4093
      %6691 = vmatprep.subr.bf16.mxu0 0
      %6692 = vmatpush1.bf16.msra.mxu0 %v4096
      %6693 = vmatprep.subr.bf16.mxu0 0
      %6694 = vmatpush1.bf16.msra.mxu0 %v4099
      %6695 = vmatprep.subr.bf16.mxu0 0
      %6696 = vmatpush1.bf16.msra.mxu0 %v4102
      %6697 = vmatprep.subr.bf16.mxu0 0
      %6698 = vmatpush1.bf16.msra.mxu0 %v4105
      %6699 = vmatprep.subr.bf16.mxu0 0
      %6700 = vmatpush1.bf16.msra.mxu0 %v4108
      %6701 = vmatprep.subr.bf16.mxu0 0
      %6702 = vmatpush1.bf16.msra.mxu0 %v4111
      %6703 = vmatprep.subr.bf16.mxu0 0
      %6704 = vmatpush1.bf16.msra.mxu0 %v4114
      %6705 = vmatprep.subr.bf16.mxu0 0
      %6706 = vmatpush1.bf16.msra.mxu0 %v4117
      %6707 = vmatprep.subr.bf16.mxu0 0
      %6708 = vmatpush1.bf16.msra.mxu0 %v4120
      %6709 = vmatprep.subr.bf16.mxu0 0
      %6710 = vmatpush1.bf16.msra.mxu0 %v4123
      %6711 = vmatprep.subr.bf16.mxu0 0
      %6712 = vmatpush1.bf16.msra.mxu0 %v4126
      %6713 = vmatprep.subr.bf16.mxu0 0
      %6714 = vmatpush1.bf16.msra.mxu0 %v4129
      %6715 = vmatprep.mubr.bf16.mxu0 %v1891
      %6716 = vmatmul.mubr.bf16.gmra.mrb[0].mxu0 %v1890
      %v6717 = vpop.f32.mrb[0].mxu0
      %v6718 = vadd.f32 %v6605, %v6717
      %v6719 = vpop.f32.mrb[0].mxu0
      %v6720 = vpop.f32.mrb[0].mxu0
      %v6721 = vadd.f32 %v6608, %v6720
      %v6722 = vpop.f32.mrb[0].mxu0
      %6723 = vmatprep.mubr.bf16.mxu0 %v1912
      %6724 = vmatmul.mubr.bf16.gmra.mrb[0].mxu0 %v1911
      %v6725 = vpop.f32.mrb[0].mxu0
      %v6726 = vadd.f32 %v6613, %v6725
      %v6727 = vpop.f32.mrb[0].mxu0
      %v6728 = vpop.f32.mrb[0].mxu0
      %v6729 = vadd.f32 %v6616, %v6728
      %v6730 = vpop.f32.mrb[0].mxu0
      %6731 = vmatprep.mubr.bf16.mxu0 %v1933
      %6732 = vmatmul.mubr.bf16.gmra.mrb[0].mxu0 %v1932
      %v6733 = vpop.f32.mrb[0].mxu0
      %v6734 = vadd.f32 %v6621, %v6733
      %v6735 = vpop.f32.mrb[0].mxu0
      %v6736 = vpop.f32.mrb[0].mxu0
      %v6737 = vadd.f32 %v6624, %v6736
      %v6738 = vpop.f32.mrb[0].mxu0
      %6739 = vmatprep.mubr.bf16.mxu0 %v1954
      %6740 = vmatmul.mubr.bf16.gmra.mrb[0].mxu0 %v1953
      %v6741 = vpop.f32.mrb[0].mxu0
      %v6742 = vadd.f32 %v6629, %v6741
      %v6743 = vpop.f32.mrb[0].mxu0
      %v6744 = vpop.f32.mrb[0].mxu0
      %v6745 = vadd.f32 %v6632, %v6744
      %v6746 = vpop.f32.mrb[0].mxu0
      %6747 = vmatprep.mubr.bf16.mxu0 %v1975
      %6748 = vmatmul.mubr.bf16.gmra.mrb[0].mxu0 %v1974
      %v6749 = vpop.f32.mrb[0].mxu0
      %v6750 = vadd.f32 %v6637, %v6749
      %v6751 = vpop.f32.mrb[0].mxu0
      %v6752 = vpop.f32.mrb[0].mxu0
      %v6753 = vadd.f32 %v6640, %v6752
      %v6754 = vpop.f32.mrb[0].mxu0
      %6755 = vmatprep.mubr.bf16.mxu0 %v1996
      %6756 = vmatmul.mubr.bf16.gmra.mrb[0].mxu0 %v1995
      %v6757 = vpop.f32.mrb[0].mxu0
      %v6758 = vadd.f32 %v6645, %v6757
      %v6759 = vpop.f32.mrb[0].mxu0
      %v6760 = vpop.f32.mrb[0].mxu0
      %v6761 = vadd.f32 %v6648, %v6760
      %v6762 = vpop.f32.mrb[0].mxu0
      %6763 = vmatprep.mubr.bf16.mxu0 %v2017
      %6764 = vmatmul.mubr.bf16.gmra.mrb[0].mxu0 %v2016
      %v6765 = vpop.f32.mrb[0].mxu0
      %v6766 = vadd.f32 %v6653, %v6765
      %v6767 = vpop.f32.mrb[0].mxu0
      %v6768 = vpop.f32.mrb[0].mxu0
      %v6769 = vadd.f32 %v6656, %v6768
      %v6770 = vpop.f32.mrb[0].mxu0
      %6771 = vmatprep.mubr.bf16.mxu0 %v2038
      %6772 = vmatmul.mubr.bf16.gmra.mrb[0].mxu0 %v2037
      %v6773 = vpop.f32.mrb[0].mxu0
      %v6774 = vadd.f32 %v6661, %v6773
      %v6775 = vpop.f32.mrb[0].mxu0
      %v6776 = vpop.f32.mrb[0].mxu0
      %v6777 = vadd.f32 %v6664, %v6776
      %v6778 = vpop.f32.mrb[0].mxu0
      %6779 = vmatprep.mubr.bf16.mxu0 %v2059
      %6780 = vmatmul.mubr.bf16.gmra.mrb[0].mxu0 %v2058
      %v6781 = vpop.f32.mrb[0].mxu0
      %v6782 = vadd.f32 %v6669, %v6781
      %v6783 = vpop.f32.mrb[0].mxu0
      %v6784 = vpop.f32.mrb[0].mxu0
      %v6785 = vadd.f32 %v6672, %v6784
      %v6786 = vpop.f32.mrb[0].mxu0
      %6787 = vmatprep.mubr.bf16.mxu0 %v2080
      %6788 = vmatmul.mubr.bf16.gmra.mrb[0].mxu0 %v2079
      %v6789 = vpop.f32.mrb[0].mxu0
      %v6790 = vadd.f32 %v6677, %v6789
      %v6791 = vpop.f32.mrb[0].mxu0
      %v6792 = vpop.f32.mrb[0].mxu0
      %v6793 = vadd.f32 %v6680, %v6792
      %v6794 = vpop.f32.mrb[0].mxu0
      %6795 = vdwg.mxu0
      %6796 = vmatprep.subr.bf16.mxu0 0
      %6797 = vmatpush1.bf16.msra.mxu0 %v4132
      %6798 = vmatprep.subr.bf16.mxu0 0
      %6799 = vmatpush1.bf16.msra.mxu0 %v4135
      %6800 = vmatprep.subr.bf16.mxu0 0
      %6801 = vmatpush1.bf16.msra.mxu0 %v4138
      %6802 = vmatprep.subr.bf16.mxu0 0
      %6803 = vmatpush1.bf16.msra.mxu0 %v4141
      %6804 = vmatprep.subr.bf16.mxu0 0
      %6805 = vmatpush1.bf16.msra.mxu0 %v4144
      %6806 = vmatprep.subr.bf16.mxu0 0
      %6807 = vmatpush1.bf16.msra.mxu0 %v4147
      %6808 = vmatprep.subr.bf16.mxu0 0
      %6809 = vmatpush1.bf16.msra.mxu0 %v4150
      %6810 = vmatprep.subr.bf16.mxu0 0
      %6811 = vmatpush1.bf16.msra.mxu0 %v4153
      %6812 = vmatprep.subr.bf16.mxu0 0
      %6813 = vmatpush1.bf16.msra.mxu0 %v4156
      %6814 = vmatprep.subr.bf16.mxu0 0
      %6815 = vmatpush1.bf16.msra.mxu0 %v4159
      %6816 = vmatprep.subr.bf16.mxu0 0
      %6817 = vmatpush1.bf16.msra.mxu0 %v4162
      %6818 = vmatprep.subr.bf16.mxu0 0
      %6819 = vmatpush1.bf16.msra.mxu0 %v4165
      %6820 = vmatprep.subr.bf16.mxu0 0
      %6821 = vmatpush1.bf16.msra.mxu0 %v4168
      %6822 = vmatprep.subr.bf16.mxu0 0
      %6823 = vmatpush1.bf16.msra.mxu0 %v4171
      %6824 = vmatprep.subr.bf16.mxu0 0
      %6825 = vmatpush1.bf16.msra.mxu0 %v4174
      %6826 = vmatprep.subr.bf16.mxu0 0
      %6827 = vmatpush1.bf16.msra.mxu0 %v4177
      %6828 = vmatprep.mubr.bf16.mxu0 %v1893
      %6829 = vmatmul.mubr.bf16.gmra.mrb[0].mxu0 %v1892
      %v6830 = vpop.f32.mrb[0].mxu0
      %v6831 = vadd.f32 %v6718, %v6830
      %v6832 = vpop.f32.mrb[0].mxu0
      %v6833 = vpop.f32.mrb[0].mxu0
      %v6834 = vadd.f32 %v6721, %v6833
      %v6835 = vpop.f32.mrb[0].mxu0
      %6836 = vmatprep.mubr.bf16.mxu0 %v1914
      %6837 = vmatmul.mubr.bf16.gmra.mrb[0].mxu0 %v1913
      %v6838 = vpop.f32.mrb[0].mxu0
      %v6839 = vadd.f32 %v6726, %v6838
      %v6840 = vpop.f32.mrb[0].mxu0
      %v6841 = vpop.f32.mrb[0].mxu0
      %v6842 = vadd.f32 %v6729, %v6841
      %v6843 = vpop.f32.mrb[0].mxu0
      %6844 = vmatprep.mubr.bf16.mxu0 %v1935
      %6845 = vmatmul.mubr.bf16.gmra.mrb[0].mxu0 %v1934
      %v6846 = vpop.f32.mrb[0].mxu0
      %v6847 = vadd.f32 %v6734, %v6846
      %v6848 = vpop.f32.mrb[0].mxu0
      %v6849 = vpop.f32.mrb[0].mxu0
      %v6850 = vadd.f32 %v6737, %v6849
      %v6851 = vpop.f32.mrb[0].mxu0
      %6852 = vmatprep.mubr.bf16.mxu0 %v1956
      %6853 = vmatmul.mubr.bf16.gmra.mrb[0].mxu0 %v1955
      %v6854 = vpop.f32.mrb[0].mxu0
      %v6855 = vadd.f32 %v6742, %v6854
      %v6856 = vpop.f32.mrb[0].mxu0
      %v6857 = vpop.f32.mrb[0].mxu0
      %v6858 = vadd.f32 %v6745, %v6857
      %v6859 = vpop.f32.mrb[0].mxu0
      %6860 = vmatprep.mubr.bf16.mxu0 %v1977
      %6861 = vmatmul.mubr.bf16.gmra.mrb[0].mxu0 %v1976
      %v6862 = vpop.f32.mrb[0].mxu0
      %v6863 = vadd.f32 %v6750, %v6862
      %v6864 = vpop.f32.mrb[0].mxu0
      %v6865 = vpop.f32.mrb[0].mxu0
      %v6866 = vadd.f32 %v6753, %v6865
      %v6867 = vpop.f32.mrb[0].mxu0
      %6868 = vmatprep.mubr.bf16.mxu0 %v1998
      %6869 = vmatmul.mubr.bf16.gmra.mrb[0].mxu0 %v1997
      %v6870 = vpop.f32.mrb[0].mxu0
      %v6871 = vadd.f32 %v6758, %v6870
      %v6872 = vpop.f32.mrb[0].mxu0
      %v6873 = vpop.f32.mrb[0].mxu0
      %v6874 = vadd.f32 %v6761, %v6873
      %v6875 = vpop.f32.mrb[0].mxu0
      %6876 = vmatprep.mubr.bf16.mxu0 %v2019
      %6877 = vmatmul.mubr.bf16.gmra.mrb[0].mxu0 %v2018
      %v6878 = vpop.f32.mrb[0].mxu0
      %v6879 = vadd.f32 %v6766, %v6878
      %v6880 = vpop.f32.mrb[0].mxu0
      %v6881 = vpop.f32.mrb[0].mxu0
      %v6882 = vadd.f32 %v6769, %v6881
      %v6883 = vpop.f32.mrb[0].mxu0
      %6884 = vmatprep.mubr.bf16.mxu0 %v2040
      %6885 = vmatmul.mubr.bf16.gmra.mrb[0].mxu0 %v2039
      %v6886 = vpop.f32.mrb[0].mxu0
      %v6887 = vadd.f32 %v6774, %v6886
      %v6888 = vpop.f32.mrb[0].mxu0
      %v6889 = vpop.f32.mrb[0].mxu0
      %v6890 = vadd.f32 %v6777, %v6889
      %v6891 = vpop.f32.mrb[0].mxu0
      %6892 = vmatprep.mubr.bf16.mxu0 %v2061
      %6893 = vmatmul.mubr.bf16.gmra.mrb[0].mxu0 %v2060
      %v6894 = vpop.f32.mrb[0].mxu0
      %v6895 = vadd.f32 %v6782, %v6894
      %v6896 = vpop.f32.mrb[0].mxu0
      %v6897 = vpop.f32.mrb[0].mxu0
      %v6898 = vadd.f32 %v6785, %v6897
      %v6899 = vpop.f32.mrb[0].mxu0
      %6900 = vmatprep.mubr.bf16.mxu0 %v2082
      %6901 = vmatmul.mubr.bf16.gmra.mrb[0].mxu0 %v2081
      %v6902 = vpop.f32.mrb[0].mxu0
      %v6903 = vadd.f32 %v6790, %v6902
      %v6904 = vpop.f32.mrb[0].mxu0
      %v6905 = vpop.f32.mrb[0].mxu0
      %v6906 = vadd.f32 %v6793, %v6905
      %v6907 = vpop.f32.mrb[0].mxu0
      %6908 = vdwg.mxu0
      %6909 = vmatprep.subr.bf16.mxu0 0
      %6910 = vmatpush1.bf16.msra.mxu0 %v4180
      %6911 = vmatprep.subr.bf16.mxu0 0
      %6912 = vmatpush1.bf16.msra.mxu0 %v4183
      %6913 = vmatprep.subr.bf16.mxu0 0
      %6914 = vmatpush1.bf16.msra.mxu0 %v4186
      %6915 = vmatprep.subr.bf16.mxu0 0
      %6916 = vmatpush1.bf16.msra.mxu0 %v4189
      %6917 = vmatprep.subr.bf16.mxu0 0
      %6918 = vmatpush1.bf16.msra.mxu0 %v4192
      %6919 = vmatprep.subr.bf16.mxu0 0
      %6920 = vmatpush1.bf16.msra.mxu0 %v4195
      %6921 = vmatprep.subr.bf16.mxu0 0
      %6922 = vmatpush1.bf16.msra.mxu0 %v4198
      %6923 = vmatprep.subr.bf16.mxu0 0
      %6924 = vmatpush1.bf16.msra.mxu0 %v4201
      %6925 = vmatprep.subr.bf16.mxu0 0
      %6926 = vmatpush1.bf16.msra.mxu0 %v4204
      %6927 = vmatprep.subr.bf16.mxu0 0
      %6928 = vmatpush1.bf16.msra.mxu0 %v4207
      %6929 = vmatprep.subr.bf16.mxu0 0
      %6930 = vmatpush1.bf16.msra.mxu0 %v4210
      %6931 = vmatprep.subr.bf16.mxu0 0
      %6932 = vmatpush1.bf16.msra.mxu0 %v4213
      %6933 = vmatprep.subr.bf16.mxu0 0
      %6934 = vmatpush1.bf16.msra.mxu0 %v4216
      %6935 = vmatprep.subr.bf16.mxu0 0
      %6936 = vmatpush1.bf16.msra.mxu0 %v4219
      %6937 = vmatprep.subr.bf16.mxu0 0
      %6938 = vmatpush1.bf16.msra.mxu0 %v4222
      %6939 = vmatprep.subr.bf16.mxu0 0
      %6940 = vmatpush1.bf16.msra.mxu0 %v4225
      %6941 = vmatprep.mubr.bf16.mxu0 %v1895
      %6942 = vmatmul.mubr.bf16.gmra.mrb[0].mxu0 %v1894
      %v6943 = vpop.f32.mrb[0].mxu0
      %v6944 = vadd.f32 %v6831, %v6943
      %v6945 = vpop.f32.mrb[0].mxu0
      %v6946 = vpop.f32.mrb[0].mxu0
      %v6947 = vadd.f32 %v6834, %v6946
      %v6948 = vpop.f32.mrb[0].mxu0
      %6949 = vmatprep.mubr.bf16.mxu0 %v1916
      %6950 = vmatmul.mubr.bf16.gmra.mrb[0].mxu0 %v1915
      %v6951 = vpop.f32.mrb[0].mxu0
      %v6952 = vadd.f32 %v6839, %v6951
      %v6953 = vpop.f32.mrb[0].mxu0
      %v6954 = vpop.f32.mrb[0].mxu0
      %v6955 = vadd.f32 %v6842, %v6954
      %v6956 = vpop.f32.mrb[0].mxu0
      %6957 = vmatprep.mubr.bf16.mxu0 %v1937
      %6958 = vmatmul.mubr.bf16.gmra.mrb[0].mxu0 %v1936
      %v6959 = vpop.f32.mrb[0].mxu0
      %v6960 = vadd.f32 %v6847, %v6959
      %v6961 = vpop.f32.mrb[0].mxu0
      %v6962 = vpop.f32.mrb[0].mxu0
      %v6963 = vadd.f32 %v6850, %v6962
      %v6964 = vpop.f32.mrb[0].mxu0
      %6965 = vmatprep.mubr.bf16.mxu0 %v1958
      %6966 = vmatmul.mubr.bf16.gmra.mrb[0].mxu0 %v1957
      %v6967 = vpop.f32.mrb[0].mxu0
      %v6968 = vadd.f32 %v6855, %v6967
      %v6969 = vpop.f32.mrb[0].mxu0
      %v6970 = vpop.f32.mrb[0].mxu0
      %v6971 = vadd.f32 %v6858, %v6970
      %v6972 = vpop.f32.mrb[0].mxu0
      %6973 = vmatprep.mubr.bf16.mxu0 %v1979
      %6974 = vmatmul.mubr.bf16.gmra.mrb[0].mxu0 %v1978
      %v6975 = vpop.f32.mrb[0].mxu0
      %v6976 = vadd.f32 %v6863, %v6975
      %v6977 = vpop.f32.mrb[0].mxu0
      %v6978 = vpop.f32.mrb[0].mxu0
      %v6979 = vadd.f32 %v6866, %v6978
      %v6980 = vpop.f32.mrb[0].mxu0
      %6981 = vmatprep.mubr.bf16.mxu0 %v2000
      %6982 = vmatmul.mubr.bf16.gmra.mrb[0].mxu0 %v1999
      %v6983 = vpop.f32.mrb[0].mxu0
      %v6984 = vadd.f32 %v6871, %v6983
      %v6985 = vpop.f32.mrb[0].mxu0
      %v6986 = vpop.f32.mrb[0].mxu0
      %v6987 = vadd.f32 %v6874, %v6986
      %v6988 = vpop.f32.mrb[0].mxu0
      %6989 = vmatprep.mubr.bf16.mxu0 %v2021
      %6990 = vmatmul.mubr.bf16.gmra.mrb[0].mxu0 %v2020
      %v6991 = vpop.f32.mrb[0].mxu0
      %v6992 = vadd.f32 %v6879, %v6991
      %v6993 = vpop.f32.mrb[0].mxu0
      %v6994 = vpop.f32.mrb[0].mxu0
      %v6995 = vadd.f32 %v6882, %v6994
      %v6996 = vpop.f32.mrb[0].mxu0
      %6997 = vmatprep.mubr.bf16.mxu0 %v2042
      %6998 = vmatmul.mubr.bf16.gmra.mrb[0].mxu0 %v2041
      %v6999 = vpop.f32.mrb[0].mxu0
      %v7000 = vadd.f32 %v6887, %v6999
      %v7001 = vpop.f32.mrb[0].mxu0
      %v7002 = vpop.f32.mrb[0].mxu0
      %v7003 = vadd.f32 %v6890, %v7002
      %v7004 = vpop.f32.mrb[0].mxu0
      %7005 = vmatprep.mubr.bf16.mxu0 %v2063
      %7006 = vmatmul.mubr.bf16.gmra.mrb[0].mxu0 %v2062
      %v7007 = vpop.f32.mrb[0].mxu0
      %v7008 = vadd.f32 %v6895, %v7007
      %v7009 = vpop.f32.mrb[0].mxu0
      %v7010 = vpop.f32.mrb[0].mxu0
      %v7011 = vadd.f32 %v6898, %v7010
      %v7012 = vpop.f32.mrb[0].mxu0
      %7013 = vmatprep.mubr.bf16.mxu0 %v2084
      %7014 = vmatmul.mubr.bf16.gmra.mrb[0].mxu0 %v2083
      %v7015 = vpop.f32.mrb[0].mxu0
      %v7016 = vadd.f32 %v6903, %v7015
      %v7017 = vpop.f32.mrb[0].mxu0
      %v7018 = vpop.f32.mrb[0].mxu0
      %v7019 = vadd.f32 %v6906, %v7018
      %v7020 = vpop.f32.mrb[0].mxu0
      %7021 = vdwg.mxu0
      %7022 = vmatprep.subr.bf16.mxu0 0
      %7023 = vmatpush1.bf16.msra.mxu0 %v4228
      %7024 = vmatprep.subr.bf16.mxu0 0
      %7025 = vmatpush1.bf16.msra.mxu0 %v4231
      %7026 = vmatprep.subr.bf16.mxu0 0
      %7027 = vmatpush1.bf16.msra.mxu0 %v4234
      %7028 = vmatprep.subr.bf16.mxu0 0
      %7029 = vmatpush1.bf16.msra.mxu0 %v4237
      %7030 = vmatprep.subr.bf16.mxu0 0
      %7031 = vmatpush1.bf16.msra.mxu0 %v4240
      %7032 = vmatprep.subr.bf16.mxu0 0
      %7033 = vmatpush1.bf16.msra.mxu0 %v4243
      %7034 = vmatprep.subr.bf16.mxu0 0
      %7035 = vmatpush1.bf16.msra.mxu0 %v4246
      %7036 = vmatprep.subr.bf16.mxu0 0
      %7037 = vmatpush1.bf16.msra.mxu0 %v4249
      %7038 = vmatprep.subr.bf16.mxu0 0
      %7039 = vmatpush1.bf16.msra.mxu0 %v4252
      %7040 = vmatprep.subr.bf16.mxu0 0
      %7041 = vmatpush1.bf16.msra.mxu0 %v4255
      %7042 = vmatprep.subr.bf16.mxu0 0
      %7043 = vmatpush1.bf16.msra.mxu0 %v4258
      %7044 = vmatprep.subr.bf16.mxu0 0
      %7045 = vmatpush1.bf16.msra.mxu0 %v4261
      %7046 = vmatprep.subr.bf16.mxu0 0
      %7047 = vmatpush1.bf16.msra.mxu0 %v4264
      %7048 = vmatprep.subr.bf16.mxu0 0
      %7049 = vmatpush1.bf16.msra.mxu0 %v4267
      %7050 = vmatprep.subr.bf16.mxu0 0
      %7051 = vmatpush1.bf16.msra.mxu0 %v4270
      %7052 = vmatprep.subr.bf16.mxu0 0
      %7053 = vmatpush1.bf16.msra.mxu0 %v4273
      %7054 = vmatprep.mubr.bf16.mxu0 %v1897
      %7055 = vmatmul.mubr.bf16.gmra.mrb[0].mxu0 %v1896
      %v7056 = vpop.f32.mrb[0].mxu0
      %v7057 = vadd.f32 %v6944, %v7056
      %v7058 = vpop.f32.mrb[0].mxu0
      %v7059 = vpop.f32.mrb[0].mxu0
      %v7060 = vadd.f32 %v6947, %v7059
      %v7061 = vpop.f32.mrb[0].mxu0
      %7062 = vmatprep.mubr.bf16.mxu0 %v1918
      %7063 = vmatmul.mubr.bf16.gmra.mrb[0].mxu0 %v1917
      %v7064 = vpop.f32.mrb[0].mxu0
      %v7065 = vadd.f32 %v6952, %v7064
      %v7066 = vpop.f32.mrb[0].mxu0
      %v7067 = vpop.f32.mrb[0].mxu0
      %v7068 = vadd.f32 %v6955, %v7067
      %v7069 = vpop.f32.mrb[0].mxu0
      %7070 = vmatprep.mubr.bf16.mxu0 %v1939
      %7071 = vmatmul.mubr.bf16.gmra.mrb[0].mxu0 %v1938
      %v7072 = vpop.f32.mrb[0].mxu0
      %v7073 = vadd.f32 %v6960, %v7072
      %v7074 = vpop.f32.mrb[0].mxu0
      %v7075 = vpop.f32.mrb[0].mxu0
      %v7076 = vadd.f32 %v6963, %v7075
      %v7077 = vpop.f32.mrb[0].mxu0
      %7078 = vmatprep.mubr.bf16.mxu0 %v1960
      %7079 = vmatmul.mubr.bf16.gmra.mrb[0].mxu0 %v1959
      %v7080 = vpop.f32.mrb[0].mxu0
      %v7081 = vadd.f32 %v6968, %v7080
      %v7082 = vpop.f32.mrb[0].mxu0
      %v7083 = vpop.f32.mrb[0].mxu0
      %v7084 = vadd.f32 %v6971, %v7083
      %v7085 = vpop.f32.mrb[0].mxu0
      %7086 = vmatprep.mubr.bf16.mxu0 %v1981
      %7087 = vmatmul.mubr.bf16.gmra.mrb[0].mxu0 %v1980
      %v7088 = vpop.f32.mrb[0].mxu0
      %v7089 = vadd.f32 %v6976, %v7088
      %v7090 = vpop.f32.mrb[0].mxu0
      %v7091 = vpop.f32.mrb[0].mxu0
      %v7092 = vadd.f32 %v6979, %v7091
      %v7093 = vpop.f32.mrb[0].mxu0
      %7094 = vmatprep.mubr.bf16.mxu0 %v2002
      %7095 = vmatmul.mubr.bf16.gmra.mrb[0].mxu0 %v2001
      %v7096 = vpop.f32.mrb[0].mxu0
      %v7097 = vadd.f32 %v6984, %v7096
      %v7098 = vpop.f32.mrb[0].mxu0
      %v7099 = vpop.f32.mrb[0].mxu0
      %v7100 = vadd.f32 %v6987, %v7099
      %v7101 = vpop.f32.mrb[0].mxu0
      %7102 = vmatprep.mubr.bf16.mxu0 %v2023
      %7103 = vmatmul.mubr.bf16.gmra.mrb[0].mxu0 %v2022
      %v7104 = vpop.f32.mrb[0].mxu0
      %v7105 = vadd.f32 %v6992, %v7104
      %v7106 = vpop.f32.mrb[0].mxu0
      %v7107 = vpop.f32.mrb[0].mxu0
      %v7108 = vadd.f32 %v6995, %v7107
      %v7109 = vpop.f32.mrb[0].mxu0
      %7110 = vmatprep.mubr.bf16.mxu0 %v2044
      %7111 = vmatmul.mubr.bf16.gmra.mrb[0].mxu0 %v2043
      %v7112 = vpop.f32.mrb[0].mxu0
      %v7113 = vadd.f32 %v7000, %v7112
      %v7114 = vpop.f32.mrb[0].mxu0
      %v7115 = vpop.f32.mrb[0].mxu0
      %v7116 = vadd.f32 %v7003, %v7115
      %v7117 = vpop.f32.mrb[0].mxu0
      %7118 = vmatprep.mubr.bf16.mxu0 %v2065
      %7119 = vmatmul.mubr.bf16.gmra.mrb[0].mxu0 %v2064
      %v7120 = vpop.f32.mrb[0].mxu0
      %v7121 = vadd.f32 %v7008, %v7120
      %v7122 = vpop.f32.mrb[0].mxu0
      %v7123 = vpop.f32.mrb[0].mxu0
      %v7124 = vadd.f32 %v7011, %v7123
      %v7125 = vpop.f32.mrb[0].mxu0
      %7126 = vmatprep.mubr.bf16.mxu0 %v2086
      %7127 = vmatmul.mubr.bf16.gmra.mrb[0].mxu0 %v2085
      %v7128 = vpop.f32.mrb[0].mxu0
      %v7129 = vadd.f32 %v7016, %v7128
      %v7130 = vpop.f32.mrb[0].mxu0
      %v7131 = vpop.f32.mrb[0].mxu0
      %v7132 = vadd.f32 %v7019, %v7131
      %v7133 = vpop.f32.mrb[0].mxu0
      %7134 = vdwg.mxu0
      %7135 = vmatprep.subr.bf16.mxu0 0
      %7136 = vmatpush1.bf16.msra.mxu0 %v4276
      %7137 = vmatprep.subr.bf16.mxu0 0
      %7138 = vmatpush1.bf16.msra.mxu0 %v4279
      %7139 = vmatprep.subr.bf16.mxu0 0
      %7140 = vmatpush1.bf16.msra.mxu0 %v4282
      %7141 = vmatprep.subr.bf16.mxu0 0
      %7142 = vmatpush1.bf16.msra.mxu0 %v4285
      %7143 = vmatprep.subr.bf16.mxu0 0
      %7144 = vmatpush1.bf16.msra.mxu0 %v4288
      %7145 = vmatprep.subr.bf16.mxu0 0
      %7146 = vmatpush1.bf16.msra.mxu0 %v4291
      %7147 = vmatprep.subr.bf16.mxu0 0
      %7148 = vmatpush1.bf16.msra.mxu0 %v4294
      %7149 = vmatprep.subr.bf16.mxu0 0
      %7150 = vmatpush1.bf16.msra.mxu0 %v4297
      %7151 = vmatprep.subr.bf16.mxu0 0
      %7152 = vmatpush1.bf16.msra.mxu0 %v4300
      %7153 = vmatprep.subr.bf16.mxu0 0
      %7154 = vmatpush1.bf16.msra.mxu0 %v4303
      %7155 = vmatprep.subr.bf16.mxu0 0
      %7156 = vmatpush1.bf16.msra.mxu0 %v4306
      %7157 = vmatprep.subr.bf16.mxu0 0
      %7158 = vmatpush1.bf16.msra.mxu0 %v4309
      %7159 = vmatprep.subr.bf16.mxu0 0
      %7160 = vmatpush1.bf16.msra.mxu0 %v4312
      %7161 = vmatprep.subr.bf16.mxu0 0
      %7162 = vmatpush1.bf16.msra.mxu0 %v4315
      %7163 = vmatprep.subr.bf16.mxu0 0
      %7164 = vmatpush1.bf16.msra.mxu0 %v4318
      %7165 = vmatprep.subr.bf16.mxu0 0
      %7166 = vmatpush1.bf16.msra.mxu0 %v4321
      %7167 = vmatprep.mubr.bf16.mxu0 %v1899
      %7168 = vmatmul.mubr.bf16.gmra.mrb[0].mxu0 %v1898
      %v7169 = vpop.f32.mrb[0].mxu0
      %v7170 = vadd.f32 %v7057, %v7169
      %v7171 = vpop.f32.mrb[0].mxu0
      %v7172 = vpop.f32.mrb[0].mxu0
      %v7173 = vadd.f32 %v7060, %v7172
      %v7174 = vpop.f32.mrb[0].mxu0
      %7175 = vmatprep.mubr.bf16.mxu0 %v1920
      %7176 = vmatmul.mubr.bf16.gmra.mrb[0].mxu0 %v1919
      %v7177 = vpop.f32.mrb[0].mxu0
      %v7178 = vadd.f32 %v7065, %v7177
      %v7179 = vpop.f32.mrb[0].mxu0
      %v7180 = vpop.f32.mrb[0].mxu0
      %v7181 = vadd.f32 %v7068, %v7180
      %v7182 = vpop.f32.mrb[0].mxu0
      %7183 = vmatprep.mubr.bf16.mxu0 %v1941
      %7184 = vmatmul.mubr.bf16.gmra.mrb[0].mxu0 %v1940
      %v7185 = vpop.f32.mrb[0].mxu0
      %v7186 = vadd.f32 %v7073, %v7185
      %v7187 = vpop.f32.mrb[0].mxu0
      %v7188 = vpop.f32.mrb[0].mxu0
      %v7189 = vadd.f32 %v7076, %v7188
      %v7190 = vpop.f32.mrb[0].mxu0
      %7191 = vmatprep.mubr.bf16.mxu0 %v1962
      %7192 = vmatmul.mubr.bf16.gmra.mrb[0].mxu0 %v1961
      %v7193 = vpop.f32.mrb[0].mxu0
      %v7194 = vadd.f32 %v7081, %v7193
      %v7195 = vpop.f32.mrb[0].mxu0
      %v7196 = vpop.f32.mrb[0].mxu0
      %v7197 = vadd.f32 %v7084, %v7196
      %v7198 = vpop.f32.mrb[0].mxu0
      %7199 = vmatprep.mubr.bf16.mxu0 %v1983
      %7200 = vmatmul.mubr.bf16.gmra.mrb[0].mxu0 %v1982
      %v7201 = vpop.f32.mrb[0].mxu0
      %v7202 = vadd.f32 %v7089, %v7201
      %v7203 = vpop.f32.mrb[0].mxu0
      %v7204 = vpop.f32.mrb[0].mxu0
      %v7205 = vadd.f32 %v7092, %v7204
      %v7206 = vpop.f32.mrb[0].mxu0
      %7207 = vmatprep.mubr.bf16.mxu0 %v2004
      %7208 = vmatmul.mubr.bf16.gmra.mrb[0].mxu0 %v2003
      %v7209 = vpop.f32.mrb[0].mxu0
      %v7210 = vadd.f32 %v7097, %v7209
      %v7211 = vpop.f32.mrb[0].mxu0
      %v7212 = vpop.f32.mrb[0].mxu0
      %v7213 = vadd.f32 %v7100, %v7212
      %v7214 = vpop.f32.mrb[0].mxu0
      %7215 = vmatprep.mubr.bf16.mxu0 %v2025
      %7216 = vmatmul.mubr.bf16.gmra.mrb[0].mxu0 %v2024
      %v7217 = vpop.f32.mrb[0].mxu0
      %v7218 = vadd.f32 %v7105, %v7217
      %v7219 = vpop.f32.mrb[0].mxu0
      %v7220 = vpop.f32.mrb[0].mxu0
      %v7221 = vadd.f32 %v7108, %v7220
      %v7222 = vpop.f32.mrb[0].mxu0
      %7223 = vmatprep.mubr.bf16.mxu0 %v2046
      %7224 = vmatmul.mubr.bf16.gmra.mrb[0].mxu0 %v2045
      %v7225 = vpop.f32.mrb[0].mxu0
      %v7226 = vadd.f32 %v7113, %v7225
      %v7227 = vpop.f32.mrb[0].mxu0
      %v7228 = vpop.f32.mrb[0].mxu0
      %v7229 = vadd.f32 %v7116, %v7228
      %v7230 = vpop.f32.mrb[0].mxu0
      %7231 = vmatprep.mubr.bf16.mxu0 %v2067
      %7232 = vmatmul.mubr.bf16.gmra.mrb[0].mxu0 %v2066
      %v7233 = vpop.f32.mrb[0].mxu0
      %v7234 = vadd.f32 %v7121, %v7233
      %v7235 = vpop.f32.mrb[0].mxu0
      %v7236 = vpop.f32.mrb[0].mxu0
      %v7237 = vadd.f32 %v7124, %v7236
      %v7238 = vpop.f32.mrb[0].mxu0
      %7239 = vmatprep.mubr.bf16.mxu0 %v2088
      %7240 = vmatmul.mubr.bf16.gmra.mrb[0].mxu0 %v2087
      %v7241 = vpop.f32.mrb[0].mxu0
      %v7242 = vadd.f32 %v7129, %v7241
      %v7243 = vpop.f32.mrb[0].mxu0
      %v7244 = vpop.f32.mrb[0].mxu0
      %v7245 = vadd.f32 %v7132, %v7244
      %v7246 = vpop.f32.mrb[0].mxu0
      %7247 = vdwg.mxu0
      %7248 = vmatprep.subr.bf16.mxu0 0
      %7249 = vmatpush1.bf16.msra.mxu0 %v4324
      %7250 = vmatprep.subr.bf16.mxu0 0
      %7251 = vmatpush1.bf16.msra.mxu0 %v4327
      %7252 = vmatprep.subr.bf16.mxu0 0
      %7253 = vmatpush1.bf16.msra.mxu0 %v4330
      %7254 = vmatprep.subr.bf16.mxu0 0
      %7255 = vmatpush1.bf16.msra.mxu0 %v4333
      %7256 = vmatprep.subr.bf16.mxu0 0
      %7257 = vmatpush1.bf16.msra.mxu0 %v4336
      %7258 = vmatprep.subr.bf16.mxu0 0
      %7259 = vmatpush1.bf16.msra.mxu0 %v4339
      %7260 = vmatprep.subr.bf16.mxu0 0
      %7261 = vmatpush1.bf16.msra.mxu0 %v4342
      %7262 = vmatprep.subr.bf16.mxu0 0
      %7263 = vmatpush1.bf16.msra.mxu0 %v4345
      %7264 = vmatprep.subr.bf16.mxu0 0
      %7265 = vmatpush1.bf16.msra.mxu0 %v4348
      %7266 = vmatprep.subr.bf16.mxu0 0
      %7267 = vmatpush1.bf16.msra.mxu0 %v4351
      %7268 = vmatprep.subr.bf16.mxu0 0
      %7269 = vmatpush1.bf16.msra.mxu0 %v4354
      %7270 = vmatprep.subr.bf16.mxu0 0
      %7271 = vmatpush1.bf16.msra.mxu0 %v4357
      %7272 = vmatprep.subr.bf16.mxu0 0
      %7273 = vmatpush1.bf16.msra.mxu0 %v4360
      %7274 = vmatprep.subr.bf16.mxu0 0
      %7275 = vmatpush1.bf16.msra.mxu0 %v4363
      %7276 = vmatprep.subr.bf16.mxu0 0
      %7277 = vmatpush1.bf16.msra.mxu0 %v4366
      %7278 = vmatprep.subr.bf16.mxu0 0
      %7279 = vmatpush1.bf16.msra.mxu0 %v4369
      %7280 = vmatprep.mubr.bf16.mxu0 %v1901
      %7281 = vmatmul.mubr.bf16.gmra.mrb[0].mxu0 %v1900
      %v7282 = vpop.f32.mrb[0].mxu0
      %v7283 = vadd.f32 %v7170, %v7282
      %v7284 = vpop.f32.mrb[0].mxu0
      %v7285 = vpop.f32.mrb[0].mxu0
      %v7286 = vadd.f32 %v7173, %v7285
      %v7287 = vpop.f32.mrb[0].mxu0
      %7288 = vmatprep.mubr.bf16.mxu0 %v1922
      %7289 = vmatmul.mubr.bf16.gmra.mrb[0].mxu0 %v1921
      %v7290 = vpop.f32.mrb[0].mxu0
      %v7291 = vadd.f32 %v7178, %v7290
      %v7292 = vpop.f32.mrb[0].mxu0
      %v7293 = vpop.f32.mrb[0].mxu0
      %v7294 = vadd.f32 %v7181, %v7293
      %v7295 = vpop.f32.mrb[0].mxu0
      %7296 = vmatprep.mubr.bf16.mxu0 %v1943
      %7297 = vmatmul.mubr.bf16.gmra.mrb[0].mxu0 %v1942
      %v7298 = vpop.f32.mrb[0].mxu0
      %v7299 = vadd.f32 %v7186, %v7298
      %v7300 = vpop.f32.mrb[0].mxu0
      %v7301 = vpop.f32.mrb[0].mxu0
      %v7302 = vadd.f32 %v7189, %v7301
      %v7303 = vpop.f32.mrb[0].mxu0
      %7304 = vmatprep.mubr.bf16.mxu0 %v1964
      %7305 = vmatmul.mubr.bf16.gmra.mrb[0].mxu0 %v1963
      %v7306 = vpop.f32.mrb[0].mxu0
      %v7307 = vadd.f32 %v7194, %v7306
      %v7308 = vpop.f32.mrb[0].mxu0
      %v7309 = vpop.f32.mrb[0].mxu0
      %v7310 = vadd.f32 %v7197, %v7309
      %v7311 = vpop.f32.mrb[0].mxu0
      %7312 = vmatprep.mubr.bf16.mxu0 %v1985
      %7313 = vmatmul.mubr.bf16.gmra.mrb[0].mxu0 %v1984
      %v7314 = vpop.f32.mrb[0].mxu0
      %v7315 = vadd.f32 %v7202, %v7314
      %v7316 = vpop.f32.mrb[0].mxu0
      %v7317 = vpop.f32.mrb[0].mxu0
      %v7318 = vadd.f32 %v7205, %v7317
      %v7319 = vpop.f32.mrb[0].mxu0
      %7320 = vmatprep.mubr.bf16.mxu0 %v2006
      %7321 = vmatmul.mubr.bf16.gmra.mrb[0].mxu0 %v2005
      %v7322 = vpop.f32.mrb[0].mxu0
      %v7323 = vadd.f32 %v7210, %v7322
      %v7324 = vpop.f32.mrb[0].mxu0
      %v7325 = vpop.f32.mrb[0].mxu0
      %v7326 = vadd.f32 %v7213, %v7325
      %v7327 = vpop.f32.mrb[0].mxu0
      %7328 = vmatprep.mubr.bf16.mxu0 %v2027
      %7329 = vmatmul.mubr.bf16.gmra.mrb[0].mxu0 %v2026
      %v7330 = vpop.f32.mrb[0].mxu0
      %v7331 = vadd.f32 %v7218, %v7330
      %v7332 = vpop.f32.mrb[0].mxu0
      %v7333 = vpop.f32.mrb[0].mxu0
      %v7334 = vadd.f32 %v7221, %v7333
      %v7335 = vpop.f32.mrb[0].mxu0
      %7336 = vmatprep.mubr.bf16.mxu0 %v2048
      %7337 = vmatmul.mubr.bf16.gmra.mrb[0].mxu0 %v2047
      %v7338 = vpop.f32.mrb[0].mxu0
      %v7339 = vadd.f32 %v7226, %v7338
      %v7340 = vpop.f32.mrb[0].mxu0
      %v7341 = vpop.f32.mrb[0].mxu0
      %v7342 = vadd.f32 %v7229, %v7341
      %v7343 = vpop.f32.mrb[0].mxu0
      %7344 = vmatprep.mubr.bf16.mxu0 %v2069
      %7345 = vmatmul.mubr.bf16.gmra.mrb[0].mxu0 %v2068
      %v7346 = vpop.f32.mrb[0].mxu0
      %v7347 = vadd.f32 %v7234, %v7346
      %v7348 = vpop.f32.mrb[0].mxu0
      %v7349 = vpop.f32.mrb[0].mxu0
      %v7350 = vadd.f32 %v7237, %v7349
      %v7351 = vpop.f32.mrb[0].mxu0
      %7352 = vmatprep.mubr.bf16.mxu0 %v2090
      %7353 = vmatmul.mubr.bf16.gmra.mrb[0].mxu0 %v2089
      %v7354 = vpop.f32.mrb[0].mxu0
      %v7355 = vadd.f32 %v7242, %v7354
      %v7356 = vpop.f32.mrb[0].mxu0
      %v7357 = vpop.f32.mrb[0].mxu0
      %v7358 = vadd.f32 %v7245, %v7357
      %v7359 = vpop.f32.mrb[0].mxu0
      %7360 = vdwg.mxu0
      %7361 = vmatprep.subr.bf16.mxu0 0
      %7362 = vmatpush1.bf16.msra.mxu0 %v4372
      %7363 = vmatprep.subr.bf16.mxu0 0
      %7364 = vmatpush1.bf16.msra.mxu0 %v4375
      %7365 = vmatprep.subr.bf16.mxu0 0
      %7366 = vmatpush1.bf16.msra.mxu0 %v4378
      %7367 = vmatprep.subr.bf16.mxu0 0
      %7368 = vmatpush1.bf16.msra.mxu0 %v4381
      %7369 = vmatprep.subr.bf16.mxu0 0
      %7370 = vmatpush1.bf16.msra.mxu0 %v4384
      %7371 = vmatprep.subr.bf16.mxu0 0
      %7372 = vmatpush1.bf16.msra.mxu0 %v4387
      %7373 = vmatprep.subr.bf16.mxu0 0
      %7374 = vmatpush1.bf16.msra.mxu0 %v4390
      %7375 = vmatprep.subr.bf16.mxu0 0
      %7376 = vmatpush1.bf16.msra.mxu0 %v4393
      %7377 = vmatprep.subr.bf16.mxu0 0
      %7378 = vmatpush1.bf16.msra.mxu0 %v4396
      %7379 = vmatprep.subr.bf16.mxu0 0
      %7380 = vmatpush1.bf16.msra.mxu0 %v4399
      %7381 = vmatprep.subr.bf16.mxu0 0
      %7382 = vmatpush1.bf16.msra.mxu0 %v4402
      %7383 = vmatprep.subr.bf16.mxu0 0
      %7384 = vmatpush1.bf16.msra.mxu0 %v4405
      %7385 = vmatprep.subr.bf16.mxu0 0
      %7386 = vmatpush1.bf16.msra.mxu0 %v4408
      %7387 = vmatprep.subr.bf16.mxu0 0
      %7388 = vmatpush1.bf16.msra.mxu0 %v4411
      %7389 = vmatprep.subr.bf16.mxu0 0
      %7390 = vmatpush1.bf16.msra.mxu0 %v4414
      %7391 = vmatprep.subr.bf16.mxu0 0
      %7392 = vmatpush1.bf16.msra.mxu0 %v4417
      %7393 = vmatprep.mubr.bf16.mxu0 %v1903
      %7394 = vmatmul.mubr.bf16.gmra.mrb[0].mxu0 %v1902
      %v7395 = vpop.f32.mrb[0].mxu0
      %v7396 = vadd.f32 %v7283, %v7395
      %v7397 = vpop.f32.mrb[0].mxu0
      %v7398 = vpop.f32.mrb[0].mxu0
      %v7399 = vadd.f32 %v7286, %v7398
      %v7400 = vpop.f32.mrb[0].mxu0
      %7401 = vmatprep.mubr.bf16.mxu0 %v1924
      %7402 = vmatmul.mubr.bf16.gmra.mrb[0].mxu0 %v1923
      %v7403 = vpop.f32.mrb[0].mxu0
      %v7404 = vadd.f32 %v7291, %v7403
      %v7405 = vpop.f32.mrb[0].mxu0
      %v7406 = vpop.f32.mrb[0].mxu0
      %v7407 = vadd.f32 %v7294, %v7406
      %v7408 = vpop.f32.mrb[0].mxu0
      %7409 = vmatprep.mubr.bf16.mxu0 %v1945
      %7410 = vmatmul.mubr.bf16.gmra.mrb[0].mxu0 %v1944
      %v7411 = vpop.f32.mrb[0].mxu0
      %v7412 = vadd.f32 %v7299, %v7411
      %v7413 = vpop.f32.mrb[0].mxu0
      %v7414 = vpop.f32.mrb[0].mxu0
      %v7415 = vadd.f32 %v7302, %v7414
      %v7416 = vpop.f32.mrb[0].mxu0
      %7417 = vmatprep.mubr.bf16.mxu0 %v1966
      %7418 = vmatmul.mubr.bf16.gmra.mrb[0].mxu0 %v1965
      %v7419 = vpop.f32.mrb[0].mxu0
      %v7420 = vadd.f32 %v7307, %v7419
      %v7421 = vpop.f32.mrb[0].mxu0
      %v7422 = vpop.f32.mrb[0].mxu0
      %v7423 = vadd.f32 %v7310, %v7422
      %v7424 = vpop.f32.mrb[0].mxu0
      %7425 = vmatprep.mubr.bf16.mxu0 %v1987
      %7426 = vmatmul.mubr.bf16.gmra.mrb[0].mxu0 %v1986
      %v7427 = vpop.f32.mrb[0].mxu0
      %v7428 = vadd.f32 %v7315, %v7427
      %v7429 = vpop.f32.mrb[0].mxu0
      %v7430 = vpop.f32.mrb[0].mxu0
      %v7431 = vadd.f32 %v7318, %v7430
      %v7432 = vpop.f32.mrb[0].mxu0
      %7433 = vmatprep.mubr.bf16.mxu0 %v2008
      %7434 = vmatmul.mubr.bf16.gmra.mrb[0].mxu0 %v2007
      %v7435 = vpop.f32.mrb[0].mxu0
      %v7436 = vadd.f32 %v7323, %v7435
      %v7437 = vpop.f32.mrb[0].mxu0
      %v7438 = vpop.f32.mrb[0].mxu0
      %v7439 = vadd.f32 %v7326, %v7438
      %v7440 = vpop.f32.mrb[0].mxu0
      %7441 = vmatprep.mubr.bf16.mxu0 %v2029
      %7442 = vmatmul.mubr.bf16.gmra.mrb[0].mxu0 %v2028
      %v7443 = vpop.f32.mrb[0].mxu0
      %v7444 = vadd.f32 %v7331, %v7443
      %v7445 = vpop.f32.mrb[0].mxu0
      %v7446 = vpop.f32.mrb[0].mxu0
      %v7447 = vadd.f32 %v7334, %v7446
      %v7448 = vpop.f32.mrb[0].mxu0
      %7449 = vmatprep.mubr.bf16.mxu0 %v2050
      %7450 = vmatmul.mubr.bf16.gmra.mrb[0].mxu0 %v2049
      %v7451 = vpop.f32.mrb[0].mxu0
      %v7452 = vadd.f32 %v7339, %v7451
      %v7453 = vpop.f32.mrb[0].mxu0
      %v7454 = vpop.f32.mrb[0].mxu0
      %v7455 = vadd.f32 %v7342, %v7454
      %v7456 = vpop.f32.mrb[0].mxu0
      %7457 = vmatprep.mubr.bf16.mxu0 %v2071
      %7458 = vmatmul.mubr.bf16.gmra.mrb[0].mxu0 %v2070
      %v7459 = vpop.f32.mrb[0].mxu0
      %v7460 = vadd.f32 %v7347, %v7459
      %v7461 = vpop.f32.mrb[0].mxu0
      %v7462 = vpop.f32.mrb[0].mxu0
      %v7463 = vadd.f32 %v7350, %v7462
      %v7464 = vpop.f32.mrb[0].mxu0
      %7465 = vmatprep.mubr.bf16.mxu0 %v2092
      %7466 = vmatmul.mubr.bf16.gmra.mrb[0].mxu0 %v2091
      %v7467 = vpop.f32.mrb[0].mxu0
      %v7468 = vadd.f32 %v7355, %v7467
      %v7469 = vpop.f32.mrb[0].mxu0
      %v7470 = vpop.f32.mrb[0].mxu0
      %v7471 = vadd.f32 %v7358, %v7470
      %v7472 = vpop.f32.mrb[0].mxu0
      %7473 = vdwg.mxu0
      %7474 = vmatprep.subr.bf16.mxu0 0
      %7475 = vmatpush1.bf16.msra.mxu0 %v4420
      %7476 = vmatprep.subr.bf16.mxu0 0
      %7477 = vmatpush1.bf16.msra.mxu0 %v4423
      %7478 = vmatprep.subr.bf16.mxu0 0
      %7479 = vmatpush1.bf16.msra.mxu0 %v4426
      %7480 = vmatprep.subr.bf16.mxu0 0
      %7481 = vmatpush1.bf16.msra.mxu0 %v4429
      %7482 = vmatprep.subr.bf16.mxu0 0
      %7483 = vmatpush1.bf16.msra.mxu0 %v4432
      %7484 = vmatprep.subr.bf16.mxu0 0
      %7485 = vmatpush1.bf16.msra.mxu0 %v4435
      %7486 = vmatprep.subr.bf16.mxu0 0
      %7487 = vmatpush1.bf16.msra.mxu0 %v4438
      %7488 = vmatprep.subr.bf16.mxu0 0
      %7489 = vmatpush1.bf16.msra.mxu0 %v4441
      %7490 = vmatprep.subr.bf16.mxu0 0
      %7491 = vmatpush1.bf16.msra.mxu0 %v4444
      %7492 = vmatprep.subr.bf16.mxu0 0
      %7493 = vmatpush1.bf16.msra.mxu0 %v4447
      %7494 = vmatprep.subr.bf16.mxu0 0
      %7495 = vmatpush1.bf16.msra.mxu0 %v4450
      %7496 = vmatprep.subr.bf16.mxu0 0
      %7497 = vmatpush1.bf16.msra.mxu0 %v4453
      %7498 = vmatprep.subr.bf16.mxu0 0
      %7499 = vmatpush1.bf16.msra.mxu0 %v4456
      %7500 = vmatprep.subr.bf16.mxu0 0
      %7501 = vmatpush1.bf16.msra.mxu0 %v4459
      %7502 = vmatprep.subr.bf16.mxu0 0
      %7503 = vmatpush1.bf16.msra.mxu0 %v4462
      %7504 = vmatprep.subr.bf16.mxu0 0
      %7505 = vmatpush1.bf16.msra.mxu0 %v4465
      %7506 = vmatprep.mubr.bf16.mxu0 %v1905
      %7507 = vmatmul.mubr.bf16.gmra.mrb[0].mxu0 %v1904
      %v7508 = vpop.f32.mrb[0].mxu0
      %v7509 = vadd.f32 %v7396, %v7508
      %v7510 = vpop.f32.mrb[0].mxu0
      %v7511 = vpop.f32.mrb[0].mxu0
      %v7512 = vadd.f32 %v7399, %v7511
      %v7513 = vpop.f32.mrb[0].mxu0
      %7514 = vmatprep.mubr.bf16.mxu0 %v1926
      %7515 = vmatmul.mubr.bf16.gmra.mrb[0].mxu0 %v1925
      %v7516 = vpop.f32.mrb[0].mxu0
      %v7517 = vadd.f32 %v7404, %v7516
      %v7518 = vpop.f32.mrb[0].mxu0
      %v7519 = vpop.f32.mrb[0].mxu0
      %v7520 = vadd.f32 %v7407, %v7519
      %v7521 = vpop.f32.mrb[0].mxu0
      %7522 = vmatprep.mubr.bf16.mxu0 %v1947
      %7523 = vmatmul.mubr.bf16.gmra.mrb[0].mxu0 %v1946
      %v7524 = vpop.f32.mrb[0].mxu0
      %v7525 = vadd.f32 %v7412, %v7524
      %v7526 = vpop.f32.mrb[0].mxu0
      %v7527 = vpop.f32.mrb[0].mxu0
      %v7528 = vadd.f32 %v7415, %v7527
      %v7529 = vpop.f32.mrb[0].mxu0
      %7530 = vmatprep.mubr.bf16.mxu0 %v1968
      %7531 = vmatmul.mubr.bf16.gmra.mrb[0].mxu0 %v1967
      %v7532 = vpop.f32.mrb[0].mxu0
      %v7533 = vadd.f32 %v7420, %v7532
      %v7534 = vpop.f32.mrb[0].mxu0
      %v7535 = vpop.f32.mrb[0].mxu0
      %v7536 = vadd.f32 %v7423, %v7535
      %v7537 = vpop.f32.mrb[0].mxu0
      %7538 = vmatprep.mubr.bf16.mxu0 %v1989
      %7539 = vmatmul.mubr.bf16.gmra.mrb[0].mxu0 %v1988
      %v7540 = vpop.f32.mrb[0].mxu0
      %v7541 = vadd.f32 %v7428, %v7540
      %v7542 = vpop.f32.mrb[0].mxu0
      %v7543 = vpop.f32.mrb[0].mxu0
      %v7544 = vadd.f32 %v7431, %v7543
      %v7545 = vpop.f32.mrb[0].mxu0
      %7546 = vmatprep.mubr.bf16.mxu0 %v2010
      %7547 = vmatmul.mubr.bf16.gmra.mrb[0].mxu0 %v2009
      %v7548 = vpop.f32.mrb[0].mxu0
      %v7549 = vadd.f32 %v7436, %v7548
      %v7550 = vpop.f32.mrb[0].mxu0
      %v7551 = vpop.f32.mrb[0].mxu0
      %v7552 = vadd.f32 %v7439, %v7551
      %v7553 = vpop.f32.mrb[0].mxu0
      %7554 = vmatprep.mubr.bf16.mxu0 %v2031
      %7555 = vmatmul.mubr.bf16.gmra.mrb[0].mxu0 %v2030
      %v7556 = vpop.f32.mrb[0].mxu0
      %v7557 = vadd.f32 %v7444, %v7556
      %v7558 = vpop.f32.mrb[0].mxu0
      %v7559 = vpop.f32.mrb[0].mxu0
      %v7560 = vadd.f32 %v7447, %v7559
      %v7561 = vpop.f32.mrb[0].mxu0
      %7562 = vmatprep.mubr.bf16.mxu0 %v2052
      %7563 = vmatmul.mubr.bf16.gmra.mrb[0].mxu0 %v2051
      %v7564 = vpop.f32.mrb[0].mxu0
      %v7565 = vadd.f32 %v7452, %v7564
      %v7566 = vpop.f32.mrb[0].mxu0
      %v7567 = vpop.f32.mrb[0].mxu0
      %v7568 = vadd.f32 %v7455, %v7567
      %v7569 = vpop.f32.mrb[0].mxu0
      %7570 = vmatprep.mubr.bf16.mxu0 %v2073
      %7571 = vmatmul.mubr.bf16.gmra.mrb[0].mxu0 %v2072
      %v7572 = vpop.f32.mrb[0].mxu0
      %v7573 = vadd.f32 %v7460, %v7572
      %v7574 = vpop.f32.mrb[0].mxu0
      %v7575 = vpop.f32.mrb[0].mxu0
      %v7576 = vadd.f32 %v7463, %v7575
      %v7577 = vpop.f32.mrb[0].mxu0
      %7578 = vmatprep.mubr.bf16.mxu0 %v2094
      %7579 = vmatmul.mubr.bf16.gmra.mrb[0].mxu0 %v2093
      %v7580 = vpop.f32.mrb[0].mxu0
      %v7581 = vadd.f32 %v7468, %v7580
      %v7582 = vpop.f32.mrb[0].mxu0
      %v7583 = vpop.f32.mrb[0].mxu0
      %v7584 = vadd.f32 %v7471, %v7583
      %v7585 = vpop.f32.mrb[0].mxu0
      %7586 = vdwg.mxu0
      %7587 = vmatprep.subr.bf16.mxu0 0
      %7588 = vmatpush1.bf16.msra.mxu0 %v4468
      %7589 = vmatprep.subr.bf16.mxu0 0
      %7590 = vmatpush1.bf16.msra.mxu0 %v4471
      %7591 = vmatprep.subr.bf16.mxu0 0
      %7592 = vmatpush1.bf16.msra.mxu0 %v4474
      %7593 = vmatprep.subr.bf16.mxu0 0
      %7594 = vmatpush1.bf16.msra.mxu0 %v4477
      %7595 = vmatprep.subr.bf16.mxu0 0
      %7596 = vmatpush1.bf16.msra.mxu0 %v4480
      %7597 = vmatprep.subr.bf16.mxu0 0
      %7598 = vmatpush1.bf16.msra.mxu0 %v4483
      %7599 = vmatprep.subr.bf16.mxu0 0
      %7600 = vmatpush1.bf16.msra.mxu0 %v4486
      %7601 = vmatprep.subr.bf16.mxu0 0
      %7602 = vmatpush1.bf16.msra.mxu0 %v4489
      %7603 = vmatprep.subr.bf16.mxu0 0
      %7604 = vmatpush1.bf16.msra.mxu0 0
      %7605 = vmatprep.subr.bf16.mxu0 0
      %7606 = vmatpush1.bf16.msra.mxu0 0
      %7607 = vmatprep.subr.bf16.mxu0 0
      %7608 = vmatpush1.bf16.msra.mxu0 0
      %7609 = vmatprep.subr.bf16.mxu0 0
      %7610 = vmatpush1.bf16.msra.mxu0 0
      %7611 = vmatprep.subr.bf16.mxu0 0
      %7612 = vmatpush1.bf16.msra.mxu0 0
      %7613 = vmatprep.subr.bf16.mxu0 0
      %7614 = vmatpush1.bf16.msra.mxu0 0
      %7615 = vmatprep.subr.bf16.mxu0 0
      %7616 = vmatpush1.bf16.msra.mxu0 0
      %7617 = vmatprep.subr.bf16.mxu0 0
      %7618 = vmatpush1.bf16.msra.mxu0 0
      %7619 = vmatprep.mubr.bf16.mxu0 0
      %7620 = vmatmul.mubr.bf16.gmra.mrb[0].mxu0 %v1906
      %v7621 = vpop.f32.mrb[0].mxu0
      %v7622 = vadd.f32 %v7509, %v7621
      %v7623 = vpop.f32.mrb[0].mxu0
      %v7624 = vpop.f32.mrb[0].mxu0
      %v7625 = vadd.f32 %v7512, %v7624
      %v7626 = vpop.f32.mrb[0].mxu0
      %7627 = vmatprep.mubr.bf16.mxu0 0
      %7628 = vmatmul.mubr.bf16.gmra.mrb[0].mxu0 %v1927
      %v7629 = vpop.f32.mrb[0].mxu0
      %v7630 = vadd.f32 %v7517, %v7629
      %v7631 = vpop.f32.mrb[0].mxu0
      %v7632 = vpop.f32.mrb[0].mxu0
      %v7633 = vadd.f32 %v7520, %v7632
      %v7634 = vpop.f32.mrb[0].mxu0
      %7635 = vmatprep.mubr.bf16.mxu0 0
      %7636 = vmatmul.mubr.bf16.gmra.mrb[0].mxu0 %v1948
      %v7637 = vpop.f32.mrb[0].mxu0
      %v7638 = vadd.f32 %v7525, %v7637
      %v7639 = vpop.f32.mrb[0].mxu0
      %v7640 = vpop.f32.mrb[0].mxu0
      %v7641 = vadd.f32 %v7528, %v7640
      %v7642 = vpop.f32.mrb[0].mxu0
      %7643 = vmatprep.mubr.bf16.mxu0 0
      %7644 = vmatmul.mubr.bf16.gmra.mrb[0].mxu0 %v1969
      %v7645 = vpop.f32.mrb[0].mxu0
      %v7646 = vadd.f32 %v7533, %v7645
      %v7647 = vpop.f32.mrb[0].mxu0
      %v7648 = vpop.f32.mrb[0].mxu0
      %v7649 = vadd.f32 %v7536, %v7648
      %v7650 = vpop.f32.mrb[0].mxu0
      %7651 = vmatprep.mubr.bf16.mxu0 0
      %7652 = vmatmul.mubr.bf16.gmra.mrb[0].mxu0 %v1990
      %v7653 = vpop.f32.mrb[0].mxu0
      %v7654 = vadd.f32 %v7541, %v7653
      %v7655 = vpop.f32.mrb[0].mxu0
      %v7656 = vpop.f32.mrb[0].mxu0
      %v7657 = vadd.f32 %v7544, %v7656
      %v7658 = vpop.f32.mrb[0].mxu0
      %7659 = vmatprep.mubr.bf16.mxu0 0
      %7660 = vmatmul.mubr.bf16.gmra.mrb[0].mxu0 %v2011
      %v7661 = vpop.f32.mrb[0].mxu0
      %v7662 = vadd.f32 %v7549, %v7661
      %v7663 = vpop.f32.mrb[0].mxu0
      %v7664 = vpop.f32.mrb[0].mxu0
      %v7665 = vadd.f32 %v7552, %v7664
      %v7666 = vpop.f32.mrb[0].mxu0
      %7667 = vmatprep.mubr.bf16.mxu0 0
      %7668 = vmatmul.mubr.bf16.gmra.mrb[0].mxu0 %v2032
      %v7669 = vpop.f32.mrb[0].mxu0
      %v7670 = vadd.f32 %v7557, %v7669
      %v7671 = vpop.f32.mrb[0].mxu0
      %v7672 = vpop.f32.mrb[0].mxu0
      %v7673 = vadd.f32 %v7560, %v7672
      %v7674 = vpop.f32.mrb[0].mxu0
      %7675 = vmatprep.mubr.bf16.mxu0 0
      %7676 = vmatmul.mubr.bf16.gmra.mrb[0].mxu0 %v2053
      %v7677 = vpop.f32.mrb[0].mxu0
      %v7678 = vadd.f32 %v7565, %v7677
      %v7679 = vpop.f32.mrb[0].mxu0
      %v7680 = vpop.f32.mrb[0].mxu0
      %v7681 = vadd.f32 %v7568, %v7680
      %v7682 = vpop.f32.mrb[0].mxu0
      %7683 = vmatprep.mubr.bf16.mxu0 0
      %7684 = vmatmul.mubr.bf16.gmra.mrb[0].mxu0 %v2074
      %v7685 = vpop.f32.mrb[0].mxu0
      %v7686 = vadd.f32 %v7573, %v7685
      %v7687 = vpop.f32.mrb[0].mxu0
      %v7688 = vpop.f32.mrb[0].mxu0
      %v7689 = vadd.f32 %v7576, %v7688
      %v7690 = vpop.f32.mrb[0].mxu0
      %7691 = vmatprep.mubr.bf16.mxu0 0
      %7692 = vmatmul.mubr.bf16.gmra.mrb[0].mxu0 %v2095
      %v7693 = vpop.f32.mrb[0].mxu0
      %v7694 = vadd.f32 %v7581, %v7693
      %v7695 = vpop.f32.mrb[0].mxu0
      %v7696 = vpop.f32.mrb[0].mxu0
      %v7697 = vadd.f32 %v7584, %v7696
      %v7698 = vpop.f32.mrb[0].mxu0
      %7699 = vdwg.mxu0
      %v7700 = vmax.f32 %v6359, 0.0
      %v7701 = vmax.f32 %v6361, 0.0
      %v7702 = vmax.f32 %v7622, 0.0
      %v7703 = vmax.f32 %v6363, 0.0
      %v7704 = vmax.f32 %v6365, 0.0
      %v7705 = vmax.f32 %v7625, 0.0
      %v7706 = vmax.f32 %v6369, 0.0
      %v7707 = vmax.f32 %v6371, 0.0
      %v7708 = vmax.f32 %v7630, 0.0
      %v7709 = vmax.f32 %v6373, 0.0
      %v7710 = vmax.f32 %v6375, 0.0
      %v7711 = vmax.f32 %v7633, 0.0
      %v7712 = vmax.f32 %v6379, 0.0
      %v7713 = vmax.f32 %v6381, 0.0
      %v7714 = vmax.f32 %v7638, 0.0
      %v7715 = vmax.f32 %v6383, 0.0
      %v7716 = vmax.f32 %v6385, 0.0
      %v7717 = vmax.f32 %v7641, 0.0
      %v7718 = vmax.f32 %v6389, 0.0
      %v7719 = vmax.f32 %v6391, 0.0
      %v7720 = vmax.f32 %v7646, 0.0
      %v7721 = vmax.f32 %v6393, 0.0
      %v7722 = vmax.f32 %v6395, 0.0
      %v7723 = vmax.f32 %v7649, 0.0
      %v7724 = vmax.f32 %v6399, 0.0
      %v7725 = vmax.f32 %v6401, 0.0
      %v7726 = vmax.f32 %v7654, 0.0
      %v7727 = vmax.f32 %v6403, 0.0
      %v7728 = vmax.f32 %v6405, 0.0
      %v7729 = vmax.f32 %v7657, 0.0
      %v7730 = vmax.f32 %v6409, 0.0
      %v7731 = vmax.f32 %v6411, 0.0
      %v7732 = vmax.f32 %v7662, 0.0
      %v7733 = vmax.f32 %v6413, 0.0
      %v7734 = vmax.f32 %v6415, 0.0
      %v7735 = vmax.f32 %v7665, 0.0
      %v7736 = vmax.f32 %v6419, 0.0
      %v7737 = vmax.f32 %v6421, 0.0
      %v7738 = vmax.f32 %v7670, 0.0
      %v7739 = vmax.f32 %v6423, 0.0
      %v7740 = vmax.f32 %v6425, 0.0
      %v7741 = vmax.f32 %v7673, 0.0
      %v7742 = vmax.f32 %v6429, 0.0
      %v7743 = vmax.f32 %v6431, 0.0
      %v7744 = vmax.f32 %v7678, 0.0
      %v7745 = vmax.f32 %v6433, 0.0
      %v7746 = vmax.f32 %v6435, 0.0
      %v7747 = vmax.f32 %v7681, 0.0
      %v7748 = vmax.f32 %v6439, 0.0
      %v7749 = vmax.f32 %v6441, 0.0
      %v7750 = vmax.f32 %v7686, 0.0
      %v7751 = vmax.f32 %v6443, 0.0
      %v7752 = vmax.f32 %v6445, 0.0
      %v7753 = vmax.f32 %v7689, 0.0
      %v7754 = vmax.f32 %v6449, 0.0
      %v7755 = vmax.f32 %v6451, 0.0
      %v7756 = vmax.f32 %v7694, 0.0
      %v7757 = vmax.f32 %v6453, 0.0
      %v7758 = vmax.f32 %v6455, 0.0
      %v7759 = vmax.f32 %v7697, 0.0
      %v7760 = vpack.c.bf16 %v7703, %v7700
      %v7761 = vpack.c.bf16 %v7704, %v7701
      %v7762 = vpack.c.bf16 %v7705, %v7702
      %v7763 = vpack.c.bf16 %v7709, %v7706
      %v7764 = vpack.c.bf16 %v7710, %v7707
      %v7765 = vpack.c.bf16 %v7711, %v7708
      %v7766 = vpack.c.bf16 %v7715, %v7712
      %v7767 = vpack.c.bf16 %v7716, %v7713
      %v7768 = vpack.c.bf16 %v7717, %v7714
      %v7769 = vpack.c.bf16 %v7721, %v7718
      %v7770 = vpack.c.bf16 %v7722, %v7719
      %v7771 = vpack.c.bf16 %v7723, %v7720
      %v7772 = vpack.c.bf16 %v7727, %v7724
      %v7773 = vpack.c.bf16 %v7728, %v7725
      %v7774 = vpack.c.bf16 %v7729, %v7726
      %v7775 = vpack.c.bf16 %v7733, %v7730
      %v7776 = vpack.c.bf16 %v7734, %v7731
      %v7777 = vpack.c.bf16 %v7735, %v7732
      %v7778 = vpack.c.bf16 %v7739, %v7736
      %v7779 = vpack.c.bf16 %v7740, %v7737
      %v7780 = vpack.c.bf16 %v7741, %v7738
      %v7781 = vpack.c.bf16 %v7745, %v7742
      %v7782 = vpack.c.bf16 %v7746, %v7743
      %v7783 = vpack.c.bf16 %v7747, %v7744
      %v7784 = vpack.c.bf16 %v7751, %v7748
      %v7785 = vpack.c.bf16 %v7752, %v7749
      %v7786 = vpack.c.bf16 %v7753, %v7750
      %v7787 = vpack.c.bf16 %v7757, %v7754
      %v7788 = vpack.c.bf16 %v7758, %v7755
      %v7789 = vpack.c.bf16 %v7759, %v7756
      %v7790 = vld [vmem:[%s3] sm:$0xff]
      %v7791 = vld [vmem:[%s3 + $0x8] sm:$0xf]
      %v7792 = vld [vmem:[%s3 + $0xc] sm:$0xff]
      %v7793 = vld [vmem:[%s3 + $0x14] sm:$0xf]
      %v7794 = vld [vmem:[%s3 + $0x18] sm:$0xff]
      %v7795 = vld [vmem:[%s3 + $0x20] sm:$0xf]
      %v7796 = vld [vmem:[%s3 + $0x24] sm:$0xff]
      %v7797 = vld [vmem:[%s3 + $0x2c] sm:$0xf]
      %v7798 = vld [vmem:[%s3 + $0x30] sm:$0xff]
      %v7799 = vld [vmem:[%s3 + $0x38] sm:$0xf]
      %v7800 = vld [vmem:[%s3 + $0x3c] sm:$0xff]
      %v7801 = vld [vmem:[%s3 + $0x44] sm:$0xf]
      %v7802 = vld [vmem:[%s3 + $0x48] sm:$0xff]
      %v7803 = vld [vmem:[%s3 + $0x50] sm:$0xf]
      %v7804 = vld [vmem:[%s3 + $0x54] sm:$0xff]
      %v7805 = vld [vmem:[%s3 + $0x5c] sm:$0xf]
      %v7806 = vld [vmem:[%s3 + $0x60] sm:$0xff]
      %v7807 = vld [vmem:[%s3 + $0x68] sm:$0xf]
      %v7808 = vld [vmem:[%s3 + $0x6c] sm:$0xff]
      %v7809 = vld [vmem:[%s3 + $0x74] sm:$0xf]
      %v7810 = vld [vmem:[%s3 + $0x78] sm:$0xff]
      %v7811 = vld [vmem:[%s3 + $0x80] sm:$0xf]
      %v7812 = vld [vmem:[%s3 + $0x84] sm:$0xff]
      %v7813 = vld [vmem:[%s3 + $0x8c] sm:$0xf]
      %v7814 = vld [vmem:[%s3 + $0x90] sm:$0xff]
      %v7815 = vld [vmem:[%s3 + $0x98] sm:$0xf]
      %v7816 = vld [vmem:[%s3 + $0x9c] sm:$0xff]
      %v7817 = vld [vmem:[%s3 + $0xa4] sm:$0xf]
      %v7818 = vld [vmem:[%s3 + $0xa8] sm:$0xff]
      %v7819 = vld [vmem:[%s3 + $0xb0] sm:$0xf]
      %v7820 = vld [vmem:[%s3 + $0xb4] sm:$0xff]
      %v7821 = vld [vmem:[%s3 + $0xbc] sm:$0xf]
      %v7822 = vld [vmem:[%s3 + $0xc0] sm:$0xff]
      %v7823 = vld [vmem:[%s3 + $0xc8] sm:$0xf]
      %v7824 = vld [vmem:[%s3 + $0xcc] sm:$0xff]
      %v7825 = vld [vmem:[%s3 + $0xd4] sm:$0xf]
      %v7826 = vld [vmem:[%s3 + $0xd8] sm:$0xff]
      %v7827 = vld [vmem:[%s3 + $0xe0] sm:$0xf]
      %v7828 = vld [vmem:[%s3 + $0xe4] sm:$0xff]
      %v7829 = vld [vmem:[%s3 + $0xec] sm:$0xf]
      %v7830 = vld [vmem:[%s3 + $0xf0] sm:$0xff]
      %v7831 = vld [vmem:[%s3 + $0xf8] sm:$0xf]
      %v7832 = vld [vmem:[%s3 + $0xfc] sm:$0xff]
      %v7833 = vld [vmem:[%s3 + $0x104] sm:$0xf]
      %v7834 = vld [vmem:[%s3 + $0x108] sm:$0xff]
      %v7835 = vld [vmem:[%s3 + $0x110] sm:$0xf]
      %v7836 = vld [vmem:[%s3 + $0x114] sm:$0xff]
      %v7837 = vld [vmem:[%s3 + $0x11c] sm:$0xf]
      %v7838 = vld [vmem:[%s3 + $0x120] sm:$0xff]
      %v7839 = vld [vmem:[%s3 + $0x128] sm:$0xf]
      %v7840 = vld [vmem:[%s3 + $0x12c] sm:$0xff]
      %v7841 = vld [vmem:[%s3 + $0x134] sm:$0xf]
      %v7842 = vld [vmem:[%s3 + $0x138] sm:$0xff]
      %v7843 = vld [vmem:[%s3 + $0x140] sm:$0xf]
      %v7844 = vld [vmem:[%s3 + $0x144] sm:$0xff]
      %v7845 = vld [vmem:[%s3 + $0x14c] sm:$0xf]
      %v7846 = vld [vmem:[%s3 + $0x150] sm:$0xff]
      %v7847 = vld [vmem:[%s3 + $0x158] sm:$0xf]
      %v7848 = vld [vmem:[%s3 + $0x15c] sm:$0xff]
      %v7849 = vld [vmem:[%s3 + $0x164] sm:$0xf]
      %v7850 = vld [vmem:[%s3 + $0x168] sm:$0xff]
      %v7851 = vld [vmem:[%s3 + $0x170] sm:$0xf]
      %v7852 = vld [vmem:[%s3 + $0x174] sm:$0xff]
      %v7853 = vld [vmem:[%s3 + $0x17c] sm:$0xf]
      %v7854 = vld [vmem:[%s3 + $0x180] sm:$0xff]
      %v7855 = vld [vmem:[%s3 + $0x188] sm:$0xf]
      %v7856 = vld [vmem:[%s3 + $0x18c] sm:$0xff]
      %v7857 = vld [vmem:[%s3 + $0x194] sm:$0xf]
      %v7858 = vld [vmem:[%s3 + $0x198] sm:$0xff]
      %v7859 = vld [vmem:[%s3 + $0x1a0] sm:$0xf]
      %v7860 = vld [vmem:[%s3 + $0x1a4] sm:$0xff]
      %v7861 = vld [vmem:[%s3 + $0x1ac] sm:$0xf]
      %v7862 = vld [vmem:[%s3 + $0x1b0] sm:$0xff]
      %v7863 = vld [vmem:[%s3 + $0x1b8] sm:$0xf]
      %v7864 = vld [vmem:[%s3 + $0x1bc] sm:$0xff]
      %v7865 = vld [vmem:[%s3 + $0x1c4] sm:$0xf]
      %v7866 = vld [vmem:[%s3 + $0x1c8] sm:$0xff]
      %v7867 = vld [vmem:[%s3 + $0x1d0] sm:$0xf]
      %v7868 = vld [vmem:[%s3 + $0x1d4] sm:$0xff]
      %v7869 = vld [vmem:[%s3 + $0x1dc] sm:$0xf]
      %s7870 = scalar_lea.vmem %s3, 480
      %v7871 = vld [vmem:[%s7870] sm:$0xff]
      %v7872 = vld [vmem:[%s7870 + $0x8] sm:$0xf]
      %v7873 = vld [vmem:[%s7870 + $0xc] sm:$0xff]
      %v7874 = vld [vmem:[%s7870 + $0x14] sm:$0xf]
      %v7875 = vld [vmem:[%s7870 + $0x18] sm:$0xff]
      %v7876 = vld [vmem:[%s7870 + $0x20] sm:$0xf]
      %v7877 = vld [vmem:[%s7870 + $0x24] sm:$0xff]
      %v7878 = vld [vmem:[%s7870 + $0x2c] sm:$0xf]
      %v7879 = vld [vmem:[%s7870 + $0x30] sm:$0xff]
      %v7880 = vld [vmem:[%s7870 + $0x38] sm:$0xf]
      %v7881 = vld [vmem:[%s7870 + $0x3c] sm:$0xff]
      %v7882 = vld [vmem:[%s7870 + $0x44] sm:$0xf]
      %v7883 = vld [vmem:[%s7870 + $0x48] sm:$0xff]
      %v7884 = vld [vmem:[%s7870 + $0x50] sm:$0xf]
      %v7885 = vld [vmem:[%s7870 + $0x54] sm:$0xff]
      %v7886 = vld [vmem:[%s7870 + $0x5c] sm:$0xf]
      %v7887 = vld [vmem:[%s7870 + $0x60] sm:$0xff]
      %v7888 = vld [vmem:[%s7870 + $0x68] sm:$0xf]
      %v7889 = vld [vmem:[%s7870 + $0x6c] sm:$0xff]
      %v7890 = vld [vmem:[%s7870 + $0x74] sm:$0xf]
      %v7891 = vld [vmem:[%s7870 + $0x78] sm:$0xff]
      %v7892 = vld [vmem:[%s7870 + $0x80] sm:$0xf]
      %v7893 = vld [vmem:[%s7870 + $0x84] sm:$0xff]
      %v7894 = vld [vmem:[%s7870 + $0x8c] sm:$0xf]
      %v7895 = vld [vmem:[%s7870 + $0x90] sm:$0xff]
      %v7896 = vld [vmem:[%s7870 + $0x98] sm:$0xf]
      %v7897 = vld [vmem:[%s7870 + $0x9c] sm:$0xff]
      %v7898 = vld [vmem:[%s7870 + $0xa4] sm:$0xf]
      %v7899 = vld [vmem:[%s7870 + $0xa8] sm:$0xff]
      %v7900 = vld [vmem:[%s7870 + $0xb0] sm:$0xf]
      %v7901 = vld [vmem:[%s7870 + $0xb4] sm:$0xff]
      %v7902 = vld [vmem:[%s7870 + $0xbc] sm:$0xf]
      %v7903 = vld [vmem:[%s7870 + $0xc0] sm:$0xff]
      %v7904 = vld [vmem:[%s7870 + $0xc8] sm:$0xf]
      %v7905 = vld [vmem:[%s7870 + $0xcc] sm:$0xff]
      %v7906 = vld [vmem:[%s7870 + $0xd4] sm:$0xf]
      %v7907 = vld [vmem:[%s7870 + $0xd8] sm:$0xff]
      %v7908 = vld [vmem:[%s7870 + $0xe0] sm:$0xf]
      %v7909 = vld [vmem:[%s7870 + $0xe4] sm:$0xff]
      %v7910 = vld [vmem:[%s7870 + $0xec] sm:$0xf]
      %v7911 = vld [vmem:[%s7870 + $0xf0] sm:$0xff]
      %v7912 = vld [vmem:[%s7870 + $0xf8] sm:$0xf]
      %v7913 = vld [vmem:[%s7870 + $0xfc] sm:$0xff]
      %v7914 = vld [vmem:[%s7870 + $0x104] sm:$0xf]
      %v7915 = vld [vmem:[%s7870 + $0x108] sm:$0xff]
      %v7916 = vld [vmem:[%s7870 + $0x110] sm:$0xf]
      %v7917 = vld [vmem:[%s7870 + $0x114] sm:$0xff]
      %v7918 = vld [vmem:[%s7870 + $0x11c] sm:$0xf]
      %v7919 = vld [vmem:[%s7870 + $0x120] sm:$0xff]
      %v7920 = vld [vmem:[%s7870 + $0x128] sm:$0xf]
      %v7921 = vld [vmem:[%s7870 + $0x12c] sm:$0xff]
      %v7922 = vld [vmem:[%s7870 + $0x134] sm:$0xf]
      %v7923 = vld [vmem:[%s7870 + $0x138] sm:$0xff]
      %v7924 = vld [vmem:[%s7870 + $0x140] sm:$0xf]
      %v7925 = vld [vmem:[%s7870 + $0x144] sm:$0xff]
      %v7926 = vld [vmem:[%s7870 + $0x14c] sm:$0xf]
      %v7927 = vld [vmem:[%s7870 + $0x150] sm:$0xff]
      %v7928 = vld [vmem:[%s7870 + $0x158] sm:$0xf]
      %v7929 = vld [vmem:[%s7870 + $0x15c] sm:$0xff]
      %v7930 = vld [vmem:[%s7870 + $0x164] sm:$0xf]
      %v7931 = vld [vmem:[%s7870 + $0x168] sm:$0xff]
      %v7932 = vld [vmem:[%s7870 + $0x170] sm:$0xf]
      %v7933 = vld [vmem:[%s7870 + $0x174] sm:$0xff]
      %v7934 = vld [vmem:[%s7870 + $0x17c] sm:$0xf]
      %v7935 = vld [vmem:[%s7870 + $0x180] sm:$0xff]
      %v7936 = vld [vmem:[%s7870 + $0x188] sm:$0xf]
      %v7937 = vld [vmem:[%s7870 + $0x18c] sm:$0xff]
      %v7938 = vld [vmem:[%s7870 + $0x194] sm:$0xf]
      %v7939 = vld [vmem:[%s7870 + $0x198] sm:$0xff]
      %v7940 = vld [vmem:[%s7870 + $0x1a0] sm:$0xf]
      %v7941 = vld [vmem:[%s7870 + $0x1a4] sm:$0xff]
      %v7942 = vld [vmem:[%s7870 + $0x1ac] sm:$0xf]
      %v7943 = vld [vmem:[%s7870 + $0x1b0] sm:$0xff]
      %v7944 = vld [vmem:[%s7870 + $0x1b8] sm:$0xf]
      %v7945 = vld [vmem:[%s7870 + $0x1bc] sm:$0xff]
      %v7946 = vld [vmem:[%s7870 + $0x1c4] sm:$0xf]
      %v7947 = vld [vmem:[%s7870 + $0x1c8] sm:$0xff]
      %v7948 = vld [vmem:[%s7870 + $0x1d0] sm:$0xf]
      %v7949 = vld [vmem:[%s7870 + $0x1d4] sm:$0xff]
      %v7950 = vld [vmem:[%s7870 + $0x1dc] sm:$0xf]
      %v8031 = vunpack.c.l.b16 %v7871
      %v8032 = vunpack.c.h.b16 %v7871
      %v8033 = vunpack.c.l.b16 %v7872
      %v8034 = vunpack.c.l.b16 %v7873
      %v8035 = vunpack.c.h.b16 %v7873
      %v8036 = vunpack.c.l.b16 %v7874
      %v8037 = vunpack.c.l.b16 %v7875
      %v8038 = vunpack.c.h.b16 %v7875
      %v8039 = vunpack.c.l.b16 %v7876
      %v8040 = vunpack.c.l.b16 %v7877
      %v8041 = vunpack.c.h.b16 %v7877
      %v8042 = vunpack.c.l.b16 %v7878
      %v8043 = vunpack.c.l.b16 %v7879
      %v8044 = vunpack.c.h.b16 %v7879
      %v8045 = vunpack.c.l.b16 %v7880
      %v8046 = vunpack.c.l.b16 %v7881
      %v8047 = vunpack.c.h.b16 %v7881
      %v8048 = vunpack.c.l.b16 %v7882
      %v8049 = vunpack.c.l.b16 %v7883
      %v8050 = vunpack.c.h.b16 %v7883
      %v8051 = vunpack.c.l.b16 %v7884
      %v8052 = vunpack.c.l.b16 %v7885
      %v8053 = vunpack.c.h.b16 %v7885
      %v8054 = vunpack.c.l.b16 %v7886
      %v8055 = vunpack.c.l.b16 %v7887
      %v8056 = vunpack.c.h.b16 %v7887
      %v8057 = vunpack.c.l.b16 %v7888
      %v8058 = vunpack.c.l.b16 %v7889
      %v8059 = vunpack.c.h.b16 %v7889
      %v8060 = vunpack.c.l.b16 %v7890
      %v8061 = vunpack.c.l.b16 %v7891
      %v8062 = vunpack.c.h.b16 %v7891
      %v8063 = vunpack.c.l.b16 %v7892
      %v8064 = vunpack.c.l.b16 %v7893
      %v8065 = vunpack.c.h.b16 %v7893
      %v8066 = vunpack.c.l.b16 %v7894
      %v8067 = vunpack.c.l.b16 %v7895
      %v8068 = vunpack.c.h.b16 %v7895
      %v8069 = vunpack.c.l.b16 %v7896
      %v8070 = vunpack.c.l.b16 %v7897
      %v8071 = vunpack.c.h.b16 %v7897
      %v8072 = vunpack.c.l.b16 %v7898
      %v8073 = vunpack.c.l.b16 %v7899
      %v8074 = vunpack.c.h.b16 %v7899
      %v8075 = vunpack.c.l.b16 %v7900
      %v8076 = vunpack.c.l.b16 %v7901
      %v8077 = vunpack.c.h.b16 %v7901
      %v8078 = vunpack.c.l.b16 %v7902
      %v8079 = vunpack.c.l.b16 %v7903
      %v8080 = vunpack.c.h.b16 %v7903
      %v8081 = vunpack.c.l.b16 %v7904
      %v8082 = vunpack.c.l.b16 %v7905
      %v8083 = vunpack.c.h.b16 %v7905
      %v8084 = vunpack.c.l.b16 %v7906
      %v8085 = vunpack.c.l.b16 %v7907
      %v8086 = vunpack.c.h.b16 %v7907
      %v8087 = vunpack.c.l.b16 %v7908
      %v8088 = vunpack.c.l.b16 %v7909
      %v8089 = vunpack.c.h.b16 %v7909
      %v8090 = vunpack.c.l.b16 %v7910
      %v8091 = vunpack.c.l.b16 %v7911
      %v8092 = vunpack.c.h.b16 %v7911
      %v8093 = vunpack.c.l.b16 %v7912
      %v8094 = vunpack.c.l.b16 %v7913
      %v8095 = vunpack.c.h.b16 %v7913
      %v8096 = vunpack.c.l.b16 %v7914
      %v8097 = vunpack.c.l.b16 %v7915
      %v8098 = vunpack.c.h.b16 %v7915
      %v8099 = vunpack.c.l.b16 %v7916
      %v8100 = vunpack.c.l.b16 %v7917
      %v8101 = vunpack.c.h.b16 %v7917
      %v8102 = vunpack.c.l.b16 %v7918
      %v8103 = vunpack.c.l.b16 %v7919
      %v8104 = vunpack.c.h.b16 %v7919
      %v8105 = vunpack.c.l.b16 %v7920
      %v8106 = vunpack.c.l.b16 %v7921
      %v8107 = vunpack.c.h.b16 %v7921
      %v8108 = vunpack.c.l.b16 %v7922
      %v8109 = vunpack.c.l.b16 %v7923
      %v8110 = vunpack.c.h.b16 %v7923
      %v8111 = vunpack.c.l.b16 %v7924
      %v8112 = vunpack.c.l.b16 %v7925
      %v8113 = vunpack.c.h.b16 %v7925
      %v8114 = vunpack.c.l.b16 %v7926
      %v8115 = vunpack.c.l.b16 %v7927
      %v8116 = vunpack.c.h.b16 %v7927
      %v8117 = vunpack.c.l.b16 %v7928
      %v8118 = vunpack.c.l.b16 %v7929
      %v8119 = vunpack.c.h.b16 %v7929
      %v8120 = vunpack.c.l.b16 %v7930
      %v8121 = vunpack.c.l.b16 %v7931
      %v8122 = vunpack.c.h.b16 %v7931
      %v8123 = vunpack.c.l.b16 %v7932
      %v8124 = vunpack.c.l.b16 %v7933
      %v8125 = vunpack.c.h.b16 %v7933
      %v8126 = vunpack.c.l.b16 %v7934
      %v8127 = vunpack.c.l.b16 %v7935
      %v8128 = vunpack.c.h.b16 %v7935
      %v8129 = vunpack.c.l.b16 %v7936
      %v8130 = vunpack.c.l.b16 %v7937
      %v8131 = vunpack.c.h.b16 %v7937
      %v8132 = vunpack.c.l.b16 %v7938
      %v8133 = vunpack.c.l.b16 %v7939
      %v8134 = vunpack.c.h.b16 %v7939
      %v8135 = vunpack.c.l.b16 %v7940
      %v8136 = vunpack.c.l.b16 %v7941
      %v8137 = vunpack.c.h.b16 %v7941
      %v8138 = vunpack.c.l.b16 %v7942
      %v8139 = vunpack.c.l.b16 %v7943
      %v8140 = vunpack.c.h.b16 %v7943
      %v8141 = vunpack.c.l.b16 %v7944
      %v8142 = vunpack.c.l.b16 %v7945
      %v8143 = vunpack.c.h.b16 %v7945
      %v8144 = vunpack.c.l.b16 %v7946
      %v8145 = vunpack.c.l.b16 %v7947
      %v8146 = vunpack.c.h.b16 %v7947
      %v8147 = vunpack.c.l.b16 %v7948
      %v8148 = vunpack.c.l.b16 %v7949
      %v8149 = vunpack.c.h.b16 %v7949
      %v8150 = vunpack.c.l.b16 %v7950
      %v8151 = vpack.c.b16 %v8034, %v8031
      %v8152 = vpack.c.b16 %v8035, %v8032
      %v8153 = vpack.c.b16 %v8036, %v8033
      %v8154 = vpack.c.b16 %v8040, %v8037
      %v8155 = vpack.c.b16 %v8041, %v8038
      %v8156 = vpack.c.b16 %v8042, %v8039
      %v8157 = vpack.c.b16 %v8046, %v8043
      %v8158 = vpack.c.b16 %v8047, %v8044
      %v8159 = vpack.c.b16 %v8048, %v8045
      %v8160 = vpack.c.b16 %v8052, %v8049
      %v8161 = vpack.c.b16 %v8053, %v8050
      %v8162 = vpack.c.b16 %v8054, %v8051
      %v8163 = vpack.c.b16 %v8058, %v8055
      %v8164 = vpack.c.b16 %v8059, %v8056
      %v8165 = vpack.c.b16 %v8060, %v8057
      %v8166 = vpack.c.b16 %v8064, %v8061
      %v8167 = vpack.c.b16 %v8065, %v8062
      %v8168 = vpack.c.b16 %v8066, %v8063
      %v8169 = vpack.c.b16 %v8070, %v8067
      %v8170 = vpack.c.b16 %v8071, %v8068
      %v8171 = vpack.c.b16 %v8072, %v8069
      %v8172 = vpack.c.b16 %v8076, %v8073
      %v8173 = vpack.c.b16 %v8077, %v8074
      %v8174 = vpack.c.b16 %v8078, %v8075
      %v8175 = vpack.c.b16 %v8082, %v8079
      %v8176 = vpack.c.b16 %v8083, %v8080
      %v8177 = vpack.c.b16 %v8084, %v8081
      %v8178 = vpack.c.b16 %v8088, %v8085
      %v8179 = vpack.c.b16 %v8089, %v8086
      %v8180 = vpack.c.b16 %v8090, %v8087
      %v8181 = vpack.c.b16 %v8094, %v8091
      %v8182 = vpack.c.b16 %v8095, %v8092
      %v8183 = vpack.c.b16 %v8096, %v8093
      %v8184 = vpack.c.b16 %v8100, %v8097
      %v8185 = vpack.c.b16 %v8101, %v8098
      %v8186 = vpack.c.b16 %v8102, %v8099
      %v8187 = vpack.c.b16 %v8106, %v8103
      %v8188 = vpack.c.b16 %v8107, %v8104
      %v8189 = vpack.c.b16 %v8108, %v8105
      %v8190 = vpack.c.b16 %v8112, %v8109
      %v8191 = vpack.c.b16 %v8113, %v8110
      %v8192 = vpack.c.b16 %v8114, %v8111
      %v8193 = vpack.c.b16 %v8118, %v8115
      %v8194 = vpack.c.b16 %v8119, %v8116
      %v8195 = vpack.c.b16 %v8120, %v8117
      %v8196 = vpack.c.b16 %v8124, %v8121
      %v8197 = vpack.c.b16 %v8125, %v8122
      %v8198 = vpack.c.b16 %v8126, %v8123
      %v8199 = vpack.c.b16 %v8130, %v8127
      %v8200 = vpack.c.b16 %v8131, %v8128
      %v8201 = vpack.c.b16 %v8132, %v8129
      %v8202 = vpack.c.b16 %v8136, %v8133
      %v8203 = vpack.c.b16 %v8137, %v8134
      %v8204 = vpack.c.b16 %v8138, %v8135
      %v8205 = vpack.c.b16 %v8142, %v8139
      %v8206 = vpack.c.b16 %v8143, %v8140
      %v8207 = vpack.c.b16 %v8144, %v8141
      %v8208 = vpack.c.b16 %v8148, %v8145
      %v8209 = vpack.c.b16 %v8149, %v8146
      %v8210 = vpack.c.b16 %v8150, %v8147
      %vm8271 = vcmask 523264
      %v8273 = vsel %vm8271, %v7777, 0
      %v8276 = vsel %vm8271, %v7780, 0
      %v8279 = vsel %vm8271, %v7783, 0
      %v8282 = vsel %vm8271, %v7786, 0
      %v8285 = vsel %vm8271, %v7789, 0
      %8287 = vmatprep.subr.bf16.mxu0 %v8152
      %8288 = vmatpush1.bf16.msra.mxu0 %v8151
      %8289 = vmatprep.subr.bf16.mxu0 %v8155
      %8290 = vmatpush1.bf16.msra.mxu0 %v8154
      %8291 = vmatprep.subr.bf16.mxu0 %v8158
      %8292 = vmatpush1.bf16.msra.mxu0 %v8157
      %8293 = vmatprep.subr.bf16.mxu0 %v8161
      %8294 = vmatpush1.bf16.msra.mxu0 %v8160
      %8295 = vmatprep.subr.bf16.mxu0 %v8164
      %8296 = vmatpush1.bf16.msra.mxu0 %v8163
      %8297 = vmatprep.subr.bf16.mxu0 %v8167
      %8298 = vmatpush1.bf16.msra.mxu0 %v8166
      %8299 = vmatprep.subr.bf16.mxu0 %v8170
      %8300 = vmatpush1.bf16.msra.mxu0 %v8169
      %8301 = vmatprep.subr.bf16.mxu0 %v8173
      %8302 = vmatpush1.bf16.msra.mxu0 %v8172
      %8303 = vmatprep.subr.bf16.mxu0 %v8176
      %8304 = vmatpush1.bf16.msra.mxu0 %v8175
      %8305 = vmatprep.subr.bf16.mxu0 %v8179
      %8306 = vmatpush1.bf16.msra.mxu0 %v8178
      %8307 = vmatprep.subr.bf16.mxu0 %v8182
      %8308 = vmatpush1.bf16.msra.mxu0 %v8181
      %8309 = vmatprep.subr.bf16.mxu0 %v8185
      %8310 = vmatpush1.bf16.msra.mxu0 %v8184
      %8311 = vmatprep.subr.bf16.mxu0 %v8188
      %8312 = vmatpush1.bf16.msra.mxu0 %v8187
      %8313 = vmatprep.subr.bf16.mxu0 %v8191
      %8314 = vmatpush1.bf16.msra.mxu0 %v8190
      %8315 = vmatprep.subr.bf16.mxu0 %v8194
      %8316 = vmatpush1.bf16.msra.mxu0 %v8193
      %8317 = vmatprep.subr.bf16.mxu0 %v8197
      %8318 = vmatpush1.bf16.msra.mxu0 %v8196
      %8319 = vmatprep.mubr.bf16.mxu0 %v7776
      %8320 = vmatmul.mubr.bf16.gmra.mrb[0].mxu0 %v7775
      %v8321 = vpop.f32.mrb[0].mxu0
      %v8322 = vadd.f32 0.0, %v8321
      %v8323 = vpop.f32.mrb[0].mxu0
      %v8324 = vadd.f32 0.0, %v8323
      %v8325 = vpop.f32.mrb[0].mxu0
      %v8326 = vadd.f32 0.0, %v8325
      %v8327 = vpop.f32.mrb[0].mxu0
      %v8328 = vadd.f32 0.0, %v8327
      %8329 = vmatprep.mubr.bf16.mxu0 %v7779
      %8330 = vmatmul.mubr.bf16.gmra.mrb[0].mxu0 %v7778
      %v8331 = vpop.f32.mrb[0].mxu0
      %v8332 = vadd.f32 0.0, %v8331
      %v8333 = vpop.f32.mrb[0].mxu0
      %v8334 = vadd.f32 0.0, %v8333
      %v8335 = vpop.f32.mrb[0].mxu0
      %v8336 = vadd.f32 0.0, %v8335
      %v8337 = vpop.f32.mrb[0].mxu0
      %v8338 = vadd.f32 0.0, %v8337
      %8339 = vmatprep.mubr.bf16.mxu0 %v7782
      %8340 = vmatmul.mubr.bf16.gmra.mrb[0].mxu0 %v7781
      %v8341 = vpop.f32.mrb[0].mxu0
      %v8342 = vadd.f32 0.0, %v8341
      %v8343 = vpop.f32.mrb[0].mxu0
      %v8344 = vadd.f32 0.0, %v8343
      %v8345 = vpop.f32.mrb[0].mxu0
      %v8346 = vadd.f32 0.0, %v8345
      %v8347 = vpop.f32.mrb[0].mxu0
      %v8348 = vadd.f32 0.0, %v8347
      %8349 = vmatprep.mubr.bf16.mxu0 %v7785
      %8350 = vmatmul.mubr.bf16.gmra.mrb[0].mxu0 %v7784
      %v8351 = vpop.f32.mrb[0].mxu0
      %v8352 = vadd.f32 0.0, %v8351
      %v8353 = vpop.f32.mrb[0].mxu0
      %v8354 = vadd.f32 0.0, %v8353
      %v8355 = vpop.f32.mrb[0].mxu0
      %v8356 = vadd.f32 0.0, %v8355
      %v8357 = vpop.f32.mrb[0].mxu0
      %v8358 = vadd.f32 0.0, %v8357
      %8359 = vmatprep.mubr.bf16.mxu0 %v7788
      %8360 = vmatmul.mubr.bf16.gmra.mrb[0].mxu0 %v7787
      %v8361 = vpop.f32.mrb[0].mxu0
      %v8362 = vadd.f32 0.0, %v8361
      %v8363 = vpop.f32.mrb[0].mxu0
      %v8364 = vadd.f32 0.0, %v8363
      %v8365 = vpop.f32.mrb[0].mxu0
      %v8366 = vpop.f32.mrb[0].mxu0
      %8367 = vdwg.mxu0
      %8368 = vmatprep.subr.bf16.mxu0 %v8200
      %8369 = vmatpush1.bf16.msra.mxu0 %v8199
      %8370 = vmatprep.subr.bf16.mxu0 %v8203
      %8371 = vmatpush1.bf16.msra.mxu0 %v8202
      %8372 = vmatprep.subr.bf16.mxu0 %v8206
      %8373 = vmatpush1.bf16.msra.mxu0 %v8205
      %8374 = vmatprep.subr.bf16.mxu0 %v8209
      %8375 = vmatpush1.bf16.msra.mxu0 %v8208
      %8376 = vmatprep.subr.bf16.mxu0 0
      %8377 = vmatpush1.bf16.msra.mxu0 0
      %8378 = vmatprep.subr.bf16.mxu0 0
      %8379 = vmatpush1.bf16.msra.mxu0 0
      %8380 = vmatprep.subr.bf16.mxu0 0
      %8381 = vmatpush1.bf16.msra.mxu0 0
      %8382 = vmatprep.subr.bf16.mxu0 0
      %8383 = vmatpush1.bf16.msra.mxu0 0
      %8384 = vmatprep.subr.bf16.mxu0 0
      %8385 = vmatpush1.bf16.msra.mxu0 0
      %8386 = vmatprep.subr.bf16.mxu0 0
      %8387 = vmatpush1.bf16.msra.mxu0 0
      %8388 = vmatprep.subr.bf16.mxu0 0
      %8389 = vmatpush1.bf16.msra.mxu0 0
      %8390 = vmatprep.subr.bf16.mxu0 0
      %8391 = vmatpush1.bf16.msra.mxu0 0
      %8392 = vmatprep.subr.bf16.mxu0 0
      %8393 = vmatpush1.bf16.msra.mxu0 0
      %8394 = vmatprep.subr.bf16.mxu0 0
      %8395 = vmatpush1.bf16.msra.mxu0 0
      %8396 = vmatprep.subr.bf16.mxu0 0
      %8397 = vmatpush1.bf16.msra.mxu0 0
      %8398 = vmatprep.subr.bf16.mxu0 0
      %8399 = vmatpush1.bf16.msra.mxu0 0
      %8400 = vmatprep.mubr.bf16.mxu0 0
      %8401 = vmatmul.mubr.bf16.gmra.mrb[0].mxu0 %v8273
      %v8402 = vpop.f32.mrb[0].mxu0
      %v8403 = vadd.f32 %v8322, %v8402
      %v8404 = vpop.f32.mrb[0].mxu0
      %v8405 = vadd.f32 %v8324, %v8404
      %v8406 = vpop.f32.mrb[0].mxu0
      %v8407 = vadd.f32 %v8326, %v8406
      %v8408 = vpop.f32.mrb[0].mxu0
      %v8409 = vadd.f32 %v8328, %v8408
      %8410 = vmatprep.mubr.bf16.mxu0 0
      %8411 = vmatmul.mubr.bf16.gmra.mrb[0].mxu0 %v8276
      %v8412 = vpop.f32.mrb[0].mxu0
      %v8413 = vadd.f32 %v8332, %v8412
      %v8414 = vpop.f32.mrb[0].mxu0
      %v8415 = vadd.f32 %v8334, %v8414
      %v8416 = vpop.f32.mrb[0].mxu0
      %v8417 = vadd.f32 %v8336, %v8416
      %v8418 = vpop.f32.mrb[0].mxu0
      %v8419 = vadd.f32 %v8338, %v8418
      %8420 = vmatprep.mubr.bf16.mxu0 0
      %8421 = vmatmul.mubr.bf16.gmra.mrb[0].mxu0 %v8279
      %v8422 = vpop.f32.mrb[0].mxu0
      %v8423 = vadd.f32 %v8342, %v8422
      %v8424 = vpop.f32.mrb[0].mxu0
      %v8425 = vadd.f32 %v8344, %v8424
      %v8426 = vpop.f32.mrb[0].mxu0
      %v8427 = vadd.f32 %v8346, %v8426
      %v8428 = vpop.f32.mrb[0].mxu0
      %v8429 = vadd.f32 %v8348, %v8428
      %8430 = vmatprep.mubr.bf16.mxu0 0
      %8431 = vmatmul.mubr.bf16.gmra.mrb[0].mxu0 %v8282
      %v8432 = vpop.f32.mrb[0].mxu0
      %v8433 = vadd.f32 %v8352, %v8432
      %v8434 = vpop.f32.mrb[0].mxu0
      %v8435 = vadd.f32 %v8354, %v8434
      %v8436 = vpop.f32.mrb[0].mxu0
      %v8437 = vadd.f32 %v8356, %v8436
      %v8438 = vpop.f32.mrb[0].mxu0
      %v8439 = vadd.f32 %v8358, %v8438
      %8440 = vmatprep.mubr.bf16.mxu0 0
      %8441 = vmatmul.mubr.bf16.gmra.mrb[0].mxu0 %v8285
      %v8442 = vpop.f32.mrb[0].mxu0
      %v8443 = vadd.f32 %v8362, %v8442
      %v8444 = vpop.f32.mrb[0].mxu0
      %v8445 = vadd.f32 %v8364, %v8444
      %v8446 = vpop.f32.mrb[0].mxu0
      %v8447 = vpop.f32.mrb[0].mxu0
      %8448 = vdwg.mxu0
      %8449 = vmatprep.subr.bf16.mxu0 0
      %8450 = vmatpush1.bf16.msra.mxu0 %v8153
      %8451 = vmatprep.subr.bf16.mxu0 0
      %8452 = vmatpush1.bf16.msra.mxu0 %v8156
      %8453 = vmatprep.subr.bf16.mxu0 0
      %8454 = vmatpush1.bf16.msra.mxu0 %v8159
      %8455 = vmatprep.subr.bf16.mxu0 0
      %8456 = vmatpush1.bf16.msra.mxu0 %v8162
      %8457 = vmatprep.subr.bf16.mxu0 0
      %8458 = vmatpush1.bf16.msra.mxu0 %v8165
      %8459 = vmatprep.subr.bf16.mxu0 0
      %8460 = vmatpush1.bf16.msra.mxu0 %v8168
      %8461 = vmatprep.subr.bf16.mxu0 0
      %8462 = vmatpush1.bf16.msra.mxu0 %v8171
      %8463 = vmatprep.subr.bf16.mxu0 0
      %8464 = vmatpush1.bf16.msra.mxu0 %v8174
      %8465 = vmatprep.subr.bf16.mxu0 0
      %8466 = vmatpush1.bf16.msra.mxu0 %v8177
      %8467 = vmatprep.subr.bf16.mxu0 0
      %8468 = vmatpush1.bf16.msra.mxu0 %v8180
      %8469 = vmatprep.subr.bf16.mxu0 0
      %8470 = vmatpush1.bf16.msra.mxu0 %v8183
      %8471 = vmatprep.subr.bf16.mxu0 0
      %8472 = vmatpush1.bf16.msra.mxu0 %v8186
      %8473 = vmatprep.subr.bf16.mxu0 0
      %8474 = vmatpush1.bf16.msra.mxu0 %v8189
      %8475 = vmatprep.subr.bf16.mxu0 0
      %8476 = vmatpush1.bf16.msra.mxu0 %v8192
      %8477 = vmatprep.subr.bf16.mxu0 0
      %8478 = vmatpush1.bf16.msra.mxu0 %v8195
      %8479 = vmatprep.subr.bf16.mxu0 0
      %8480 = vmatpush1.bf16.msra.mxu0 %v8198
      %8481 = vmatprep.mubr.bf16.mxu0 %v7776
      %8482 = vmatmul.mubr.bf16.gmra.mrb[0].mxu0 %v7775
      %v8483 = vpop.f32.mrb[0].mxu0
      %v8484 = vadd.f32 0.0, %v8483
      %v8485 = vpop.f32.mrb[0].mxu0
      %v8486 = vpop.f32.mrb[0].mxu0
      %v8487 = vadd.f32 0.0, %v8486
      %v8488 = vpop.f32.mrb[0].mxu0
      %8489 = vmatprep.mubr.bf16.mxu0 %v7779
      %8490 = vmatmul.mubr.bf16.gmra.mrb[0].mxu0 %v7778
      %v8491 = vpop.f32.mrb[0].mxu0
      %v8492 = vadd.f32 0.0, %v8491
      %v8493 = vpop.f32.mrb[0].mxu0
      %v8494 = vpop.f32.mrb[0].mxu0
      %v8495 = vadd.f32 0.0, %v8494
      %v8496 = vpop.f32.mrb[0].mxu0
      %8497 = vmatprep.mubr.bf16.mxu0 %v7782
      %8498 = vmatmul.mubr.bf16.gmra.mrb[0].mxu0 %v7781
      %v8499 = vpop.f32.mrb[0].mxu0
      %v8500 = vadd.f32 0.0, %v8499
      %v8501 = vpop.f32.mrb[0].mxu0
      %v8502 = vpop.f32.mrb[0].mxu0
      %v8503 = vadd.f32 0.0, %v8502
      %v8504 = vpop.f32.mrb[0].mxu0
      %8505 = vmatprep.mubr.bf16.mxu0 %v7785
      %8506 = vmatmul.mubr.bf16.gmra.mrb[0].mxu0 %v7784
      %v8507 = vpop.f32.mrb[0].mxu0
      %v8508 = vadd.f32 0.0, %v8507
      %v8509 = vpop.f32.mrb[0].mxu0
      %v8510 = vpop.f32.mrb[0].mxu0
      %v8511 = vadd.f32 0.0, %v8510
      %v8512 = vpop.f32.mrb[0].mxu0
      %8513 = vmatprep.mubr.bf16.mxu0 %v7788
      %8514 = vmatmul.mubr.bf16.gmra.mrb[0].mxu0 %v7787
      %v8515 = vpop.f32.mrb[0].mxu0
      %v8516 = vadd.f32 0.0, %v8515
      %v8517 = vpop.f32.mrb[0].mxu0
      %v8518 = vpop.f32.mrb[0].mxu0
      %v8519 = vpop.f32.mrb[0].mxu0
      %8520 = vdwg.mxu0
      %8521 = vmatprep.subr.bf16.mxu0 0
      %8522 = vmatpush1.bf16.msra.mxu0 %v8201
      %8523 = vmatprep.subr.bf16.mxu0 0
      %8524 = vmatpush1.bf16.msra.mxu0 %v8204
      %8525 = vmatprep.subr.bf16.mxu0 0
      %8526 = vmatpush1.bf16.msra.mxu0 %v8207
      %8527 = vmatprep.subr.bf16.mxu0 0
      %8528 = vmatpush1.bf16.msra.mxu0 %v8210
      %8529 = vmatprep.subr.bf16.mxu0 0
      %8530 = vmatpush1.bf16.msra.mxu0 0
      %8531 = vmatprep.subr.bf16.mxu0 0
      %8532 = vmatpush1.bf16.msra.mxu0 0
      %8533 = vmatprep.subr.bf16.mxu0 0
      %8534 = vmatpush1.bf16.msra.mxu0 0
      %8535 = vmatprep.subr.bf16.mxu0 0
      %8536 = vmatpush1.bf16.msra.mxu0 0
      %8537 = vmatprep.subr.bf16.mxu0 0
      %8538 = vmatpush1.bf16.msra.mxu0 0
      %8539 = vmatprep.subr.bf16.mxu0 0
      %8540 = vmatpush1.bf16.msra.mxu0 0
      %8541 = vmatprep.subr.bf16.mxu0 0
      %8542 = vmatpush1.bf16.msra.mxu0 0
      %8543 = vmatprep.subr.bf16.mxu0 0
      %8544 = vmatpush1.bf16.msra.mxu0 0
      %8545 = vmatprep.subr.bf16.mxu0 0
      %8546 = vmatpush1.bf16.msra.mxu0 0
      %8547 = vmatprep.subr.bf16.mxu0 0
      %8548 = vmatpush1.bf16.msra.mxu0 0
      %8549 = vmatprep.subr.bf16.mxu0 0
      %8550 = vmatpush1.bf16.msra.mxu0 0
      %8551 = vmatprep.subr.bf16.mxu0 0
      %8552 = vmatpush1.bf16.msra.mxu0 0
      %8553 = vmatprep.mubr.bf16.mxu0 0
      %8554 = vmatmul.mubr.bf16.gmra.mrb[0].mxu0 %v8273
      %v8555 = vpop.f32.mrb[0].mxu0
      %v8556 = vadd.f32 %v8484, %v8555
      %v8557 = vpop.f32.mrb[0].mxu0
      %v8558 = vpop.f32.mrb[0].mxu0
      %v8559 = vadd.f32 %v8487, %v8558
      %v8560 = vpop.f32.mrb[0].mxu0
      %8561 = vmatprep.mubr.bf16.mxu0 0
      %8562 = vmatmul.mubr.bf16.gmra.mrb[0].mxu0 %v8276
      %v8563 = vpop.f32.mrb[0].mxu0
      %v8564 = vadd.f32 %v8492, %v8563
      %v8565 = vpop.f32.mrb[0].mxu0
      %v8566 = vpop.f32.mrb[0].mxu0
      %v8567 = vadd.f32 %v8495, %v8566
      %v8568 = vpop.f32.mrb[0].mxu0
      %8569 = vmatprep.mubr.bf16.mxu0 0
      %8570 = vmatmul.mubr.bf16.gmra.mrb[0].mxu0 %v8279
      %v8571 = vpop.f32.mrb[0].mxu0
      %v8572 = vadd.f32 %v8500, %v8571
      %v8573 = vpop.f32.mrb[0].mxu0
      %v8574 = vpop.f32.mrb[0].mxu0
      %v8575 = vadd.f32 %v8503, %v8574
      %v8576 = vpop.f32.mrb[0].mxu0
      %8577 = vmatprep.mubr.bf16.mxu0 0
      %8578 = vmatmul.mubr.bf16.gmra.mrb[0].mxu0 %v8282
      %v8579 = vpop.f32.mrb[0].mxu0
      %v8580 = vadd.f32 %v8508, %v8579
      %v8581 = vpop.f32.mrb[0].mxu0
      %v8582 = vpop.f32.mrb[0].mxu0
      %v8583 = vadd.f32 %v8511, %v8582
      %v8584 = vpop.f32.mrb[0].mxu0
      %8585 = vmatprep.mubr.bf16.mxu0 0
      %8586 = vmatmul.mubr.bf16.gmra.mrb[0].mxu0 %v8285
      %v8587 = vpop.f32.mrb[0].mxu0
      %v8588 = vadd.f32 %v8516, %v8587
      %v8589 = vpop.f32.mrb[0].mxu0
      %v8590 = vpop.f32.mrb[0].mxu0
      %v8591 = vpop.f32.mrb[0].mxu0
      %8592 = vdwg.mxu0
      %v8673 = vunpack.c.l.b16 %v7790
      %v8674 = vunpack.c.h.b16 %v7790
      %v8675 = vunpack.c.l.b16 %v7791
      %v8676 = vunpack.c.l.b16 %v7792
      %v8677 = vunpack.c.h.b16 %v7792
      %v8678 = vunpack.c.l.b16 %v7793
      %v8679 = vunpack.c.l.b16 %v7794
      %v8680 = vunpack.c.h.b16 %v7794
      %v8681 = vunpack.c.l.b16 %v7795
      %v8682 = vunpack.c.l.b16 %v7796
      %v8683 = vunpack.c.h.b16 %v7796
      %v8684 = vunpack.c.l.b16 %v7797
      %v8685 = vunpack.c.l.b16 %v7798
      %v8686 = vunpack.c.h.b16 %v7798
      %v8687 = vunpack.c.l.b16 %v7799
      %v8688 = vunpack.c.l.b16 %v7800
      %v8689 = vunpack.c.h.b16 %v7800
      %v8690 = vunpack.c.l.b16 %v7801
      %v8691 = vunpack.c.l.b16 %v7802
      %v8692 = vunpack.c.h.b16 %v7802
      %v8693 = vunpack.c.l.b16 %v7803
      %v8694 = vunpack.c.l.b16 %v7804
      %v8695 = vunpack.c.h.b16 %v7804
      %v8696 = vunpack.c.l.b16 %v7805
      %v8697 = vunpack.c.l.b16 %v7806
      %v8698 = vunpack.c.h.b16 %v7806
      %v8699 = vunpack.c.l.b16 %v7807
      %v8700 = vunpack.c.l.b16 %v7808
      %v8701 = vunpack.c.h.b16 %v7808
      %v8702 = vunpack.c.l.b16 %v7809
      %v8703 = vunpack.c.l.b16 %v7810
      %v8704 = vunpack.c.h.b16 %v7810
      %v8705 = vunpack.c.l.b16 %v7811
      %v8706 = vunpack.c.l.b16 %v7812
      %v8707 = vunpack.c.h.b16 %v7812
      %v8708 = vunpack.c.l.b16 %v7813
      %v8709 = vunpack.c.l.b16 %v7814
      %v8710 = vunpack.c.h.b16 %v7814
      %v8711 = vunpack.c.l.b16 %v7815
      %v8712 = vunpack.c.l.b16 %v7816
      %v8713 = vunpack.c.h.b16 %v7816
      %v8714 = vunpack.c.l.b16 %v7817
      %v8715 = vunpack.c.l.b16 %v7818
      %v8716 = vunpack.c.h.b16 %v7818
      %v8717 = vunpack.c.l.b16 %v7819
      %v8718 = vunpack.c.l.b16 %v7820
      %v8719 = vunpack.c.h.b16 %v7820
      %v8720 = vunpack.c.l.b16 %v7821
      %v8721 = vunpack.c.l.b16 %v7822
      %v8722 = vunpack.c.h.b16 %v7822
      %v8723 = vunpack.c.l.b16 %v7823
      %v8724 = vunpack.c.l.b16 %v7824
      %v8725 = vunpack.c.h.b16 %v7824
      %v8726 = vunpack.c.l.b16 %v7825
      %v8727 = vunpack.c.l.b16 %v7826
      %v8728 = vunpack.c.h.b16 %v7826
      %v8729 = vunpack.c.l.b16 %v7827
      %v8730 = vunpack.c.l.b16 %v7828
      %v8731 = vunpack.c.h.b16 %v7828
      %v8732 = vunpack.c.l.b16 %v7829
      %v8733 = vunpack.c.l.b16 %v7830
      %v8734 = vunpack.c.h.b16 %v7830
      %v8735 = vunpack.c.l.b16 %v7831
      %v8736 = vunpack.c.l.b16 %v7832
      %v8737 = vunpack.c.h.b16 %v7832
      %v8738 = vunpack.c.l.b16 %v7833
      %v8739 = vunpack.c.l.b16 %v7834
      %v8740 = vunpack.c.h.b16 %v7834
      %v8741 = vunpack.c.l.b16 %v7835
      %v8742 = vunpack.c.l.b16 %v7836
      %v8743 = vunpack.c.h.b16 %v7836
      %v8744 = vunpack.c.l.b16 %v7837
      %v8745 = vunpack.c.l.b16 %v7838
      %v8746 = vunpack.c.h.b16 %v7838
      %v8747 = vunpack.c.l.b16 %v7839
      %v8748 = vunpack.c.l.b16 %v7840
      %v8749 = vunpack.c.h.b16 %v7840
      %v8750 = vunpack.c.l.b16 %v7841
      %v8751 = vunpack.c.l.b16 %v7842
      %v8752 = vunpack.c.h.b16 %v7842
      %v8753 = vunpack.c.l.b16 %v7843
      %v8754 = vunpack.c.l.b16 %v7844
      %v8755 = vunpack.c.h.b16 %v7844
      %v8756 = vunpack.c.l.b16 %v7845
      %v8757 = vunpack.c.l.b16 %v7846
      %v8758 = vunpack.c.h.b16 %v7846
      %v8759 = vunpack.c.l.b16 %v7847
      %v8760 = vunpack.c.l.b16 %v7848
      %v8761 = vunpack.c.h.b16 %v7848
      %v8762 = vunpack.c.l.b16 %v7849
      %v8763 = vunpack.c.l.b16 %v7850
      %v8764 = vunpack.c.h.b16 %v7850
      %v8765 = vunpack.c.l.b16 %v7851
      %v8766 = vunpack.c.l.b16 %v7852
      %v8767 = vunpack.c.h.b16 %v7852
      %v8768 = vunpack.c.l.b16 %v7853
      %v8769 = vunpack.c.l.b16 %v7854
      %v8770 = vunpack.c.h.b16 %v7854
      %v8771 = vunpack.c.l.b16 %v7855
      %v8772 = vunpack.c.l.b16 %v7856
      %v8773 = vunpack.c.h.b16 %v7856
      %v8774 = vunpack.c.l.b16 %v7857
      %v8775 = vunpack.c.l.b16 %v7858
      %v8776 = vunpack.c.h.b16 %v7858
      %v8777 = vunpack.c.l.b16 %v7859
      %v8778 = vunpack.c.l.b16 %v7860
      %v8779 = vunpack.c.h.b16 %v7860
      %v8780 = vunpack.c.l.b16 %v7861
      %v8781 = vunpack.c.l.b16 %v7862
      %v8782 = vunpack.c.h.b16 %v7862
      %v8783 = vunpack.c.l.b16 %v7863
      %v8784 = vunpack.c.l.b16 %v7864
      %v8785 = vunpack.c.h.b16 %v7864
      %v8786 = vunpack.c.l.b16 %v7865
      %v8787 = vunpack.c.l.b16 %v7866
      %v8788 = vunpack.c.h.b16 %v7866
      %v8789 = vunpack.c.l.b16 %v7867
      %v8790 = vunpack.c.l.b16 %v7868
      %v8791 = vunpack.c.h.b16 %v7868
      %v8792 = vunpack.c.l.b16 %v7869
      %v8793 = vpack.c.b16 %v8676, %v8673
      %v8794 = vpack.c.b16 %v8677, %v8674
      %v8795 = vpack.c.b16 %v8678, %v8675
      %v8796 = vpack.c.b16 %v8682, %v8679
      %v8797 = vpack.c.b16 %v8683, %v8680
      %v8798 = vpack.c.b16 %v8684, %v8681
      %v8799 = vpack.c.b16 %v8688, %v8685
      %v8800 = vpack.c.b16 %v8689, %v8686
      %v8801 = vpack.c.b16 %v8690, %v8687
      %v8802 = vpack.c.b16 %v8694, %v8691
      %v8803 = vpack.c.b16 %v8695, %v8692
      %v8804 = vpack.c.b16 %v8696, %v8693
      %v8805 = vpack.c.b16 %v8700, %v8697
      %v8806 = vpack.c.b16 %v8701, %v8698
      %v8807 = vpack.c.b16 %v8702, %v8699
      %v8808 = vpack.c.b16 %v8706, %v8703
      %v8809 = vpack.c.b16 %v8707, %v8704
      %v8810 = vpack.c.b16 %v8708, %v8705
      %v8811 = vpack.c.b16 %v8712, %v8709
      %v8812 = vpack.c.b16 %v8713, %v8710
      %v8813 = vpack.c.b16 %v8714, %v8711
      %v8814 = vpack.c.b16 %v8718, %v8715
      %v8815 = vpack.c.b16 %v8719, %v8716
      %v8816 = vpack.c.b16 %v8720, %v8717
      %v8817 = vpack.c.b16 %v8724, %v8721
      %v8818 = vpack.c.b16 %v8725, %v8722
      %v8819 = vpack.c.b16 %v8726, %v8723
      %v8820 = vpack.c.b16 %v8730, %v8727
      %v8821 = vpack.c.b16 %v8731, %v8728
      %v8822 = vpack.c.b16 %v8732, %v8729
      %v8823 = vpack.c.b16 %v8736, %v8733
      %v8824 = vpack.c.b16 %v8737, %v8734
      %v8825 = vpack.c.b16 %v8738, %v8735
      %v8826 = vpack.c.b16 %v8742, %v8739
      %v8827 = vpack.c.b16 %v8743, %v8740
      %v8828 = vpack.c.b16 %v8744, %v8741
      %v8829 = vpack.c.b16 %v8748, %v8745
      %v8830 = vpack.c.b16 %v8749, %v8746
      %v8831 = vpack.c.b16 %v8750, %v8747
      %v8832 = vpack.c.b16 %v8754, %v8751
      %v8833 = vpack.c.b16 %v8755, %v8752
      %v8834 = vpack.c.b16 %v8756, %v8753
      %v8835 = vpack.c.b16 %v8760, %v8757
      %v8836 = vpack.c.b16 %v8761, %v8758
      %v8837 = vpack.c.b16 %v8762, %v8759
      %v8838 = vpack.c.b16 %v8766, %v8763
      %v8839 = vpack.c.b16 %v8767, %v8764
      %v8840 = vpack.c.b16 %v8768, %v8765
      %v8841 = vpack.c.b16 %v8772, %v8769
      %v8842 = vpack.c.b16 %v8773, %v8770
      %v8843 = vpack.c.b16 %v8774, %v8771
      %v8844 = vpack.c.b16 %v8778, %v8775
      %v8845 = vpack.c.b16 %v8779, %v8776
      %v8846 = vpack.c.b16 %v8780, %v8777
      %v8847 = vpack.c.b16 %v8784, %v8781
      %v8848 = vpack.c.b16 %v8785, %v8782
      %v8849 = vpack.c.b16 %v8786, %v8783
      %v8850 = vpack.c.b16 %v8790, %v8787
      %v8851 = vpack.c.b16 %v8791, %v8788
      %v8852 = vpack.c.b16 %v8792, %v8789
      %v8914 = vsel %vm8271, %v7762, 0
      %v8917 = vsel %vm8271, %v7765, 0
      %v8920 = vsel %vm8271, %v7768, 0
      %v8923 = vsel %vm8271, %v7771, 0
      %v8926 = vsel %vm8271, %v7774, 0
      %8928 = vmatprep.subr.bf16.mxu0 %v8794
      %8929 = vmatpush1.bf16.msra.mxu0 %v8793
      %8930 = vmatprep.subr.bf16.mxu0 %v8797
      %8931 = vmatpush1.bf16.msra.mxu0 %v8796
      %8932 = vmatprep.subr.bf16.mxu0 %v8800
      %8933 = vmatpush1.bf16.msra.mxu0 %v8799
      %8934 = vmatprep.subr.bf16.mxu0 %v8803
      %8935 = vmatpush1.bf16.msra.mxu0 %v8802
      %8936 = vmatprep.subr.bf16.mxu0 %v8806
      %8937 = vmatpush1.bf16.msra.mxu0 %v8805
      %8938 = vmatprep.subr.bf16.mxu0 %v8809
      %8939 = vmatpush1.bf16.msra.mxu0 %v8808
      %8940 = vmatprep.subr.bf16.mxu0 %v8812
      %8941 = vmatpush1.bf16.msra.mxu0 %v8811
      %8942 = vmatprep.subr.bf16.mxu0 %v8815
      %8943 = vmatpush1.bf16.msra.mxu0 %v8814
      %8944 = vmatprep.subr.bf16.mxu0 %v8818
      %8945 = vmatpush1.bf16.msra.mxu0 %v8817
      %8946 = vmatprep.subr.bf16.mxu0 %v8821
      %8947 = vmatpush1.bf16.msra.mxu0 %v8820
      %8948 = vmatprep.subr.bf16.mxu0 %v8824
      %8949 = vmatpush1.bf16.msra.mxu0 %v8823
      %8950 = vmatprep.subr.bf16.mxu0 %v8827
      %8951 = vmatpush1.bf16.msra.mxu0 %v8826
      %8952 = vmatprep.subr.bf16.mxu0 %v8830
      %8953 = vmatpush1.bf16.msra.mxu0 %v8829
      %8954 = vmatprep.subr.bf16.mxu0 %v8833
      %8955 = vmatpush1.bf16.msra.mxu0 %v8832
      %8956 = vmatprep.subr.bf16.mxu0 %v8836
      %8957 = vmatpush1.bf16.msra.mxu0 %v8835
      %8958 = vmatprep.subr.bf16.mxu0 %v8839
      %8959 = vmatpush1.bf16.msra.mxu0 %v8838
      %8960 = vmatprep.mubr.bf16.mxu0 %v7761
      %8961 = vmatmul.mubr.bf16.gmra.mrb[0].mxu0 %v7760
      %v8962 = vpop.f32.mrb[0].mxu0
      %v8963 = vadd.f32 %v8403, %v8962
      %v8964 = vpop.f32.mrb[0].mxu0
      %v8965 = vadd.f32 %v8405, %v8964
      %v8966 = vpop.f32.mrb[0].mxu0
      %v8967 = vadd.f32 %v8407, %v8966
      %v8968 = vpop.f32.mrb[0].mxu0
      %v8969 = vadd.f32 %v8409, %v8968
      %8970 = vmatprep.mubr.bf16.mxu0 %v7764
      %8971 = vmatmul.mubr.bf16.gmra.mrb[0].mxu0 %v7763
      %v8972 = vpop.f32.mrb[0].mxu0
      %v8973 = vadd.f32 %v8413, %v8972
      %v8974 = vpop.f32.mrb[0].mxu0
      %v8975 = vadd.f32 %v8415, %v8974
      %v8976 = vpop.f32.mrb[0].mxu0
      %v8977 = vadd.f32 %v8417, %v8976
      %v8978 = vpop.f32.mrb[0].mxu0
      %v8979 = vadd.f32 %v8419, %v8978
      %8980 = vmatprep.mubr.bf16.mxu0 %v7767
      %8981 = vmatmul.mubr.bf16.gmra.mrb[0].mxu0 %v7766
      %v8982 = vpop.f32.mrb[0].mxu0
      %v8983 = vadd.f32 %v8423, %v8982
      %v8984 = vpop.f32.mrb[0].mxu0
      %v8985 = vadd.f32 %v8425, %v8984
      %v8986 = vpop.f32.mrb[0].mxu0
      %v8987 = vadd.f32 %v8427, %v8986
      %v8988 = vpop.f32.mrb[0].mxu0
      %v8989 = vadd.f32 %v8429, %v8988
      %8990 = vmatprep.mubr.bf16.mxu0 %v7770
      %8991 = vmatmul.mubr.bf16.gmra.mrb[0].mxu0 %v7769
      %v8992 = vpop.f32.mrb[0].mxu0
      %v8993 = vadd.f32 %v8433, %v8992
      %v8994 = vpop.f32.mrb[0].mxu0
      %v8995 = vadd.f32 %v8435, %v8994
      %v8996 = vpop.f32.mrb[0].mxu0
      %v8997 = vadd.f32 %v8437, %v8996
      %v8998 = vpop.f32.mrb[0].mxu0
      %v8999 = vadd.f32 %v8439, %v8998
      %9000 = vmatprep.mubr.bf16.mxu0 %v7773
      %9001 = vmatmul.mubr.bf16.gmra.mrb[0].mxu0 %v7772
      %v9002 = vpop.f32.mrb[0].mxu0
      %v9003 = vadd.f32 %v8443, %v9002
      %v9004 = vpop.f32.mrb[0].mxu0
      %v9005 = vadd.f32 %v8445, %v9004
      %v9006 = vpop.f32.mrb[0].mxu0
      %v9007 = vpop.f32.mrb[0].mxu0
      %9008 = vdwg.mxu0
      %9009 = vmatprep.subr.bf16.mxu0 %v8842
      %9010 = vmatpush1.bf16.msra.mxu0 %v8841
      %9011 = vmatprep.subr.bf16.mxu0 %v8845
      %9012 = vmatpush1.bf16.msra.mxu0 %v8844
      %9013 = vmatprep.subr.bf16.mxu0 %v8848
      %9014 = vmatpush1.bf16.msra.mxu0 %v8847
      %9015 = vmatprep.subr.bf16.mxu0 %v8851
      %9016 = vmatpush1.bf16.msra.mxu0 %v8850
      %9017 = vmatprep.subr.bf16.mxu0 0
      %9018 = vmatpush1.bf16.msra.mxu0 0
      %9019 = vmatprep.subr.bf16.mxu0 0
      %9020 = vmatpush1.bf16.msra.mxu0 0
      %9021 = vmatprep.subr.bf16.mxu0 0
      %9022 = vmatpush1.bf16.msra.mxu0 0
      %9023 = vmatprep.subr.bf16.mxu0 0
      %9024 = vmatpush1.bf16.msra.mxu0 0
      %9025 = vmatprep.subr.bf16.mxu0 0
      %9026 = vmatpush1.bf16.msra.mxu0 0
      %9027 = vmatprep.subr.bf16.mxu0 0
      %9028 = vmatpush1.bf16.msra.mxu0 0
      %9029 = vmatprep.subr.bf16.mxu0 0
      %9030 = vmatpush1.bf16.msra.mxu0 0
      %9031 = vmatprep.subr.bf16.mxu0 0
      %9032 = vmatpush1.bf16.msra.mxu0 0
      %9033 = vmatprep.subr.bf16.mxu0 0
      %9034 = vmatpush1.bf16.msra.mxu0 0
      %9035 = vmatprep.subr.bf16.mxu0 0
      %9036 = vmatpush1.bf16.msra.mxu0 0
      %9037 = vmatprep.subr.bf16.mxu0 0
      %9038 = vmatpush1.bf16.msra.mxu0 0
      %9039 = vmatprep.subr.bf16.mxu0 0
      %9040 = vmatpush1.bf16.msra.mxu0 0
      %9041 = vmatprep.mubr.bf16.mxu0 0
      %9042 = vmatmul.mubr.bf16.gmra.mrb[0].mxu0 %v8914
      %v9043 = vpop.f32.mrb[0].mxu0
      %v9044 = vadd.f32 %v8963, %v9043
      %v9045 = vpop.f32.mrb[0].mxu0
      %v9046 = vadd.f32 %v8965, %v9045
      %v9047 = vpop.f32.mrb[0].mxu0
      %v9048 = vadd.f32 %v8967, %v9047
      %v9049 = vpop.f32.mrb[0].mxu0
      %v9050 = vadd.f32 %v8969, %v9049
      %9051 = vmatprep.mubr.bf16.mxu0 0
      %9052 = vmatmul.mubr.bf16.gmra.mrb[0].mxu0 %v8917
      %v9053 = vpop.f32.mrb[0].mxu0
      %v9054 = vadd.f32 %v8973, %v9053
      %v9055 = vpop.f32.mrb[0].mxu0
      %v9056 = vadd.f32 %v8975, %v9055
      %v9057 = vpop.f32.mrb[0].mxu0
      %v9058 = vadd.f32 %v8977, %v9057
      %v9059 = vpop.f32.mrb[0].mxu0
      %v9060 = vadd.f32 %v8979, %v9059
      %9061 = vmatprep.mubr.bf16.mxu0 0
      %9062 = vmatmul.mubr.bf16.gmra.mrb[0].mxu0 %v8920
      %v9063 = vpop.f32.mrb[0].mxu0
      %v9064 = vadd.f32 %v8983, %v9063
      %v9065 = vpop.f32.mrb[0].mxu0
      %v9066 = vadd.f32 %v8985, %v9065
      %v9067 = vpop.f32.mrb[0].mxu0
      %v9068 = vadd.f32 %v8987, %v9067
      %v9069 = vpop.f32.mrb[0].mxu0
      %v9070 = vadd.f32 %v8989, %v9069
      %9071 = vmatprep.mubr.bf16.mxu0 0
      %9072 = vmatmul.mubr.bf16.gmra.mrb[0].mxu0 %v8923
      %v9073 = vpop.f32.mrb[0].mxu0
      %v9074 = vadd.f32 %v8993, %v9073
      %v9075 = vpop.f32.mrb[0].mxu0
      %v9076 = vadd.f32 %v8995, %v9075
      %v9077 = vpop.f32.mrb[0].mxu0
      %v9078 = vadd.f32 %v8997, %v9077
      %v9079 = vpop.f32.mrb[0].mxu0
      %v9080 = vadd.f32 %v8999, %v9079
      %9081 = vmatprep.mubr.bf16.mxu0 0
      %9082 = vmatmul.mubr.bf16.gmra.mrb[0].mxu0 %v8926
      %v9083 = vpop.f32.mrb[0].mxu0
      %v9084 = vadd.f32 %v9003, %v9083
      %v9085 = vpop.f32.mrb[0].mxu0
      %v9086 = vadd.f32 %v9005, %v9085
      %v9087 = vpop.f32.mrb[0].mxu0
      %v9088 = vpop.f32.mrb[0].mxu0
      %9089 = vdwg.mxu0
      %9090 = vmatprep.subr.bf16.mxu0 0
      %9091 = vmatpush1.bf16.msra.mxu0 %v8795
      %9092 = vmatprep.subr.bf16.mxu0 0
      %9093 = vmatpush1.bf16.msra.mxu0 %v8798
      %9094 = vmatprep.subr.bf16.mxu0 0
      %9095 = vmatpush1.bf16.msra.mxu0 %v8801
      %9096 = vmatprep.subr.bf16.mxu0 0
      %9097 = vmatpush1.bf16.msra.mxu0 %v8804
      %9098 = vmatprep.subr.bf16.mxu0 0
      %9099 = vmatpush1.bf16.msra.mxu0 %v8807
      %9100 = vmatprep.subr.bf16.mxu0 0
      %9101 = vmatpush1.bf16.msra.mxu0 %v8810
      %9102 = vmatprep.subr.bf16.mxu0 0
      %9103 = vmatpush1.bf16.msra.mxu0 %v8813
      %9104 = vmatprep.subr.bf16.mxu0 0
      %9105 = vmatpush1.bf16.msra.mxu0 %v8816
      %9106 = vmatprep.subr.bf16.mxu0 0
      %9107 = vmatpush1.bf16.msra.mxu0 %v8819
      %9108 = vmatprep.subr.bf16.mxu0 0
      %9109 = vmatpush1.bf16.msra.mxu0 %v8822
      %9110 = vmatprep.subr.bf16.mxu0 0
      %9111 = vmatpush1.bf16.msra.mxu0 %v8825
      %9112 = vmatprep.subr.bf16.mxu0 0
      %9113 = vmatpush1.bf16.msra.mxu0 %v8828
      %9114 = vmatprep.subr.bf16.mxu0 0
      %9115 = vmatpush1.bf16.msra.mxu0 %v8831
      %9116 = vmatprep.subr.bf16.mxu0 0
      %9117 = vmatpush1.bf16.msra.mxu0 %v8834
      %9118 = vmatprep.subr.bf16.mxu0 0
      %9119 = vmatpush1.bf16.msra.mxu0 %v8837
      %9120 = vmatprep.subr.bf16.mxu0 0
      %9121 = vmatpush1.bf16.msra.mxu0 %v8840
      %9122 = vmatprep.mubr.bf16.mxu0 %v7761
      %9123 = vmatmul.mubr.bf16.gmra.mrb[0].mxu0 %v7760
      %v9124 = vpop.f32.mrb[0].mxu0
      %v9125 = vadd.f32 %v8556, %v9124
      %v9126 = vpop.f32.mrb[0].mxu0
      %v9127 = vpop.f32.mrb[0].mxu0
      %v9128 = vadd.f32 %v8559, %v9127
      %v9129 = vpop.f32.mrb[0].mxu0
      %9130 = vmatprep.mubr.bf16.mxu0 %v7764
      %9131 = vmatmul.mubr.bf16.gmra.mrb[0].mxu0 %v7763
      %v9132 = vpop.f32.mrb[0].mxu0
      %v9133 = vadd.f32 %v8564, %v9132
      %v9134 = vpop.f32.mrb[0].mxu0
      %v9135 = vpop.f32.mrb[0].mxu0
      %v9136 = vadd.f32 %v8567, %v9135
      %v9137 = vpop.f32.mrb[0].mxu0
      %9138 = vmatprep.mubr.bf16.mxu0 %v7767
      %9139 = vmatmul.mubr.bf16.gmra.mrb[0].mxu0 %v7766
      %v9140 = vpop.f32.mrb[0].mxu0
      %v9141 = vadd.f32 %v8572, %v9140
      %v9142 = vpop.f32.mrb[0].mxu0
      %v9143 = vpop.f32.mrb[0].mxu0
      %v9144 = vadd.f32 %v8575, %v9143
      %v9145 = vpop.f32.mrb[0].mxu0
      %9146 = vmatprep.mubr.bf16.mxu0 %v7770
      %9147 = vmatmul.mubr.bf16.gmra.mrb[0].mxu0 %v7769
      %v9148 = vpop.f32.mrb[0].mxu0
      %v9149 = vadd.f32 %v8580, %v9148
      %v9150 = vpop.f32.mrb[0].mxu0
      %v9151 = vpop.f32.mrb[0].mxu0
      %v9152 = vadd.f32 %v8583, %v9151
      %v9153 = vpop.f32.mrb[0].mxu0
      %9154 = vmatprep.mubr.bf16.mxu0 %v7773
      %9155 = vmatmul.mubr.bf16.gmra.mrb[0].mxu0 %v7772
      %v9156 = vpop.f32.mrb[0].mxu0
      %v9157 = vadd.f32 %v8588, %v9156
      %v9158 = vpop.f32.mrb[0].mxu0
      %v9159 = vpop.f32.mrb[0].mxu0
      %v9160 = vpop.f32.mrb[0].mxu0
      %9161 = vdwg.mxu0
      %9162 = vmatprep.subr.bf16.mxu0 0
      %9163 = vmatpush1.bf16.msra.mxu0 %v8843
      %9164 = vmatprep.subr.bf16.mxu0 0
      %9165 = vmatpush1.bf16.msra.mxu0 %v8846
      %9166 = vmatprep.subr.bf16.mxu0 0
      %9167 = vmatpush1.bf16.msra.mxu0 %v8849
      %9168 = vmatprep.subr.bf16.mxu0 0
      %9169 = vmatpush1.bf16.msra.mxu0 %v8852
      %9170 = vmatprep.subr.bf16.mxu0 0
      %9171 = vmatpush1.bf16.msra.mxu0 0
      %9172 = vmatprep.subr.bf16.mxu0 0
      %9173 = vmatpush1.bf16.msra.mxu0 0
      %9174 = vmatprep.subr.bf16.mxu0 0
      %9175 = vmatpush1.bf16.msra.mxu0 0
      %9176 = vmatprep.subr.bf16.mxu0 0
      %9177 = vmatpush1.bf16.msra.mxu0 0
      %9178 = vmatprep.subr.bf16.mxu0 0
      %9179 = vmatpush1.bf16.msra.mxu0 0
      %9180 = vmatprep.subr.bf16.mxu0 0
      %9181 = vmatpush1.bf16.msra.mxu0 0
      %9182 = vmatprep.subr.bf16.mxu0 0
      %9183 = vmatpush1.bf16.msra.mxu0 0
      %9184 = vmatprep.subr.bf16.mxu0 0
      %9185 = vmatpush1.bf16.msra.mxu0 0
      %9186 = vmatprep.subr.bf16.mxu0 0
      %9187 = vmatpush1.bf16.msra.mxu0 0
      %9188 = vmatprep.subr.bf16.mxu0 0
      %9189 = vmatpush1.bf16.msra.mxu0 0
      %9190 = vmatprep.subr.bf16.mxu0 0
      %9191 = vmatpush1.bf16.msra.mxu0 0
      %9192 = vmatprep.subr.bf16.mxu0 0
      %9193 = vmatpush1.bf16.msra.mxu0 0
      %9194 = vmatprep.mubr.bf16.mxu0 0
      %9195 = vmatmul.mubr.bf16.gmra.mrb[0].mxu0 %v8914
      %v9196 = vpop.f32.mrb[0].mxu0
      %v9197 = vadd.f32 %v9125, %v9196
      %v9198 = vpop.f32.mrb[0].mxu0
      %v9199 = vpop.f32.mrb[0].mxu0
      %v9200 = vadd.f32 %v9128, %v9199
      %v9201 = vpop.f32.mrb[0].mxu0
      %9202 = vmatprep.mubr.bf16.mxu0 0
      %9203 = vmatmul.mubr.bf16.gmra.mrb[0].mxu0 %v8917
      %v9204 = vpop.f32.mrb[0].mxu0
      %v9205 = vadd.f32 %v9133, %v9204
      %v9206 = vpop.f32.mrb[0].mxu0
      %v9207 = vpop.f32.mrb[0].mxu0
      %v9208 = vadd.f32 %v9136, %v9207
      %v9209 = vpop.f32.mrb[0].mxu0
      %9210 = vmatprep.mubr.bf16.mxu0 0
      %9211 = vmatmul.mubr.bf16.gmra.mrb[0].mxu0 %v8920
      %v9212 = vpop.f32.mrb[0].mxu0
      %v9213 = vadd.f32 %v9141, %v9212
      %v9214 = vpop.f32.mrb[0].mxu0
      %v9215 = vpop.f32.mrb[0].mxu0
      %v9216 = vadd.f32 %v9144, %v9215
      %v9217 = vpop.f32.mrb[0].mxu0
      %9218 = vmatprep.mubr.bf16.mxu0 0
      %9219 = vmatmul.mubr.bf16.gmra.mrb[0].mxu0 %v8923
      %v9220 = vpop.f32.mrb[0].mxu0
      %v9221 = vadd.f32 %v9149, %v9220
      %v9222 = vpop.f32.mrb[0].mxu0
      %v9223 = vpop.f32.mrb[0].mxu0
      %v9224 = vadd.f32 %v9152, %v9223
      %v9225 = vpop.f32.mrb[0].mxu0
      %9226 = vmatprep.mubr.bf16.mxu0 0
      %9227 = vmatmul.mubr.bf16.gmra.mrb[0].mxu0 %v8926
      %v9228 = vpop.f32.mrb[0].mxu0
      %v9229 = vadd.f32 %v9157, %v9228
      %v9230 = vpop.f32.mrb[0].mxu0
      %v9231 = vpop.f32.mrb[0].mxu0
      %v9232 = vpop.f32.mrb[0].mxu0
      %9233 = vdwg.mxu0
      %s9234 = scalar_lea.vmem %s3, 960
      %v9235 = vld [vmem:[%s9234] sm:$0xff]
      %v9236 = vld [vmem:[%s9234 + $0x8] sm:$0xf]
      %v9237 = vld [vmem:[%s9234 + $0xc] sm:$0xff]
      %v9238 = vld [vmem:[%s9234 + $0x14] sm:$0xf]
      %v9239 = vld [vmem:[%s9234 + $0x18] sm:$0xff]
      %v9240 = vld [vmem:[%s9234 + $0x20] sm:$0xf]
      %v9241 = vld [vmem:[%s9234 + $0x24] sm:$0xff]
      %v9242 = vld [vmem:[%s9234 + $0x2c] sm:$0xf]
      %v9243 = vld [vmem:[%s9234 + $0x30] sm:$0xff]
      %v9244 = vld [vmem:[%s9234 + $0x38] sm:$0xf]
      %v9245 = vld [vmem:[%s9234 + $0x3c] sm:$0xff]
      %v9246 = vld [vmem:[%s9234 + $0x44] sm:$0xf]
      %v9247 = vld [vmem:[%s9234 + $0x48] sm:$0xff]
      %v9248 = vld [vmem:[%s9234 + $0x50] sm:$0xf]
      %v9249 = vld [vmem:[%s9234 + $0x54] sm:$0xff]
      %v9250 = vld [vmem:[%s9234 + $0x5c] sm:$0xf]
      %v9251 = vld [vmem:[%s9234 + $0x60] sm:$0xff]
      %v9252 = vld [vmem:[%s9234 + $0x68] sm:$0xf]
      %v9253 = vld [vmem:[%s9234 + $0x6c] sm:$0xff]
      %v9254 = vld [vmem:[%s9234 + $0x74] sm:$0xf]
      %v9255 = vld [vmem:[%s9234 + $0x78] sm:$0xff]
      %v9256 = vld [vmem:[%s9234 + $0x80] sm:$0xf]
      %v9257 = vld [vmem:[%s9234 + $0x84] sm:$0xff]
      %v9258 = vld [vmem:[%s9234 + $0x8c] sm:$0xf]
      %v9259 = vld [vmem:[%s9234 + $0x90] sm:$0xff]
      %v9260 = vld [vmem:[%s9234 + $0x98] sm:$0xf]
      %v9261 = vld [vmem:[%s9234 + $0x9c] sm:$0xff]
      %v9262 = vld [vmem:[%s9234 + $0xa4] sm:$0xf]
      %v9263 = vld [vmem:[%s9234 + $0xa8] sm:$0xff]
      %v9264 = vld [vmem:[%s9234 + $0xb0] sm:$0xf]
      %v9265 = vld [vmem:[%s9234 + $0xb4] sm:$0xff]
      %v9266 = vld [vmem:[%s9234 + $0xbc] sm:$0xf]
      %v9267 = vld [vmem:[%s9234 + $0xc0] sm:$0xff]
      %v9268 = vld [vmem:[%s9234 + $0xc8] sm:$0xf]
      %v9269 = vld [vmem:[%s9234 + $0xcc] sm:$0xff]
      %v9270 = vld [vmem:[%s9234 + $0xd4] sm:$0xf]
      %v9271 = vld [vmem:[%s9234 + $0xd8] sm:$0xff]
      %v9272 = vld [vmem:[%s9234 + $0xe0] sm:$0xf]
      %v9273 = vld [vmem:[%s9234 + $0xe4] sm:$0xff]
      %v9274 = vld [vmem:[%s9234 + $0xec] sm:$0xf]
      %v9275 = vld [vmem:[%s9234 + $0xf0] sm:$0xff]
      %v9276 = vld [vmem:[%s9234 + $0xf8] sm:$0xf]
      %v9277 = vld [vmem:[%s9234 + $0xfc] sm:$0xff]
      %v9278 = vld [vmem:[%s9234 + $0x104] sm:$0xf]
      %v9279 = vld [vmem:[%s9234 + $0x108] sm:$0xff]
      %v9280 = vld [vmem:[%s9234 + $0x110] sm:$0xf]
      %v9281 = vld [vmem:[%s9234 + $0x114] sm:$0xff]
      %v9282 = vld [vmem:[%s9234 + $0x11c] sm:$0xf]
      %v9283 = vld [vmem:[%s9234 + $0x120] sm:$0xff]
      %v9284 = vld [vmem:[%s9234 + $0x128] sm:$0xf]
      %v9285 = vld [vmem:[%s9234 + $0x12c] sm:$0xff]
      %v9286 = vld [vmem:[%s9234 + $0x134] sm:$0xf]
      %v9287 = vld [vmem:[%s9234 + $0x138] sm:$0xff]
      %v9288 = vld [vmem:[%s9234 + $0x140] sm:$0xf]
      %v9289 = vld [vmem:[%s9234 + $0x144] sm:$0xff]
      %v9290 = vld [vmem:[%s9234 + $0x14c] sm:$0xf]
      %v9291 = vld [vmem:[%s9234 + $0x150] sm:$0xff]
      %v9292 = vld [vmem:[%s9234 + $0x158] sm:$0xf]
      %v9293 = vld [vmem:[%s9234 + $0x15c] sm:$0xff]
      %v9294 = vld [vmem:[%s9234 + $0x164] sm:$0xf]
      %v9295 = vld [vmem:[%s9234 + $0x168] sm:$0xff]
      %v9296 = vld [vmem:[%s9234 + $0x170] sm:$0xf]
      %v9297 = vld [vmem:[%s9234 + $0x174] sm:$0xff]
      %v9298 = vld [vmem:[%s9234 + $0x17c] sm:$0xf]
      %v9299 = vld [vmem:[%s9234 + $0x180] sm:$0xff]
      %v9300 = vld [vmem:[%s9234 + $0x188] sm:$0xf]
      %v9301 = vld [vmem:[%s9234 + $0x18c] sm:$0xff]
      %v9302 = vld [vmem:[%s9234 + $0x194] sm:$0xf]
      %v9303 = vld [vmem:[%s9234 + $0x198] sm:$0xff]
      %v9304 = vld [vmem:[%s9234 + $0x1a0] sm:$0xf]
      %v9305 = vld [vmem:[%s9234 + $0x1a4] sm:$0xff]
      %v9306 = vld [vmem:[%s9234 + $0x1ac] sm:$0xf]
      %v9307 = vld [vmem:[%s9234 + $0x1b0] sm:$0xff]
      %v9308 = vld [vmem:[%s9234 + $0x1b8] sm:$0xf]
      %v9309 = vld [vmem:[%s9234 + $0x1bc] sm:$0xff]
      %v9310 = vld [vmem:[%s9234 + $0x1c4] sm:$0xf]
      %v9311 = vld [vmem:[%s9234 + $0x1c8] sm:$0xff]
      %v9312 = vld [vmem:[%s9234 + $0x1d0] sm:$0xf]
      %v9313 = vld [vmem:[%s9234 + $0x1d4] sm:$0xff]
      %v9314 = vld [vmem:[%s9234 + $0x1dc] sm:$0xf]
      %vm9330 = vcmask 1043456
      %v9331 = vrot.slane %v7760, 4
      %v9332 = vrot.slane %v7763, 4
      %v9333 = vsel %vm9330, %v9331, %v9332
      %v9334 = vrot.slane %v7761, 4
      %v9335 = vrot.slane %v7764, 4
      %v9336 = vsel %vm9330, %v9334, %v9335
      %v9337 = vrot.slane %v7762, 4
      %v9338 = vrot.slane %v7765, 4
      %v9339 = vsel %vm9330, %v9337, %v9338
      %v9340 = vrot.slane %v7766, 4
      %v9341 = vsel %vm9330, %v9332, %v9340
      %v9342 = vrot.slane %v7767, 4
      %v9343 = vsel %vm9330, %v9335, %v9342
      %v9344 = vrot.slane %v7768, 4
      %v9345 = vsel %vm9330, %v9338, %v9344
      %v9346 = vrot.slane %v7769, 4
      %v9347 = vsel %vm9330, %v9340, %v9346
      %v9348 = vrot.slane %v7770, 4
      %v9349 = vsel %vm9330, %v9342, %v9348
      %v9350 = vrot.slane %v7771, 4
      %v9351 = vsel %vm9330, %v9344, %v9350
      %v9352 = vrot.slane %v7772, 4
      %v9353 = vsel %vm9330, %v9346, %v9352
      %v9354 = vrot.slane %v7773, 4
      %v9355 = vsel %vm9330, %v9348, %v9354
      %v9356 = vrot.slane %v7774, 4
      %v9357 = vsel %vm9330, %v9350, %v9356
      %v9448 = vunpack.c.l.b16 %v9235
      %v9449 = vunpack.c.h.b16 %v9235
      %v9450 = vunpack.c.l.b16 %v9236
      %v9451 = vunpack.c.l.b16 %v9237
      %v9452 = vunpack.c.h.b16 %v9237
      %v9453 = vunpack.c.l.b16 %v9238
      %v9454 = vunpack.c.l.b16 %v9239
      %v9455 = vunpack.c.h.b16 %v9239
      %v9456 = vunpack.c.l.b16 %v9240
      %v9457 = vunpack.c.l.b16 %v9241
      %v9458 = vunpack.c.h.b16 %v9241
      %v9459 = vunpack.c.l.b16 %v9242
      %v9460 = vunpack.c.l.b16 %v9243
      %v9461 = vunpack.c.h.b16 %v9243
      %v9462 = vunpack.c.l.b16 %v9244
      %v9463 = vunpack.c.l.b16 %v9245
      %v9464 = vunpack.c.h.b16 %v9245
      %v9465 = vunpack.c.l.b16 %v9246
      %v9466 = vunpack.c.l.b16 %v9247
      %v9467 = vunpack.c.h.b16 %v9247
      %v9468 = vunpack.c.l.b16 %v9248
      %v9469 = vunpack.c.l.b16 %v9249
      %v9470 = vunpack.c.h.b16 %v9249
      %v9471 = vunpack.c.l.b16 %v9250
      %v9472 = vunpack.c.l.b16 %v9251
      %v9473 = vunpack.c.h.b16 %v9251
      %v9474 = vunpack.c.l.b16 %v9252
      %v9475 = vunpack.c.l.b16 %v9253
      %v9476 = vunpack.c.h.b16 %v9253
      %v9477 = vunpack.c.l.b16 %v9254
      %v9478 = vunpack.c.l.b16 %v9255
      %v9479 = vunpack.c.h.b16 %v9255
      %v9480 = vunpack.c.l.b16 %v9256
      %v9481 = vunpack.c.l.b16 %v9257
      %v9482 = vunpack.c.h.b16 %v9257
      %v9483 = vunpack.c.l.b16 %v9258
      %v9484 = vunpack.c.l.b16 %v9259
      %v9485 = vunpack.c.h.b16 %v9259
      %v9486 = vunpack.c.l.b16 %v9260
      %v9487 = vunpack.c.l.b16 %v9261
      %v9488 = vunpack.c.h.b16 %v9261
      %v9489 = vunpack.c.l.b16 %v9262
      %v9490 = vunpack.c.l.b16 %v9263
      %v9491 = vunpack.c.h.b16 %v9263
      %v9492 = vunpack.c.l.b16 %v9264
      %v9493 = vunpack.c.l.b16 %v9265
      %v9494 = vunpack.c.h.b16 %v9265
      %v9495 = vunpack.c.l.b16 %v9266
      %v9496 = vunpack.c.l.b16 %v9267
      %v9497 = vunpack.c.h.b16 %v9267
      %v9498 = vunpack.c.l.b16 %v9268
      %v9499 = vunpack.c.l.b16 %v9269
      %v9500 = vunpack.c.h.b16 %v9269
      %v9501 = vunpack.c.l.b16 %v9270
      %v9502 = vunpack.c.l.b16 %v9271
      %v9503 = vunpack.c.h.b16 %v9271
      %v9504 = vunpack.c.l.b16 %v9272
      %v9505 = vunpack.c.l.b16 %v9273
      %v9506 = vunpack.c.h.b16 %v9273
      %v9507 = vunpack.c.l.b16 %v9274
      %v9508 = vunpack.c.l.b16 %v9275
      %v9509 = vunpack.c.h.b16 %v9275
      %v9510 = vunpack.c.l.b16 %v9276
      %v9511 = vunpack.c.l.b16 %v9277
      %v9512 = vunpack.c.h.b16 %v9277
      %v9513 = vunpack.c.l.b16 %v9278
      %v9514 = vunpack.c.l.b16 %v9279
      %v9515 = vunpack.c.h.b16 %v9279
      %v9516 = vunpack.c.l.b16 %v9280
      %v9517 = vunpack.c.l.b16 %v9281
      %v9518 = vunpack.c.h.b16 %v9281
      %v9519 = vunpack.c.l.b16 %v9282
      %v9520 = vunpack.c.l.b16 %v9283
      %v9521 = vunpack.c.h.b16 %v9283
      %v9522 = vunpack.c.l.b16 %v9284
      %v9523 = vunpack.c.l.b16 %v9285
      %v9524 = vunpack.c.h.b16 %v9285
      %v9525 = vunpack.c.l.b16 %v9286
      %v9526 = vunpack.c.l.b16 %v9287
      %v9527 = vunpack.c.h.b16 %v9287
      %v9528 = vunpack.c.l.b16 %v9288
      %v9529 = vunpack.c.l.b16 %v9289
      %v9530 = vunpack.c.h.b16 %v9289
      %v9531 = vunpack.c.l.b16 %v9290
      %v9532 = vunpack.c.l.b16 %v9291
      %v9533 = vunpack.c.h.b16 %v9291
      %v9534 = vunpack.c.l.b16 %v9292
      %v9535 = vunpack.c.l.b16 %v9293
      %v9536 = vunpack.c.h.b16 %v9293
      %v9537 = vunpack.c.l.b16 %v9294
      %v9538 = vunpack.c.l.b16 %v9295
      %v9539 = vunpack.c.h.b16 %v9295
      %v9540 = vunpack.c.l.b16 %v9296
      %v9541 = vunpack.c.l.b16 %v9297
      %v9542 = vunpack.c.h.b16 %v9297
      %v9543 = vunpack.c.l.b16 %v9298
      %v9544 = vunpack.c.l.b16 %v9299
      %v9545 = vunpack.c.h.b16 %v9299
      %v9546 = vunpack.c.l.b16 %v9300
      %v9547 = vunpack.c.l.b16 %v9301
      %v9548 = vunpack.c.h.b16 %v9301
      %v9549 = vunpack.c.l.b16 %v9302
      %v9550 = vunpack.c.l.b16 %v9303
      %v9551 = vunpack.c.h.b16 %v9303
      %v9552 = vunpack.c.l.b16 %v9304
      %v9553 = vunpack.c.l.b16 %v9305
      %v9554 = vunpack.c.h.b16 %v9305
      %v9555 = vunpack.c.l.b16 %v9306
      %v9556 = vunpack.c.l.b16 %v9307
      %v9557 = vunpack.c.h.b16 %v9307
      %v9558 = vunpack.c.l.b16 %v9308
      %v9559 = vunpack.c.l.b16 %v9309
      %v9560 = vunpack.c.h.b16 %v9309
      %v9561 = vunpack.c.l.b16 %v9310
      %v9562 = vunpack.c.l.b16 %v9311
      %v9563 = vunpack.c.h.b16 %v9311
      %v9564 = vunpack.c.l.b16 %v9312
      %v9565 = vunpack.c.l.b16 %v9313
      %v9566 = vunpack.c.h.b16 %v9313
      %v9567 = vunpack.c.l.b16 %v9314
      %v9568 = vpack.c.b16 %v9451, %v9448
      %v9569 = vpack.c.b16 %v9452, %v9449
      %v9570 = vpack.c.b16 %v9453, %v9450
      %v9571 = vpack.c.b16 %v9457, %v9454
      %v9572 = vpack.c.b16 %v9458, %v9455
      %v9573 = vpack.c.b16 %v9459, %v9456
      %v9574 = vpack.c.b16 %v9463, %v9460
      %v9575 = vpack.c.b16 %v9464, %v9461
      %v9576 = vpack.c.b16 %v9465, %v9462
      %v9577 = vpack.c.b16 %v9469, %v9466
      %v9578 = vpack.c.b16 %v9470, %v9467
      %v9579 = vpack.c.b16 %v9471, %v9468
      %v9580 = vpack.c.b16 %v9475, %v9472
      %v9581 = vpack.c.b16 %v9476, %v9473
      %v9582 = vpack.c.b16 %v9477, %v9474
      %v9583 = vpack.c.b16 %v9481, %v9478
      %v9584 = vpack.c.b16 %v9482, %v9479
      %v9585 = vpack.c.b16 %v9483, %v9480
      %v9586 = vpack.c.b16 %v9487, %v9484
      %v9587 = vpack.c.b16 %v9488, %v9485
      %v9588 = vpack.c.b16 %v9489, %v9486
      %v9589 = vpack.c.b16 %v9493, %v9490
      %v9590 = vpack.c.b16 %v9494, %v9491
      %v9591 = vpack.c.b16 %v9495, %v9492
      %v9592 = vpack.c.b16 %v9499, %v9496
      %v9593 = vpack.c.b16 %v9500, %v9497
      %v9594 = vpack.c.b16 %v9501, %v9498
      %v9595 = vpack.c.b16 %v9505, %v9502
      %v9596 = vpack.c.b16 %v9506, %v9503
      %v9597 = vpack.c.b16 %v9507, %v9504
      %v9598 = vpack.c.b16 %v9511, %v9508
      %v9599 = vpack.c.b16 %v9512, %v9509
      %v9600 = vpack.c.b16 %v9513, %v9510
      %v9601 = vpack.c.b16 %v9517, %v9514
      %v9602 = vpack.c.b16 %v9518, %v9515
      %v9603 = vpack.c.b16 %v9519, %v9516
      %v9604 = vpack.c.b16 %v9523, %v9520
      %v9605 = vpack.c.b16 %v9524, %v9521
      %v9606 = vpack.c.b16 %v9525, %v9522
      %v9607 = vpack.c.b16 %v9529, %v9526
      %v9608 = vpack.c.b16 %v9530, %v9527
      %v9609 = vpack.c.b16 %v9531, %v9528
      %v9610 = vpack.c.b16 %v9535, %v9532
      %v9611 = vpack.c.b16 %v9536, %v9533
      %v9612 = vpack.c.b16 %v9537, %v9534
      %v9613 = vpack.c.b16 %v9541, %v9538
      %v9614 = vpack.c.b16 %v9542, %v9539
      %v9615 = vpack.c.b16 %v9543, %v9540
      %v9616 = vpack.c.b16 %v9547, %v9544
      %v9617 = vpack.c.b16 %v9548, %v9545
      %v9618 = vpack.c.b16 %v9549, %v9546
      %v9619 = vpack.c.b16 %v9553, %v9550
      %v9620 = vpack.c.b16 %v9554, %v9551
      %v9621 = vpack.c.b16 %v9555, %v9552
      %v9622 = vpack.c.b16 %v9559, %v9556
      %v9623 = vpack.c.b16 %v9560, %v9557
      %v9624 = vpack.c.b16 %v9561, %v9558
      %v9625 = vpack.c.b16 %v9565, %v9562
      %v9626 = vpack.c.b16 %v9566, %v9563
      %v9627 = vpack.c.b16 %v9567, %v9564
      %v9689 = vsel %vm8271, %v9339, 0
      %v9692 = vsel %vm8271, %v9345, 0
      %v9695 = vsel %vm8271, %v9351, 0
      %v9698 = vsel %vm8271, %v9357, 0
      %v9701 = vsel %vm8271, %v9356, 0
      %9703 = vmatprep.subr.bf16.mxu0 %v9569
      %9704 = vmatpush1.bf16.msra.mxu0 %v9568
      %9705 = vmatprep.subr.bf16.mxu0 %v9572
      %9706 = vmatpush1.bf16.msra.mxu0 %v9571
      %9707 = vmatprep.subr.bf16.mxu0 %v9575
      %9708 = vmatpush1.bf16.msra.mxu0 %v9574
      %9709 = vmatprep.subr.bf16.mxu0 %v9578
      %9710 = vmatpush1.bf16.msra.mxu0 %v9577
      %9711 = vmatprep.subr.bf16.mxu0 %v9581
      %9712 = vmatpush1.bf16.msra.mxu0 %v9580
      %9713 = vmatprep.subr.bf16.mxu0 %v9584
      %9714 = vmatpush1.bf16.msra.mxu0 %v9583
      %9715 = vmatprep.subr.bf16.mxu0 %v9587
      %9716 = vmatpush1.bf16.msra.mxu0 %v9586
      %9717 = vmatprep.subr.bf16.mxu0 %v9590
      %9718 = vmatpush1.bf16.msra.mxu0 %v9589
      %9719 = vmatprep.subr.bf16.mxu0 %v9593
      %9720 = vmatpush1.bf16.msra.mxu0 %v9592
      %9721 = vmatprep.subr.bf16.mxu0 %v9596
      %9722 = vmatpush1.bf16.msra.mxu0 %v9595
      %9723 = vmatprep.subr.bf16.mxu0 %v9599
      %9724 = vmatpush1.bf16.msra.mxu0 %v9598
      %9725 = vmatprep.subr.bf16.mxu0 %v9602
      %9726 = vmatpush1.bf16.msra.mxu0 %v9601
      %9727 = vmatprep.subr.bf16.mxu0 %v9605
      %9728 = vmatpush1.bf16.msra.mxu0 %v9604
      %9729 = vmatprep.subr.bf16.mxu0 %v9608
      %9730 = vmatpush1.bf16.msra.mxu0 %v9607
      %9731 = vmatprep.subr.bf16.mxu0 %v9611
      %9732 = vmatpush1.bf16.msra.mxu0 %v9610
      %9733 = vmatprep.subr.bf16.mxu0 %v9614
      %9734 = vmatpush1.bf16.msra.mxu0 %v9613
      %9735 = vmatprep.mubr.bf16.mxu0 %v9336
      %9736 = vmatmul.mubr.bf16.gmra.mrb[0].mxu0 %v9333
      %v9737 = vpop.f32.mrb[0].mxu0
      %v9738 = vadd.f32 0.0, %v9737
      %v9739 = vpop.f32.mrb[0].mxu0
      %v9740 = vadd.f32 0.0, %v9739
      %v9741 = vpop.f32.mrb[0].mxu0
      %v9742 = vadd.f32 0.0, %v9741
      %v9743 = vpop.f32.mrb[0].mxu0
      %v9744 = vadd.f32 0.0, %v9743
      %9745 = vmatprep.mubr.bf16.mxu0 %v9343
      %9746 = vmatmul.mubr.bf16.gmra.mrb[0].mxu0 %v9341
      %v9747 = vpop.f32.mrb[0].mxu0
      %v9748 = vadd.f32 0.0, %v9747
      %v9749 = vpop.f32.mrb[0].mxu0
      %v9750 = vadd.f32 0.0, %v9749
      %v9751 = vpop.f32.mrb[0].mxu0
      %v9752 = vadd.f32 0.0, %v9751
      %v9753 = vpop.f32.mrb[0].mxu0
      %v9754 = vadd.f32 0.0, %v9753
      %9755 = vmatprep.mubr.bf16.mxu0 %v9349
      %9756 = vmatmul.mubr.bf16.gmra.mrb[0].mxu0 %v9347
      %v9757 = vpop.f32.mrb[0].mxu0
      %v9758 = vadd.f32 0.0, %v9757
      %v9759 = vpop.f32.mrb[0].mxu0
      %v9760 = vadd.f32 0.0, %v9759
      %v9761 = vpop.f32.mrb[0].mxu0
      %v9762 = vadd.f32 0.0, %v9761
      %v9763 = vpop.f32.mrb[0].mxu0
      %v9764 = vadd.f32 0.0, %v9763
      %9765 = vmatprep.mubr.bf16.mxu0 %v9355
      %9766 = vmatmul.mubr.bf16.gmra.mrb[0].mxu0 %v9353
      %v9767 = vpop.f32.mrb[0].mxu0
      %v9768 = vadd.f32 0.0, %v9767
      %v9769 = vpop.f32.mrb[0].mxu0
      %v9770 = vadd.f32 0.0, %v9769
      %v9771 = vpop.f32.mrb[0].mxu0
      %v9772 = vadd.f32 0.0, %v9771
      %v9773 = vpop.f32.mrb[0].mxu0
      %v9774 = vadd.f32 0.0, %v9773
      %9775 = vmatprep.mubr.bf16.mxu0 %v9354
      %9776 = vmatmul.mubr.bf16.gmra.mrb[0].mxu0 %v9352
      %v9777 = vpop.f32.mrb[0].mxu0
      %v9778 = vadd.f32 0.0, %v9777
      %v9779 = vpop.f32.mrb[0].mxu0
      %v9780 = vadd.f32 0.0, %v9779
      %v9781 = vpop.f32.mrb[0].mxu0
      %v9782 = vpop.f32.mrb[0].mxu0
      %9783 = vdwg.mxu0
      %9784 = vmatprep.subr.bf16.mxu0 %v9617
      %9785 = vmatpush1.bf16.msra.mxu0 %v9616
      %9786 = vmatprep.subr.bf16.mxu0 %v9620
      %9787 = vmatpush1.bf16.msra.mxu0 %v9619
      %9788 = vmatprep.subr.bf16.mxu0 %v9623
      %9789 = vmatpush1.bf16.msra.mxu0 %v9622
      %9790 = vmatprep.subr.bf16.mxu0 %v9626
      %9791 = vmatpush1.bf16.msra.mxu0 %v9625
      %9792 = vmatprep.subr.bf16.mxu0 0
      %9793 = vmatpush1.bf16.msra.mxu0 0
      %9794 = vmatprep.subr.bf16.mxu0 0
      %9795 = vmatpush1.bf16.msra.mxu0 0
      %9796 = vmatprep.subr.bf16.mxu0 0
      %9797 = vmatpush1.bf16.msra.mxu0 0
      %9798 = vmatprep.subr.bf16.mxu0 0
      %9799 = vmatpush1.bf16.msra.mxu0 0
      %9800 = vmatprep.subr.bf16.mxu0 0
      %9801 = vmatpush1.bf16.msra.mxu0 0
      %9802 = vmatprep.subr.bf16.mxu0 0
      %9803 = vmatpush1.bf16.msra.mxu0 0
      %9804 = vmatprep.subr.bf16.mxu0 0
      %9805 = vmatpush1.bf16.msra.mxu0 0
      %9806 = vmatprep.subr.bf16.mxu0 0
      %9807 = vmatpush1.bf16.msra.mxu0 0
      %9808 = vmatprep.subr.bf16.mxu0 0
      %9809 = vmatpush1.bf16.msra.mxu0 0
      %9810 = vmatprep.subr.bf16.mxu0 0
      %9811 = vmatpush1.bf16.msra.mxu0 0
      %9812 = vmatprep.subr.bf16.mxu0 0
      %9813 = vmatpush1.bf16.msra.mxu0 0
      %9814 = vmatprep.subr.bf16.mxu0 0
      %9815 = vmatpush1.bf16.msra.mxu0 0
      %9816 = vmatprep.mubr.bf16.mxu0 0
      %9817 = vmatmul.mubr.bf16.gmra.mrb[0].mxu0 %v9689
      %v9818 = vpop.f32.mrb[0].mxu0
      %v9819 = vadd.f32 %v9738, %v9818
      %v9820 = vpop.f32.mrb[0].mxu0
      %v9821 = vadd.f32 %v9740, %v9820
      %v9822 = vpop.f32.mrb[0].mxu0
      %v9823 = vadd.f32 %v9742, %v9822
      %v9824 = vpop.f32.mrb[0].mxu0
      %v9825 = vadd.f32 %v9744, %v9824
      %9826 = vmatprep.mubr.bf16.mxu0 0
      %9827 = vmatmul.mubr.bf16.gmra.mrb[0].mxu0 %v9692
      %v9828 = vpop.f32.mrb[0].mxu0
      %v9829 = vadd.f32 %v9748, %v9828
      %v9830 = vpop.f32.mrb[0].mxu0
      %v9831 = vadd.f32 %v9750, %v9830
      %v9832 = vpop.f32.mrb[0].mxu0
      %v9833 = vadd.f32 %v9752, %v9832
      %v9834 = vpop.f32.mrb[0].mxu0
      %v9835 = vadd.f32 %v9754, %v9834
      %9836 = vmatprep.mubr.bf16.mxu0 0
      %9837 = vmatmul.mubr.bf16.gmra.mrb[0].mxu0 %v9695
      %v9838 = vpop.f32.mrb[0].mxu0
      %v9839 = vadd.f32 %v9758, %v9838
      %v9840 = vpop.f32.mrb[0].mxu0
      %v9841 = vadd.f32 %v9760, %v9840
      %v9842 = vpop.f32.mrb[0].mxu0
      %v9843 = vadd.f32 %v9762, %v9842
      %v9844 = vpop.f32.mrb[0].mxu0
      %v9845 = vadd.f32 %v9764, %v9844
      %9846 = vmatprep.mubr.bf16.mxu0 0
      %9847 = vmatmul.mubr.bf16.gmra.mrb[0].mxu0 %v9698
      %v9848 = vpop.f32.mrb[0].mxu0
      %v9849 = vadd.f32 %v9768, %v9848
      %v9850 = vpop.f32.mrb[0].mxu0
      %v9851 = vadd.f32 %v9770, %v9850
      %v9852 = vpop.f32.mrb[0].mxu0
      %v9853 = vadd.f32 %v9772, %v9852
      %v9854 = vpop.f32.mrb[0].mxu0
      %v9855 = vadd.f32 %v9774, %v9854
      %9856 = vmatprep.mubr.bf16.mxu0 0
      %9857 = vmatmul.mubr.bf16.gmra.mrb[0].mxu0 %v9701
      %v9858 = vpop.f32.mrb[0].mxu0
      %v9859 = vadd.f32 %v9778, %v9858
      %v9860 = vpop.f32.mrb[0].mxu0
      %v9861 = vadd.f32 %v9780, %v9860
      %v9862 = vpop.f32.mrb[0].mxu0
      %v9863 = vpop.f32.mrb[0].mxu0
      %9864 = vdwg.mxu0
      %9865 = vmatprep.subr.bf16.mxu0 0
      %9866 = vmatpush1.bf16.msra.mxu0 %v9570
      %9867 = vmatprep.subr.bf16.mxu0 0
      %9868 = vmatpush1.bf16.msra.mxu0 %v9573
      %9869 = vmatprep.subr.bf16.mxu0 0
      %9870 = vmatpush1.bf16.msra.mxu0 %v9576
      %9871 = vmatprep.subr.bf16.mxu0 0
      %9872 = vmatpush1.bf16.msra.mxu0 %v9579
      %9873 = vmatprep.subr.bf16.mxu0 0
      %9874 = vmatpush1.bf16.msra.mxu0 %v9582
      %9875 = vmatprep.subr.bf16.mxu0 0
      %9876 = vmatpush1.bf16.msra.mxu0 %v9585
      %9877 = vmatprep.subr.bf16.mxu0 0
      %9878 = vmatpush1.bf16.msra.mxu0 %v9588
      %9879 = vmatprep.subr.bf16.mxu0 0
      %9880 = vmatpush1.bf16.msra.mxu0 %v9591
      %9881 = vmatprep.subr.bf16.mxu0 0
      %9882 = vmatpush1.bf16.msra.mxu0 %v9594
      %9883 = vmatprep.subr.bf16.mxu0 0
      %9884 = vmatpush1.bf16.msra.mxu0 %v9597
      %9885 = vmatprep.subr.bf16.mxu0 0
      %9886 = vmatpush1.bf16.msra.mxu0 %v9600
      %9887 = vmatprep.subr.bf16.mxu0 0
      %9888 = vmatpush1.bf16.msra.mxu0 %v9603
      %9889 = vmatprep.subr.bf16.mxu0 0
      %9890 = vmatpush1.bf16.msra.mxu0 %v9606
      %9891 = vmatprep.subr.bf16.mxu0 0
      %9892 = vmatpush1.bf16.msra.mxu0 %v9609
      %9893 = vmatprep.subr.bf16.mxu0 0
      %9894 = vmatpush1.bf16.msra.mxu0 %v9612
      %9895 = vmatprep.subr.bf16.mxu0 0
      %9896 = vmatpush1.bf16.msra.mxu0 %v9615
      %9897 = vmatprep.mubr.bf16.mxu0 %v9336
      %9898 = vmatmul.mubr.bf16.gmra.mrb[0].mxu0 %v9333
      %v9899 = vpop.f32.mrb[0].mxu0
      %v9900 = vadd.f32 0.0, %v9899
      %v9901 = vpop.f32.mrb[0].mxu0
      %v9902 = vpop.f32.mrb[0].mxu0
      %v9903 = vadd.f32 0.0, %v9902
      %v9904 = vpop.f32.mrb[0].mxu0
      %9905 = vmatprep.mubr.bf16.mxu0 %v9343
      %9906 = vmatmul.mubr.bf16.gmra.mrb[0].mxu0 %v9341
      %v9907 = vpop.f32.mrb[0].mxu0
      %v9908 = vadd.f32 0.0, %v9907
      %v9909 = vpop.f32.mrb[0].mxu0
      %v9910 = vpop.f32.mrb[0].mxu0
      %v9911 = vadd.f32 0.0, %v9910
      %v9912 = vpop.f32.mrb[0].mxu0
      %9913 = vmatprep.mubr.bf16.mxu0 %v9349
      %9914 = vmatmul.mubr.bf16.gmra.mrb[0].mxu0 %v9347
      %v9915 = vpop.f32.mrb[0].mxu0
      %v9916 = vadd.f32 0.0, %v9915
      %v9917 = vpop.f32.mrb[0].mxu0
      %v9918 = vpop.f32.mrb[0].mxu0
      %v9919 = vadd.f32 0.0, %v9918
      %v9920 = vpop.f32.mrb[0].mxu0
      %9921 = vmatprep.mubr.bf16.mxu0 %v9355
      %9922 = vmatmul.mubr.bf16.gmra.mrb[0].mxu0 %v9353
      %v9923 = vpop.f32.mrb[0].mxu0
      %v9924 = vadd.f32 0.0, %v9923
      %v9925 = vpop.f32.mrb[0].mxu0
      %v9926 = vpop.f32.mrb[0].mxu0
      %v9927 = vadd.f32 0.0, %v9926
      %v9928 = vpop.f32.mrb[0].mxu0
      %9929 = vmatprep.mubr.bf16.mxu0 %v9354
      %9930 = vmatmul.mubr.bf16.gmra.mrb[0].mxu0 %v9352
      %v9931 = vpop.f32.mrb[0].mxu0
      %v9932 = vadd.f32 0.0, %v9931
      %v9933 = vpop.f32.mrb[0].mxu0
      %v9934 = vpop.f32.mrb[0].mxu0
      %v9935 = vpop.f32.mrb[0].mxu0
      %9936 = vdwg.mxu0
      %9937 = vmatprep.subr.bf16.mxu0 0
      %9938 = vmatpush1.bf16.msra.mxu0 %v9618
      %9939 = vmatprep.subr.bf16.mxu0 0
      %9940 = vmatpush1.bf16.msra.mxu0 %v9621
      %9941 = vmatprep.subr.bf16.mxu0 0
      %9942 = vmatpush1.bf16.msra.mxu0 %v9624
      %9943 = vmatprep.subr.bf16.mxu0 0
      %9944 = vmatpush1.bf16.msra.mxu0 %v9627
      %9945 = vmatprep.subr.bf16.mxu0 0
      %9946 = vmatpush1.bf16.msra.mxu0 0
      %9947 = vmatprep.subr.bf16.mxu0 0
      %9948 = vmatpush1.bf16.msra.mxu0 0
      %9949 = vmatprep.subr.bf16.mxu0 0
      %9950 = vmatpush1.bf16.msra.mxu0 0
      %9951 = vmatprep.subr.bf16.mxu0 0
      %9952 = vmatpush1.bf16.msra.mxu0 0
      %9953 = vmatprep.subr.bf16.mxu0 0
      %9954 = vmatpush1.bf16.msra.mxu0 0
      %9955 = vmatprep.subr.bf16.mxu0 0
      %9956 = vmatpush1.bf16.msra.mxu0 0
      %9957 = vmatprep.subr.bf16.mxu0 0
      %9958 = vmatpush1.bf16.msra.mxu0 0
      %9959 = vmatprep.subr.bf16.mxu0 0
      %9960 = vmatpush1.bf16.msra.mxu0 0
      %9961 = vmatprep.subr.bf16.mxu0 0
      %9962 = vmatpush1.bf16.msra.mxu0 0
      %9963 = vmatprep.subr.bf16.mxu0 0
      %9964 = vmatpush1.bf16.msra.mxu0 0
      %9965 = vmatprep.subr.bf16.mxu0 0
      %9966 = vmatpush1.bf16.msra.mxu0 0
      %9967 = vmatprep.subr.bf16.mxu0 0
      %9968 = vmatpush1.bf16.msra.mxu0 0
      %9969 = vmatprep.mubr.bf16.mxu0 0
      %9970 = vmatmul.mubr.bf16.gmra.mrb[0].mxu0 %v9689
      %v9971 = vpop.f32.mrb[0].mxu0
      %v9972 = vadd.f32 %v9900, %v9971
      %v9973 = vpop.f32.mrb[0].mxu0
      %v9974 = vpop.f32.mrb[0].mxu0
      %v9975 = vadd.f32 %v9903, %v9974
      %v9976 = vpop.f32.mrb[0].mxu0
      %9977 = vmatprep.mubr.bf16.mxu0 0
      %9978 = vmatmul.mubr.bf16.gmra.mrb[0].mxu0 %v9692
      %v9979 = vpop.f32.mrb[0].mxu0
      %v9980 = vadd.f32 %v9908, %v9979
      %v9981 = vpop.f32.mrb[0].mxu0
      %v9982 = vpop.f32.mrb[0].mxu0
      %v9983 = vadd.f32 %v9911, %v9982
      %v9984 = vpop.f32.mrb[0].mxu0
      %9985 = vmatprep.mubr.bf16.mxu0 0
      %9986 = vmatmul.mubr.bf16.gmra.mrb[0].mxu0 %v9695
      %v9987 = vpop.f32.mrb[0].mxu0
      %v9988 = vadd.f32 %v9916, %v9987
      %v9989 = vpop.f32.mrb[0].mxu0
      %v9990 = vpop.f32.mrb[0].mxu0
      %v9991 = vadd.f32 %v9919, %v9990
      %v9992 = vpop.f32.mrb[0].mxu0
      %9993 = vmatprep.mubr.bf16.mxu0 0
      %9994 = vmatmul.mubr.bf16.gmra.mrb[0].mxu0 %v9698
      %v9995 = vpop.f32.mrb[0].mxu0
      %v9996 = vadd.f32 %v9924, %v9995
      %v9997 = vpop.f32.mrb[0].mxu0
      %v9998 = vpop.f32.mrb[0].mxu0
      %v9999 = vadd.f32 %v9927, %v9998
      %v10000 = vpop.f32.mrb[0].mxu0
      %10001 = vmatprep.mubr.bf16.mxu0 0
      %10002 = vmatmul.mubr.bf16.gmra.mrb[0].mxu0 %v9701
      %v10003 = vpop.f32.mrb[0].mxu0
      %v10004 = vadd.f32 %v9932, %v10003
      %v10005 = vpop.f32.mrb[0].mxu0
      %v10006 = vpop.f32.mrb[0].mxu0
      %v10007 = vpop.f32.mrb[0].mxu0
      %10008 = vdwg.mxu0
      %v10009 = vadd.f32 %v9044, %v9819
      %v10010 = vadd.f32 %v9046, %v9821
      %v10011 = vadd.f32 %v9197, %v9972
      %v10012 = vadd.f32 %v9048, %v9823
      %v10013 = vadd.f32 %v9050, %v9825
      %v10014 = vadd.f32 %v9200, %v9975
      %v10015 = vadd.f32 %v9054, %v9829
      %v10016 = vadd.f32 %v9056, %v9831
      %v10017 = vadd.f32 %v9205, %v9980
      %v10018 = vadd.f32 %v9058, %v9833
      %v10019 = vadd.f32 %v9060, %v9835
      %v10020 = vadd.f32 %v9208, %v9983
      %v10021 = vadd.f32 %v9064, %v9839
      %v10022 = vadd.f32 %v9066, %v9841
      %v10023 = vadd.f32 %v9213, %v9988
      %v10024 = vadd.f32 %v9068, %v9843
      %v10025 = vadd.f32 %v9070, %v9845
      %v10026 = vadd.f32 %v9216, %v9991
      %v10027 = vadd.f32 %v9074, %v9849
      %v10028 = vadd.f32 %v9076, %v9851
      %v10029 = vadd.f32 %v9221, %v9996
      %v10030 = vadd.f32 %v9078, %v9853
      %v10031 = vadd.f32 %v9080, %v9855
      %v10032 = vadd.f32 %v9224, %v9999
      %v10033 = vadd.f32 %v9084, %v9859
      %v10034 = vadd.f32 %v9086, %v9861
      %v10035 = vadd.f32 %v9229, %v10004
      %s10036 = scalar_lea.vmem %s3, 1440
      %v10037 = vld [vmem:[%s10036] sm:$0xff]
      %v10038 = vld [vmem:[%s10036 + $0x8] sm:$0xf]
      %v10039 = vld [vmem:[%s10036 + $0xc] sm:$0xff]
      %v10040 = vld [vmem:[%s10036 + $0x14] sm:$0xf]
      %v10041 = vld [vmem:[%s10036 + $0x18] sm:$0xff]
      %v10042 = vld [vmem:[%s10036 + $0x20] sm:$0xf]
      %v10043 = vld [vmem:[%s10036 + $0x24] sm:$0xff]
      %v10044 = vld [vmem:[%s10036 + $0x2c] sm:$0xf]
      %v10045 = vld [vmem:[%s10036 + $0x30] sm:$0xff]
      %v10046 = vld [vmem:[%s10036 + $0x38] sm:$0xf]
      %v10047 = vld [vmem:[%s10036 + $0x3c] sm:$0xff]
      %v10048 = vld [vmem:[%s10036 + $0x44] sm:$0xf]
      %v10049 = vld [vmem:[%s10036 + $0x48] sm:$0xff]
      %v10050 = vld [vmem:[%s10036 + $0x50] sm:$0xf]
      %v10051 = vld [vmem:[%s10036 + $0x54] sm:$0xff]
      %v10052 = vld [vmem:[%s10036 + $0x5c] sm:$0xf]
      %v10053 = vld [vmem:[%s10036 + $0x60] sm:$0xff]
      %v10054 = vld [vmem:[%s10036 + $0x68] sm:$0xf]
      %v10055 = vld [vmem:[%s10036 + $0x6c] sm:$0xff]
      %v10056 = vld [vmem:[%s10036 + $0x74] sm:$0xf]
      %v10057 = vld [vmem:[%s10036 + $0x78] sm:$0xff]
      %v10058 = vld [vmem:[%s10036 + $0x80] sm:$0xf]
      %v10059 = vld [vmem:[%s10036 + $0x84] sm:$0xff]
      %v10060 = vld [vmem:[%s10036 + $0x8c] sm:$0xf]
      %v10061 = vld [vmem:[%s10036 + $0x90] sm:$0xff]
      %v10062 = vld [vmem:[%s10036 + $0x98] sm:$0xf]
      %v10063 = vld [vmem:[%s10036 + $0x9c] sm:$0xff]
      %v10064 = vld [vmem:[%s10036 + $0xa4] sm:$0xf]
      %v10065 = vld [vmem:[%s10036 + $0xa8] sm:$0xff]
      %v10066 = vld [vmem:[%s10036 + $0xb0] sm:$0xf]
      %v10067 = vld [vmem:[%s10036 + $0xb4] sm:$0xff]
      %v10068 = vld [vmem:[%s10036 + $0xbc] sm:$0xf]
      %v10069 = vld [vmem:[%s10036 + $0xc0] sm:$0xff]
      %v10070 = vld [vmem:[%s10036 + $0xc8] sm:$0xf]
      %v10071 = vld [vmem:[%s10036 + $0xcc] sm:$0xff]
      %v10072 = vld [vmem:[%s10036 + $0xd4] sm:$0xf]
      %v10073 = vld [vmem:[%s10036 + $0xd8] sm:$0xff]
      %v10074 = vld [vmem:[%s10036 + $0xe0] sm:$0xf]
      %v10075 = vld [vmem:[%s10036 + $0xe4] sm:$0xff]
      %v10076 = vld [vmem:[%s10036 + $0xec] sm:$0xf]
      %v10077 = vld [vmem:[%s10036 + $0xf0] sm:$0xff]
      %v10078 = vld [vmem:[%s10036 + $0xf8] sm:$0xf]
      %v10079 = vld [vmem:[%s10036 + $0xfc] sm:$0xff]
      %v10080 = vld [vmem:[%s10036 + $0x104] sm:$0xf]
      %v10081 = vld [vmem:[%s10036 + $0x108] sm:$0xff]
      %v10082 = vld [vmem:[%s10036 + $0x110] sm:$0xf]
      %v10083 = vld [vmem:[%s10036 + $0x114] sm:$0xff]
      %v10084 = vld [vmem:[%s10036 + $0x11c] sm:$0xf]
      %v10085 = vld [vmem:[%s10036 + $0x120] sm:$0xff]
      %v10086 = vld [vmem:[%s10036 + $0x128] sm:$0xf]
      %v10087 = vld [vmem:[%s10036 + $0x12c] sm:$0xff]
      %v10088 = vld [vmem:[%s10036 + $0x134] sm:$0xf]
      %v10089 = vld [vmem:[%s10036 + $0x138] sm:$0xff]
      %v10090 = vld [vmem:[%s10036 + $0x140] sm:$0xf]
      %v10091 = vld [vmem:[%s10036 + $0x144] sm:$0xff]
      %v10092 = vld [vmem:[%s10036 + $0x14c] sm:$0xf]
      %v10093 = vld [vmem:[%s10036 + $0x150] sm:$0xff]
      %v10094 = vld [vmem:[%s10036 + $0x158] sm:$0xf]
      %v10095 = vld [vmem:[%s10036 + $0x15c] sm:$0xff]
      %v10096 = vld [vmem:[%s10036 + $0x164] sm:$0xf]
      %v10097 = vld [vmem:[%s10036 + $0x168] sm:$0xff]
      %v10098 = vld [vmem:[%s10036 + $0x170] sm:$0xf]
      %v10099 = vld [vmem:[%s10036 + $0x174] sm:$0xff]
      %v10100 = vld [vmem:[%s10036 + $0x17c] sm:$0xf]
      %v10101 = vld [vmem:[%s10036 + $0x180] sm:$0xff]
      %v10102 = vld [vmem:[%s10036 + $0x188] sm:$0xf]
      %v10103 = vld [vmem:[%s10036 + $0x18c] sm:$0xff]
      %v10104 = vld [vmem:[%s10036 + $0x194] sm:$0xf]
      %v10105 = vld [vmem:[%s10036 + $0x198] sm:$0xff]
      %v10106 = vld [vmem:[%s10036 + $0x1a0] sm:$0xf]
      %v10107 = vld [vmem:[%s10036 + $0x1a4] sm:$0xff]
      %v10108 = vld [vmem:[%s10036 + $0x1ac] sm:$0xf]
      %v10109 = vld [vmem:[%s10036 + $0x1b0] sm:$0xff]
      %v10110 = vld [vmem:[%s10036 + $0x1b8] sm:$0xf]
      %v10111 = vld [vmem:[%s10036 + $0x1bc] sm:$0xff]
      %v10112 = vld [vmem:[%s10036 + $0x1c4] sm:$0xf]
      %v10113 = vld [vmem:[%s10036 + $0x1c8] sm:$0xff]
      %v10114 = vld [vmem:[%s10036 + $0x1d0] sm:$0xf]
      %v10115 = vld [vmem:[%s10036 + $0x1d4] sm:$0xff]
      %v10116 = vld [vmem:[%s10036 + $0x1dc] sm:$0xf]
      %v10132 = vrot.slane %v7775, 4
      %v10133 = vrot.slane %v7778, 4
      %v10134 = vsel %vm9330, %v10132, %v10133
      %v10135 = vrot.slane %v7776, 4
      %v10136 = vrot.slane %v7779, 4
      %v10137 = vsel %vm9330, %v10135, %v10136
      %v10138 = vrot.slane %v7777, 4
      %v10139 = vrot.slane %v7780, 4
      %v10140 = vsel %vm9330, %v10138, %v10139
      %v10141 = vrot.slane %v7781, 4
      %v10142 = vsel %vm9330, %v10133, %v10141
      %v10143 = vrot.slane %v7782, 4
      %v10144 = vsel %vm9330, %v10136, %v10143
      %v10145 = vrot.slane %v7783, 4
      %v10146 = vsel %vm9330, %v10139, %v10145
      %v10147 = vrot.slane %v7784, 4
      %v10148 = vsel %vm9330, %v10141, %v10147
      %v10149 = vrot.slane %v7785, 4
      %v10150 = vsel %vm9330, %v10143, %v10149
      %v10151 = vrot.slane %v7786, 4
      %v10152 = vsel %vm9330, %v10145, %v10151
      %v10153 = vrot.slane %v7787, 4
      %v10154 = vsel %vm9330, %v10147, %v10153
      %v10155 = vrot.slane %v7788, 4
      %v10156 = vsel %vm9330, %v10149, %v10155
      %v10157 = vrot.slane %v7789, 4
      %v10158 = vsel %vm9330, %v10151, %v10157
      %v10249 = vunpack.c.l.b16 %v10037
      %v10250 = vunpack.c.h.b16 %v10037
      %v10251 = vunpack.c.l.b16 %v10038
      %v10252 = vunpack.c.l.b16 %v10039
      %v10253 = vunpack.c.h.b16 %v10039
      %v10254 = vunpack.c.l.b16 %v10040
      %v10255 = vunpack.c.l.b16 %v10041
      %v10256 = vunpack.c.h.b16 %v10041
      %v10257 = vunpack.c.l.b16 %v10042
      %v10258 = vunpack.c.l.b16 %v10043
      %v10259 = vunpack.c.h.b16 %v10043
      %v10260 = vunpack.c.l.b16 %v10044
      %v10261 = vunpack.c.l.b16 %v10045
      %v10262 = vunpack.c.h.b16 %v10045
      %v10263 = vunpack.c.l.b16 %v10046
      %v10264 = vunpack.c.l.b16 %v10047
      %v10265 = vunpack.c.h.b16 %v10047
      %v10266 = vunpack.c.l.b16 %v10048
      %v10267 = vunpack.c.l.b16 %v10049
      %v10268 = vunpack.c.h.b16 %v10049
      %v10269 = vunpack.c.l.b16 %v10050
      %v10270 = vunpack.c.l.b16 %v10051
      %v10271 = vunpack.c.h.b16 %v10051
      %v10272 = vunpack.c.l.b16 %v10052
      %v10273 = vunpack.c.l.b16 %v10053
      %v10274 = vunpack.c.h.b16 %v10053
      %v10275 = vunpack.c.l.b16 %v10054
      %v10276 = vunpack.c.l.b16 %v10055
      %v10277 = vunpack.c.h.b16 %v10055
      %v10278 = vunpack.c.l.b16 %v10056
      %v10279 = vunpack.c.l.b16 %v10057
      %v10280 = vunpack.c.h.b16 %v10057
      %v10281 = vunpack.c.l.b16 %v10058
      %v10282 = vunpack.c.l.b16 %v10059
      %v10283 = vunpack.c.h.b16 %v10059
      %v10284 = vunpack.c.l.b16 %v10060
      %v10285 = vunpack.c.l.b16 %v10061
      %v10286 = vunpack.c.h.b16 %v10061
      %v10287 = vunpack.c.l.b16 %v10062
      %v10288 = vunpack.c.l.b16 %v10063
      %v10289 = vunpack.c.h.b16 %v10063
      %v10290 = vunpack.c.l.b16 %v10064
      %v10291 = vunpack.c.l.b16 %v10065
      %v10292 = vunpack.c.h.b16 %v10065
      %v10293 = vunpack.c.l.b16 %v10066
      %v10294 = vunpack.c.l.b16 %v10067
      %v10295 = vunpack.c.h.b16 %v10067
      %v10296 = vunpack.c.l.b16 %v10068
      %v10297 = vunpack.c.l.b16 %v10069
      %v10298 = vunpack.c.h.b16 %v10069
      %v10299 = vunpack.c.l.b16 %v10070
      %v10300 = vunpack.c.l.b16 %v10071
      %v10301 = vunpack.c.h.b16 %v10071
      %v10302 = vunpack.c.l.b16 %v10072
      %v10303 = vunpack.c.l.b16 %v10073
      %v10304 = vunpack.c.h.b16 %v10073
      %v10305 = vunpack.c.l.b16 %v10074
      %v10306 = vunpack.c.l.b16 %v10075
      %v10307 = vunpack.c.h.b16 %v10075
      %v10308 = vunpack.c.l.b16 %v10076
      %v10309 = vunpack.c.l.b16 %v10077
      %v10310 = vunpack.c.h.b16 %v10077
      %v10311 = vunpack.c.l.b16 %v10078
      %v10312 = vunpack.c.l.b16 %v10079
      %v10313 = vunpack.c.h.b16 %v10079
      %v10314 = vunpack.c.l.b16 %v10080
      %v10315 = vunpack.c.l.b16 %v10081
      %v10316 = vunpack.c.h.b16 %v10081
      %v10317 = vunpack.c.l.b16 %v10082
      %v10318 = vunpack.c.l.b16 %v10083
      %v10319 = vunpack.c.h.b16 %v10083
      %v10320 = vunpack.c.l.b16 %v10084
      %v10321 = vunpack.c.l.b16 %v10085
      %v10322 = vunpack.c.h.b16 %v10085
      %v10323 = vunpack.c.l.b16 %v10086
      %v10324 = vunpack.c.l.b16 %v10087
      %v10325 = vunpack.c.h.b16 %v10087
      %v10326 = vunpack.c.l.b16 %v10088
      %v10327 = vunpack.c.l.b16 %v10089
      %v10328 = vunpack.c.h.b16 %v10089
      %v10329 = vunpack.c.l.b16 %v10090
      %v10330 = vunpack.c.l.b16 %v10091
      %v10331 = vunpack.c.h.b16 %v10091
      %v10332 = vunpack.c.l.b16 %v10092
      %v10333 = vunpack.c.l.b16 %v10093
      %v10334 = vunpack.c.h.b16 %v10093
      %v10335 = vunpack.c.l.b16 %v10094
      %v10336 = vunpack.c.l.b16 %v10095
      %v10337 = vunpack.c.h.b16 %v10095
      %v10338 = vunpack.c.l.b16 %v10096
      %v10339 = vunpack.c.l.b16 %v10097
      %v10340 = vunpack.c.h.b16 %v10097
      %v10341 = vunpack.c.l.b16 %v10098
      %v10342 = vunpack.c.l.b16 %v10099
      %v10343 = vunpack.c.h.b16 %v10099
      %v10344 = vunpack.c.l.b16 %v10100
      %v10345 = vunpack.c.l.b16 %v10101
      %v10346 = vunpack.c.h.b16 %v10101
      %v10347 = vunpack.c.l.b16 %v10102
      %v10348 = vunpack.c.l.b16 %v10103
      %v10349 = vunpack.c.h.b16 %v10103
      %v10350 = vunpack.c.l.b16 %v10104
      %v10351 = vunpack.c.l.b16 %v10105
      %v10352 = vunpack.c.h.b16 %v10105
      %v10353 = vunpack.c.l.b16 %v10106
      %v10354 = vunpack.c.l.b16 %v10107
      %v10355 = vunpack.c.h.b16 %v10107
      %v10356 = vunpack.c.l.b16 %v10108
      %v10357 = vunpack.c.l.b16 %v10109
      %v10358 = vunpack.c.h.b16 %v10109
      %v10359 = vunpack.c.l.b16 %v10110
      %v10360 = vunpack.c.l.b16 %v10111
      %v10361 = vunpack.c.h.b16 %v10111
      %v10362 = vunpack.c.l.b16 %v10112
      %v10363 = vunpack.c.l.b16 %v10113
      %v10364 = vunpack.c.h.b16 %v10113
      %v10365 = vunpack.c.l.b16 %v10114
      %v10366 = vunpack.c.l.b16 %v10115
      %v10367 = vunpack.c.h.b16 %v10115
      %v10368 = vunpack.c.l.b16 %v10116
      %v10369 = vpack.c.b16 %v10252, %v10249
      %v10370 = vpack.c.b16 %v10253, %v10250
      %v10371 = vpack.c.b16 %v10254, %v10251
      %v10372 = vpack.c.b16 %v10258, %v10255
      %v10373 = vpack.c.b16 %v10259, %v10256
      %v10374 = vpack.c.b16 %v10260, %v10257
      %v10375 = vpack.c.b16 %v10264, %v10261
      %v10376 = vpack.c.b16 %v10265, %v10262
      %v10377 = vpack.c.b16 %v10266, %v10263
      %v10378 = vpack.c.b16 %v10270, %v10267
      %v10379 = vpack.c.b16 %v10271, %v10268
      %v10380 = vpack.c.b16 %v10272, %v10269
      %v10381 = vpack.c.b16 %v10276, %v10273
      %v10382 = vpack.c.b16 %v10277, %v10274
      %v10383 = vpack.c.b16 %v10278, %v10275
      %v10384 = vpack.c.b16 %v10282, %v10279
      %v10385 = vpack.c.b16 %v10283, %v10280
      %v10386 = vpack.c.b16 %v10284, %v10281
      %v10387 = vpack.c.b16 %v10288, %v10285
      %v10388 = vpack.c.b16 %v10289, %v10286
      %v10389 = vpack.c.b16 %v10290, %v10287
      %v10390 = vpack.c.b16 %v10294, %v10291
      %v10391 = vpack.c.b16 %v10295, %v10292
      %v10392 = vpack.c.b16 %v10296, %v10293
      %v10393 = vpack.c.b16 %v10300, %v10297
      %v10394 = vpack.c.b16 %v10301, %v10298
      %v10395 = vpack.c.b16 %v10302, %v10299
      %v10396 = vpack.c.b16 %v10306, %v10303
      %v10397 = vpack.c.b16 %v10307, %v10304
      %v10398 = vpack.c.b16 %v10308, %v10305
      %v10399 = vpack.c.b16 %v10312, %v10309
      %v10400 = vpack.c.b16 %v10313, %v10310
      %v10401 = vpack.c.b16 %v10314, %v10311
      %v10402 = vpack.c.b16 %v10318, %v10315
      %v10403 = vpack.c.b16 %v10319, %v10316
      %v10404 = vpack.c.b16 %v10320, %v10317
      %v10405 = vpack.c.b16 %v10324, %v10321
      %v10406 = vpack.c.b16 %v10325, %v10322
      %v10407 = vpack.c.b16 %v10326, %v10323
      %v10408 = vpack.c.b16 %v10330, %v10327
      %v10409 = vpack.c.b16 %v10331, %v10328
      %v10410 = vpack.c.b16 %v10332, %v10329
      %v10411 = vpack.c.b16 %v10336, %v10333
      %v10412 = vpack.c.b16 %v10337, %v10334
      %v10413 = vpack.c.b16 %v10338, %v10335
      %v10414 = vpack.c.b16 %v10342, %v10339
      %v10415 = vpack.c.b16 %v10343, %v10340
      %v10416 = vpack.c.b16 %v10344, %v10341
      %v10417 = vpack.c.b16 %v10348, %v10345
      %v10418 = vpack.c.b16 %v10349, %v10346
      %v10419 = vpack.c.b16 %v10350, %v10347
      %v10420 = vpack.c.b16 %v10354, %v10351
      %v10421 = vpack.c.b16 %v10355, %v10352
      %v10422 = vpack.c.b16 %v10356, %v10353
      %v10423 = vpack.c.b16 %v10360, %v10357
      %v10424 = vpack.c.b16 %v10361, %v10358
      %v10425 = vpack.c.b16 %v10362, %v10359
      %v10426 = vpack.c.b16 %v10366, %v10363
      %v10427 = vpack.c.b16 %v10367, %v10364
      %v10428 = vpack.c.b16 %v10368, %v10365
      %v10490 = vsel %vm8271, %v10140, 0
      %v10493 = vsel %vm8271, %v10146, 0
      %v10496 = vsel %vm8271, %v10152, 0
      %v10499 = vsel %vm8271, %v10158, 0
      %v10502 = vsel %vm8271, %v10157, 0
      %10504 = vmatprep.subr.bf16.mxu0 %v10370
      %10505 = vmatpush1.bf16.msra.mxu0 %v10369
      %10506 = vmatprep.subr.bf16.mxu0 %v10373
      %10507 = vmatpush1.bf16.msra.mxu0 %v10372
      %10508 = vmatprep.subr.bf16.mxu0 %v10376
      %10509 = vmatpush1.bf16.msra.mxu0 %v10375
      %10510 = vmatprep.subr.bf16.mxu0 %v10379
      %10511 = vmatpush1.bf16.msra.mxu0 %v10378
      %10512 = vmatprep.subr.bf16.mxu0 %v10382
      %10513 = vmatpush1.bf16.msra.mxu0 %v10381
      %10514 = vmatprep.subr.bf16.mxu0 %v10385
      %10515 = vmatpush1.bf16.msra.mxu0 %v10384
      %10516 = vmatprep.subr.bf16.mxu0 %v10388
      %10517 = vmatpush1.bf16.msra.mxu0 %v10387
      %10518 = vmatprep.subr.bf16.mxu0 %v10391
      %10519 = vmatpush1.bf16.msra.mxu0 %v10390
      %10520 = vmatprep.subr.bf16.mxu0 %v10394
      %10521 = vmatpush1.bf16.msra.mxu0 %v10393
      %10522 = vmatprep.subr.bf16.mxu0 %v10397
      %10523 = vmatpush1.bf16.msra.mxu0 %v10396
      %10524 = vmatprep.subr.bf16.mxu0 %v10400
      %10525 = vmatpush1.bf16.msra.mxu0 %v10399
      %10526 = vmatprep.subr.bf16.mxu0 %v10403
      %10527 = vmatpush1.bf16.msra.mxu0 %v10402
      %10528 = vmatprep.subr.bf16.mxu0 %v10406
      %10529 = vmatpush1.bf16.msra.mxu0 %v10405
      %10530 = vmatprep.subr.bf16.mxu0 %v10409
      %10531 = vmatpush1.bf16.msra.mxu0 %v10408
      %10532 = vmatprep.subr.bf16.mxu0 %v10412
      %10533 = vmatpush1.bf16.msra.mxu0 %v10411
      %10534 = vmatprep.subr.bf16.mxu0 %v10415
      %10535 = vmatpush1.bf16.msra.mxu0 %v10414
      %10536 = vmatprep.mubr.bf16.mxu0 %v10137
      %10537 = vmatmul.mubr.bf16.gmra.mrb[0].mxu0 %v10134
      %v10538 = vpop.f32.mrb[0].mxu0
      %v10539 = vadd.f32 0.0, %v10538
      %v10540 = vpop.f32.mrb[0].mxu0
      %v10541 = vadd.f32 0.0, %v10540
      %v10542 = vpop.f32.mrb[0].mxu0
      %v10543 = vadd.f32 0.0, %v10542
      %v10544 = vpop.f32.mrb[0].mxu0
      %v10545 = vadd.f32 0.0, %v10544
      %10546 = vmatprep.mubr.bf16.mxu0 %v10144
      %10547 = vmatmul.mubr.bf16.gmra.mrb[0].mxu0 %v10142
      %v10548 = vpop.f32.mrb[0].mxu0
      %v10549 = vadd.f32 0.0, %v10548
      %v10550 = vpop.f32.mrb[0].mxu0
      %v10551 = vadd.f32 0.0, %v10550
      %v10552 = vpop.f32.mrb[0].mxu0
      %v10553 = vadd.f32 0.0, %v10552
      %v10554 = vpop.f32.mrb[0].mxu0
      %v10555 = vadd.f32 0.0, %v10554
      %10556 = vmatprep.mubr.bf16.mxu0 %v10150
      %10557 = vmatmul.mubr.bf16.gmra.mrb[0].mxu0 %v10148
      %v10558 = vpop.f32.mrb[0].mxu0
      %v10559 = vadd.f32 0.0, %v10558
      %v10560 = vpop.f32.mrb[0].mxu0
      %v10561 = vadd.f32 0.0, %v10560
      %v10562 = vpop.f32.mrb[0].mxu0
      %v10563 = vadd.f32 0.0, %v10562
      %v10564 = vpop.f32.mrb[0].mxu0
      %v10565 = vadd.f32 0.0, %v10564
      %10566 = vmatprep.mubr.bf16.mxu0 %v10156
      %10567 = vmatmul.mubr.bf16.gmra.mrb[0].mxu0 %v10154
      %v10568 = vpop.f32.mrb[0].mxu0
      %v10569 = vadd.f32 0.0, %v10568
      %v10570 = vpop.f32.mrb[0].mxu0
      %v10571 = vadd.f32 0.0, %v10570
      %v10572 = vpop.f32.mrb[0].mxu0
      %v10573 = vadd.f32 0.0, %v10572
      %v10574 = vpop.f32.mrb[0].mxu0
      %v10575 = vadd.f32 0.0, %v10574
      %10576 = vmatprep.mubr.bf16.mxu0 %v10155
      %10577 = vmatmul.mubr.bf16.gmra.mrb[0].mxu0 %v10153
      %v10578 = vpop.f32.mrb[0].mxu0
      %v10579 = vadd.f32 0.0, %v10578
      %v10580 = vpop.f32.mrb[0].mxu0
      %v10581 = vadd.f32 0.0, %v10580
      %v10582 = vpop.f32.mrb[0].mxu0
      %v10583 = vpop.f32.mrb[0].mxu0
      %10584 = vdwg.mxu0
      %10585 = vmatprep.subr.bf16.mxu0 %v10418
      %10586 = vmatpush1.bf16.msra.mxu0 %v10417
      %10587 = vmatprep.subr.bf16.mxu0 %v10421
      %10588 = vmatpush1.bf16.msra.mxu0 %v10420
      %10589 = vmatprep.subr.bf16.mxu0 %v10424
      %10590 = vmatpush1.bf16.msra.mxu0 %v10423
      %10591 = vmatprep.subr.bf16.mxu0 %v10427
      %10592 = vmatpush1.bf16.msra.mxu0 %v10426
      %10593 = vmatprep.subr.bf16.mxu0 0
      %10594 = vmatpush1.bf16.msra.mxu0 0
      %10595 = vmatprep.subr.bf16.mxu0 0
      %10596 = vmatpush1.bf16.msra.mxu0 0
      %10597 = vmatprep.subr.bf16.mxu0 0
      %10598 = vmatpush1.bf16.msra.mxu0 0
      %10599 = vmatprep.subr.bf16.mxu0 0
      %10600 = vmatpush1.bf16.msra.mxu0 0
      %10601 = vmatprep.subr.bf16.mxu0 0
      %10602 = vmatpush1.bf16.msra.mxu0 0
      %10603 = vmatprep.subr.bf16.mxu0 0
      %10604 = vmatpush1.bf16.msra.mxu0 0
      %10605 = vmatprep.subr.bf16.mxu0 0
      %10606 = vmatpush1.bf16.msra.mxu0 0
      %10607 = vmatprep.subr.bf16.mxu0 0
      %10608 = vmatpush1.bf16.msra.mxu0 0
      %10609 = vmatprep.subr.bf16.mxu0 0
      %10610 = vmatpush1.bf16.msra.mxu0 0
      %10611 = vmatprep.subr.bf16.mxu0 0
      %10612 = vmatpush1.bf16.msra.mxu0 0
      %10613 = vmatprep.subr.bf16.mxu0 0
      %10614 = vmatpush1.bf16.msra.mxu0 0
      %10615 = vmatprep.subr.bf16.mxu0 0
      %10616 = vmatpush1.bf16.msra.mxu0 0
      %10617 = vmatprep.mubr.bf16.mxu0 0
      %10618 = vmatmul.mubr.bf16.gmra.mrb[0].mxu0 %v10490
      %v10619 = vpop.f32.mrb[0].mxu0
      %v10620 = vadd.f32 %v10539, %v10619
      %v10621 = vpop.f32.mrb[0].mxu0
      %v10622 = vadd.f32 %v10541, %v10621
      %v10623 = vpop.f32.mrb[0].mxu0
      %v10624 = vadd.f32 %v10543, %v10623
      %v10625 = vpop.f32.mrb[0].mxu0
      %v10626 = vadd.f32 %v10545, %v10625
      %10627 = vmatprep.mubr.bf16.mxu0 0
      %10628 = vmatmul.mubr.bf16.gmra.mrb[0].mxu0 %v10493
      %v10629 = vpop.f32.mrb[0].mxu0
      %v10630 = vadd.f32 %v10549, %v10629
      %v10631 = vpop.f32.mrb[0].mxu0
      %v10632 = vadd.f32 %v10551, %v10631
      %v10633 = vpop.f32.mrb[0].mxu0
      %v10634 = vadd.f32 %v10553, %v10633
      %v10635 = vpop.f32.mrb[0].mxu0
      %v10636 = vadd.f32 %v10555, %v10635
      %10637 = vmatprep.mubr.bf16.mxu0 0
      %10638 = vmatmul.mubr.bf16.gmra.mrb[0].mxu0 %v10496
      %v10639 = vpop.f32.mrb[0].mxu0
      %v10640 = vadd.f32 %v10559, %v10639
      %v10641 = vpop.f32.mrb[0].mxu0
      %v10642 = vadd.f32 %v10561, %v10641
      %v10643 = vpop.f32.mrb[0].mxu0
      %v10644 = vadd.f32 %v10563, %v10643
      %v10645 = vpop.f32.mrb[0].mxu0
      %v10646 = vadd.f32 %v10565, %v10645
      %10647 = vmatprep.mubr.bf16.mxu0 0
      %10648 = vmatmul.mubr.bf16.gmra.mrb[0].mxu0 %v10499
      %v10649 = vpop.f32.mrb[0].mxu0
      %v10650 = vadd.f32 %v10569, %v10649
      %v10651 = vpop.f32.mrb[0].mxu0
      %v10652 = vadd.f32 %v10571, %v10651
      %v10653 = vpop.f32.mrb[0].mxu0
      %v10654 = vadd.f32 %v10573, %v10653
      %v10655 = vpop.f32.mrb[0].mxu0
      %v10656 = vadd.f32 %v10575, %v10655
      %10657 = vmatprep.mubr.bf16.mxu0 0
      %10658 = vmatmul.mubr.bf16.gmra.mrb[0].mxu0 %v10502
      %v10659 = vpop.f32.mrb[0].mxu0
      %v10660 = vadd.f32 %v10579, %v10659
      %v10661 = vpop.f32.mrb[0].mxu0
      %v10662 = vadd.f32 %v10581, %v10661
      %v10663 = vpop.f32.mrb[0].mxu0
      %v10664 = vpop.f32.mrb[0].mxu0
      %10665 = vdwg.mxu0
      %10666 = vmatprep.subr.bf16.mxu0 0
      %10667 = vmatpush1.bf16.msra.mxu0 %v10371
      %10668 = vmatprep.subr.bf16.mxu0 0
      %10669 = vmatpush1.bf16.msra.mxu0 %v10374
      %10670 = vmatprep.subr.bf16.mxu0 0
      %10671 = vmatpush1.bf16.msra.mxu0 %v10377
      %10672 = vmatprep.subr.bf16.mxu0 0
      %10673 = vmatpush1.bf16.msra.mxu0 %v10380
      %10674 = vmatprep.subr.bf16.mxu0 0
      %10675 = vmatpush1.bf16.msra.mxu0 %v10383
      %10676 = vmatprep.subr.bf16.mxu0 0
      %10677 = vmatpush1.bf16.msra.mxu0 %v10386
      %10678 = vmatprep.subr.bf16.mxu0 0
      %10679 = vmatpush1.bf16.msra.mxu0 %v10389
      %10680 = vmatprep.subr.bf16.mxu0 0
      %10681 = vmatpush1.bf16.msra.mxu0 %v10392
      %10682 = vmatprep.subr.bf16.mxu0 0
      %10683 = vmatpush1.bf16.msra.mxu0 %v10395
      %10684 = vmatprep.subr.bf16.mxu0 0
      %10685 = vmatpush1.bf16.msra.mxu0 %v10398
      %10686 = vmatprep.subr.bf16.mxu0 0
      %10687 = vmatpush1.bf16.msra.mxu0 %v10401
      %10688 = vmatprep.subr.bf16.mxu0 0
      %10689 = vmatpush1.bf16.msra.mxu0 %v10404
      %10690 = vmatprep.subr.bf16.mxu0 0
      %10691 = vmatpush1.bf16.msra.mxu0 %v10407
      %10692 = vmatprep.subr.bf16.mxu0 0
      %10693 = vmatpush1.bf16.msra.mxu0 %v10410
      %10694 = vmatprep.subr.bf16.mxu0 0
      %10695 = vmatpush1.bf16.msra.mxu0 %v10413
      %10696 = vmatprep.subr.bf16.mxu0 0
      %10697 = vmatpush1.bf16.msra.mxu0 %v10416
      %10698 = vmatprep.mubr.bf16.mxu0 %v10137
      %10699 = vmatmul.mubr.bf16.gmra.mrb[0].mxu0 %v10134
      %v10700 = vpop.f32.mrb[0].mxu0
      %v10701 = vadd.f32 0.0, %v10700
      %v10702 = vpop.f32.mrb[0].mxu0
      %v10703 = vpop.f32.mrb[0].mxu0
      %v10704 = vadd.f32 0.0, %v10703
      %v10705 = vpop.f32.mrb[0].mxu0
      %10706 = vmatprep.mubr.bf16.mxu0 %v10144
      %10707 = vmatmul.mubr.bf16.gmra.mrb[0].mxu0 %v10142
      %v10708 = vpop.f32.mrb[0].mxu0
      %v10709 = vadd.f32 0.0, %v10708
      %v10710 = vpop.f32.mrb[0].mxu0
      %v10711 = vpop.f32.mrb[0].mxu0
      %v10712 = vadd.f32 0.0, %v10711
      %v10713 = vpop.f32.mrb[0].mxu0
      %10714 = vmatprep.mubr.bf16.mxu0 %v10150
      %10715 = vmatmul.mubr.bf16.gmra.mrb[0].mxu0 %v10148
      %v10716 = vpop.f32.mrb[0].mxu0
      %v10717 = vadd.f32 0.0, %v10716
      %v10718 = vpop.f32.mrb[0].mxu0
      %v10719 = vpop.f32.mrb[0].mxu0
      %v10720 = vadd.f32 0.0, %v10719
      %v10721 = vpop.f32.mrb[0].mxu0
      %10722 = vmatprep.mubr.bf16.mxu0 %v10156
      %10723 = vmatmul.mubr.bf16.gmra.mrb[0].mxu0 %v10154
      %v10724 = vpop.f32.mrb[0].mxu0
      %v10725 = vadd.f32 0.0, %v10724
      %v10726 = vpop.f32.mrb[0].mxu0
      %v10727 = vpop.f32.mrb[0].mxu0
      %v10728 = vadd.f32 0.0, %v10727
      %v10729 = vpop.f32.mrb[0].mxu0
      %10730 = vmatprep.mubr.bf16.mxu0 %v10155
      %10731 = vmatmul.mubr.bf16.gmra.mrb[0].mxu0 %v10153
      %v10732 = vpop.f32.mrb[0].mxu0
      %v10733 = vadd.f32 0.0, %v10732
      %v10734 = vpop.f32.mrb[0].mxu0
      %v10735 = vpop.f32.mrb[0].mxu0
      %v10736 = vpop.f32.mrb[0].mxu0
      %10737 = vdwg.mxu0
      %10738 = vmatprep.subr.bf16.mxu0 0
      %10739 = vmatpush1.bf16.msra.mxu0 %v10419
      %10740 = vmatprep.subr.bf16.mxu0 0
      %10741 = vmatpush1.bf16.msra.mxu0 %v10422
      %10742 = vmatprep.subr.bf16.mxu0 0
      %10743 = vmatpush1.bf16.msra.mxu0 %v10425
      %10744 = vmatprep.subr.bf16.mxu0 0
      %10745 = vmatpush1.bf16.msra.mxu0 %v10428
      %10746 = vmatprep.subr.bf16.mxu0 0
      %10747 = vmatpush1.bf16.msra.mxu0 0
      %10748 = vmatprep.subr.bf16.mxu0 0
      %10749 = vmatpush1.bf16.msra.mxu0 0
      %10750 = vmatprep.subr.bf16.mxu0 0
      %10751 = vmatpush1.bf16.msra.mxu0 0
      %10752 = vmatprep.subr.bf16.mxu0 0
      %10753 = vmatpush1.bf16.msra.mxu0 0
      %10754 = vmatprep.subr.bf16.mxu0 0
      %10755 = vmatpush1.bf16.msra.mxu0 0
      %10756 = vmatprep.subr.bf16.mxu0 0
      %10757 = vmatpush1.bf16.msra.mxu0 0
      %10758 = vmatprep.subr.bf16.mxu0 0
      %10759 = vmatpush1.bf16.msra.mxu0 0
      %10760 = vmatprep.subr.bf16.mxu0 0
      %10761 = vmatpush1.bf16.msra.mxu0 0
      %10762 = vmatprep.subr.bf16.mxu0 0
      %10763 = vmatpush1.bf16.msra.mxu0 0
      %10764 = vmatprep.subr.bf16.mxu0 0
      %10765 = vmatpush1.bf16.msra.mxu0 0
      %10766 = vmatprep.subr.bf16.mxu0 0
      %10767 = vmatpush1.bf16.msra.mxu0 0
      %10768 = vmatprep.subr.bf16.mxu0 0
      %10769 = vmatpush1.bf16.msra.mxu0 0
      %10770 = vmatprep.mubr.bf16.mxu0 0
      %10771 = vmatmul.mubr.bf16.gmra.mrb[0].mxu0 %v10490
      %v10772 = vpop.f32.mrb[0].mxu0
      %v10773 = vadd.f32 %v10701, %v10772
      %v10774 = vpop.f32.mrb[0].mxu0
      %v10775 = vpop.f32.mrb[0].mxu0
      %v10776 = vadd.f32 %v10704, %v10775
      %v10777 = vpop.f32.mrb[0].mxu0
      %10778 = vmatprep.mubr.bf16.mxu0 0
      %10779 = vmatmul.mubr.bf16.gmra.mrb[0].mxu0 %v10493
      %v10780 = vpop.f32.mrb[0].mxu0
      %v10781 = vadd.f32 %v10709, %v10780
      %v10782 = vpop.f32.mrb[0].mxu0
      %v10783 = vpop.f32.mrb[0].mxu0
      %v10784 = vadd.f32 %v10712, %v10783
      %v10785 = vpop.f32.mrb[0].mxu0
      %10786 = vmatprep.mubr.bf16.mxu0 0
      %10787 = vmatmul.mubr.bf16.gmra.mrb[0].mxu0 %v10496
      %v10788 = vpop.f32.mrb[0].mxu0
      %v10789 = vadd.f32 %v10717, %v10788
      %v10790 = vpop.f32.mrb[0].mxu0
      %v10791 = vpop.f32.mrb[0].mxu0
      %v10792 = vadd.f32 %v10720, %v10791
      %v10793 = vpop.f32.mrb[0].mxu0
      %10794 = vmatprep.mubr.bf16.mxu0 0
      %10795 = vmatmul.mubr.bf16.gmra.mrb[0].mxu0 %v10499
      %v10796 = vpop.f32.mrb[0].mxu0
      %v10797 = vadd.f32 %v10725, %v10796
      %v10798 = vpop.f32.mrb[0].mxu0
      %v10799 = vpop.f32.mrb[0].mxu0
      %v10800 = vadd.f32 %v10728, %v10799
      %v10801 = vpop.f32.mrb[0].mxu0
      %10802 = vmatprep.mubr.bf16.mxu0 0
      %10803 = vmatmul.mubr.bf16.gmra.mrb[0].mxu0 %v10502
      %v10804 = vpop.f32.mrb[0].mxu0
      %v10805 = vadd.f32 %v10733, %v10804
      %v10806 = vpop.f32.mrb[0].mxu0
      %v10807 = vpop.f32.mrb[0].mxu0
      %v10808 = vpop.f32.mrb[0].mxu0
      %10809 = vdwg.mxu0
      %v10810 = vadd.f32 %v10009, %v10620
      %v10811 = vadd.f32 %v10010, %v10622
      %v10812 = vadd.f32 %v10011, %v10773
      %v10813 = vadd.f32 %v10012, %v10624
      %v10814 = vadd.f32 %v10013, %v10626
      %v10815 = vadd.f32 %v10014, %v10776
      %v10816 = vadd.f32 %v10015, %v10630
      %v10817 = vadd.f32 %v10016, %v10632
      %v10818 = vadd.f32 %v10017, %v10781
      %v10819 = vadd.f32 %v10018, %v10634
      %v10820 = vadd.f32 %v10019, %v10636
      %v10821 = vadd.f32 %v10020, %v10784
      %v10822 = vadd.f32 %v10021, %v10640
      %v10823 = vadd.f32 %v10022, %v10642
      %v10824 = vadd.f32 %v10023, %v10789
      %v10825 = vadd.f32 %v10024, %v10644
      %v10826 = vadd.f32 %v10025, %v10646
      %v10827 = vadd.f32 %v10026, %v10792
      %v10828 = vadd.f32 %v10027, %v10650
      %v10829 = vadd.f32 %v10028, %v10652
      %v10830 = vadd.f32 %v10029, %v10797
      %v10831 = vadd.f32 %v10030, %v10654
      %v10832 = vadd.f32 %v10031, %v10656
      %v10833 = vadd.f32 %v10032, %v10800
      %v10834 = vadd.f32 %v10033, %v10660
      %v10835 = vadd.f32 %v10034, %v10662
      %v10836 = vadd.f32 %v10035, %v10805
      %v10837 = vld [vmem:[%s4] sm:$0x7]
      %v10839 = vlaneseq
      %v10840 = vshrl.u32 %v10839, 7
      %v10841 = vsub.s32 0, %v10840
      %v10842 = vrot.slane %v10837, %v10841
      %v10843 = vlaneseq
      %v10844 = vshrl.u32 %v10843, 7
      %v10845 = vsub.s32 1, %v10844
      %v10846 = vrot.slane %v10837, %v10845
      %v10847 = vlaneseq
      %v10848 = vshrl.u32 %v10847, 7
      %v10849 = vsub.s32 2, %v10848
      %v10850 = vrot.slane %v10837, %v10849
      %v10854 = vadd.f32 %v10810, %v10842
      %v10855 = vadd.f32 %v10811, %v10846
      %v10856 = vadd.f32 %v10812, %v10850
      %v10857 = vadd.f32 %v10813, %v10842
      %v10858 = vadd.f32 %v10814, %v10846
      %v10859 = vadd.f32 %v10815, %v10850
      %v10860 = vadd.f32 %v10816, %v10842
      %v10861 = vadd.f32 %v10817, %v10846
      %v10862 = vadd.f32 %v10818, %v10850
      %v10863 = vadd.f32 %v10819, %v10842
      %v10864 = vadd.f32 %v10820, %v10846
      %v10865 = vadd.f32 %v10821, %v10850
      %v10866 = vadd.f32 %v10822, %v10842
      %v10867 = vadd.f32 %v10823, %v10846
      %v10868 = vadd.f32 %v10824, %v10850
      %v10869 = vadd.f32 %v10825, %v10842
      %v10870 = vadd.f32 %v10826, %v10846
      %v10871 = vadd.f32 %v10827, %v10850
      %v10872 = vadd.f32 %v10828, %v10842
      %v10873 = vadd.f32 %v10829, %v10846
      %v10874 = vadd.f32 %v10830, %v10850
      %v10875 = vadd.f32 %v10831, %v10842
      %v10876 = vadd.f32 %v10832, %v10846
      %v10877 = vadd.f32 %v10833, %v10850
      %v10878 = vadd.f32 %v10834, %v10842
      %v10879 = vadd.f32 %v10835, %v10846
      %v10880 = vadd.f32 %v10836, %v10850
      %v10881 = vmax.f32 %v10854, 0.0
      %v10882 = vmax.f32 %v10855, 0.0
      %v10883 = vmax.f32 %v10856, 0.0
      %v10884 = vmax.f32 %v10857, 0.0
      %v10885 = vmax.f32 %v10858, 0.0
      %v10886 = vmax.f32 %v10859, 0.0
      %v10887 = vmax.f32 %v10860, 0.0
      %v10888 = vmax.f32 %v10861, 0.0
      %v10889 = vmax.f32 %v10862, 0.0
      %v10890 = vmax.f32 %v10863, 0.0
      %v10891 = vmax.f32 %v10864, 0.0
      %v10892 = vmax.f32 %v10865, 0.0
      %v10893 = vmax.f32 %v10866, 0.0
      %v10894 = vmax.f32 %v10867, 0.0
      %v10895 = vmax.f32 %v10868, 0.0
      %v10896 = vmax.f32 %v10869, 0.0
      %v10897 = vmax.f32 %v10870, 0.0
      %v10898 = vmax.f32 %v10871, 0.0
      %v10899 = vmax.f32 %v10872, 0.0
      %v10900 = vmax.f32 %v10873, 0.0
      %v10901 = vmax.f32 %v10874, 0.0
      %v10902 = vmax.f32 %v10875, 0.0
      %v10903 = vmax.f32 %v10876, 0.0
      %v10904 = vmax.f32 %v10877, 0.0
      %v10905 = vmax.f32 %v10878, 0.0
      %v10906 = vmax.f32 %v10879, 0.0
      %v10907 = vmax.f32 %v10880, 0.0
      %v10908 = vpack.c.bf16 %v10884, %v10881
      %v10909 = vpack.c.bf16 %v10885, %v10882
      %v10910 = vpack.c.bf16 %v10886, %v10883
      %v10911 = vpack.c.bf16 %v10890, %v10887
      %v10912 = vpack.c.bf16 %v10891, %v10888
      %v10913 = vpack.c.bf16 %v10892, %v10889
      %v10914 = vpack.c.bf16 %v10896, %v10893
      %v10915 = vpack.c.bf16 %v10897, %v10894
      %v10916 = vpack.c.bf16 %v10898, %v10895
      %v10917 = vpack.c.bf16 %v10902, %v10899
      %v10918 = vpack.c.bf16 %v10903, %v10900
      %v10919 = vpack.c.bf16 %v10904, %v10901
      %v10920 = vpack.c.bf16 %v10905, %v10905
      %v10921 = vpack.c.bf16 %v10906, %v10906
      %v10922 = vpack.c.bf16 %v10907, %v10907
      %v10923 = vld [vmem:[%s5] sm:$0xff]
      %v10924 = vld [vmem:[%s5 + $0x8] sm:$0xff]
      %v10925 = vld [vmem:[%s5 + $0x10] sm:$0xff]
      %v10926 = vld [vmem:[%s5 + $0x18] sm:$0xff]
      %v10927 = vld [vmem:[%s5 + $0x20] sm:$0xff]
      %v10928 = vld [vmem:[%s5 + $0x28] sm:$0xff]
      %v10929 = vld [vmem:[%s5 + $0x30] sm:$0xff]
      %v10930 = vld [vmem:[%s5 + $0x38] sm:$0xff]
      %v10931 = vld [vmem:[%s5 + $0x40] sm:$0xff]
      %v10932 = vld [vmem:[%s5 + $0x48] sm:$0xff]
      %v10933 = vld [vmem:[%s5 + $0x50] sm:$0xff]
      %v10934 = vld [vmem:[%s5 + $0x58] sm:$0xff]
      %v10935 = vld [vmem:[%s5 + $0x60] sm:$0xff]
      %v10936 = vld [vmem:[%s5 + $0x68] sm:$0xff]
      %v10937 = vld [vmem:[%s5 + $0x70] sm:$0xff]
      %v10938 = vld [vmem:[%s5 + $0x78] sm:$0xff]
      %v10939 = vld [vmem:[%s5 + $0x80] sm:$0xff]
      %v10940 = vld [vmem:[%s5 + $0x88] sm:$0xff]
      %v10941 = vld [vmem:[%s5 + $0x90] sm:$0xff]
      %v10942 = vld [vmem:[%s5 + $0x98] sm:$0xff]
      %v10943 = vld [vmem:[%s5 + $0xa0] sm:$0xff]
      %v10944 = vld [vmem:[%s5 + $0xa8] sm:$0xff]
      %v10945 = vld [vmem:[%s5 + $0xb0] sm:$0xff]
      %v10946 = vld [vmem:[%s5 + $0xb8] sm:$0xff]
      %v10947 = vld [vmem:[%s5 + $0xc0] sm:$0xff]
      %v10948 = vld [vmem:[%s5 + $0xc8] sm:$0xff]
      %v10949 = vld [vmem:[%s5 + $0xd0] sm:$0xff]
      %v10950 = vld [vmem:[%s5 + $0xd8] sm:$0xff]
      %v10951 = vld [vmem:[%s5 + $0xe0] sm:$0xff]
      %v10952 = vld [vmem:[%s5 + $0xe8] sm:$0xff]
      %v10953 = vld [vmem:[%s5 + $0xf0] sm:$0xff]
      %v10954 = vld [vmem:[%s5 + $0xf8] sm:$0xff]
      %v10955 = vld [vmem:[%s5 + $0x100] sm:$0xff]
      %v10956 = vld [vmem:[%s5 + $0x108] sm:$0xff]
      %v10957 = vld [vmem:[%s5 + $0x110] sm:$0xff]
      %v10958 = vld [vmem:[%s5 + $0x118] sm:$0xff]
      %v10959 = vld [vmem:[%s5 + $0x120] sm:$0xff]
      %v10960 = vld [vmem:[%s5 + $0x128] sm:$0xff]
      %v10961 = vld [vmem:[%s5 + $0x130] sm:$0xff]
      %v10962 = vld [vmem:[%s5 + $0x138] sm:$0xff]
      %v10963 = vld [vmem:[%s5 + $0x140] sm:$0xff]
      %v10964 = vld [vmem:[%s5 + $0x148] sm:$0xff]
      %v10965 = vld [vmem:[%s5 + $0x150] sm:$0xff]
      %v10966 = vld [vmem:[%s5 + $0x158] sm:$0xff]
      %v10967 = vld [vmem:[%s5 + $0x160] sm:$0xff]
      %v10968 = vld [vmem:[%s5 + $0x168] sm:$0xff]
      %v10969 = vld [vmem:[%s5 + $0x170] sm:$0xff]
      %v10970 = vld [vmem:[%s5 + $0x178] sm:$0xff]
      %v10971 = vld [vmem:[%s5 + $0x180] sm:$0xff]
      %v10972 = vld [vmem:[%s5 + $0x188] sm:$0xff]
      %v10973 = vld [vmem:[%s5 + $0x190] sm:$0xff]
      %v10974 = vld [vmem:[%s5 + $0x198] sm:$0xff]
      %v10975 = vld [vmem:[%s5 + $0x1a0] sm:$0xff]
      %v10976 = vld [vmem:[%s5 + $0x1a8] sm:$0xff]
      %v10977 = vld [vmem:[%s5 + $0x1b0] sm:$0xff]
      %v10978 = vld [vmem:[%s5 + $0x1b8] sm:$0xff]
      %v10979 = vld [vmem:[%s5 + $0x1c0] sm:$0xff]
      %v10980 = vld [vmem:[%s5 + $0x1c8] sm:$0xff]
      %v10981 = vld [vmem:[%s5 + $0x1d0] sm:$0xff]
      %v10982 = vld [vmem:[%s5 + $0x1d8] sm:$0xff]
      %v10983 = vld [vmem:[%s5 + $0x1e0] sm:$0xff]
      %v10984 = vld [vmem:[%s5 + $0x1e8] sm:$0xff]
      %v10985 = vld [vmem:[%s5 + $0x1f0] sm:$0xff]
      %v10986 = vld [vmem:[%s5 + $0x1f8] sm:$0xff]
      %v10987 = vld [vmem:[%s5 + $0x200] sm:$0xff]
      %v10988 = vld [vmem:[%s5 + $0x208] sm:$0xff]
      %v10989 = vld [vmem:[%s5 + $0x210] sm:$0xff]
      %v10990 = vld [vmem:[%s5 + $0x218] sm:$0xff]
      %v10991 = vld [vmem:[%s5 + $0x220] sm:$0xff]
      %v10992 = vld [vmem:[%s5 + $0x228] sm:$0xff]
      %v10993 = vld [vmem:[%s5 + $0x230] sm:$0xff]
      %v10994 = vld [vmem:[%s5 + $0x238] sm:$0xff]
      %v10998 = vrot.slane %v10908, 4
      %v10999 = vrot.slane %v10909, 4
      %v11000 = vrot.slane %v10910, 4
      %v11039 = vunpack.c.l.b16 %v10959
      %v11040 = vunpack.c.h.b16 %v10959
      %v11041 = vunpack.c.l.b16 %v10960
      %v11042 = vunpack.c.h.b16 %v10960
      %v11043 = vunpack.c.l.b16 %v10961
      %v11044 = vunpack.c.h.b16 %v10961
      %v11045 = vunpack.c.l.b16 %v10962
      %v11046 = vunpack.c.h.b16 %v10962
      %v11047 = vunpack.c.l.b16 %v10963
      %v11048 = vunpack.c.h.b16 %v10963
      %v11049 = vunpack.c.l.b16 %v10964
      %v11050 = vunpack.c.h.b16 %v10964
      %v11051 = vunpack.c.l.b16 %v10965
      %v11052 = vunpack.c.h.b16 %v10965
      %v11053 = vunpack.c.l.b16 %v10966
      %v11054 = vunpack.c.h.b16 %v10966
      %v11055 = vunpack.c.l.b16 %v10967
      %v11056 = vunpack.c.h.b16 %v10967
      %v11057 = vunpack.c.l.b16 %v10968
      %v11058 = vunpack.c.h.b16 %v10968
      %v11059 = vunpack.c.l.b16 %v10969
      %v11060 = vunpack.c.h.b16 %v10969
      %v11061 = vunpack.c.l.b16 %v10970
      %v11062 = vunpack.c.h.b16 %v10970
      %v11063 = vunpack.c.l.b16 %v10971
      %v11064 = vunpack.c.h.b16 %v10971
      %v11065 = vunpack.c.l.b16 %v10972
      %v11066 = vunpack.c.h.b16 %v10972
      %v11067 = vunpack.c.l.b16 %v10973
      %v11068 = vunpack.c.h.b16 %v10973
      %v11069 = vunpack.c.l.b16 %v10974
      %v11070 = vunpack.c.h.b16 %v10974
      %v11071 = vunpack.c.l.b16 %v10975
      %v11072 = vunpack.c.h.b16 %v10975
      %v11073 = vunpack.c.l.b16 %v10976
      %v11074 = vunpack.c.h.b16 %v10976
      %v11075 = vunpack.c.l.b16 %v10977
      %v11076 = vunpack.c.h.b16 %v10977
      %v11077 = vunpack.c.l.b16 %v10978
      %v11078 = vunpack.c.h.b16 %v10978
      %v11079 = vunpack.c.l.b16 %v10979
      %v11080 = vunpack.c.h.b16 %v10979
      %v11081 = vunpack.c.l.b16 %v10980
      %v11082 = vunpack.c.h.b16 %v10980
      %v11083 = vunpack.c.l.b16 %v10981
      %v11084 = vunpack.c.h.b16 %v10981
      %v11085 = vunpack.c.l.b16 %v10982
      %v11086 = vunpack.c.h.b16 %v10982
      %v11087 = vunpack.c.l.b16 %v10983
      %v11088 = vunpack.c.h.b16 %v10983
      %v11089 = vunpack.c.l.b16 %v10984
      %v11090 = vunpack.c.h.b16 %v10984
      %v11091 = vunpack.c.l.b16 %v10985
      %v11092 = vunpack.c.h.b16 %v10985
      %v11093 = vunpack.c.l.b16 %v10986
      %v11094 = vunpack.c.h.b16 %v10986
      %v11095 = vunpack.c.l.b16 %v10987
      %v11096 = vunpack.c.h.b16 %v10987
      %v11097 = vunpack.c.l.b16 %v10988
      %v11098 = vunpack.c.h.b16 %v10988
      %v11099 = vunpack.c.l.b16 %v10989
      %v11100 = vunpack.c.h.b16 %v10989
      %v11101 = vunpack.c.l.b16 %v10990
      %v11102 = vunpack.c.h.b16 %v10990
      %v11103 = vunpack.c.l.b16 %v10991
      %v11104 = vunpack.c.h.b16 %v10991
      %v11105 = vunpack.c.l.b16 %v10992
      %v11106 = vunpack.c.h.b16 %v10992
      %v11107 = vunpack.c.l.b16 %v10993
      %v11108 = vunpack.c.h.b16 %v10993
      %v11109 = vunpack.c.l.b16 %v10994
      %v11110 = vunpack.c.h.b16 %v10994
      %v11111 = vpack.c.b16 %v11041, %v11039
      %v11112 = vpack.c.b16 %v11042, %v11040
      %v11113 = vpack.c.b16 %v11045, %v11043
      %v11114 = vpack.c.b16 %v11046, %v11044
      %v11115 = vpack.c.b16 %v11049, %v11047
      %v11116 = vpack.c.b16 %v11050, %v11048
      %v11117 = vpack.c.b16 %v11053, %v11051
      %v11118 = vpack.c.b16 %v11054, %v11052
      %v11119 = vpack.c.b16 %v11057, %v11055
      %v11120 = vpack.c.b16 %v11058, %v11056
      %v11121 = vpack.c.b16 %v11061, %v11059
      %v11122 = vpack.c.b16 %v11062, %v11060
      %v11123 = vpack.c.b16 %v11065, %v11063
      %v11124 = vpack.c.b16 %v11066, %v11064
      %v11125 = vpack.c.b16 %v11069, %v11067
      %v11126 = vpack.c.b16 %v11070, %v11068
      %v11127 = vpack.c.b16 %v11073, %v11071
      %v11128 = vpack.c.b16 %v11074, %v11072
      %v11129 = vpack.c.b16 %v11077, %v11075
      %v11130 = vpack.c.b16 %v11078, %v11076
      %v11131 = vpack.c.b16 %v11081, %v11079
      %v11132 = vpack.c.b16 %v11082, %v11080
      %v11133 = vpack.c.b16 %v11085, %v11083
      %v11134 = vpack.c.b16 %v11086, %v11084
      %v11135 = vpack.c.b16 %v11089, %v11087
      %v11136 = vpack.c.b16 %v11090, %v11088
      %v11137 = vpack.c.b16 %v11093, %v11091
      %v11138 = vpack.c.b16 %v11094, %v11092
      %v11139 = vpack.c.b16 %v11097, %v11095
      %v11140 = vpack.c.b16 %v11098, %v11096
      %v11141 = vpack.c.b16 %v11101, %v11099
      %v11142 = vpack.c.b16 %v11102, %v11100
      %v11143 = vpack.c.b16 %v11105, %v11103
      %v11144 = vpack.c.b16 %v11106, %v11104
      %v11145 = vpack.c.b16 %v11109, %v11107
      %v11146 = vpack.c.b16 %v11110, %v11108
      %vm11183 = vcmask 261120
      %v11185 = vsel %vm11183, %v11000, 0
      %11187 = vmatprep.subr.bf16.mxu0 %v11112
      %11188 = vmatpush1.bf16.msra.mxu0 %v11111
      %11189 = vmatprep.subr.bf16.mxu0 %v11114
      %11190 = vmatpush1.bf16.msra.mxu0 %v11113
      %11191 = vmatprep.subr.bf16.mxu0 %v11116
      %11192 = vmatpush1.bf16.msra.mxu0 %v11115
      %11193 = vmatprep.subr.bf16.mxu0 %v11118
      %11194 = vmatpush1.bf16.msra.mxu0 %v11117
      %11195 = vmatprep.subr.bf16.mxu0 %v11120
      %11196 = vmatpush1.bf16.msra.mxu0 %v11119
      %11197 = vmatprep.subr.bf16.mxu0 %v11122
      %11198 = vmatpush1.bf16.msra.mxu0 %v11121
      %11199 = vmatprep.subr.bf16.mxu0 %v11124
      %11200 = vmatpush1.bf16.msra.mxu0 %v11123
      %11201 = vmatprep.subr.bf16.mxu0 %v11126
      %11202 = vmatpush1.bf16.msra.mxu0 %v11125
      %11203 = vmatprep.subr.bf16.mxu0 %v11128
      %11204 = vmatpush1.bf16.msra.mxu0 %v11127
      %11205 = vmatprep.subr.bf16.mxu0 %v11130
      %11206 = vmatpush1.bf16.msra.mxu0 %v11129
      %11207 = vmatprep.subr.bf16.mxu0 %v11132
      %11208 = vmatpush1.bf16.msra.mxu0 %v11131
      %11209 = vmatprep.subr.bf16.mxu0 %v11134
      %11210 = vmatpush1.bf16.msra.mxu0 %v11133
      %11211 = vmatprep.subr.bf16.mxu0 %v11136
      %11212 = vmatpush1.bf16.msra.mxu0 %v11135
      %11213 = vmatprep.subr.bf16.mxu0 %v11138
      %11214 = vmatpush1.bf16.msra.mxu0 %v11137
      %11215 = vmatprep.subr.bf16.mxu0 %v11140
      %11216 = vmatpush1.bf16.msra.mxu0 %v11139
      %11217 = vmatprep.subr.bf16.mxu0 %v11142
      %11218 = vmatpush1.bf16.msra.mxu0 %v11141
      %11219 = vmatprep.mubr.bf16.mxu0 %v10999
      %11220 = vmatmul.mubr.bf16.gmra.mrb[0].mxu0 %v10998
      %v11221 = vpop.f32.mrb[0].mxu0
      %v11222 = vadd.f32 0.0, %v11221
      %v11223 = vpop.f32.mrb[0].mxu0
      %v11224 = vadd.f32 0.0, %v11223
      %v11225 = vpop.f32.mrb[0].mxu0
      %v11226 = vpop.f32.mrb[0].mxu0
      %11227 = vdwg.mxu0
      %11228 = vmatprep.subr.bf16.mxu0 %v11144
      %11229 = vmatpush1.bf16.msra.mxu0 %v11143
      %11230 = vmatprep.subr.bf16.mxu0 %v11146
      %11231 = vmatpush1.bf16.msra.mxu0 %v11145
      %11232 = vmatprep.subr.bf16.mxu0 0
      %11233 = vmatpush1.bf16.msra.mxu0 0
      %11234 = vmatprep.subr.bf16.mxu0 0
      %11235 = vmatpush1.bf16.msra.mxu0 0
      %11236 = vmatprep.subr.bf16.mxu0 0
      %11237 = vmatpush1.bf16.msra.mxu0 0
      %11238 = vmatprep.subr.bf16.mxu0 0
      %11239 = vmatpush1.bf16.msra.mxu0 0
      %11240 = vmatprep.subr.bf16.mxu0 0
      %11241 = vmatpush1.bf16.msra.mxu0 0
      %11242 = vmatprep.subr.bf16.mxu0 0
      %11243 = vmatpush1.bf16.msra.mxu0 0
      %11244 = vmatprep.subr.bf16.mxu0 0
      %11245 = vmatpush1.bf16.msra.mxu0 0
      %11246 = vmatprep.subr.bf16.mxu0 0
      %11247 = vmatpush1.bf16.msra.mxu0 0
      %11248 = vmatprep.subr.bf16.mxu0 0
      %11249 = vmatpush1.bf16.msra.mxu0 0
      %11250 = vmatprep.subr.bf16.mxu0 0
      %11251 = vmatpush1.bf16.msra.mxu0 0
      %11252 = vmatprep.subr.bf16.mxu0 0
      %11253 = vmatpush1.bf16.msra.mxu0 0
      %11254 = vmatprep.subr.bf16.mxu0 0
      %11255 = vmatpush1.bf16.msra.mxu0 0
      %11256 = vmatprep.subr.bf16.mxu0 0
      %11257 = vmatpush1.bf16.msra.mxu0 0
      %11258 = vmatprep.subr.bf16.mxu0 0
      %11259 = vmatpush1.bf16.msra.mxu0 0
      %11260 = vmatprep.mubr.bf16.mxu0 0
      %11261 = vmatmul.mubr.bf16.gmra.mrb[0].mxu0 %v11185
      %v11262 = vpop.f32.mrb[0].mxu0
      %v11263 = vadd.f32 %v11222, %v11262
      %v11264 = vpop.f32.mrb[0].mxu0
      %v11265 = vadd.f32 %v11224, %v11264
      %v11266 = vpop.f32.mrb[0].mxu0
      %v11267 = vpop.f32.mrb[0].mxu0
      %11268 = vdwg.mxu0
      %v11269 = vld [vmem:[%s5 + $0x240] sm:$0xff]
      %v11270 = vld [vmem:[%s5 + $0x248] sm:$0xff]
      %v11271 = vld [vmem:[%s5 + $0x250] sm:$0xff]
      %v11272 = vld [vmem:[%s5 + $0x258] sm:$0xff]
      %v11273 = vld [vmem:[%s5 + $0x260] sm:$0xff]
      %v11274 = vld [vmem:[%s5 + $0x268] sm:$0xff]
      %v11275 = vld [vmem:[%s5 + $0x270] sm:$0xff]
      %v11276 = vld [vmem:[%s5 + $0x278] sm:$0xff]
      %v11277 = vld [vmem:[%s5 + $0x280] sm:$0xff]
      %v11278 = vld [vmem:[%s5 + $0x288] sm:$0xff]
      %v11279 = vld [vmem:[%s5 + $0x290] sm:$0xff]
      %v11280 = vld [vmem:[%s5 + $0x298] sm:$0xff]
      %v11281 = vld [vmem:[%s5 + $0x2a0] sm:$0xff]
      %v11282 = vld [vmem:[%s5 + $0x2a8] sm:$0xff]
      %v11283 = vld [vmem:[%s5 + $0x2b0] sm:$0xff]
      %v11284 = vld [vmem:[%s5 + $0x2b8] sm:$0xff]
      %v11285 = vld [vmem:[%s5 + $0x2c0] sm:$0xff]
      %v11286 = vld [vmem:[%s5 + $0x2c8] sm:$0xff]
      %v11287 = vld [vmem:[%s5 + $0x2d0] sm:$0xff]
      %v11288 = vld [vmem:[%s5 + $0x2d8] sm:$0xff]
      %v11289 = vld [vmem:[%s5 + $0x2e0] sm:$0xff]
      %v11290 = vld [vmem:[%s5 + $0x2e8] sm:$0xff]
      %v11291 = vld [vmem:[%s5 + $0x2f0] sm:$0xff]
      %v11292 = vld [vmem:[%s5 + $0x2f8] sm:$0xff]
      %v11293 = vld [vmem:[%s5 + $0x300] sm:$0xff]
      %v11294 = vld [vmem:[%s5 + $0x308] sm:$0xff]
      %v11295 = vld [vmem:[%s5 + $0x310] sm:$0xff]
      %v11296 = vld [vmem:[%s5 + $0x318] sm:$0xff]
      %v11297 = vld [vmem:[%s5 + $0x320] sm:$0xff]
      %v11298 = vld [vmem:[%s5 + $0x328] sm:$0xff]
      %v11299 = vld [vmem:[%s5 + $0x330] sm:$0xff]
      %v11300 = vld [vmem:[%s5 + $0x338] sm:$0xff]
      %v11301 = vld [vmem:[%s5 + $0x340] sm:$0xff]
      %v11302 = vld [vmem:[%s5 + $0x348] sm:$0xff]
      %v11303 = vld [vmem:[%s5 + $0x350] sm:$0xff]
      %v11304 = vld [vmem:[%s5 + $0x358] sm:$0xff]
      %v11341 = vunpack.c.l.b16 %v11269
      %v11342 = vunpack.c.h.b16 %v11269
      %v11343 = vunpack.c.l.b16 %v11270
      %v11344 = vunpack.c.h.b16 %v11270
      %v11345 = vunpack.c.l.b16 %v11271
      %v11346 = vunpack.c.h.b16 %v11271
      %v11347 = vunpack.c.l.b16 %v11272
      %v11348 = vunpack.c.h.b16 %v11272
      %v11349 = vunpack.c.l.b16 %v11273
      %v11350 = vunpack.c.h.b16 %v11273
      %v11351 = vunpack.c.l.b16 %v11274
      %v11352 = vunpack.c.h.b16 %v11274
      %v11353 = vunpack.c.l.b16 %v11275
      %v11354 = vunpack.c.h.b16 %v11275
      %v11355 = vunpack.c.l.b16 %v11276
      %v11356 = vunpack.c.h.b16 %v11276
      %v11357 = vunpack.c.l.b16 %v11277
      %v11358 = vunpack.c.h.b16 %v11277
      %v11359 = vunpack.c.l.b16 %v11278
      %v11360 = vunpack.c.h.b16 %v11278
      %v11361 = vunpack.c.l.b16 %v11279
      %v11362 = vunpack.c.h.b16 %v11279
      %v11363 = vunpack.c.l.b16 %v11280
      %v11364 = vunpack.c.h.b16 %v11280
      %v11365 = vunpack.c.l.b16 %v11281
      %v11366 = vunpack.c.h.b16 %v11281
      %v11367 = vunpack.c.l.b16 %v11282
      %v11368 = vunpack.c.h.b16 %v11282
      %v11369 = vunpack.c.l.b16 %v11283
      %v11370 = vunpack.c.h.b16 %v11283
      %v11371 = vunpack.c.l.b16 %v11284
      %v11372 = vunpack.c.h.b16 %v11284
      %v11373 = vunpack.c.l.b16 %v11285
      %v11374 = vunpack.c.h.b16 %v11285
      %v11375 = vunpack.c.l.b16 %v11286
      %v11376 = vunpack.c.h.b16 %v11286
      %v11377 = vunpack.c.l.b16 %v11287
      %v11378 = vunpack.c.h.b16 %v11287
      %v11379 = vunpack.c.l.b16 %v11288
      %v11380 = vunpack.c.h.b16 %v11288
      %v11381 = vunpack.c.l.b16 %v11289
      %v11382 = vunpack.c.h.b16 %v11289
      %v11383 = vunpack.c.l.b16 %v11290
      %v11384 = vunpack.c.h.b16 %v11290
      %v11385 = vunpack.c.l.b16 %v11291
      %v11386 = vunpack.c.h.b16 %v11291
      %v11387 = vunpack.c.l.b16 %v11292
      %v11388 = vunpack.c.h.b16 %v11292
      %v11389 = vunpack.c.l.b16 %v11293
      %v11390 = vunpack.c.h.b16 %v11293
      %v11391 = vunpack.c.l.b16 %v11294
      %v11392 = vunpack.c.h.b16 %v11294
      %v11393 = vunpack.c.l.b16 %v11295
      %v11394 = vunpack.c.h.b16 %v11295
      %v11395 = vunpack.c.l.b16 %v11296
      %v11396 = vunpack.c.h.b16 %v11296
      %v11397 = vunpack.c.l.b16 %v11297
      %v11398 = vunpack.c.h.b16 %v11297
      %v11399 = vunpack.c.l.b16 %v11298
      %v11400 = vunpack.c.h.b16 %v11298
      %v11401 = vunpack.c.l.b16 %v11299
      %v11402 = vunpack.c.h.b16 %v11299
      %v11403 = vunpack.c.l.b16 %v11300
      %v11404 = vunpack.c.h.b16 %v11300
      %v11405 = vunpack.c.l.b16 %v11301
      %v11406 = vunpack.c.h.b16 %v11301
      %v11407 = vunpack.c.l.b16 %v11302
      %v11408 = vunpack.c.h.b16 %v11302
      %v11409 = vunpack.c.l.b16 %v11303
      %v11410 = vunpack.c.h.b16 %v11303
      %v11411 = vunpack.c.l.b16 %v11304
      %v11412 = vunpack.c.h.b16 %v11304
      %v11413 = vpack.c.b16 %v11343, %v11341
      %v11414 = vpack.c.b16 %v11344, %v11342
      %v11415 = vpack.c.b16 %v11347, %v11345
      %v11416 = vpack.c.b16 %v11348, %v11346
      %v11417 = vpack.c.b16 %v11351, %v11349
      %v11418 = vpack.c.b16 %v11352, %v11350
      %v11419 = vpack.c.b16 %v11355, %v11353
      %v11420 = vpack.c.b16 %v11356, %v11354
      %v11421 = vpack.c.b16 %v11359, %v11357
      %v11422 = vpack.c.b16 %v11360, %v11358
      %v11423 = vpack.c.b16 %v11363, %v11361
      %v11424 = vpack.c.b16 %v11364, %v11362
      %v11425 = vpack.c.b16 %v11367, %v11365
      %v11426 = vpack.c.b16 %v11368, %v11366
      %v11427 = vpack.c.b16 %v11371, %v11369
      %v11428 = vpack.c.b16 %v11372, %v11370
      %v11429 = vpack.c.b16 %v11375, %v11373
      %v11430 = vpack.c.b16 %v11376, %v11374
      %v11431 = vpack.c.b16 %v11379, %v11377
      %v11432 = vpack.c.b16 %v11380, %v11378
      %v11433 = vpack.c.b16 %v11383, %v11381
      %v11434 = vpack.c.b16 %v11384, %v11382
      %v11435 = vpack.c.b16 %v11387, %v11385
      %v11436 = vpack.c.b16 %v11388, %v11386
      %v11437 = vpack.c.b16 %v11391, %v11389
      %v11438 = vpack.c.b16 %v11392, %v11390
      %v11439 = vpack.c.b16 %v11395, %v11393
      %v11440 = vpack.c.b16 %v11396, %v11394
      %v11441 = vpack.c.b16 %v11399, %v11397
      %v11442 = vpack.c.b16 %v11400, %v11398
      %v11443 = vpack.c.b16 %v11403, %v11401
      %v11444 = vpack.c.b16 %v11404, %v11402
      %v11445 = vpack.c.b16 %v11407, %v11405
      %v11446 = vpack.c.b16 %v11408, %v11406
      %v11447 = vpack.c.b16 %v11411, %v11409
      %v11448 = vpack.c.b16 %v11412, %v11410
      %v11486 = vsel %vm11183, %v10913, 0
      %11488 = vmatprep.subr.bf16.mxu0 %v11414
      %11489 = vmatpush1.bf16.msra.mxu0 %v11413
      %11490 = vmatprep.subr.bf16.mxu0 %v11416
      %11491 = vmatpush1.bf16.msra.mxu0 %v11415
      %11492 = vmatprep.subr.bf16.mxu0 %v11418
      %11493 = vmatpush1.bf16.msra.mxu0 %v11417
      %11494 = vmatprep.subr.bf16.mxu0 %v11420
      %11495 = vmatpush1.bf16.msra.mxu0 %v11419
      %11496 = vmatprep.subr.bf16.mxu0 %v11422
      %11497 = vmatpush1.bf16.msra.mxu0 %v11421
      %11498 = vmatprep.subr.bf16.mxu0 %v11424
      %11499 = vmatpush1.bf16.msra.mxu0 %v11423
      %11500 = vmatprep.subr.bf16.mxu0 %v11426
      %11501 = vmatpush1.bf16.msra.mxu0 %v11425
      %11502 = vmatprep.subr.bf16.mxu0 %v11428
      %11503 = vmatpush1.bf16.msra.mxu0 %v11427
      %11504 = vmatprep.subr.bf16.mxu0 %v11430
      %11505 = vmatpush1.bf16.msra.mxu0 %v11429
      %11506 = vmatprep.subr.bf16.mxu0 %v11432
      %11507 = vmatpush1.bf16.msra.mxu0 %v11431
      %11508 = vmatprep.subr.bf16.mxu0 %v11434
      %11509 = vmatpush1.bf16.msra.mxu0 %v11433
      %11510 = vmatprep.subr.bf16.mxu0 %v11436
      %11511 = vmatpush1.bf16.msra.mxu0 %v11435
      %11512 = vmatprep.subr.bf16.mxu0 %v11438
      %11513 = vmatpush1.bf16.msra.mxu0 %v11437
      %11514 = vmatprep.subr.bf16.mxu0 %v11440
      %11515 = vmatpush1.bf16.msra.mxu0 %v11439
      %11516 = vmatprep.subr.bf16.mxu0 %v11442
      %11517 = vmatpush1.bf16.msra.mxu0 %v11441
      %11518 = vmatprep.subr.bf16.mxu0 %v11444
      %11519 = vmatpush1.bf16.msra.mxu0 %v11443
      %11520 = vmatprep.mubr.bf16.mxu0 %v10912
      %11521 = vmatmul.mubr.bf16.gmra.mrb[0].mxu0 %v10911
      %v11522 = vpop.f32.mrb[0].mxu0
      %v11523 = vadd.f32 0.0, %v11522
      %v11524 = vpop.f32.mrb[0].mxu0
      %v11525 = vadd.f32 0.0, %v11524
      %v11526 = vpop.f32.mrb[0].mxu0
      %v11527 = vpop.f32.mrb[0].mxu0
      %11528 = vdwg.mxu0
      %11529 = vmatprep.subr.bf16.mxu0 %v11446
      %11530 = vmatpush1.bf16.msra.mxu0 %v11445
      %11531 = vmatprep.subr.bf16.mxu0 %v11448
      %11532 = vmatpush1.bf16.msra.mxu0 %v11447
      %11533 = vmatprep.subr.bf16.mxu0 0
      %11534 = vmatpush1.bf16.msra.mxu0 0
      %11535 = vmatprep.subr.bf16.mxu0 0
      %11536 = vmatpush1.bf16.msra.mxu0 0
      %11537 = vmatprep.subr.bf16.mxu0 0
      %11538 = vmatpush1.bf16.msra.mxu0 0
      %11539 = vmatprep.subr.bf16.mxu0 0
      %11540 = vmatpush1.bf16.msra.mxu0 0
      %11541 = vmatprep.subr.bf16.mxu0 0
      %11542 = vmatpush1.bf16.msra.mxu0 0
      %11543 = vmatprep.subr.bf16.mxu0 0
      %11544 = vmatpush1.bf16.msra.mxu0 0
      %11545 = vmatprep.subr.bf16.mxu0 0
      %11546 = vmatpush1.bf16.msra.mxu0 0
      %11547 = vmatprep.subr.bf16.mxu0 0
      %11548 = vmatpush1.bf16.msra.mxu0 0
      %11549 = vmatprep.subr.bf16.mxu0 0
      %11550 = vmatpush1.bf16.msra.mxu0 0
      %11551 = vmatprep.subr.bf16.mxu0 0
      %11552 = vmatpush1.bf16.msra.mxu0 0
      %11553 = vmatprep.subr.bf16.mxu0 0
      %11554 = vmatpush1.bf16.msra.mxu0 0
      %11555 = vmatprep.subr.bf16.mxu0 0
      %11556 = vmatpush1.bf16.msra.mxu0 0
      %11557 = vmatprep.subr.bf16.mxu0 0
      %11558 = vmatpush1.bf16.msra.mxu0 0
      %11559 = vmatprep.subr.bf16.mxu0 0
      %11560 = vmatpush1.bf16.msra.mxu0 0
      %11561 = vmatprep.mubr.bf16.mxu0 0
      %11562 = vmatmul.mubr.bf16.gmra.mrb[0].mxu0 %v11486
      %v11563 = vpop.f32.mrb[0].mxu0
      %v11564 = vadd.f32 %v11523, %v11563
      %v11565 = vpop.f32.mrb[0].mxu0
      %v11566 = vadd.f32 %v11525, %v11565
      %v11567 = vpop.f32.mrb[0].mxu0
      %v11568 = vpop.f32.mrb[0].mxu0
      %11569 = vdwg.mxu0
      %v11570 = vld [vmem:[%s5 + $0x360] sm:$0xff]
      %v11571 = vld [vmem:[%s5 + $0x368] sm:$0xff]
      %v11572 = vld [vmem:[%s5 + $0x370] sm:$0xff]
      %v11573 = vld [vmem:[%s5 + $0x378] sm:$0xff]
      %v11574 = vld [vmem:[%s5 + $0x380] sm:$0xff]
      %v11575 = vld [vmem:[%s5 + $0x388] sm:$0xff]
      %v11576 = vld [vmem:[%s5 + $0x390] sm:$0xff]
      %v11577 = vld [vmem:[%s5 + $0x398] sm:$0xff]
      %v11578 = vld [vmem:[%s5 + $0x3a0] sm:$0xff]
      %v11579 = vld [vmem:[%s5 + $0x3a8] sm:$0xff]
      %v11580 = vld [vmem:[%s5 + $0x3b0] sm:$0xff]
      %v11581 = vld [vmem:[%s5 + $0x3b8] sm:$0xff]
      %v11582 = vld [vmem:[%s5 + $0x3c0] sm:$0xff]
      %v11583 = vld [vmem:[%s5 + $0x3c8] sm:$0xff]
      %v11584 = vld [vmem:[%s5 + $0x3d0] sm:$0xff]
      %v11585 = vld [vmem:[%s5 + $0x3d8] sm:$0xff]
      %v11586 = vld [vmem:[%s5 + $0x3e0] sm:$0xff]
      %v11587 = vld [vmem:[%s5 + $0x3e8] sm:$0xff]
      %v11588 = vld [vmem:[%s5 + $0x3f0] sm:$0xff]
      %v11589 = vld [vmem:[%s5 + $0x3f8] sm:$0xff]
      %v11590 = vld [vmem:[%s5 + $0x400] sm:$0xff]
      %v11591 = vld [vmem:[%s5 + $0x408] sm:$0xff]
      %v11592 = vld [vmem:[%s5 + $0x410] sm:$0xff]
      %v11593 = vld [vmem:[%s5 + $0x418] sm:$0xff]
      %v11594 = vld [vmem:[%s5 + $0x420] sm:$0xff]
      %v11595 = vld [vmem:[%s5 + $0x428] sm:$0xff]
      %v11596 = vld [vmem:[%s5 + $0x430] sm:$0xff]
      %v11597 = vld [vmem:[%s5 + $0x438] sm:$0xff]
      %v11598 = vld [vmem:[%s5 + $0x440] sm:$0xff]
      %v11599 = vld [vmem:[%s5 + $0x448] sm:$0xff]
      %v11600 = vld [vmem:[%s5 + $0x450] sm:$0xff]
      %v11601 = vld [vmem:[%s5 + $0x458] sm:$0xff]
      %v11602 = vld [vmem:[%s5 + $0x460] sm:$0xff]
      %v11603 = vld [vmem:[%s5 + $0x468] sm:$0xff]
      %v11604 = vld [vmem:[%s5 + $0x470] sm:$0xff]
      %v11605 = vld [vmem:[%s5 + $0x478] sm:$0xff]
      %v11609 = vrot.slane %v10911, 4
      %v11610 = vrot.slane %v10912, 4
      %v11611 = vrot.slane %v10913, 4
      %v11650 = vunpack.c.l.b16 %v11570
      %v11651 = vunpack.c.h.b16 %v11570
      %v11652 = vunpack.c.l.b16 %v11571
      %v11653 = vunpack.c.h.b16 %v11571
      %v11654 = vunpack.c.l.b16 %v11572
      %v11655 = vunpack.c.h.b16 %v11572
      %v11656 = vunpack.c.l.b16 %v11573
      %v11657 = vunpack.c.h.b16 %v11573
      %v11658 = vunpack.c.l.b16 %v11574
      %v11659 = vunpack.c.h.b16 %v11574
      %v11660 = vunpack.c.l.b16 %v11575
      %v11661 = vunpack.c.h.b16 %v11575
      %v11662 = vunpack.c.l.b16 %v11576
      %v11663 = vunpack.c.h.b16 %v11576
      %v11664 = vunpack.c.l.b16 %v11577
      %v11665 = vunpack.c.h.b16 %v11577
      %v11666 = vunpack.c.l.b16 %v11578
      %v11667 = vunpack.c.h.b16 %v11578
      %v11668 = vunpack.c.l.b16 %v11579
      %v11669 = vunpack.c.h.b16 %v11579
      %v11670 = vunpack.c.l.b16 %v11580
      %v11671 = vunpack.c.h.b16 %v11580
      %v11672 = vunpack.c.l.b16 %v11581
      %v11673 = vunpack.c.h.b16 %v11581
      %v11674 = vunpack.c.l.b16 %v11582
      %v11675 = vunpack.c.h.b16 %v11582
      %v11676 = vunpack.c.l.b16 %v11583
      %v11677 = vunpack.c.h.b16 %v11583
      %v11678 = vunpack.c.l.b16 %v11584
      %v11679 = vunpack.c.h.b16 %v11584
      %v11680 = vunpack.c.l.b16 %v11585
      %v11681 = vunpack.c.h.b16 %v11585
      %v11682 = vunpack.c.l.b16 %v11586
      %v11683 = vunpack.c.h.b16 %v11586
      %v11684 = vunpack.c.l.b16 %v11587
      %v11685 = vunpack.c.h.b16 %v11587
      %v11686 = vunpack.c.l.b16 %v11588
      %v11687 = vunpack.c.h.b16 %v11588
      %v11688 = vunpack.c.l.b16 %v11589
      %v11689 = vunpack.c.h.b16 %v11589
      %v11690 = vunpack.c.l.b16 %v11590
      %v11691 = vunpack.c.h.b16 %v11590
      %v11692 = vunpack.c.l.b16 %v11591
      %v11693 = vunpack.c.h.b16 %v11591
      %v11694 = vunpack.c.l.b16 %v11592
      %v11695 = vunpack.c.h.b16 %v11592
      %v11696 = vunpack.c.l.b16 %v11593
      %v11697 = vunpack.c.h.b16 %v11593
      %v11698 = vunpack.c.l.b16 %v11594
      %v11699 = vunpack.c.h.b16 %v11594
      %v11700 = vunpack.c.l.b16 %v11595
      %v11701 = vunpack.c.h.b16 %v11595
      %v11702 = vunpack.c.l.b16 %v11596
      %v11703 = vunpack.c.h.b16 %v11596
      %v11704 = vunpack.c.l.b16 %v11597
      %v11705 = vunpack.c.h.b16 %v11597
      %v11706 = vunpack.c.l.b16 %v11598
      %v11707 = vunpack.c.h.b16 %v11598
      %v11708 = vunpack.c.l.b16 %v11599
      %v11709 = vunpack.c.h.b16 %v11599
      %v11710 = vunpack.c.l.b16 %v11600
      %v11711 = vunpack.c.h.b16 %v11600
      %v11712 = vunpack.c.l.b16 %v11601
      %v11713 = vunpack.c.h.b16 %v11601
      %v11714 = vunpack.c.l.b16 %v11602
      %v11715 = vunpack.c.h.b16 %v11602
      %v11716 = vunpack.c.l.b16 %v11603
      %v11717 = vunpack.c.h.b16 %v11603
      %v11718 = vunpack.c.l.b16 %v11604
      %v11719 = vunpack.c.h.b16 %v11604
      %v11720 = vunpack.c.l.b16 %v11605
      %v11721 = vunpack.c.h.b16 %v11605
      %v11722 = vpack.c.b16 %v11652, %v11650
      %v11723 = vpack.c.b16 %v11653, %v11651
      %v11724 = vpack.c.b16 %v11656, %v11654
      %v11725 = vpack.c.b16 %v11657, %v11655
      %v11726 = vpack.c.b16 %v11660, %v11658
      %v11727 = vpack.c.b16 %v11661, %v11659
      %v11728 = vpack.c.b16 %v11664, %v11662
      %v11729 = vpack.c.b16 %v11665, %v11663
      %v11730 = vpack.c.b16 %v11668, %v11666
      %v11731 = vpack.c.b16 %v11669, %v11667
      %v11732 = vpack.c.b16 %v11672, %v11670
      %v11733 = vpack.c.b16 %v11673, %v11671
      %v11734 = vpack.c.b16 %v11676, %v11674
      %v11735 = vpack.c.b16 %v11677, %v11675
      %v11736 = vpack.c.b16 %v11680, %v11678
      %v11737 = vpack.c.b16 %v11681, %v11679
      %v11738 = vpack.c.b16 %v11684, %v11682
      %v11739 = vpack.c.b16 %v11685, %v11683
      %v11740 = vpack.c.b16 %v11688, %v11686
      %v11741 = vpack.c.b16 %v11689, %v11687
      %v11742 = vpack.c.b16 %v11692, %v11690
      %v11743 = vpack.c.b16 %v11693, %v11691
      %v11744 = vpack.c.b16 %v11696, %v11694
      %v11745 = vpack.c.b16 %v11697, %v11695
      %v11746 = vpack.c.b16 %v11700, %v11698
      %v11747 = vpack.c.b16 %v11701, %v11699
      %v11748 = vpack.c.b16 %v11704, %v11702
      %v11749 = vpack.c.b16 %v11705, %v11703
      %v11750 = vpack.c.b16 %v11708, %v11706
      %v11751 = vpack.c.b16 %v11709, %v11707
      %v11752 = vpack.c.b16 %v11712, %v11710
      %v11753 = vpack.c.b16 %v11713, %v11711
      %v11754 = vpack.c.b16 %v11716, %v11714
      %v11755 = vpack.c.b16 %v11717, %v11715
      %v11756 = vpack.c.b16 %v11720, %v11718
      %v11757 = vpack.c.b16 %v11721, %v11719
      %v11795 = vsel %vm11183, %v11611, 0
      %11797 = vmatprep.subr.bf16.mxu0 %v11723
      %11798 = vmatpush1.bf16.msra.mxu0 %v11722
      %11799 = vmatprep.subr.bf16.mxu0 %v11725
      %11800 = vmatpush1.bf16.msra.mxu0 %v11724
      %11801 = vmatprep.subr.bf16.mxu0 %v11727
      %11802 = vmatpush1.bf16.msra.mxu0 %v11726
      %11803 = vmatprep.subr.bf16.mxu0 %v11729
      %11804 = vmatpush1.bf16.msra.mxu0 %v11728
      %11805 = vmatprep.subr.bf16.mxu0 %v11731
      %11806 = vmatpush1.bf16.msra.mxu0 %v11730
      %11807 = vmatprep.subr.bf16.mxu0 %v11733
      %11808 = vmatpush1.bf16.msra.mxu0 %v11732
      %11809 = vmatprep.subr.bf16.mxu0 %v11735
      %11810 = vmatpush1.bf16.msra.mxu0 %v11734
      %11811 = vmatprep.subr.bf16.mxu0 %v11737
      %11812 = vmatpush1.bf16.msra.mxu0 %v11736
      %11813 = vmatprep.subr.bf16.mxu0 %v11739
      %11814 = vmatpush1.bf16.msra.mxu0 %v11738
      %11815 = vmatprep.subr.bf16.mxu0 %v11741
      %11816 = vmatpush1.bf16.msra.mxu0 %v11740
      %11817 = vmatprep.subr.bf16.mxu0 %v11743
      %11818 = vmatpush1.bf16.msra.mxu0 %v11742
      %11819 = vmatprep.subr.bf16.mxu0 %v11745
      %11820 = vmatpush1.bf16.msra.mxu0 %v11744
      %11821 = vmatprep.subr.bf16.mxu0 %v11747
      %11822 = vmatpush1.bf16.msra.mxu0 %v11746
      %11823 = vmatprep.subr.bf16.mxu0 %v11749
      %11824 = vmatpush1.bf16.msra.mxu0 %v11748
      %11825 = vmatprep.subr.bf16.mxu0 %v11751
      %11826 = vmatpush1.bf16.msra.mxu0 %v11750
      %11827 = vmatprep.subr.bf16.mxu0 %v11753
      %11828 = vmatpush1.bf16.msra.mxu0 %v11752
      %11829 = vmatprep.mubr.bf16.mxu0 %v11610
      %11830 = vmatmul.mubr.bf16.gmra.mrb[0].mxu0 %v11609
      %v11831 = vpop.f32.mrb[0].mxu0
      %v11832 = vadd.f32 0.0, %v11831
      %v11833 = vpop.f32.mrb[0].mxu0
      %v11834 = vadd.f32 0.0, %v11833
      %v11835 = vpop.f32.mrb[0].mxu0
      %v11836 = vpop.f32.mrb[0].mxu0
      %11837 = vdwg.mxu0
      %11838 = vmatprep.subr.bf16.mxu0 %v11755
      %11839 = vmatpush1.bf16.msra.mxu0 %v11754
      %11840 = vmatprep.subr.bf16.mxu0 %v11757
      %11841 = vmatpush1.bf16.msra.mxu0 %v11756
      %11842 = vmatprep.subr.bf16.mxu0 0
      %11843 = vmatpush1.bf16.msra.mxu0 0
      %11844 = vmatprep.subr.bf16.mxu0 0
      %11845 = vmatpush1.bf16.msra.mxu0 0
      %11846 = vmatprep.subr.bf16.mxu0 0
      %11847 = vmatpush1.bf16.msra.mxu0 0
      %11848 = vmatprep.subr.bf16.mxu0 0
      %11849 = vmatpush1.bf16.msra.mxu0 0
      %11850 = vmatprep.subr.bf16.mxu0 0
      %11851 = vmatpush1.bf16.msra.mxu0 0
      %11852 = vmatprep.subr.bf16.mxu0 0
      %11853 = vmatpush1.bf16.msra.mxu0 0
      %11854 = vmatprep.subr.bf16.mxu0 0
      %11855 = vmatpush1.bf16.msra.mxu0 0
      %11856 = vmatprep.subr.bf16.mxu0 0
      %11857 = vmatpush1.bf16.msra.mxu0 0
      %11858 = vmatprep.subr.bf16.mxu0 0
      %11859 = vmatpush1.bf16.msra.mxu0 0
      %11860 = vmatprep.subr.bf16.mxu0 0
      %11861 = vmatpush1.bf16.msra.mxu0 0
      %11862 = vmatprep.subr.bf16.mxu0 0
      %11863 = vmatpush1.bf16.msra.mxu0 0
      %11864 = vmatprep.subr.bf16.mxu0 0
      %11865 = vmatpush1.bf16.msra.mxu0 0
      %11866 = vmatprep.subr.bf16.mxu0 0
      %11867 = vmatpush1.bf16.msra.mxu0 0
      %11868 = vmatprep.subr.bf16.mxu0 0
      %11869 = vmatpush1.bf16.msra.mxu0 0
      %11870 = vmatprep.mubr.bf16.mxu0 0
      %11871 = vmatmul.mubr.bf16.gmra.mrb[0].mxu0 %v11795
      %v11872 = vpop.f32.mrb[0].mxu0
      %v11873 = vadd.f32 %v11832, %v11872
      %v11874 = vpop.f32.mrb[0].mxu0
      %v11875 = vadd.f32 %v11834, %v11874
      %v11876 = vpop.f32.mrb[0].mxu0
      %v11877 = vpop.f32.mrb[0].mxu0
      %11878 = vdwg.mxu0
      %v11879 = vld [vmem:[%s5 + $0x480] sm:$0xff]
      %v11880 = vld [vmem:[%s5 + $0x488] sm:$0xff]
      %v11881 = vld [vmem:[%s5 + $0x490] sm:$0xff]
      %v11882 = vld [vmem:[%s5 + $0x498] sm:$0xff]
      %v11883 = vld [vmem:[%s5 + $0x4a0] sm:$0xff]
      %v11884 = vld [vmem:[%s5 + $0x4a8] sm:$0xff]
      %v11885 = vld [vmem:[%s5 + $0x4b0] sm:$0xff]
      %v11886 = vld [vmem:[%s5 + $0x4b8] sm:$0xff]
      %v11887 = vld [vmem:[%s5 + $0x4c0] sm:$0xff]
      %v11888 = vld [vmem:[%s5 + $0x4c8] sm:$0xff]
      %v11889 = vld [vmem:[%s5 + $0x4d0] sm:$0xff]
      %v11890 = vld [vmem:[%s5 + $0x4d8] sm:$0xff]
      %v11891 = vld [vmem:[%s5 + $0x4e0] sm:$0xff]
      %v11892 = vld [vmem:[%s5 + $0x4e8] sm:$0xff]
      %v11893 = vld [vmem:[%s5 + $0x4f0] sm:$0xff]
      %v11894 = vld [vmem:[%s5 + $0x4f8] sm:$0xff]
      %v11895 = vld [vmem:[%s5 + $0x500] sm:$0xff]
      %v11896 = vld [vmem:[%s5 + $0x508] sm:$0xff]
      %v11897 = vld [vmem:[%s5 + $0x510] sm:$0xff]
      %v11898 = vld [vmem:[%s5 + $0x518] sm:$0xff]
      %v11899 = vld [vmem:[%s5 + $0x520] sm:$0xff]
      %v11900 = vld [vmem:[%s5 + $0x528] sm:$0xff]
      %v11901 = vld [vmem:[%s5 + $0x530] sm:$0xff]
      %v11902 = vld [vmem:[%s5 + $0x538] sm:$0xff]
      %v11903 = vld [vmem:[%s5 + $0x540] sm:$0xff]
      %v11904 = vld [vmem:[%s5 + $0x548] sm:$0xff]
      %v11905 = vld [vmem:[%s5 + $0x550] sm:$0xff]
      %v11906 = vld [vmem:[%s5 + $0x558] sm:$0xff]
      %v11907 = vld [vmem:[%s5 + $0x560] sm:$0xff]
      %v11908 = vld [vmem:[%s5 + $0x568] sm:$0xff]
      %v11909 = vld [vmem:[%s5 + $0x570] sm:$0xff]
      %v11910 = vld [vmem:[%s5 + $0x578] sm:$0xff]
      %v11911 = vld [vmem:[%s5 + $0x580] sm:$0xff]
      %v11912 = vld [vmem:[%s5 + $0x588] sm:$0xff]
      %v11913 = vld [vmem:[%s5 + $0x590] sm:$0xff]
      %v11914 = vld [vmem:[%s5 + $0x598] sm:$0xff]
      %v11951 = vunpack.c.l.b16 %v11879
      %v11952 = vunpack.c.h.b16 %v11879
      %v11953 = vunpack.c.l.b16 %v11880
      %v11954 = vunpack.c.h.b16 %v11880
      %v11955 = vunpack.c.l.b16 %v11881
      %v11956 = vunpack.c.h.b16 %v11881
      %v11957 = vunpack.c.l.b16 %v11882
      %v11958 = vunpack.c.h.b16 %v11882
      %v11959 = vunpack.c.l.b16 %v11883
      %v11960 = vunpack.c.h.b16 %v11883
      %v11961 = vunpack.c.l.b16 %v11884
      %v11962 = vunpack.c.h.b16 %v11884
      %v11963 = vunpack.c.l.b16 %v11885
      %v11964 = vunpack.c.h.b16 %v11885
      %v11965 = vunpack.c.l.b16 %v11886
      %v11966 = vunpack.c.h.b16 %v11886
      %v11967 = vunpack.c.l.b16 %v11887
      %v11968 = vunpack.c.h.b16 %v11887
      %v11969 = vunpack.c.l.b16 %v11888
      %v11970 = vunpack.c.h.b16 %v11888
      %v11971 = vunpack.c.l.b16 %v11889
      %v11972 = vunpack.c.h.b16 %v11889
      %v11973 = vunpack.c.l.b16 %v11890
      %v11974 = vunpack.c.h.b16 %v11890
      %v11975 = vunpack.c.l.b16 %v11891
      %v11976 = vunpack.c.h.b16 %v11891
      %v11977 = vunpack.c.l.b16 %v11892
      %v11978 = vunpack.c.h.b16 %v11892
      %v11979 = vunpack.c.l.b16 %v11893
      %v11980 = vunpack.c.h.b16 %v11893
      %v11981 = vunpack.c.l.b16 %v11894
      %v11982 = vunpack.c.h.b16 %v11894
      %v11983 = vunpack.c.l.b16 %v11895
      %v11984 = vunpack.c.h.b16 %v11895
      %v11985 = vunpack.c.l.b16 %v11896
      %v11986 = vunpack.c.h.b16 %v11896
      %v11987 = vunpack.c.l.b16 %v11897
      %v11988 = vunpack.c.h.b16 %v11897
      %v11989 = vunpack.c.l.b16 %v11898
      %v11990 = vunpack.c.h.b16 %v11898
      %v11991 = vunpack.c.l.b16 %v11899
      %v11992 = vunpack.c.h.b16 %v11899
      %v11993 = vunpack.c.l.b16 %v11900
      %v11994 = vunpack.c.h.b16 %v11900
      %v11995 = vunpack.c.l.b16 %v11901
      %v11996 = vunpack.c.h.b16 %v11901
      %v11997 = vunpack.c.l.b16 %v11902
      %v11998 = vunpack.c.h.b16 %v11902
      %v11999 = vunpack.c.l.b16 %v11903
      %v12000 = vunpack.c.h.b16 %v11903
      %v12001 = vunpack.c.l.b16 %v11904
      %v12002 = vunpack.c.h.b16 %v11904
      %v12003 = vunpack.c.l.b16 %v11905
      %v12004 = vunpack.c.h.b16 %v11905
      %v12005 = vunpack.c.l.b16 %v11906
      %v12006 = vunpack.c.h.b16 %v11906
      %v12007 = vunpack.c.l.b16 %v11907
      %v12008 = vunpack.c.h.b16 %v11907
      %v12009 = vunpack.c.l.b16 %v11908
      %v12010 = vunpack.c.h.b16 %v11908
      %v12011 = vunpack.c.l.b16 %v11909
      %v12012 = vunpack.c.h.b16 %v11909
      %v12013 = vunpack.c.l.b16 %v11910
      %v12014 = vunpack.c.h.b16 %v11910
      %v12015 = vunpack.c.l.b16 %v11911
      %v12016 = vunpack.c.h.b16 %v11911
      %v12017 = vunpack.c.l.b16 %v11912
      %v12018 = vunpack.c.h.b16 %v11912
      %v12019 = vunpack.c.l.b16 %v11913
      %v12020 = vunpack.c.h.b16 %v11913
      %v12021 = vunpack.c.l.b16 %v11914
      %v12022 = vunpack.c.h.b16 %v11914
      %v12023 = vpack.c.b16 %v11953, %v11951
      %v12024 = vpack.c.b16 %v11954, %v11952
      %v12025 = vpack.c.b16 %v11957, %v11955
      %v12026 = vpack.c.b16 %v11958, %v11956
      %v12027 = vpack.c.b16 %v11961, %v11959
      %v12028 = vpack.c.b16 %v11962, %v11960
      %v12029 = vpack.c.b16 %v11965, %v11963
      %v12030 = vpack.c.b16 %v11966, %v11964
      %v12031 = vpack.c.b16 %v11969, %v11967
      %v12032 = vpack.c.b16 %v11970, %v11968
      %v12033 = vpack.c.b16 %v11973, %v11971
      %v12034 = vpack.c.b16 %v11974, %v11972
      %v12035 = vpack.c.b16 %v11977, %v11975
      %v12036 = vpack.c.b16 %v11978, %v11976
      %v12037 = vpack.c.b16 %v11981, %v11979
      %v12038 = vpack.c.b16 %v11982, %v11980
      %v12039 = vpack.c.b16 %v11985, %v11983
      %v12040 = vpack.c.b16 %v11986, %v11984
      %v12041 = vpack.c.b16 %v11989, %v11987
      %v12042 = vpack.c.b16 %v11990, %v11988
      %v12043 = vpack.c.b16 %v11993, %v11991
      %v12044 = vpack.c.b16 %v11994, %v11992
      %v12045 = vpack.c.b16 %v11997, %v11995
      %v12046 = vpack.c.b16 %v11998, %v11996
      %v12047 = vpack.c.b16 %v12001, %v11999
      %v12048 = vpack.c.b16 %v12002, %v12000
      %v12049 = vpack.c.b16 %v12005, %v12003
      %v12050 = vpack.c.b16 %v12006, %v12004
      %v12051 = vpack.c.b16 %v12009, %v12007
      %v12052 = vpack.c.b16 %v12010, %v12008
      %v12053 = vpack.c.b16 %v12013, %v12011
      %v12054 = vpack.c.b16 %v12014, %v12012
      %v12055 = vpack.c.b16 %v12017, %v12015
      %v12056 = vpack.c.b16 %v12018, %v12016
      %v12057 = vpack.c.b16 %v12021, %v12019
      %v12058 = vpack.c.b16 %v12022, %v12020
      %v12096 = vsel %vm11183, %v10916, 0
      %12098 = vmatprep.subr.bf16.mxu0 %v12024
      %12099 = vmatpush1.bf16.msra.mxu0 %v12023
      %12100 = vmatprep.subr.bf16.mxu0 %v12026
      %12101 = vmatpush1.bf16.msra.mxu0 %v12025
      %12102 = vmatprep.subr.bf16.mxu0 %v12028
      %12103 = vmatpush1.bf16.msra.mxu0 %v12027
      %12104 = vmatprep.subr.bf16.mxu0 %v12030
      %12105 = vmatpush1.bf16.msra.mxu0 %v12029
      %12106 = vmatprep.subr.bf16.mxu0 %v12032
      %12107 = vmatpush1.bf16.msra.mxu0 %v12031
      %12108 = vmatprep.subr.bf16.mxu0 %v12034
      %12109 = vmatpush1.bf16.msra.mxu0 %v12033
      %12110 = vmatprep.subr.bf16.mxu0 %v12036
      %12111 = vmatpush1.bf16.msra.mxu0 %v12035
      %12112 = vmatprep.subr.bf16.mxu0 %v12038
      %12113 = vmatpush1.bf16.msra.mxu0 %v12037
      %12114 = vmatprep.subr.bf16.mxu0 %v12040
      %12115 = vmatpush1.bf16.msra.mxu0 %v12039
      %12116 = vmatprep.subr.bf16.mxu0 %v12042
      %12117 = vmatpush1.bf16.msra.mxu0 %v12041
      %12118 = vmatprep.subr.bf16.mxu0 %v12044
      %12119 = vmatpush1.bf16.msra.mxu0 %v12043
      %12120 = vmatprep.subr.bf16.mxu0 %v12046
      %12121 = vmatpush1.bf16.msra.mxu0 %v12045
      %12122 = vmatprep.subr.bf16.mxu0 %v12048
      %12123 = vmatpush1.bf16.msra.mxu0 %v12047
      %12124 = vmatprep.subr.bf16.mxu0 %v12050
      %12125 = vmatpush1.bf16.msra.mxu0 %v12049
      %12126 = vmatprep.subr.bf16.mxu0 %v12052
      %12127 = vmatpush1.bf16.msra.mxu0 %v12051
      %12128 = vmatprep.subr.bf16.mxu0 %v12054
      %12129 = vmatpush1.bf16.msra.mxu0 %v12053
      %12130 = vmatprep.mubr.bf16.mxu0 %v10915
      %12131 = vmatmul.mubr.bf16.gmra.mrb[0].mxu0 %v10914
      %v12132 = vpop.f32.mrb[0].mxu0
      %v12133 = vadd.f32 0.0, %v12132
      %v12134 = vpop.f32.mrb[0].mxu0
      %v12135 = vadd.f32 0.0, %v12134
      %v12136 = vpop.f32.mrb[0].mxu0
      %v12137 = vpop.f32.mrb[0].mxu0
      %12138 = vdwg.mxu0
      %12139 = vmatprep.subr.bf16.mxu0 %v12056
      %12140 = vmatpush1.bf16.msra.mxu0 %v12055
      %12141 = vmatprep.subr.bf16.mxu0 %v12058
      %12142 = vmatpush1.bf16.msra.mxu0 %v12057
      %12143 = vmatprep.subr.bf16.mxu0 0
      %12144 = vmatpush1.bf16.msra.mxu0 0
      %12145 = vmatprep.subr.bf16.mxu0 0
      %12146 = vmatpush1.bf16.msra.mxu0 0
      %12147 = vmatprep.subr.bf16.mxu0 0
      %12148 = vmatpush1.bf16.msra.mxu0 0
      %12149 = vmatprep.subr.bf16.mxu0 0
      %12150 = vmatpush1.bf16.msra.mxu0 0
      %12151 = vmatprep.subr.bf16.mxu0 0
      %12152 = vmatpush1.bf16.msra.mxu0 0
      %12153 = vmatprep.subr.bf16.mxu0 0
      %12154 = vmatpush1.bf16.msra.mxu0 0
      %12155 = vmatprep.subr.bf16.mxu0 0
      %12156 = vmatpush1.bf16.msra.mxu0 0
      %12157 = vmatprep.subr.bf16.mxu0 0
      %12158 = vmatpush1.bf16.msra.mxu0 0
      %12159 = vmatprep.subr.bf16.mxu0 0
      %12160 = vmatpush1.bf16.msra.mxu0 0
      %12161 = vmatprep.subr.bf16.mxu0 0
      %12162 = vmatpush1.bf16.msra.mxu0 0
      %12163 = vmatprep.subr.bf16.mxu0 0
      %12164 = vmatpush1.bf16.msra.mxu0 0
      %12165 = vmatprep.subr.bf16.mxu0 0
      %12166 = vmatpush1.bf16.msra.mxu0 0
      %12167 = vmatprep.subr.bf16.mxu0 0
      %12168 = vmatpush1.bf16.msra.mxu0 0
      %12169 = vmatprep.subr.bf16.mxu0 0
      %12170 = vmatpush1.bf16.msra.mxu0 0
      %12171 = vmatprep.mubr.bf16.mxu0 0
      %12172 = vmatmul.mubr.bf16.gmra.mrb[0].mxu0 %v12096
      %v12173 = vpop.f32.mrb[0].mxu0
      %v12174 = vadd.f32 %v12133, %v12173
      %v12175 = vpop.f32.mrb[0].mxu0
      %v12176 = vadd.f32 %v12135, %v12175
      %v12177 = vpop.f32.mrb[0].mxu0
      %v12178 = vpop.f32.mrb[0].mxu0
      %12179 = vdwg.mxu0
      %v12180 = vld [vmem:[%s5 + $0x5a0] sm:$0xff]
      %v12181 = vld [vmem:[%s5 + $0x5a8] sm:$0xff]
      %v12182 = vld [vmem:[%s5 + $0x5b0] sm:$0xff]
      %v12183 = vld [vmem:[%s5 + $0x5b8] sm:$0xff]
      %v12184 = vld [vmem:[%s5 + $0x5c0] sm:$0xff]
      %v12185 = vld [vmem:[%s5 + $0x5c8] sm:$0xff]
      %v12186 = vld [vmem:[%s5 + $0x5d0] sm:$0xff]
      %v12187 = vld [vmem:[%s5 + $0x5d8] sm:$0xff]
      %v12188 = vld [vmem:[%s5 + $0x5e0] sm:$0xff]
      %v12189 = vld [vmem:[%s5 + $0x5e8] sm:$0xff]
      %v12190 = vld [vmem:[%s5 + $0x5f0] sm:$0xff]
      %v12191 = vld [vmem:[%s5 + $0x5f8] sm:$0xff]
      %v12192 = vld [vmem:[%s5 + $0x600] sm:$0xff]
      %v12193 = vld [vmem:[%s5 + $0x608] sm:$0xff]
      %v12194 = vld [vmem:[%s5 + $0x610] sm:$0xff]
      %v12195 = vld [vmem:[%s5 + $0x618] sm:$0xff]
      %v12196 = vld [vmem:[%s5 + $0x620] sm:$0xff]
      %v12197 = vld [vmem:[%s5 + $0x628] sm:$0xff]
      %v12198 = vld [vmem:[%s5 + $0x630] sm:$0xff]
      %v12199 = vld [vmem:[%s5 + $0x638] sm:$0xff]
      %v12200 = vld [vmem:[%s5 + $0x640] sm:$0xff]
      %v12201 = vld [vmem:[%s5 + $0x648] sm:$0xff]
      %v12202 = vld [vmem:[%s5 + $0x650] sm:$0xff]
      %v12203 = vld [vmem:[%s5 + $0x658] sm:$0xff]
      %v12204 = vld [vmem:[%s5 + $0x660] sm:$0xff]
      %v12205 = vld [vmem:[%s5 + $0x668] sm:$0xff]
      %v12206 = vld [vmem:[%s5 + $0x670] sm:$0xff]
      %v12207 = vld [vmem:[%s5 + $0x678] sm:$0xff]
      %v12208 = vld [vmem:[%s5 + $0x680] sm:$0xff]
      %v12209 = vld [vmem:[%s5 + $0x688] sm:$0xff]
      %v12210 = vld [vmem:[%s5 + $0x690] sm:$0xff]
      %v12211 = vld [vmem:[%s5 + $0x698] sm:$0xff]
      %v12212 = vld [vmem:[%s5 + $0x6a0] sm:$0xff]
      %v12213 = vld [vmem:[%s5 + $0x6a8] sm:$0xff]
      %v12214 = vld [vmem:[%s5 + $0x6b0] sm:$0xff]
      %v12215 = vld [vmem:[%s5 + $0x6b8] sm:$0xff]
      %v12219 = vrot.slane %v10914, 4
      %v12220 = vrot.slane %v10915, 4
      %v12221 = vrot.slane %v10916, 4
      %v12260 = vunpack.c.l.b16 %v12180
      %v12261 = vunpack.c.h.b16 %v12180
      %v12262 = vunpack.c.l.b16 %v12181
      %v12263 = vunpack.c.h.b16 %v12181
      %v12264 = vunpack.c.l.b16 %v12182
      %v12265 = vunpack.c.h.b16 %v12182
      %v12266 = vunpack.c.l.b16 %v12183
      %v12267 = vunpack.c.h.b16 %v12183
      %v12268 = vunpack.c.l.b16 %v12184
      %v12269 = vunpack.c.h.b16 %v12184
      %v12270 = vunpack.c.l.b16 %v12185
      %v12271 = vunpack.c.h.b16 %v12185
      %v12272 = vunpack.c.l.b16 %v12186
      %v12273 = vunpack.c.h.b16 %v12186
      %v12274 = vunpack.c.l.b16 %v12187
      %v12275 = vunpack.c.h.b16 %v12187
      %v12276 = vunpack.c.l.b16 %v12188
      %v12277 = vunpack.c.h.b16 %v12188
      %v12278 = vunpack.c.l.b16 %v12189
      %v12279 = vunpack.c.h.b16 %v12189
      %v12280 = vunpack.c.l.b16 %v12190
      %v12281 = vunpack.c.h.b16 %v12190
      %v12282 = vunpack.c.l.b16 %v12191
      %v12283 = vunpack.c.h.b16 %v12191
      %v12284 = vunpack.c.l.b16 %v12192
      %v12285 = vunpack.c.h.b16 %v12192
      %v12286 = vunpack.c.l.b16 %v12193
      %v12287 = vunpack.c.h.b16 %v12193
      %v12288 = vunpack.c.l.b16 %v12194
      %v12289 = vunpack.c.h.b16 %v12194
      %v12290 = vunpack.c.l.b16 %v12195
      %v12291 = vunpack.c.h.b16 %v12195
      %v12292 = vunpack.c.l.b16 %v12196
      %v12293 = vunpack.c.h.b16 %v12196
      %v12294 = vunpack.c.l.b16 %v12197
      %v12295 = vunpack.c.h.b16 %v12197
      %v12296 = vunpack.c.l.b16 %v12198
      %v12297 = vunpack.c.h.b16 %v12198
      %v12298 = vunpack.c.l.b16 %v12199
      %v12299 = vunpack.c.h.b16 %v12199
      %v12300 = vunpack.c.l.b16 %v12200
      %v12301 = vunpack.c.h.b16 %v12200
      %v12302 = vunpack.c.l.b16 %v12201
      %v12303 = vunpack.c.h.b16 %v12201
      %v12304 = vunpack.c.l.b16 %v12202
      %v12305 = vunpack.c.h.b16 %v12202
      %v12306 = vunpack.c.l.b16 %v12203
      %v12307 = vunpack.c.h.b16 %v12203
      %v12308 = vunpack.c.l.b16 %v12204
      %v12309 = vunpack.c.h.b16 %v12204
      %v12310 = vunpack.c.l.b16 %v12205
      %v12311 = vunpack.c.h.b16 %v12205
      %v12312 = vunpack.c.l.b16 %v12206
      %v12313 = vunpack.c.h.b16 %v12206
      %v12314 = vunpack.c.l.b16 %v12207
      %v12315 = vunpack.c.h.b16 %v12207
      %v12316 = vunpack.c.l.b16 %v12208
      %v12317 = vunpack.c.h.b16 %v12208
      %v12318 = vunpack.c.l.b16 %v12209
      %v12319 = vunpack.c.h.b16 %v12209
      %v12320 = vunpack.c.l.b16 %v12210
      %v12321 = vunpack.c.h.b16 %v12210
      %v12322 = vunpack.c.l.b16 %v12211
      %v12323 = vunpack.c.h.b16 %v12211
      %v12324 = vunpack.c.l.b16 %v12212
      %v12325 = vunpack.c.h.b16 %v12212
      %v12326 = vunpack.c.l.b16 %v12213
      %v12327 = vunpack.c.h.b16 %v12213
      %v12328 = vunpack.c.l.b16 %v12214
      %v12329 = vunpack.c.h.b16 %v12214
      %v12330 = vunpack.c.l.b16 %v12215
      %v12331 = vunpack.c.h.b16 %v12215
      %v12332 = vpack.c.b16 %v12262, %v12260
      %v12333 = vpack.c.b16 %v12263, %v12261
      %v12334 = vpack.c.b16 %v12266, %v12264
      %v12335 = vpack.c.b16 %v12267, %v12265
      %v12336 = vpack.c.b16 %v12270, %v12268
      %v12337 = vpack.c.b16 %v12271, %v12269
      %v12338 = vpack.c.b16 %v12274, %v12272
      %v12339 = vpack.c.b16 %v12275, %v12273
      %v12340 = vpack.c.b16 %v12278, %v12276
      %v12341 = vpack.c.b16 %v12279, %v12277
      %v12342 = vpack.c.b16 %v12282, %v12280
      %v12343 = vpack.c.b16 %v12283, %v12281
      %v12344 = vpack.c.b16 %v12286, %v12284
      %v12345 = vpack.c.b16 %v12287, %v12285
      %v12346 = vpack.c.b16 %v12290, %v12288
      %v12347 = vpack.c.b16 %v12291, %v12289
      %v12348 = vpack.c.b16 %v12294, %v12292
      %v12349 = vpack.c.b16 %v12295, %v12293
      %v12350 = vpack.c.b16 %v12298, %v12296
      %v12351 = vpack.c.b16 %v12299, %v12297
      %v12352 = vpack.c.b16 %v12302, %v12300
      %v12353 = vpack.c.b16 %v12303, %v12301
      %v12354 = vpack.c.b16 %v12306, %v12304
      %v12355 = vpack.c.b16 %v12307, %v12305
      %v12356 = vpack.c.b16 %v12310, %v12308
      %v12357 = vpack.c.b16 %v12311, %v12309
      %v12358 = vpack.c.b16 %v12314, %v12312
      %v12359 = vpack.c.b16 %v12315, %v12313
      %v12360 = vpack.c.b16 %v12318, %v12316
      %v12361 = vpack.c.b16 %v12319, %v12317
      %v12362 = vpack.c.b16 %v12322, %v12320
      %v12363 = vpack.c.b16 %v12323, %v12321
      %v12364 = vpack.c.b16 %v12326, %v12324
      %v12365 = vpack.c.b16 %v12327, %v12325
      %v12366 = vpack.c.b16 %v12330, %v12328
      %v12367 = vpack.c.b16 %v12331, %v12329
      %v12405 = vsel %vm11183, %v12221, 0
      %12407 = vmatprep.subr.bf16.mxu0 %v12333
      %12408 = vmatpush1.bf16.msra.mxu0 %v12332
      %12409 = vmatprep.subr.bf16.mxu0 %v12335
      %12410 = vmatpush1.bf16.msra.mxu0 %v12334
      %12411 = vmatprep.subr.bf16.mxu0 %v12337
      %12412 = vmatpush1.bf16.msra.mxu0 %v12336
      %12413 = vmatprep.subr.bf16.mxu0 %v12339
      %12414 = vmatpush1.bf16.msra.mxu0 %v12338
      %12415 = vmatprep.subr.bf16.mxu0 %v12341
      %12416 = vmatpush1.bf16.msra.mxu0 %v12340
      %12417 = vmatprep.subr.bf16.mxu0 %v12343
      %12418 = vmatpush1.bf16.msra.mxu0 %v12342
      %12419 = vmatprep.subr.bf16.mxu0 %v12345
      %12420 = vmatpush1.bf16.msra.mxu0 %v12344
      %12421 = vmatprep.subr.bf16.mxu0 %v12347
      %12422 = vmatpush1.bf16.msra.mxu0 %v12346
      %12423 = vmatprep.subr.bf16.mxu0 %v12349
      %12424 = vmatpush1.bf16.msra.mxu0 %v12348
      %12425 = vmatprep.subr.bf16.mxu0 %v12351
      %12426 = vmatpush1.bf16.msra.mxu0 %v12350
      %12427 = vmatprep.subr.bf16.mxu0 %v12353
      %12428 = vmatpush1.bf16.msra.mxu0 %v12352
      %12429 = vmatprep.subr.bf16.mxu0 %v12355
      %12430 = vmatpush1.bf16.msra.mxu0 %v12354
      %12431 = vmatprep.subr.bf16.mxu0 %v12357
      %12432 = vmatpush1.bf16.msra.mxu0 %v12356
      %12433 = vmatprep.subr.bf16.mxu0 %v12359
      %12434 = vmatpush1.bf16.msra.mxu0 %v12358
      %12435 = vmatprep.subr.bf16.mxu0 %v12361
      %12436 = vmatpush1.bf16.msra.mxu0 %v12360
      %12437 = vmatprep.subr.bf16.mxu0 %v12363
      %12438 = vmatpush1.bf16.msra.mxu0 %v12362
      %12439 = vmatprep.mubr.bf16.mxu0 %v12220
      %12440 = vmatmul.mubr.bf16.gmra.mrb[0].mxu0 %v12219
      %v12441 = vpop.f32.mrb[0].mxu0
      %v12442 = vadd.f32 0.0, %v12441
      %v12443 = vpop.f32.mrb[0].mxu0
      %v12444 = vadd.f32 0.0, %v12443
      %v12445 = vpop.f32.mrb[0].mxu0
      %v12446 = vpop.f32.mrb[0].mxu0
      %12447 = vdwg.mxu0
      %12448 = vmatprep.subr.bf16.mxu0 %v12365
      %12449 = vmatpush1.bf16.msra.mxu0 %v12364
      %12450 = vmatprep.subr.bf16.mxu0 %v12367
      %12451 = vmatpush1.bf16.msra.mxu0 %v12366
      %12452 = vmatprep.subr.bf16.mxu0 0
      %12453 = vmatpush1.bf16.msra.mxu0 0
      %12454 = vmatprep.subr.bf16.mxu0 0
      %12455 = vmatpush1.bf16.msra.mxu0 0
      %12456 = vmatprep.subr.bf16.mxu0 0
      %12457 = vmatpush1.bf16.msra.mxu0 0
      %12458 = vmatprep.subr.bf16.mxu0 0
      %12459 = vmatpush1.bf16.msra.mxu0 0
      %12460 = vmatprep.subr.bf16.mxu0 0
      %12461 = vmatpush1.bf16.msra.mxu0 0
      %12462 = vmatprep.subr.bf16.mxu0 0
      %12463 = vmatpush1.bf16.msra.mxu0 0
      %12464 = vmatprep.subr.bf16.mxu0 0
      %12465 = vmatpush1.bf16.msra.mxu0 0
      %12466 = vmatprep.subr.bf16.mxu0 0
      %12467 = vmatpush1.bf16.msra.mxu0 0
      %12468 = vmatprep.subr.bf16.mxu0 0
      %12469 = vmatpush1.bf16.msra.mxu0 0
      %12470 = vmatprep.subr.bf16.mxu0 0
      %12471 = vmatpush1.bf16.msra.mxu0 0
      %12472 = vmatprep.subr.bf16.mxu0 0
      %12473 = vmatpush1.bf16.msra.mxu0 0
      %12474 = vmatprep.subr.bf16.mxu0 0
      %12475 = vmatpush1.bf16.msra.mxu0 0
      %12476 = vmatprep.subr.bf16.mxu0 0
      %12477 = vmatpush1.bf16.msra.mxu0 0
      %12478 = vmatprep.subr.bf16.mxu0 0
      %12479 = vmatpush1.bf16.msra.mxu0 0
      %12480 = vmatprep.mubr.bf16.mxu0 0
      %12481 = vmatmul.mubr.bf16.gmra.mrb[0].mxu0 %v12405
      %v12482 = vpop.f32.mrb[0].mxu0
      %v12483 = vadd.f32 %v12442, %v12482
      %v12484 = vpop.f32.mrb[0].mxu0
      %v12485 = vadd.f32 %v12444, %v12484
      %v12486 = vpop.f32.mrb[0].mxu0
      %v12487 = vpop.f32.mrb[0].mxu0
      %12488 = vdwg.mxu0
      %v12489 = vld [vmem:[%s5 + $0x6c0] sm:$0xff]
      %v12490 = vld [vmem:[%s5 + $0x6c8] sm:$0xff]
      %v12491 = vld [vmem:[%s5 + $0x6d0] sm:$0xff]
      %v12492 = vld [vmem:[%s5 + $0x6d8] sm:$0xff]
      %v12493 = vld [vmem:[%s5 + $0x6e0] sm:$0xff]
      %v12494 = vld [vmem:[%s5 + $0x6e8] sm:$0xff]
      %v12495 = vld [vmem:[%s5 + $0x6f0] sm:$0xff]
      %v12496 = vld [vmem:[%s5 + $0x6f8] sm:$0xff]
      %v12497 = vld [vmem:[%s5 + $0x700] sm:$0xff]
      %v12498 = vld [vmem:[%s5 + $0x708] sm:$0xff]
      %v12499 = vld [vmem:[%s5 + $0x710] sm:$0xff]
      %v12500 = vld [vmem:[%s5 + $0x718] sm:$0xff]
      %v12501 = vld [vmem:[%s5 + $0x720] sm:$0xff]
      %v12502 = vld [vmem:[%s5 + $0x728] sm:$0xff]
      %v12503 = vld [vmem:[%s5 + $0x730] sm:$0xff]
      %v12504 = vld [vmem:[%s5 + $0x738] sm:$0xff]
      %v12505 = vld [vmem:[%s5 + $0x740] sm:$0xff]
      %v12506 = vld [vmem:[%s5 + $0x748] sm:$0xff]
      %v12507 = vld [vmem:[%s5 + $0x750] sm:$0xff]
      %v12508 = vld [vmem:[%s5 + $0x758] sm:$0xff]
      %v12509 = vld [vmem:[%s5 + $0x760] sm:$0xff]
      %v12510 = vld [vmem:[%s5 + $0x768] sm:$0xff]
      %v12511 = vld [vmem:[%s5 + $0x770] sm:$0xff]
      %v12512 = vld [vmem:[%s5 + $0x778] sm:$0xff]
      %v12513 = vld [vmem:[%s5 + $0x780] sm:$0xff]
      %v12514 = vld [vmem:[%s5 + $0x788] sm:$0xff]
      %v12515 = vld [vmem:[%s5 + $0x790] sm:$0xff]
      %v12516 = vld [vmem:[%s5 + $0x798] sm:$0xff]
      %v12517 = vld [vmem:[%s5 + $0x7a0] sm:$0xff]
      %v12518 = vld [vmem:[%s5 + $0x7a8] sm:$0xff]
      %v12519 = vld [vmem:[%s5 + $0x7b0] sm:$0xff]
      %v12520 = vld [vmem:[%s5 + $0x7b8] sm:$0xff]
      %v12521 = vld [vmem:[%s5 + $0x7c0] sm:$0xff]
      %v12522 = vld [vmem:[%s5 + $0x7c8] sm:$0xff]
      %v12523 = vld [vmem:[%s5 + $0x7d0] sm:$0xff]
      %v12524 = vld [vmem:[%s5 + $0x7d8] sm:$0xff]
      %v12561 = vunpack.c.l.b16 %v12489
      %v12562 = vunpack.c.h.b16 %v12489
      %v12563 = vunpack.c.l.b16 %v12490
      %v12564 = vunpack.c.h.b16 %v12490
      %v12565 = vunpack.c.l.b16 %v12491
      %v12566 = vunpack.c.h.b16 %v12491
      %v12567 = vunpack.c.l.b16 %v12492
      %v12568 = vunpack.c.h.b16 %v12492
      %v12569 = vunpack.c.l.b16 %v12493
      %v12570 = vunpack.c.h.b16 %v12493
      %v12571 = vunpack.c.l.b16 %v12494
      %v12572 = vunpack.c.h.b16 %v12494
      %v12573 = vunpack.c.l.b16 %v12495
      %v12574 = vunpack.c.h.b16 %v12495
      %v12575 = vunpack.c.l.b16 %v12496
      %v12576 = vunpack.c.h.b16 %v12496
      %v12577 = vunpack.c.l.b16 %v12497
      %v12578 = vunpack.c.h.b16 %v12497
      %v12579 = vunpack.c.l.b16 %v12498
      %v12580 = vunpack.c.h.b16 %v12498
      %v12581 = vunpack.c.l.b16 %v12499
      %v12582 = vunpack.c.h.b16 %v12499
      %v12583 = vunpack.c.l.b16 %v12500
      %v12584 = vunpack.c.h.b16 %v12500
      %v12585 = vunpack.c.l.b16 %v12501
      %v12586 = vunpack.c.h.b16 %v12501
      %v12587 = vunpack.c.l.b16 %v12502
      %v12588 = vunpack.c.h.b16 %v12502
      %v12589 = vunpack.c.l.b16 %v12503
      %v12590 = vunpack.c.h.b16 %v12503
      %v12591 = vunpack.c.l.b16 %v12504
      %v12592 = vunpack.c.h.b16 %v12504
      %v12593 = vunpack.c.l.b16 %v12505
      %v12594 = vunpack.c.h.b16 %v12505
      %v12595 = vunpack.c.l.b16 %v12506
      %v12596 = vunpack.c.h.b16 %v12506
      %v12597 = vunpack.c.l.b16 %v12507
      %v12598 = vunpack.c.h.b16 %v12507
      %v12599 = vunpack.c.l.b16 %v12508
      %v12600 = vunpack.c.h.b16 %v12508
      %v12601 = vunpack.c.l.b16 %v12509
      %v12602 = vunpack.c.h.b16 %v12509
      %v12603 = vunpack.c.l.b16 %v12510
      %v12604 = vunpack.c.h.b16 %v12510
      %v12605 = vunpack.c.l.b16 %v12511
      %v12606 = vunpack.c.h.b16 %v12511
      %v12607 = vunpack.c.l.b16 %v12512
      %v12608 = vunpack.c.h.b16 %v12512
      %v12609 = vunpack.c.l.b16 %v12513
      %v12610 = vunpack.c.h.b16 %v12513
      %v12611 = vunpack.c.l.b16 %v12514
      %v12612 = vunpack.c.h.b16 %v12514
      %v12613 = vunpack.c.l.b16 %v12515
      %v12614 = vunpack.c.h.b16 %v12515
      %v12615 = vunpack.c.l.b16 %v12516
      %v12616 = vunpack.c.h.b16 %v12516
      %v12617 = vunpack.c.l.b16 %v12517
      %v12618 = vunpack.c.h.b16 %v12517
      %v12619 = vunpack.c.l.b16 %v12518
      %v12620 = vunpack.c.h.b16 %v12518
      %v12621 = vunpack.c.l.b16 %v12519
      %v12622 = vunpack.c.h.b16 %v12519
      %v12623 = vunpack.c.l.b16 %v12520
      %v12624 = vunpack.c.h.b16 %v12520
      %v12625 = vunpack.c.l.b16 %v12521
      %v12626 = vunpack.c.h.b16 %v12521
      %v12627 = vunpack.c.l.b16 %v12522
      %v12628 = vunpack.c.h.b16 %v12522
      %v12629 = vunpack.c.l.b16 %v12523
      %v12630 = vunpack.c.h.b16 %v12523
      %v12631 = vunpack.c.l.b16 %v12524
      %v12632 = vunpack.c.h.b16 %v12524
      %v12633 = vpack.c.b16 %v12563, %v12561
      %v12634 = vpack.c.b16 %v12564, %v12562
      %v12635 = vpack.c.b16 %v12567, %v12565
      %v12636 = vpack.c.b16 %v12568, %v12566
      %v12637 = vpack.c.b16 %v12571, %v12569
      %v12638 = vpack.c.b16 %v12572, %v12570
      %v12639 = vpack.c.b16 %v12575, %v12573
      %v12640 = vpack.c.b16 %v12576, %v12574
      %v12641 = vpack.c.b16 %v12579, %v12577
      %v12642 = vpack.c.b16 %v12580, %v12578
      %v12643 = vpack.c.b16 %v12583, %v12581
      %v12644 = vpack.c.b16 %v12584, %v12582
      %v12645 = vpack.c.b16 %v12587, %v12585
      %v12646 = vpack.c.b16 %v12588, %v12586
      %v12647 = vpack.c.b16 %v12591, %v12589
      %v12648 = vpack.c.b16 %v12592, %v12590
      %v12649 = vpack.c.b16 %v12595, %v12593
      %v12650 = vpack.c.b16 %v12596, %v12594
      %v12651 = vpack.c.b16 %v12599, %v12597
      %v12652 = vpack.c.b16 %v12600, %v12598
      %v12653 = vpack.c.b16 %v12603, %v12601
      %v12654 = vpack.c.b16 %v12604, %v12602
      %v12655 = vpack.c.b16 %v12607, %v12605
      %v12656 = vpack.c.b16 %v12608, %v12606
      %v12657 = vpack.c.b16 %v12611, %v12609
      %v12658 = vpack.c.b16 %v12612, %v12610
      %v12659 = vpack.c.b16 %v12615, %v12613
      %v12660 = vpack.c.b16 %v12616, %v12614
      %v12661 = vpack.c.b16 %v12619, %v12617
      %v12662 = vpack.c.b16 %v12620, %v12618
      %v12663 = vpack.c.b16 %v12623, %v12621
      %v12664 = vpack.c.b16 %v12624, %v12622
      %v12665 = vpack.c.b16 %v12627, %v12625
      %v12666 = vpack.c.b16 %v12628, %v12626
      %v12667 = vpack.c.b16 %v12631, %v12629
      %v12668 = vpack.c.b16 %v12632, %v12630
      %v12706 = vsel %vm11183, %v10919, 0
      %12708 = vmatprep.subr.bf16.mxu0 %v12634
      %12709 = vmatpush1.bf16.msra.mxu0 %v12633
      %12710 = vmatprep.subr.bf16.mxu0 %v12636
      %12711 = vmatpush1.bf16.msra.mxu0 %v12635
      %12712 = vmatprep.subr.bf16.mxu0 %v12638
      %12713 = vmatpush1.bf16.msra.mxu0 %v12637
      %12714 = vmatprep.subr.bf16.mxu0 %v12640
      %12715 = vmatpush1.bf16.msra.mxu0 %v12639
      %12716 = vmatprep.subr.bf16.mxu0 %v12642
      %12717 = vmatpush1.bf16.msra.mxu0 %v12641
      %12718 = vmatprep.subr.bf16.mxu0 %v12644
      %12719 = vmatpush1.bf16.msra.mxu0 %v12643
      %12720 = vmatprep.subr.bf16.mxu0 %v12646
      %12721 = vmatpush1.bf16.msra.mxu0 %v12645
      %12722 = vmatprep.subr.bf16.mxu0 %v12648
      %12723 = vmatpush1.bf16.msra.mxu0 %v12647
      %12724 = vmatprep.subr.bf16.mxu0 %v12650
      %12725 = vmatpush1.bf16.msra.mxu0 %v12649
      %12726 = vmatprep.subr.bf16.mxu0 %v12652
      %12727 = vmatpush1.bf16.msra.mxu0 %v12651
      %12728 = vmatprep.subr.bf16.mxu0 %v12654
      %12729 = vmatpush1.bf16.msra.mxu0 %v12653
      %12730 = vmatprep.subr.bf16.mxu0 %v12656
      %12731 = vmatpush1.bf16.msra.mxu0 %v12655
      %12732 = vmatprep.subr.bf16.mxu0 %v12658
      %12733 = vmatpush1.bf16.msra.mxu0 %v12657
      %12734 = vmatprep.subr.bf16.mxu0 %v12660
      %12735 = vmatpush1.bf16.msra.mxu0 %v12659
      %12736 = vmatprep.subr.bf16.mxu0 %v12662
      %12737 = vmatpush1.bf16.msra.mxu0 %v12661
      %12738 = vmatprep.subr.bf16.mxu0 %v12664
      %12739 = vmatpush1.bf16.msra.mxu0 %v12663
      %12740 = vmatprep.mubr.bf16.mxu0 %v10918
      %12741 = vmatmul.mubr.bf16.gmra.mrb[0].mxu0 %v10917
      %v12742 = vpop.f32.mrb[0].mxu0
      %v12743 = vadd.f32 0.0, %v12742
      %v12744 = vpop.f32.mrb[0].mxu0
      %v12745 = vadd.f32 0.0, %v12744
      %v12746 = vpop.f32.mrb[0].mxu0
      %v12747 = vpop.f32.mrb[0].mxu0
      %12748 = vdwg.mxu0
      %12749 = vmatprep.subr.bf16.mxu0 %v12666
      %12750 = vmatpush1.bf16.msra.mxu0 %v12665
      %12751 = vmatprep.subr.bf16.mxu0 %v12668
      %12752 = vmatpush1.bf16.msra.mxu0 %v12667
      %12753 = vmatprep.subr.bf16.mxu0 0
      %12754 = vmatpush1.bf16.msra.mxu0 0
      %12755 = vmatprep.subr.bf16.mxu0 0
      %12756 = vmatpush1.bf16.msra.mxu0 0
      %12757 = vmatprep.subr.bf16.mxu0 0
      %12758 = vmatpush1.bf16.msra.mxu0 0
      %12759 = vmatprep.subr.bf16.mxu0 0
      %12760 = vmatpush1.bf16.msra.mxu0 0
      %12761 = vmatprep.subr.bf16.mxu0 0
      %12762 = vmatpush1.bf16.msra.mxu0 0
      %12763 = vmatprep.subr.bf16.mxu0 0
      %12764 = vmatpush1.bf16.msra.mxu0 0
      %12765 = vmatprep.subr.bf16.mxu0 0
      %12766 = vmatpush1.bf16.msra.mxu0 0
      %12767 = vmatprep.subr.bf16.mxu0 0
      %12768 = vmatpush1.bf16.msra.mxu0 0
      %12769 = vmatprep.subr.bf16.mxu0 0
      %12770 = vmatpush1.bf16.msra.mxu0 0
      %12771 = vmatprep.subr.bf16.mxu0 0
      %12772 = vmatpush1.bf16.msra.mxu0 0
      %12773 = vmatprep.subr.bf16.mxu0 0
      %12774 = vmatpush1.bf16.msra.mxu0 0
      %12775 = vmatprep.subr.bf16.mxu0 0
      %12776 = vmatpush1.bf16.msra.mxu0 0
      %12777 = vmatprep.subr.bf16.mxu0 0
      %12778 = vmatpush1.bf16.msra.mxu0 0
      %12779 = vmatprep.subr.bf16.mxu0 0
      %12780 = vmatpush1.bf16.msra.mxu0 0
      %12781 = vmatprep.mubr.bf16.mxu0 0
      %12782 = vmatmul.mubr.bf16.gmra.mrb[0].mxu0 %v12706
      %v12783 = vpop.f32.mrb[0].mxu0
      %v12784 = vadd.f32 %v12743, %v12783
      %v12785 = vpop.f32.mrb[0].mxu0
      %v12786 = vadd.f32 %v12745, %v12785
      %v12787 = vpop.f32.mrb[0].mxu0
      %v12788 = vpop.f32.mrb[0].mxu0
      %12789 = vdwg.mxu0
      %v12790 = vld [vmem:[%s5 + $0x7e0] sm:$0xff]
      %v12791 = vld [vmem:[%s5 + $0x7e8] sm:$0xff]
      %v12792 = vld [vmem:[%s5 + $0x7f0] sm:$0xff]
      %v12793 = vld [vmem:[%s5 + $0x7f8] sm:$0xff]
      %v12794 = vld [vmem:[%s5 + $0x800] sm:$0xff]
      %v12795 = vld [vmem:[%s5 + $0x808] sm:$0xff]
      %v12796 = vld [vmem:[%s5 + $0x810] sm:$0xff]
      %v12797 = vld [vmem:[%s5 + $0x818] sm:$0xff]
      %v12798 = vld [vmem:[%s5 + $0x820] sm:$0xff]
      %v12799 = vld [vmem:[%s5 + $0x828] sm:$0xff]
      %v12800 = vld [vmem:[%s5 + $0x830] sm:$0xff]
      %v12801 = vld [vmem:[%s5 + $0x838] sm:$0xff]
      %v12802 = vld [vmem:[%s5 + $0x840] sm:$0xff]
      %v12803 = vld [vmem:[%s5 + $0x848] sm:$0xff]
      %v12804 = vld [vmem:[%s5 + $0x850] sm:$0xff]
      %v12805 = vld [vmem:[%s5 + $0x858] sm:$0xff]
      %v12806 = vld [vmem:[%s5 + $0x860] sm:$0xff]
      %v12807 = vld [vmem:[%s5 + $0x868] sm:$0xff]
      %v12808 = vld [vmem:[%s5 + $0x870] sm:$0xff]
      %v12809 = vld [vmem:[%s5 + $0x878] sm:$0xff]
      %v12810 = vld [vmem:[%s5 + $0x880] sm:$0xff]
      %v12811 = vld [vmem:[%s5 + $0x888] sm:$0xff]
      %v12812 = vld [vmem:[%s5 + $0x890] sm:$0xff]
      %v12813 = vld [vmem:[%s5 + $0x898] sm:$0xff]
      %v12814 = vld [vmem:[%s5 + $0x8a0] sm:$0xff]
      %v12815 = vld [vmem:[%s5 + $0x8a8] sm:$0xff]
      %v12816 = vld [vmem:[%s5 + $0x8b0] sm:$0xff]
      %v12817 = vld [vmem:[%s5 + $0x8b8] sm:$0xff]
      %v12818 = vld [vmem:[%s5 + $0x8c0] sm:$0xff]
      %v12819 = vld [vmem:[%s5 + $0x8c8] sm:$0xff]
      %v12820 = vld [vmem:[%s5 + $0x8d0] sm:$0xff]
      %v12821 = vld [vmem:[%s5 + $0x8d8] sm:$0xff]
      %v12822 = vld [vmem:[%s5 + $0x8e0] sm:$0xff]
      %v12823 = vld [vmem:[%s5 + $0x8e8] sm:$0xff]
      %v12824 = vld [vmem:[%s5 + $0x8f0] sm:$0xff]
      %v12825 = vld [vmem:[%s5 + $0x8f8] sm:$0xff]
      %v12829 = vrot.slane %v10917, 4
      %v12830 = vrot.slane %v10918, 4
      %v12831 = vrot.slane %v10919, 4
      %v12870 = vunpack.c.l.b16 %v12790
      %v12871 = vunpack.c.h.b16 %v12790
      %v12872 = vunpack.c.l.b16 %v12791
      %v12873 = vunpack.c.h.b16 %v12791
      %v12874 = vunpack.c.l.b16 %v12792
      %v12875 = vunpack.c.h.b16 %v12792
      %v12876 = vunpack.c.l.b16 %v12793
      %v12877 = vunpack.c.h.b16 %v12793
      %v12878 = vunpack.c.l.b16 %v12794
      %v12879 = vunpack.c.h.b16 %v12794
      %v12880 = vunpack.c.l.b16 %v12795
      %v12881 = vunpack.c.h.b16 %v12795
      %v12882 = vunpack.c.l.b16 %v12796
      %v12883 = vunpack.c.h.b16 %v12796
      %v12884 = vunpack.c.l.b16 %v12797
      %v12885 = vunpack.c.h.b16 %v12797
      %v12886 = vunpack.c.l.b16 %v12798
      %v12887 = vunpack.c.h.b16 %v12798
      %v12888 = vunpack.c.l.b16 %v12799
      %v12889 = vunpack.c.h.b16 %v12799
      %v12890 = vunpack.c.l.b16 %v12800
      %v12891 = vunpack.c.h.b16 %v12800
      %v12892 = vunpack.c.l.b16 %v12801
      %v12893 = vunpack.c.h.b16 %v12801
      %v12894 = vunpack.c.l.b16 %v12802
      %v12895 = vunpack.c.h.b16 %v12802
      %v12896 = vunpack.c.l.b16 %v12803
      %v12897 = vunpack.c.h.b16 %v12803
      %v12898 = vunpack.c.l.b16 %v12804
      %v12899 = vunpack.c.h.b16 %v12804
      %v12900 = vunpack.c.l.b16 %v12805
      %v12901 = vunpack.c.h.b16 %v12805
      %v12902 = vunpack.c.l.b16 %v12806
      %v12903 = vunpack.c.h.b16 %v12806
      %v12904 = vunpack.c.l.b16 %v12807
      %v12905 = vunpack.c.h.b16 %v12807
      %v12906 = vunpack.c.l.b16 %v12808
      %v12907 = vunpack.c.h.b16 %v12808
      %v12908 = vunpack.c.l.b16 %v12809
      %v12909 = vunpack.c.h.b16 %v12809
      %v12910 = vunpack.c.l.b16 %v12810
      %v12911 = vunpack.c.h.b16 %v12810
      %v12912 = vunpack.c.l.b16 %v12811
      %v12913 = vunpack.c.h.b16 %v12811
      %v12914 = vunpack.c.l.b16 %v12812
      %v12915 = vunpack.c.h.b16 %v12812
      %v12916 = vunpack.c.l.b16 %v12813
      %v12917 = vunpack.c.h.b16 %v12813
      %v12918 = vunpack.c.l.b16 %v12814
      %v12919 = vunpack.c.h.b16 %v12814
      %v12920 = vunpack.c.l.b16 %v12815
      %v12921 = vunpack.c.h.b16 %v12815
      %v12922 = vunpack.c.l.b16 %v12816
      %v12923 = vunpack.c.h.b16 %v12816
      %v12924 = vunpack.c.l.b16 %v12817
      %v12925 = vunpack.c.h.b16 %v12817
      %v12926 = vunpack.c.l.b16 %v12818
      %v12927 = vunpack.c.h.b16 %v12818
      %v12928 = vunpack.c.l.b16 %v12819
      %v12929 = vunpack.c.h.b16 %v12819
      %v12930 = vunpack.c.l.b16 %v12820
      %v12931 = vunpack.c.h.b16 %v12820
      %v12932 = vunpack.c.l.b16 %v12821
      %v12933 = vunpack.c.h.b16 %v12821
      %v12934 = vunpack.c.l.b16 %v12822
      %v12935 = vunpack.c.h.b16 %v12822
      %v12936 = vunpack.c.l.b16 %v12823
      %v12937 = vunpack.c.h.b16 %v12823
      %v12938 = vunpack.c.l.b16 %v12824
      %v12939 = vunpack.c.h.b16 %v12824
      %v12940 = vunpack.c.l.b16 %v12825
      %v12941 = vunpack.c.h.b16 %v12825
      %v12942 = vpack.c.b16 %v12872, %v12870
      %v12943 = vpack.c.b16 %v12873, %v12871
      %v12944 = vpack.c.b16 %v12876, %v12874
      %v12945 = vpack.c.b16 %v12877, %v12875
      %v12946 = vpack.c.b16 %v12880, %v12878
      %v12947 = vpack.c.b16 %v12881, %v12879
      %v12948 = vpack.c.b16 %v12884, %v12882
      %v12949 = vpack.c.b16 %v12885, %v12883
      %v12950 = vpack.c.b16 %v12888, %v12886
      %v12951 = vpack.c.b16 %v12889, %v12887
      %v12952 = vpack.c.b16 %v12892, %v12890
      %v12953 = vpack.c.b16 %v12893, %v12891
      %v12954 = vpack.c.b16 %v12896, %v12894
      %v12955 = vpack.c.b16 %v12897, %v12895
      %v12956 = vpack.c.b16 %v12900, %v12898
      %v12957 = vpack.c.b16 %v12901, %v12899
      %v12958 = vpack.c.b16 %v12904, %v12902
      %v12959 = vpack.c.b16 %v12905, %v12903
      %v12960 = vpack.c.b16 %v12908, %v12906
      %v12961 = vpack.c.b16 %v12909, %v12907
      %v12962 = vpack.c.b16 %v12912, %v12910
      %v12963 = vpack.c.b16 %v12913, %v12911
      %v12964 = vpack.c.b16 %v12916, %v12914
      %v12965 = vpack.c.b16 %v12917, %v12915
      %v12966 = vpack.c.b16 %v12920, %v12918
      %v12967 = vpack.c.b16 %v12921, %v12919
      %v12968 = vpack.c.b16 %v12924, %v12922
      %v12969 = vpack.c.b16 %v12925, %v12923
      %v12970 = vpack.c.b16 %v12928, %v12926
      %v12971 = vpack.c.b16 %v12929, %v12927
      %v12972 = vpack.c.b16 %v12932, %v12930
      %v12973 = vpack.c.b16 %v12933, %v12931
      %v12974 = vpack.c.b16 %v12936, %v12934
      %v12975 = vpack.c.b16 %v12937, %v12935
      %v12976 = vpack.c.b16 %v12940, %v12938
      %v12977 = vpack.c.b16 %v12941, %v12939
      %v13015 = vsel %vm11183, %v12831, 0
      %13017 = vmatprep.subr.bf16.mxu0 %v12943
      %13018 = vmatpush1.bf16.msra.mxu0 %v12942
      %13019 = vmatprep.subr.bf16.mxu0 %v12945
      %13020 = vmatpush1.bf16.msra.mxu0 %v12944
      %13021 = vmatprep.subr.bf16.mxu0 %v12947
      %13022 = vmatpush1.bf16.msra.mxu0 %v12946
      %13023 = vmatprep.subr.bf16.mxu0 %v12949
      %13024 = vmatpush1.bf16.msra.mxu0 %v12948
      %13025 = vmatprep.subr.bf16.mxu0 %v12951
      %13026 = vmatpush1.bf16.msra.mxu0 %v12950
      %13027 = vmatprep.subr.bf16.mxu0 %v12953
      %13028 = vmatpush1.bf16.msra.mxu0 %v12952
      %13029 = vmatprep.subr.bf16.mxu0 %v12955
      %13030 = vmatpush1.bf16.msra.mxu0 %v12954
      %13031 = vmatprep.subr.bf16.mxu0 %v12957
      %13032 = vmatpush1.bf16.msra.mxu0 %v12956
      %13033 = vmatprep.subr.bf16.mxu0 %v12959
      %13034 = vmatpush1.bf16.msra.mxu0 %v12958
      %13035 = vmatprep.subr.bf16.mxu0 %v12961
      %13036 = vmatpush1.bf16.msra.mxu0 %v12960
      %13037 = vmatprep.subr.bf16.mxu0 %v12963
      %13038 = vmatpush1.bf16.msra.mxu0 %v12962
      %13039 = vmatprep.subr.bf16.mxu0 %v12965
      %13040 = vmatpush1.bf16.msra.mxu0 %v12964
      %13041 = vmatprep.subr.bf16.mxu0 %v12967
      %13042 = vmatpush1.bf16.msra.mxu0 %v12966
      %13043 = vmatprep.subr.bf16.mxu0 %v12969
      %13044 = vmatpush1.bf16.msra.mxu0 %v12968
      %13045 = vmatprep.subr.bf16.mxu0 %v12971
      %13046 = vmatpush1.bf16.msra.mxu0 %v12970
      %13047 = vmatprep.subr.bf16.mxu0 %v12973
      %13048 = vmatpush1.bf16.msra.mxu0 %v12972
      %13049 = vmatprep.mubr.bf16.mxu0 %v12830
      %13050 = vmatmul.mubr.bf16.gmra.mrb[0].mxu0 %v12829
      %v13051 = vpop.f32.mrb[0].mxu0
      %v13052 = vadd.f32 0.0, %v13051
      %v13053 = vpop.f32.mrb[0].mxu0
      %v13054 = vadd.f32 0.0, %v13053
      %v13055 = vpop.f32.mrb[0].mxu0
      %v13056 = vpop.f32.mrb[0].mxu0
      %13057 = vdwg.mxu0
      %13058 = vmatprep.subr.bf16.mxu0 %v12975
      %13059 = vmatpush1.bf16.msra.mxu0 %v12974
      %13060 = vmatprep.subr.bf16.mxu0 %v12977
      %13061 = vmatpush1.bf16.msra.mxu0 %v12976
      %13062 = vmatprep.subr.bf16.mxu0 0
      %13063 = vmatpush1.bf16.msra.mxu0 0
      %13064 = vmatprep.subr.bf16.mxu0 0
      %13065 = vmatpush1.bf16.msra.mxu0 0
      %13066 = vmatprep.subr.bf16.mxu0 0
      %13067 = vmatpush1.bf16.msra.mxu0 0
      %13068 = vmatprep.subr.bf16.mxu0 0
      %13069 = vmatpush1.bf16.msra.mxu0 0
      %13070 = vmatprep.subr.bf16.mxu0 0
      %13071 = vmatpush1.bf16.msra.mxu0 0
      %13072 = vmatprep.subr.bf16.mxu0 0
      %13073 = vmatpush1.bf16.msra.mxu0 0
      %13074 = vmatprep.subr.bf16.mxu0 0
      %13075 = vmatpush1.bf16.msra.mxu0 0
      %13076 = vmatprep.subr.bf16.mxu0 0
      %13077 = vmatpush1.bf16.msra.mxu0 0
      %13078 = vmatprep.subr.bf16.mxu0 0
      %13079 = vmatpush1.bf16.msra.mxu0 0
      %13080 = vmatprep.subr.bf16.mxu0 0
      %13081 = vmatpush1.bf16.msra.mxu0 0
      %13082 = vmatprep.subr.bf16.mxu0 0
      %13083 = vmatpush1.bf16.msra.mxu0 0
      %13084 = vmatprep.subr.bf16.mxu0 0
      %13085 = vmatpush1.bf16.msra.mxu0 0
      %13086 = vmatprep.subr.bf16.mxu0 0
      %13087 = vmatpush1.bf16.msra.mxu0 0
      %13088 = vmatprep.subr.bf16.mxu0 0
      %13089 = vmatpush1.bf16.msra.mxu0 0
      %13090 = vmatprep.mubr.bf16.mxu0 0
      %13091 = vmatmul.mubr.bf16.gmra.mrb[0].mxu0 %v13015
      %v13092 = vpop.f32.mrb[0].mxu0
      %v13093 = vadd.f32 %v13052, %v13092
      %v13094 = vpop.f32.mrb[0].mxu0
      %v13095 = vadd.f32 %v13054, %v13094
      %v13096 = vpop.f32.mrb[0].mxu0
      %v13097 = vpop.f32.mrb[0].mxu0
      %13098 = vdwg.mxu0
      %v13099 = vld [vmem:[%s5 + $0x900] sm:$0xff]
      %v13100 = vld [vmem:[%s5 + $0x908] sm:$0xff]
      %v13101 = vld [vmem:[%s5 + $0x910] sm:$0xff]
      %v13102 = vld [vmem:[%s5 + $0x918] sm:$0xff]
      %v13103 = vld [vmem:[%s5 + $0x920] sm:$0xff]
      %v13104 = vld [vmem:[%s5 + $0x928] sm:$0xff]
      %v13105 = vld [vmem:[%s5 + $0x930] sm:$0xff]
      %v13106 = vld [vmem:[%s5 + $0x938] sm:$0xff]
      %v13107 = vld [vmem:[%s5 + $0x940] sm:$0xff]
      %v13108 = vld [vmem:[%s5 + $0x948] sm:$0xff]
      %v13109 = vld [vmem:[%s5 + $0x950] sm:$0xff]
      %v13110 = vld [vmem:[%s5 + $0x958] sm:$0xff]
      %v13111 = vld [vmem:[%s5 + $0x960] sm:$0xff]
      %v13112 = vld [vmem:[%s5 + $0x968] sm:$0xff]
      %v13113 = vld [vmem:[%s5 + $0x970] sm:$0xff]
      %v13114 = vld [vmem:[%s5 + $0x978] sm:$0xff]
      %v13115 = vld [vmem:[%s5 + $0x980] sm:$0xff]
      %v13116 = vld [vmem:[%s5 + $0x988] sm:$0xff]
      %v13117 = vld [vmem:[%s5 + $0x990] sm:$0xff]
      %v13118 = vld [vmem:[%s5 + $0x998] sm:$0xff]
      %v13119 = vld [vmem:[%s5 + $0x9a0] sm:$0xff]
      %v13120 = vld [vmem:[%s5 + $0x9a8] sm:$0xff]
      %v13121 = vld [vmem:[%s5 + $0x9b0] sm:$0xff]
      %v13122 = vld [vmem:[%s5 + $0x9b8] sm:$0xff]
      %v13123 = vld [vmem:[%s5 + $0x9c0] sm:$0xff]
      %v13124 = vld [vmem:[%s5 + $0x9c8] sm:$0xff]
      %v13125 = vld [vmem:[%s5 + $0x9d0] sm:$0xff]
      %v13126 = vld [vmem:[%s5 + $0x9d8] sm:$0xff]
      %v13127 = vld [vmem:[%s5 + $0x9e0] sm:$0xff]
      %v13128 = vld [vmem:[%s5 + $0x9e8] sm:$0xff]
      %v13129 = vld [vmem:[%s5 + $0x9f0] sm:$0xff]
      %v13130 = vld [vmem:[%s5 + $0x9f8] sm:$0xff]
      %v13131 = vld [vmem:[%s5 + $0xa00] sm:$0xff]
      %v13132 = vld [vmem:[%s5 + $0xa08] sm:$0xff]
      %v13133 = vld [vmem:[%s5 + $0xa10] sm:$0xff]
      %v13134 = vld [vmem:[%s5 + $0xa18] sm:$0xff]
      %v13171 = vunpack.c.l.b16 %v13099
      %v13172 = vunpack.c.h.b16 %v13099
      %v13173 = vunpack.c.l.b16 %v13100
      %v13174 = vunpack.c.h.b16 %v13100
      %v13175 = vunpack.c.l.b16 %v13101
      %v13176 = vunpack.c.h.b16 %v13101
      %v13177 = vunpack.c.l.b16 %v13102
      %v13178 = vunpack.c.h.b16 %v13102
      %v13179 = vunpack.c.l.b16 %v13103
      %v13180 = vunpack.c.h.b16 %v13103
      %v13181 = vunpack.c.l.b16 %v13104
      %v13182 = vunpack.c.h.b16 %v13104
      %v13183 = vunpack.c.l.b16 %v13105
      %v13184 = vunpack.c.h.b16 %v13105
      %v13185 = vunpack.c.l.b16 %v13106
      %v13186 = vunpack.c.h.b16 %v13106
      %v13187 = vunpack.c.l.b16 %v13107
      %v13188 = vunpack.c.h.b16 %v13107
      %v13189 = vunpack.c.l.b16 %v13108
      %v13190 = vunpack.c.h.b16 %v13108
      %v13191 = vunpack.c.l.b16 %v13109
      %v13192 = vunpack.c.h.b16 %v13109
      %v13193 = vunpack.c.l.b16 %v13110
      %v13194 = vunpack.c.h.b16 %v13110
      %v13195 = vunpack.c.l.b16 %v13111
      %v13196 = vunpack.c.h.b16 %v13111
      %v13197 = vunpack.c.l.b16 %v13112
      %v13198 = vunpack.c.h.b16 %v13112
      %v13199 = vunpack.c.l.b16 %v13113
      %v13200 = vunpack.c.h.b16 %v13113
      %v13201 = vunpack.c.l.b16 %v13114
      %v13202 = vunpack.c.h.b16 %v13114
      %v13203 = vunpack.c.l.b16 %v13115
      %v13204 = vunpack.c.h.b16 %v13115
      %v13205 = vunpack.c.l.b16 %v13116
      %v13206 = vunpack.c.h.b16 %v13116
      %v13207 = vunpack.c.l.b16 %v13117
      %v13208 = vunpack.c.h.b16 %v13117
      %v13209 = vunpack.c.l.b16 %v13118
      %v13210 = vunpack.c.h.b16 %v13118
      %v13211 = vunpack.c.l.b16 %v13119
      %v13212 = vunpack.c.h.b16 %v13119
      %v13213 = vunpack.c.l.b16 %v13120
      %v13214 = vunpack.c.h.b16 %v13120
      %v13215 = vunpack.c.l.b16 %v13121
      %v13216 = vunpack.c.h.b16 %v13121
      %v13217 = vunpack.c.l.b16 %v13122
      %v13218 = vunpack.c.h.b16 %v13122
      %v13219 = vunpack.c.l.b16 %v13123
      %v13220 = vunpack.c.h.b16 %v13123
      %v13221 = vunpack.c.l.b16 %v13124
      %v13222 = vunpack.c.h.b16 %v13124
      %v13223 = vunpack.c.l.b16 %v13125
      %v13224 = vunpack.c.h.b16 %v13125
      %v13225 = vunpack.c.l.b16 %v13126
      %v13226 = vunpack.c.h.b16 %v13126
      %v13227 = vunpack.c.l.b16 %v13127
      %v13228 = vunpack.c.h.b16 %v13127
      %v13229 = vunpack.c.l.b16 %v13128
      %v13230 = vunpack.c.h.b16 %v13128
      %v13231 = vunpack.c.l.b16 %v13129
      %v13232 = vunpack.c.h.b16 %v13129
      %v13233 = vunpack.c.l.b16 %v13130
      %v13234 = vunpack.c.h.b16 %v13130
      %v13235 = vunpack.c.l.b16 %v13131
      %v13236 = vunpack.c.h.b16 %v13131
      %v13237 = vunpack.c.l.b16 %v13132
      %v13238 = vunpack.c.h.b16 %v13132
      %v13239 = vunpack.c.l.b16 %v13133
      %v13240 = vunpack.c.h.b16 %v13133
      %v13241 = vunpack.c.l.b16 %v13134
      %v13242 = vunpack.c.h.b16 %v13134
      %v13243 = vpack.c.b16 %v13173, %v13171
      %v13244 = vpack.c.b16 %v13174, %v13172
      %v13245 = vpack.c.b16 %v13177, %v13175
      %v13246 = vpack.c.b16 %v13178, %v13176
      %v13247 = vpack.c.b16 %v13181, %v13179
      %v13248 = vpack.c.b16 %v13182, %v13180
      %v13249 = vpack.c.b16 %v13185, %v13183
      %v13250 = vpack.c.b16 %v13186, %v13184
      %v13251 = vpack.c.b16 %v13189, %v13187
      %v13252 = vpack.c.b16 %v13190, %v13188
      %v13253 = vpack.c.b16 %v13193, %v13191
      %v13254 = vpack.c.b16 %v13194, %v13192
      %v13255 = vpack.c.b16 %v13197, %v13195
      %v13256 = vpack.c.b16 %v13198, %v13196
      %v13257 = vpack.c.b16 %v13201, %v13199
      %v13258 = vpack.c.b16 %v13202, %v13200
      %v13259 = vpack.c.b16 %v13205, %v13203
      %v13260 = vpack.c.b16 %v13206, %v13204
      %v13261 = vpack.c.b16 %v13209, %v13207
      %v13262 = vpack.c.b16 %v13210, %v13208
      %v13263 = vpack.c.b16 %v13213, %v13211
      %v13264 = vpack.c.b16 %v13214, %v13212
      %v13265 = vpack.c.b16 %v13217, %v13215
      %v13266 = vpack.c.b16 %v13218, %v13216
      %v13267 = vpack.c.b16 %v13221, %v13219
      %v13268 = vpack.c.b16 %v13222, %v13220
      %v13269 = vpack.c.b16 %v13225, %v13223
      %v13270 = vpack.c.b16 %v13226, %v13224
      %v13271 = vpack.c.b16 %v13229, %v13227
      %v13272 = vpack.c.b16 %v13230, %v13228
      %v13273 = vpack.c.b16 %v13233, %v13231
      %v13274 = vpack.c.b16 %v13234, %v13232
      %v13275 = vpack.c.b16 %v13237, %v13235
      %v13276 = vpack.c.b16 %v13238, %v13236
      %v13277 = vpack.c.b16 %v13241, %v13239
      %v13278 = vpack.c.b16 %v13242, %v13240
      %v13316 = vsel %vm11183, %v10922, 0
      %13318 = vmatprep.subr.bf16.mxu0 %v13244
      %13319 = vmatpush1.bf16.msra.mxu0 %v13243
      %13320 = vmatprep.subr.bf16.mxu0 %v13246
      %13321 = vmatpush1.bf16.msra.mxu0 %v13245
      %13322 = vmatprep.subr.bf16.mxu0 %v13248
      %13323 = vmatpush1.bf16.msra.mxu0 %v13247
      %13324 = vmatprep.subr.bf16.mxu0 %v13250
      %13325 = vmatpush1.bf16.msra.mxu0 %v13249
      %13326 = vmatprep.subr.bf16.mxu0 %v13252
      %13327 = vmatpush1.bf16.msra.mxu0 %v13251
      %13328 = vmatprep.subr.bf16.mxu0 %v13254
      %13329 = vmatpush1.bf16.msra.mxu0 %v13253
      %13330 = vmatprep.subr.bf16.mxu0 %v13256
      %13331 = vmatpush1.bf16.msra.mxu0 %v13255
      %13332 = vmatprep.subr.bf16.mxu0 %v13258
      %13333 = vmatpush1.bf16.msra.mxu0 %v13257
      %13334 = vmatprep.subr.bf16.mxu0 %v13260
      %13335 = vmatpush1.bf16.msra.mxu0 %v13259
      %13336 = vmatprep.subr.bf16.mxu0 %v13262
      %13337 = vmatpush1.bf16.msra.mxu0 %v13261
      %13338 = vmatprep.subr.bf16.mxu0 %v13264
      %13339 = vmatpush1.bf16.msra.mxu0 %v13263
      %13340 = vmatprep.subr.bf16.mxu0 %v13266
      %13341 = vmatpush1.bf16.msra.mxu0 %v13265
      %13342 = vmatprep.subr.bf16.mxu0 %v13268
      %13343 = vmatpush1.bf16.msra.mxu0 %v13267
      %13344 = vmatprep.subr.bf16.mxu0 %v13270
      %13345 = vmatpush1.bf16.msra.mxu0 %v13269
      %13346 = vmatprep.subr.bf16.mxu0 %v13272
      %13347 = vmatpush1.bf16.msra.mxu0 %v13271
      %13348 = vmatprep.subr.bf16.mxu0 %v13274
      %13349 = vmatpush1.bf16.msra.mxu0 %v13273
      %13350 = vmatprep.mubr.bf16.mxu0 %v10921
      %13351 = vmatmul.mubr.bf16.gmra.mrb[0].mxu0 %v10920
      %v13352 = vpop.f32.mrb[0].mxu0
      %v13353 = vadd.f32 0.0, %v13352
      %v13354 = vpop.f32.mrb[0].mxu0
      %v13355 = vadd.f32 0.0, %v13354
      %v13356 = vpop.f32.mrb[0].mxu0
      %v13357 = vpop.f32.mrb[0].mxu0
      %13358 = vdwg.mxu0
      %13359 = vmatprep.subr.bf16.mxu0 %v13276
      %13360 = vmatpush1.bf16.msra.mxu0 %v13275
      %13361 = vmatprep.subr.bf16.mxu0 %v13278
      %13362 = vmatpush1.bf16.msra.mxu0 %v13277
      %13363 = vmatprep.subr.bf16.mxu0 0
      %13364 = vmatpush1.bf16.msra.mxu0 0
      %13365 = vmatprep.subr.bf16.mxu0 0
      %13366 = vmatpush1.bf16.msra.mxu0 0
      %13367 = vmatprep.subr.bf16.mxu0 0
      %13368 = vmatpush1.bf16.msra.mxu0 0
      %13369 = vmatprep.subr.bf16.mxu0 0
      %13370 = vmatpush1.bf16.msra.mxu0 0
      %13371 = vmatprep.subr.bf16.mxu0 0
      %13372 = vmatpush1.bf16.msra.mxu0 0
      %13373 = vmatprep.subr.bf16.mxu0 0
      %13374 = vmatpush1.bf16.msra.mxu0 0
      %13375 = vmatprep.subr.bf16.mxu0 0
      %13376 = vmatpush1.bf16.msra.mxu0 0
      %13377 = vmatprep.subr.bf16.mxu0 0
      %13378 = vmatpush1.bf16.msra.mxu0 0
      %13379 = vmatprep.subr.bf16.mxu0 0
      %13380 = vmatpush1.bf16.msra.mxu0 0
      %13381 = vmatprep.subr.bf16.mxu0 0
      %13382 = vmatpush1.bf16.msra.mxu0 0
      %13383 = vmatprep.subr.bf16.mxu0 0
      %13384 = vmatpush1.bf16.msra.mxu0 0
      %13385 = vmatprep.subr.bf16.mxu0 0
      %13386 = vmatpush1.bf16.msra.mxu0 0
      %13387 = vmatprep.subr.bf16.mxu0 0
      %13388 = vmatpush1.bf16.msra.mxu0 0
      %13389 = vmatprep.subr.bf16.mxu0 0
      %13390 = vmatpush1.bf16.msra.mxu0 0
      %13391 = vmatprep.mubr.bf16.mxu0 0
      %13392 = vmatmul.mubr.bf16.gmra.mrb[0].mxu0 %v13316
      %v13393 = vpop.f32.mrb[0].mxu0
      %v13394 = vadd.f32 %v13353, %v13393
      %v13395 = vpop.f32.mrb[0].mxu0
      %v13396 = vadd.f32 %v13355, %v13395
      %v13397 = vpop.f32.mrb[0].mxu0
      %v13398 = vpop.f32.mrb[0].mxu0
      %13399 = vdwg.mxu0
      %v13436 = vunpack.c.l.b16 %v10923
      %v13437 = vunpack.c.h.b16 %v10923
      %v13438 = vunpack.c.l.b16 %v10924
      %v13439 = vunpack.c.h.b16 %v10924
      %v13440 = vunpack.c.l.b16 %v10925
      %v13441 = vunpack.c.h.b16 %v10925
      %v13442 = vunpack.c.l.b16 %v10926
      %v13443 = vunpack.c.h.b16 %v10926
      %v13444 = vunpack.c.l.b16 %v10927
      %v13445 = vunpack.c.h.b16 %v10927
      %v13446 = vunpack.c.l.b16 %v10928
      %v13447 = vunpack.c.h.b16 %v10928
      %v13448 = vunpack.c.l.b16 %v10929
      %v13449 = vunpack.c.h.b16 %v10929
      %v13450 = vunpack.c.l.b16 %v10930
      %v13451 = vunpack.c.h.b16 %v10930
      %v13452 = vunpack.c.l.b16 %v10931
      %v13453 = vunpack.c.h.b16 %v10931
      %v13454 = vunpack.c.l.b16 %v10932
      %v13455 = vunpack.c.h.b16 %v10932
      %v13456 = vunpack.c.l.b16 %v10933
      %v13457 = vunpack.c.h.b16 %v10933
      %v13458 = vunpack.c.l.b16 %v10934
      %v13459 = vunpack.c.h.b16 %v10934
      %v13460 = vunpack.c.l.b16 %v10935
      %v13461 = vunpack.c.h.b16 %v10935
      %v13462 = vunpack.c.l.b16 %v10936
      %v13463 = vunpack.c.h.b16 %v10936
      %v13464 = vunpack.c.l.b16 %v10937
      %v13465 = vunpack.c.h.b16 %v10937
      %v13466 = vunpack.c.l.b16 %v10938
      %v13467 = vunpack.c.h.b16 %v10938
      %v13468 = vunpack.c.l.b16 %v10939
      %v13469 = vunpack.c.h.b16 %v10939
      %v13470 = vunpack.c.l.b16 %v10940
      %v13471 = vunpack.c.h.b16 %v10940
      %v13472 = vunpack.c.l.b16 %v10941
      %v13473 = vunpack.c.h.b16 %v10941
      %v13474 = vunpack.c.l.b16 %v10942
      %v13475 = vunpack.c.h.b16 %v10942
      %v13476 = vunpack.c.l.b16 %v10943
      %v13477 = vunpack.c.h.b16 %v10943
      %v13478 = vunpack.c.l.b16 %v10944
      %v13479 = vunpack.c.h.b16 %v10944
      %v13480 = vunpack.c.l.b16 %v10945
      %v13481 = vunpack.c.h.b16 %v10945
      %v13482 = vunpack.c.l.b16 %v10946
      %v13483 = vunpack.c.h.b16 %v10946
      %v13484 = vunpack.c.l.b16 %v10947
      %v13485 = vunpack.c.h.b16 %v10947
      %v13486 = vunpack.c.l.b16 %v10948
      %v13487 = vunpack.c.h.b16 %v10948
      %v13488 = vunpack.c.l.b16 %v10949
      %v13489 = vunpack.c.h.b16 %v10949
      %v13490 = vunpack.c.l.b16 %v10950
      %v13491 = vunpack.c.h.b16 %v10950
      %v13492 = vunpack.c.l.b16 %v10951
      %v13493 = vunpack.c.h.b16 %v10951
      %v13494 = vunpack.c.l.b16 %v10952
      %v13495 = vunpack.c.h.b16 %v10952
      %v13496 = vunpack.c.l.b16 %v10953
      %v13497 = vunpack.c.h.b16 %v10953
      %v13498 = vunpack.c.l.b16 %v10954
      %v13499 = vunpack.c.h.b16 %v10954
      %v13500 = vunpack.c.l.b16 %v10955
      %v13501 = vunpack.c.h.b16 %v10955
      %v13502 = vunpack.c.l.b16 %v10956
      %v13503 = vunpack.c.h.b16 %v10956
      %v13504 = vunpack.c.l.b16 %v10957
      %v13505 = vunpack.c.h.b16 %v10957
      %v13506 = vunpack.c.l.b16 %v10958
      %v13507 = vunpack.c.h.b16 %v10958
      %v13508 = vpack.c.b16 %v13438, %v13436
      %v13509 = vpack.c.b16 %v13439, %v13437
      %v13510 = vpack.c.b16 %v13442, %v13440
      %v13511 = vpack.c.b16 %v13443, %v13441
      %v13512 = vpack.c.b16 %v13446, %v13444
      %v13513 = vpack.c.b16 %v13447, %v13445
      %v13514 = vpack.c.b16 %v13450, %v13448
      %v13515 = vpack.c.b16 %v13451, %v13449
      %v13516 = vpack.c.b16 %v13454, %v13452
      %v13517 = vpack.c.b16 %v13455, %v13453
      %v13518 = vpack.c.b16 %v13458, %v13456
      %v13519 = vpack.c.b16 %v13459, %v13457
      %v13520 = vpack.c.b16 %v13462, %v13460
      %v13521 = vpack.c.b16 %v13463, %v13461
      %v13522 = vpack.c.b16 %v13466, %v13464
      %v13523 = vpack.c.b16 %v13467, %v13465
      %v13524 = vpack.c.b16 %v13470, %v13468
      %v13525 = vpack.c.b16 %v13471, %v13469
      %v13526 = vpack.c.b16 %v13474, %v13472
      %v13527 = vpack.c.b16 %v13475, %v13473
      %v13528 = vpack.c.b16 %v13478, %v13476
      %v13529 = vpack.c.b16 %v13479, %v13477
      %v13530 = vpack.c.b16 %v13482, %v13480
      %v13531 = vpack.c.b16 %v13483, %v13481
      %v13532 = vpack.c.b16 %v13486, %v13484
      %v13533 = vpack.c.b16 %v13487, %v13485
      %v13534 = vpack.c.b16 %v13490, %v13488
      %v13535 = vpack.c.b16 %v13491, %v13489
      %v13536 = vpack.c.b16 %v13494, %v13492
      %v13537 = vpack.c.b16 %v13495, %v13493
      %v13538 = vpack.c.b16 %v13498, %v13496
      %v13539 = vpack.c.b16 %v13499, %v13497
      %v13540 = vpack.c.b16 %v13502, %v13500
      %v13541 = vpack.c.b16 %v13503, %v13501
      %v13542 = vpack.c.b16 %v13506, %v13504
      %v13543 = vpack.c.b16 %v13507, %v13505
      %v13581 = vsel %vm11183, %v10910, 0
      %13583 = vmatprep.subr.bf16.mxu0 %v13509
      %13584 = vmatpush1.bf16.msra.mxu0 %v13508
      %13585 = vmatprep.subr.bf16.mxu0 %v13511
      %13586 = vmatpush1.bf16.msra.mxu0 %v13510
      %13587 = vmatprep.subr.bf16.mxu0 %v13513
      %13588 = vmatpush1.bf16.msra.mxu0 %v13512
      %13589 = vmatprep.subr.bf16.mxu0 %v13515
      %13590 = vmatpush1.bf16.msra.mxu0 %v13514
      %13591 = vmatprep.subr.bf16.mxu0 %v13517
      %13592 = vmatpush1.bf16.msra.mxu0 %v13516
      %13593 = vmatprep.subr.bf16.mxu0 %v13519
      %13594 = vmatpush1.bf16.msra.mxu0 %v13518
      %13595 = vmatprep.subr.bf16.mxu0 %v13521
      %13596 = vmatpush1.bf16.msra.mxu0 %v13520
      %13597 = vmatprep.subr.bf16.mxu0 %v13523
      %13598 = vmatpush1.bf16.msra.mxu0 %v13522
      %13599 = vmatprep.subr.bf16.mxu0 %v13525
      %13600 = vmatpush1.bf16.msra.mxu0 %v13524
      %13601 = vmatprep.subr.bf16.mxu0 %v13527
      %13602 = vmatpush1.bf16.msra.mxu0 %v13526
      %13603 = vmatprep.subr.bf16.mxu0 %v13529
      %13604 = vmatpush1.bf16.msra.mxu0 %v13528
      %13605 = vmatprep.subr.bf16.mxu0 %v13531
      %13606 = vmatpush1.bf16.msra.mxu0 %v13530
      %13607 = vmatprep.subr.bf16.mxu0 %v13533
      %13608 = vmatpush1.bf16.msra.mxu0 %v13532
      %13609 = vmatprep.subr.bf16.mxu0 %v13535
      %13610 = vmatpush1.bf16.msra.mxu0 %v13534
      %13611 = vmatprep.subr.bf16.mxu0 %v13537
      %13612 = vmatpush1.bf16.msra.mxu0 %v13536
      %13613 = vmatprep.subr.bf16.mxu0 %v13539
      %13614 = vmatpush1.bf16.msra.mxu0 %v13538
      %13615 = vmatprep.mubr.bf16.mxu0 %v10909
      %13616 = vmatmul.mubr.bf16.gmra.mrb[0].mxu0 %v10908
      %v13617 = vpop.f32.mrb[0].mxu0
      %v13618 = vadd.f32 %v11263, %v13617
      %v13619 = vpop.f32.mrb[0].mxu0
      %v13620 = vadd.f32 %v11265, %v13619
      %v13621 = vpop.f32.mrb[0].mxu0
      %v13622 = vpop.f32.mrb[0].mxu0
      %13623 = vdwg.mxu0
      %13624 = vmatprep.subr.bf16.mxu0 %v13541
      %13625 = vmatpush1.bf16.msra.mxu0 %v13540
      %13626 = vmatprep.subr.bf16.mxu0 %v13543
      %13627 = vmatpush1.bf16.msra.mxu0 %v13542
      %13628 = vmatprep.subr.bf16.mxu0 0
      %13629 = vmatpush1.bf16.msra.mxu0 0
      %13630 = vmatprep.subr.bf16.mxu0 0
      %13631 = vmatpush1.bf16.msra.mxu0 0
      %13632 = vmatprep.subr.bf16.mxu0 0
      %13633 = vmatpush1.bf16.msra.mxu0 0
      %13634 = vmatprep.subr.bf16.mxu0 0
      %13635 = vmatpush1.bf16.msra.mxu0 0
      %13636 = vmatprep.subr.bf16.mxu0 0
      %13637 = vmatpush1.bf16.msra.mxu0 0
      %13638 = vmatprep.subr.bf16.mxu0 0
      %13639 = vmatpush1.bf16.msra.mxu0 0
      %13640 = vmatprep.subr.bf16.mxu0 0
      %13641 = vmatpush1.bf16.msra.mxu0 0
      %13642 = vmatprep.subr.bf16.mxu0 0
      %13643 = vmatpush1.bf16.msra.mxu0 0
      %13644 = vmatprep.subr.bf16.mxu0 0
      %13645 = vmatpush1.bf16.msra.mxu0 0
      %13646 = vmatprep.subr.bf16.mxu0 0
      %13647 = vmatpush1.bf16.msra.mxu0 0
      %13648 = vmatprep.subr.bf16.mxu0 0
      %13649 = vmatpush1.bf16.msra.mxu0 0
      %13650 = vmatprep.subr.bf16.mxu0 0
      %13651 = vmatpush1.bf16.msra.mxu0 0
      %13652 = vmatprep.subr.bf16.mxu0 0
      %13653 = vmatpush1.bf16.msra.mxu0 0
      %13654 = vmatprep.subr.bf16.mxu0 0
      %13655 = vmatpush1.bf16.msra.mxu0 0
      %13656 = vmatprep.mubr.bf16.mxu0 0
      %13657 = vmatmul.mubr.bf16.gmra.mrb[0].mxu0 %v13581
      %v13658 = vpop.f32.mrb[0].mxu0
      %v13659 = vadd.f32 %v13618, %v13658
      %v13660 = vpop.f32.mrb[0].mxu0
      %v13661 = vadd.f32 %v13620, %v13660
      %v13662 = vpop.f32.mrb[0].mxu0
      %v13663 = vpop.f32.mrb[0].mxu0
      %13664 = vdwg.mxu0
      %v13665 = vadd.f32 %v13659, %v11564
      %v13666 = vadd.f32 %v13661, %v11566
      %v13667 = vadd.f32 %v13665, %v11873
      %v13668 = vadd.f32 %v13666, %v11875
      %v13669 = vadd.f32 %v13667, %v12174
      %v13670 = vadd.f32 %v13668, %v12176
      %v13671 = vadd.f32 %v13669, %v12483
      %v13672 = vadd.f32 %v13670, %v12485
      %v13673 = vadd.f32 %v13671, %v12784
      %v13674 = vadd.f32 %v13672, %v12786
      %v13675 = vadd.f32 %v13673, %v13093
      %v13676 = vadd.f32 %v13674, %v13095
      %v13677 = vadd.f32 %v13675, %v13394
      %v13678 = vadd.f32 %v13676, %v13396
      %v13679 = vld [vmem:[%s6] sm:$0x3]
      %v13681 = vlaneseq
      %v13682 = vshrl.u32 %v13681, 7
      %v13683 = vsub.s32 0, %v13682
      %v13684 = vrot.slane %v13679, %v13683
      %v13685 = vlaneseq
      %v13686 = vshrl.u32 %v13685, 7
      %v13687 = vsub.s32 1, %v13686
      %v13688 = vrot.slane %v13679, %v13687
      %v13691 = vadd.f32 %v13677, %v13684
      %v13692 = vadd.f32 %v13678, %v13688
      %v13693 = vmax.f32 %v13691, 0.0
      %v13694 = vmax.f32 %v13692, 0.0
      %v13695 = vpack.c.bf16 %v13693, %v13693
      %v13696 = vpack.c.bf16 %v13694, %v13694
      %v13697 = vld [vmem:[%s7] sm:$0xf]
      %v13698 = vld [vmem:[%s7 + $0x4] sm:$0xf]
      %v13699 = vld [vmem:[%s7 + $0x8] sm:$0xf]
      %v13700 = vld [vmem:[%s7 + $0xc] sm:$0xf]
      %v13701 = vld [vmem:[%s7 + $0x10] sm:$0xf]
      %v13702 = vld [vmem:[%s7 + $0x14] sm:$0xf]
      %v13703 = vld [vmem:[%s7 + $0x18] sm:$0xf]
      %v13704 = vld [vmem:[%s7 + $0x1c] sm:$0xf]
      %v13705 = vld [vmem:[%s7 + $0x20] sm:$0xf]
      %v13706 = vld [vmem:[%s7 + $0x24] sm:$0xf]
      %v13707 = vld [vmem:[%s7 + $0x28] sm:$0xf]
      %v13708 = vld [vmem:[%s7 + $0x2c] sm:$0xf]
      %v13709 = vld [vmem:[%s7 + $0x30] sm:$0xf]
      %v13710 = vld [vmem:[%s7 + $0x34] sm:$0xf]
      %v13711 = vld [vmem:[%s7 + $0x38] sm:$0xf]
      %v13712 = vld [vmem:[%s7 + $0x3c] sm:$0xf]
      %v13713 = vld [vmem:[%s7 + $0x40] sm:$0xf]
      %v13714 = vld [vmem:[%s7 + $0x44] sm:$0xf]
      %v13715 = vld [vmem:[%s7 + $0x48] sm:$0xf]
      %v13716 = vld [vmem:[%s7 + $0x4c] sm:$0xf]
      %v13717 = vld [vmem:[%s7 + $0x50] sm:$0xf]
      %v13718 = vld [vmem:[%s7 + $0x54] sm:$0xf]
      %v13719 = vld [vmem:[%s7 + $0x58] sm:$0xf]
      %v13720 = vld [vmem:[%s7 + $0x5c] sm:$0xf]
      %v13721 = vld [vmem:[%s7 + $0x60] sm:$0xf]
      %v13722 = vld [vmem:[%s7 + $0x64] sm:$0xf]
      %v13723 = vld [vmem:[%s7 + $0x68] sm:$0xf]
      %v13724 = vld [vmem:[%s7 + $0x6c] sm:$0xf]
      %v13725 = vld [vmem:[%s7 + $0x70] sm:$0xf]
      %v13726 = vld [vmem:[%s7 + $0x74] sm:$0xf]
      %v13727 = vld [vmem:[%s7 + $0x78] sm:$0xf]
      %v13728 = vld [vmem:[%s7 + $0x7c] sm:$0xf]
      %v13729 = vld [vmem:[%s8] sm:$0x1]
      %v13731 = vlaneseq
      %v13732 = vshrl.u32 %v13731, 7
      %v13733 = vsub.s32 0, %v13732
      %v13734 = vrot.slane %v13729, %v13733
      %v13768 = vunpack.c.l.b16 %v13697
      %v13769 = vunpack.c.l.b16 %v13698
      %v13770 = vunpack.c.l.b16 %v13699
      %v13771 = vunpack.c.l.b16 %v13700
      %v13772 = vunpack.c.l.b16 %v13701
      %v13773 = vunpack.c.l.b16 %v13702
      %v13774 = vunpack.c.l.b16 %v13703
      %v13775 = vunpack.c.l.b16 %v13704
      %v13776 = vunpack.c.l.b16 %v13705
      %v13777 = vunpack.c.l.b16 %v13706
      %v13778 = vunpack.c.l.b16 %v13707
      %v13779 = vunpack.c.l.b16 %v13708
      %v13780 = vunpack.c.l.b16 %v13709
      %v13781 = vunpack.c.l.b16 %v13710
      %v13782 = vunpack.c.l.b16 %v13711
      %v13783 = vunpack.c.l.b16 %v13712
      %v13784 = vunpack.c.l.b16 %v13713
      %v13785 = vunpack.c.l.b16 %v13714
      %v13786 = vunpack.c.l.b16 %v13715
      %v13787 = vunpack.c.l.b16 %v13716
      %v13788 = vunpack.c.l.b16 %v13717
      %v13789 = vunpack.c.l.b16 %v13718
      %v13790 = vunpack.c.l.b16 %v13719
      %v13791 = vunpack.c.l.b16 %v13720
      %v13792 = vunpack.c.l.b16 %v13721
      %v13793 = vunpack.c.l.b16 %v13722
      %v13794 = vunpack.c.l.b16 %v13723
      %v13795 = vunpack.c.l.b16 %v13724
      %v13796 = vunpack.c.l.b16 %v13725
      %v13797 = vunpack.c.l.b16 %v13726
      %v13798 = vunpack.c.l.b16 %v13727
      %v13799 = vunpack.c.l.b16 %v13728
      %v13800 = vpack.c.b16 %v13769, %v13768
      %v13801 = vpack.c.b16 %v13771, %v13770
      %v13802 = vpack.c.b16 %v13773, %v13772
      %v13803 = vpack.c.b16 %v13775, %v13774
      %v13804 = vpack.c.b16 %v13777, %v13776
      %v13805 = vpack.c.b16 %v13779, %v13778
      %v13806 = vpack.c.b16 %v13781, %v13780
      %v13807 = vpack.c.b16 %v13783, %v13782
      %v13808 = vpack.c.b16 %v13785, %v13784
      %v13809 = vpack.c.b16 %v13787, %v13786
      %v13810 = vpack.c.b16 %v13789, %v13788
      %v13811 = vpack.c.b16 %v13791, %v13790
      %v13812 = vpack.c.b16 %v13793, %v13792
      %v13813 = vpack.c.b16 %v13795, %v13794
      %v13814 = vpack.c.b16 %v13797, %v13796
      %v13815 = vpack.c.b16 %v13799, %v13798
      %13832 = vmatprep.subr.bf16.mxu0 0
      %13833 = vmatpush1.bf16.msra.mxu0 %v13800
      %13834 = vmatprep.subr.bf16.mxu0 0
      %13835 = vmatpush1.bf16.msra.mxu0 %v13801
      %13836 = vmatprep.subr.bf16.mxu0 0
      %13837 = vmatpush1.bf16.msra.mxu0 %v13802
      %13838 = vmatprep.subr.bf16.mxu0 0
      %13839 = vmatpush1.bf16.msra.mxu0 %v13803
      %13840 = vmatprep.subr.bf16.mxu0 0
      %13841 = vmatpush1.bf16.msra.mxu0 %v13804
      %13842 = vmatprep.subr.bf16.mxu0 0
      %13843 = vmatpush1.bf16.msra.mxu0 %v13805
      %13844 = vmatprep.subr.bf16.mxu0 0
      %13845 = vmatpush1.bf16.msra.mxu0 %v13806
      %13846 = vmatprep.subr.bf16.mxu0 0
      %13847 = vmatpush1.bf16.msra.mxu0 %v13807
      %13848 = vmatprep.subr.bf16.mxu0 0
      %13849 = vmatpush1.bf16.msra.mxu0 %v13808
      %13850 = vmatprep.subr.bf16.mxu0 0
      %13851 = vmatpush1.bf16.msra.mxu0 %v13809
      %13852 = vmatprep.subr.bf16.mxu0 0
      %13853 = vmatpush1.bf16.msra.mxu0 %v13810
      %13854 = vmatprep.subr.bf16.mxu0 0
      %13855 = vmatpush1.bf16.msra.mxu0 %v13811
      %13856 = vmatprep.subr.bf16.mxu0 0
      %13857 = vmatpush1.bf16.msra.mxu0 %v13812
      %13858 = vmatprep.subr.bf16.mxu0 0
      %13859 = vmatpush1.bf16.msra.mxu0 %v13813
      %13860 = vmatprep.subr.bf16.mxu0 0
      %13861 = vmatpush1.bf16.msra.mxu0 %v13814
      %13862 = vmatprep.subr.bf16.mxu0 0
      %13863 = vmatpush1.bf16.msra.mxu0 %v13815
      %13864 = vmatprep.mubr.bf16.mxu0 %v13696
      %13865 = vmatmul.mubr.bf16.gmra.mrb[0].mxu0 %v13695
      %v13866 = vpop.f32.mrb[0].mxu0
      %v13867 = vadd.f32 %v13734, %v13866
      %v13868 = vpop.f32.mrb[0].mxu0
      %v13869 = vpop.f32.mrb[0].mxu0
      %v13870 = vpop.f32.mrb[0].mxu0
      %13871 = vdwg.mxu0
      %vm13872 = vcmask 48128
      %v13873 = vsel %vm13872, %v13867, -inf
      %13874 = vmax.xlane.f32.xlu0 %v13873
      %v13875 = vpop.xlane.xlu0 %13874
      %v13876 = vsub.f32 %v13867, %v13875
      %v13877 = vmul.f32 %v13876, 1.442695
      %v13878 = vpow.pop %v13877
      %v13879 = vsel %vm13872, %v13878, 0.0
      %13880 = vadd.xlane.f32.xlu0 %v13879
      %v13881 = vpop.xlane.xlu0 %13880
      %v13882 = vrcp.pop %v13881
      %v13883 = vmul.f32 %v13878, %v13882
      %13884 = vst.msk [vmem:[%s335] sm:$0xff] %vm13872, %v13883
      %p13885 = scmp.lt.s32.totalorder %s20, 1
      %s13886 = scalar_select %p13885, %s20, 1
      %s13887 = smul.addr %s13886, 8
      %s13888 = scalar_lea.vmem %s9, %s13887
      // Predicated region
      $region57: #{agent_forward.1} parent=55 // pred_check
        %p13889 = pneg %p232
      $region58: #{agent_forward.1} parent=55 // pred_check_branch
        %13891 = sbr.rel (%p13889) target = $region60
      $region59: #{agent_forward.1} parent=55 // pred_region
        _
      $region60: #{agent_forward.1} parent=55 // pred_fallthru
        _
    $region56: #{agent_forward.1} parent=5 // pred_fallthru
      _
    %p13892 = scmp.le.s32.totalorder 2, %s15
    // Predicated region
    $region61: #{agent_forward.1} parent=5 // pred_check
      %p13893 = pneg %p13892
    $region62: #{agent_forward.1} parent=5 // pred_check_branch
      %13895 = sbr.rel (%p13893) target = $region64
    $region63: #{agent_forward.1} parent=5 // pred_region
      %s13896 = ssub.s32 %s15, 2
      // Predicated region
      $region65: #{agent_forward.1} parent=63 // pred_check
        %p13897 = pneg %p238
      $region66: #{agent_forward.1} parent=63 // pred_check_branch
        %13899 = sbr.rel (%p13897) target = $region68
      $region67: #{agent_forward.1} parent=63 // pred_region
        %p13900 = scmp.lt.s32.totalorder %s21, 1
        %s13901 = scalar_select %p13900, %s21, 1
        %s13902 = smul.addr %s13901, 8
        %s13903 = scalar_lea.vmem %s9, %s13902
      $region68: #{agent_forward.1} parent=63 // pred_fallthru
        _
    $region64: #{agent_forward.1} parent=5 // pred_fallthru
      _
  $region6: #{agent_forward.1} parent=0 // loop_footer
    %s19 = sadd.s32 1, %s15
  $region7: #{agent_forward.1} parent=0 // loop_footer_branch
    %14 = sbr.rel target = $region3
  $region8: #{agent_forward.1} parent=0 // loop_exit
    _

</llo_original>
